<compile_context>
chip_gen: v7x
topology: tpu7x:2x2x1
jax: 0.10.0
libtpu: 0.0.40
codegen_flags: <defaults>
</compile_context>

<pallas_src>
import functools

import numpy as np
import jax
import jax.numpy as jnp
from jax import lax
from jax.experimental import pallas as pl
from jax.experimental.pallas import tpu as pltpu


CLN_EPS = 1e-5      # ConditionalLayerNorm eps
LN_EPS = 1e-12      # ESM1bLayerNorm eps (used by NormalizedResidualBlock)
_INV_SQRT2 = 0.7071067811865476
_VMEM_LIMIT = 64 * 1024 * 1024


# ---------------------------------------------------------------------------
# In-kernel helpers (traced inside the Pallas kernels)
# ---------------------------------------------------------------------------

def _layer_norm_rows(x, eps):
    mean = jnp.mean(x, axis=-1, keepdims=True)
    var = jnp.mean(jnp.square(x - mean), axis=-1, keepdims=True)
    return (x - mean) * lax.rsqrt(var + eps)


def _gelu(x):
    # exact (erf) gelu, as in esm.modules.gelu; multiply by 1/sqrt(2) constant
    return 0.5 * x * (1.0 + lax.erf(x * _INV_SQRT2))


def _bf16(x):
    return x.astype(jnp.bfloat16)


# ---------------------------------------------------------------------------
# Kernel A: conditional LN + self-attention (+bias_kv) + residual, then
#           conditional LN + FFN + residual.   One batch element per grid step.
# ---------------------------------------------------------------------------

def _main_kernel(x_ref, c_ref,
                 cln1_w_ref, cln1_b_ref, cln1_wg_ref, cln1_wb_ref,
                 wq_ref, bq_ref, wk_ref, bk_ref, wv_ref, bv_ref,
                 bias_k_ref, bias_v_ref, wo_ref, bo_ref,
                 cln2_w_ref, cln2_b_ref, cln2_wg_ref, cln2_wb_ref,
                 w1_ref, b1_ref, w2_ref, b2_ref,
                 y_ref, attn_ref, *, num_heads):
    T, E = x_ref.shape[1], x_ref.shape[2]
    xb = x_ref[0].astype(jnp.float32)                       # (T, E)
    c_b = _bf16(c_ref[0])                                    # (1, E)

    # ---- conditional LayerNorm #1 (gamma/beta from c) ----
    gamma1 = cln1_w_ref[...] + jnp.dot(c_b, cln1_wg_ref[...],
                                       preferred_element_type=jnp.float32)
    beta1 = cln1_b_ref[...] + jnp.dot(c_b, cln1_wb_ref[...],
                                      preferred_element_type=jnp.float32)
    xn = _layer_norm_rows(xb, CLN_EPS) * gamma1 + beta1
    xn_b = _bf16(xn)

    # ---- multi-head self-attention with add_bias_kv (bias handled as extra column) ----
    out_acc = jnp.zeros((T, E), jnp.float32)
    attn_main = jnp.zeros((T, T), jnp.float32)
    attn_bias = jnp.zeros((T, 1), jnp.float32)
    for h in range(num_heads):                               # unrolled; per-head weights, no masks
        q_h = jnp.dot(xn_b, wq_ref[h], preferred_element_type=jnp.float32) + bq_ref[h]
        k_h = jnp.dot(xn_b, wk_ref[h], preferred_element_type=jnp.float32) + bk_ref[h]
        v_h = jnp.dot(xn_b, wv_ref[h], preferred_element_type=jnp.float32) + bv_ref[h]
        s_main = lax.dot_general(_bf16(q_h), _bf16(k_h), (((1,), (1,)), ((), ())),
                                 preferred_element_type=jnp.float32)        # (T, T)
        s_bias = lax.dot_general(q_h, bias_k_ref[h], (((1,), (1,)), ((), ())),
                                 preferred_element_type=jnp.float32)        # (T, 1)
        m = jnp.maximum(jnp.max(s_main, axis=-1, keepdims=True), s_bias)
        e_main = jnp.exp(s_main - m)
        e_bias = jnp.exp(s_bias - m)
        inv = pl.reciprocal(jnp.sum(e_main, axis=-1, keepdims=True) + e_bias, approx=True)
        p_main = e_main * inv
        p_bias = e_bias * inv
        attn_main = attn_main + p_main
        attn_bias = attn_bias + p_bias
        ctx_h = (jnp.dot(_bf16(p_main), _bf16(v_h), preferred_element_type=jnp.float32)
                 + p_bias * bias_v_ref[h])
        out_acc = out_acc + jnp.dot(_bf16(ctx_h), wo_ref[h],
                                    preferred_element_type=jnp.float32)

    x1 = xb + out_acc + bo_ref[...]                          # residual add
    inv_h = 1.0 / num_heads                                  # head-averaged attention weights
    attn_ref[0, :, :T] = attn_main * inv_h
    attn_ref[0, :, T:T + 1] = attn_bias * inv_h

    # ---- conditional LayerNorm #2 + FFN + residual ----
    gamma2 = cln2_w_ref[...] + jnp.dot(c_b, cln2_wg_ref[...],
                                       preferred_element_type=jnp.float32)
    beta2 = cln2_b_ref[...] + jnp.dot(c_b, cln2_wb_ref[...],
                                      preferred_element_type=jnp.float32)
    xn2 = _layer_norm_rows(x1, CLN_EPS) * gamma2 + beta2
    h1 = _gelu(jnp.dot(_bf16(xn2), w1_ref[...],
                       preferred_element_type=jnp.float32) + b1_ref[...])
    x2 = x1 + jnp.dot(_bf16(h1), w2_ref[...],
                      preferred_element_type=jnp.float32) + b2_ref[...]
    y_ref[0] = x2.astype(y_ref.dtype)


# ---------------------------------------------------------------------------
# Kernel B: structural adapter.  LN + rotary cross-attention over encoder feats + residual,
#           LN + small FFN + residual, plus the outer adapter residual.
# ---------------------------------------------------------------------------

def _adapter_kernel(x_ref, enc_ref,
                    ln1_w_ref, ln1_b_ref,
                    wq_ref, bq_ref, wk_ref, bk_ref, wv_ref, bv_ref,
                    bias_k_ref, bias_v_ref, wo_ref, bo_ref, rot_ref,
                    cos_q_ref, sin_q_ref, cos_k_ref, sin_k_ref,
                    ln2_w_ref, ln2_b_ref,
                    w1_ref, b1_ref, w2_ref, b2_ref,
                    y_ref, *, num_heads):
    T, E = x_ref.shape[1], x_ref.shape[2]
    xb = x_ref[0].astype(jnp.float32)                        # (T, E)
    enc = enc_ref[0].astype(jnp.float32)                     # (S_enc, E_enc)

    # --- structural_adapter_attn: x + MHA(rotary, kdim=vdim=E_enc)(LN(x)) ---
    xn = _layer_norm_rows(xb, LN_EPS) * ln1_w_ref[...] + ln1_b_ref[...]
    xn_b = _bf16(xn)
    enc_b = _bf16(enc)
    rot = rot_ref[...]                                       # (dh, dh) rotate-half matrix
    cos_q, sin_q = cos_q_ref[...], sin_q_ref[...]            # (T, dh)
    cos_k, sin_k = cos_k_ref[...], sin_k_ref[...]            # (S_enc, dh)

    out_acc = jnp.zeros((T, E), jnp.float32)
    for h in range(num_heads):
        q_h = jnp.dot(xn_b, wq_ref[h], preferred_element_type=jnp.float32) + bq_ref[h]
        q_h = q_h * cos_q + jnp.dot(q_h, rot, preferred_element_type=jnp.float32) * sin_q
        k_h = jnp.dot(enc_b, wk_ref[h], preferred_element_type=jnp.float32) + bk_ref[h]
        k_h = k_h * cos_k + jnp.dot(k_h, rot, preferred_element_type=jnp.float32) * sin_k
        v_h = jnp.dot(enc_b, wv_ref[h], preferred_element_type=jnp.float32) + bv_ref[h]
        s_main = lax.dot_general(_bf16(q_h), _bf16(k_h), (((1,), (1,)), ((), ())),
                                 preferred_element_type=jnp.float32)        # (T, S_enc)
        # bias_k_ref already carries the rotary rotation for position S_enc (done host-side)
        s_bias = lax.dot_general(q_h, bias_k_ref[h], (((1,), (1,)), ((), ())),
                                 preferred_element_type=jnp.float32)        # (T, 1)
        m = jnp.maximum(jnp.max(s_main, axis=-1, keepdims=True), s_bias)
        e_main = jnp.exp(s_main - m)
        e_bias = jnp.exp(s_bias - m)
        inv = pl.reciprocal(jnp.sum(e_main, axis=-1, keepdims=True) + e_bias, approx=True)
        ctx_h = (jnp.dot(_bf16(e_main * inv), _bf16(v_h), preferred_element_type=jnp.float32)
                 + (e_bias * inv) * bias_v_ref[h])
        out_acc = out_acc + jnp.dot(_bf16(ctx_h), wo_ref[h],
                                    preferred_element_type=jnp.float32)
    a1 = xb + out_acc + bo_ref[...]

    # --- structural_adapter_ffn: a1 + FFN(LN(a1)) ---
    hn = _layer_norm_rows(a1, LN_EPS) * ln2_w_ref[...] + ln2_b_ref[...]
    hf = _gelu(jnp.dot(_bf16(hn), w1_ref[...],
                       preferred_element_type=jnp.float32) + b1_ref[...])
    a2 = a1 + jnp.dot(_bf16(hf), w2_ref[...],
                      preferred_element_type=jnp.float32) + b2_ref[...]

    # outer residual of the transformer layer: x + forward_adapter(x)
    y_ref[0] = (xb + a2).astype(y_ref.dtype)


# ---------------------------------------------------------------------------
# pallas_call wrappers: grid over batch, weights resident via constant index_maps
# ---------------------------------------------------------------------------

def _resident_spec(arr):
    nd = arr.ndim
    return pl.BlockSpec(arr.shape, lambda b, _nd=nd: (0,) * _nd)


def _main_block(x_bte, c3, kp, num_heads):
    B, T, E = x_bte.shape
    cln1, cln2, sa = kp["self_attn_layer_norm"], kp["final_layer_norm"], kp["self_attn"]
    weights = (
        cln1["weight"], cln1["bias"], cln1["w_gamma"], cln1["w_beta"],
        sa["wq"], sa["bq"], sa["wk"], sa["bk"], sa["wv"], sa["bv"],
        sa["bias_k"], sa["bias_v"], sa["wo"], sa["bo"],
        cln2["weight"], cln2["bias"], cln2["w_gamma"], cln2["w_beta"],
        kp["fc1"]["w"], kp["fc1"]["b"], kp["fc2"]["w"], kp["fc2"]["b"],
    )
    in_specs = ([pl.BlockSpec((1, T, E), lambda b: (b, 0, 0)),
                 pl.BlockSpec((1, 1, E), lambda b: (b, 0, 0))]
                + [_resident_spec(w) for w in weights])
    return pl.pallas_call(
        functools.partial(_main_kernel, num_heads=num_heads),
        grid=(B,),
        in_specs=in_specs,
        out_specs=(pl.BlockSpec((1, T, E), lambda b: (b, 0, 0)),
                   pl.BlockSpec((1, T, T + 1), lambda b: (b, 0, 0))),
        out_shape=(jax.ShapeDtypeStruct((B, T, E), jnp.float32),
                   jax.ShapeDtypeStruct((B, T, T + 1), jnp.float32)),
        compiler_params=pltpu.CompilerParams(
            dimension_semantics=("parallel",),
            vmem_limit_bytes=_VMEM_LIMIT),
    )(x_bte, c3, *weights)


def _adapter_block(x_bte, enc, kp, bias_k_rot, cos_q, sin_q, cos_k, sin_k, num_heads):
    B, T, E = x_bte.shape
    S, E_enc = enc.shape[1], enc.shape[2]
    aa = kp["adapter_attn"]
    weights = (
        kp["adapter_attn_ln"]["weight"], kp["adapter_attn_ln"]["bias"],
        aa["wq"], aa["bq"], aa["wk"], aa["bk"], aa["wv"], aa["bv"],
        bias_k_rot, aa["bias_v"], aa["wo"], aa["bo"], aa["rot"],
        cos_q, sin_q, cos_k, sin_k,
        kp["adapter_ffn_ln"]["weight"], kp["adapter_ffn_ln"]["bias"],
        kp["adapter_fc1"]["w"], kp["adapter_fc1"]["b"],
        kp["adapter_fc2"]["w"], kp["adapter_fc2"]["b"],
    )
    in_specs = ([pl.BlockSpec((1, T, E), lambda b: (b, 0, 0)),
                 pl.BlockSpec((1, S, E_enc), lambda b: (b, 0, 0))]
                + [_resident_spec(w) for w in weights])
    return pl.pallas_call(
        functools.partial(_adapter_kernel, num_heads=num_heads),
        grid=(B,),
        in_specs=in_specs,
        out_specs=pl.BlockSpec((1, T, E), lambda b: (b, 0, 0)),
        out_shape=jax.ShapeDtypeStruct((B, T, E), jnp.float32),
        compiler_params=pltpu.CompilerParams(
            dimension_semantics=("parallel",),
            vmem_limit_bytes=_VMEM_LIMIT),
    )(x_bte, enc, *weights)


# ---------------------------------------------------------------------------
# Rotary tables / rotate-half matrix / pre-rotated bias_k (host / wrapper side)
# ---------------------------------------------------------------------------

def _rotary_tables(n_pos, dh):
    inv_freq = 1.0 / (10000.0 ** (np.arange(0, dh, 2, dtype=np.float32) / dh))
    ang = np.arange(n_pos, dtype=np.float32)[:, None] * inv_freq[None, :]
    cos = np.concatenate([np.cos(ang), np.cos(ang)], axis=-1).astype(np.float32)
    sin = np.concatenate([np.sin(ang), np.sin(ang)], axis=-1).astype(np.float32)
    return jnp.asarray(cos), jnp.asarray(sin)


def _rotate_half_matrix(dh):
    """(dh, dh) matrix R with q @ R == rotate_half(q) per head."""
    half = dh // 2
    r = np.zeros((dh, dh), np.float32)
    for i in range(half):
        r[i + half, i] = -1.0
        r[i, i + half] = 1.0
    return jnp.asarray(r)


def _rotate_bias_k(bias_k, pos, dh):
    """Apply rotary embedding at position `pos` to the per-head bias_k rows (H, 1, dh)."""
    half = dh // 2
    inv_freq = 1.0 / (10000.0 ** (np.arange(0, dh, 2, dtype=np.float32) / dh))
    ang = float(pos) * inv_freq
    cos = jnp.asarray(np.concatenate([np.cos(ang), np.cos(ang)]).astype(np.float32))
    sin = jnp.asarray(np.concatenate([np.sin(ang), np.sin(ang)]).astype(np.float32))
    b1, b2 = bias_k[..., :half], bias_k[..., half:]
    rot = jnp.concatenate([-b2, b1], axis=-1)
    return bias_k * cos + rot * sin


# ---------------------------------------------------------------------------
# Layer forward (2 fused pallas_calls)
# ---------------------------------------------------------------------------

def transformer_layer_forward(x, c, encoder_out, kernel_params, num_heads):
    """x: (T, B, E); c: (B, E); encoder_out['aligned_feats']: (B, S_enc, E_enc)."""
    T, B, E = x.shape
    enc = encoder_out["aligned_feats"]                     # batch-major already, used directly
    S = enc.shape[1]
    dh = E // num_heads

    cos_q, sin_q = _rotary_tables(T, dh)
    cos_k, sin_k = _rotary_tables(S, dh)
    # appended bias-kv row sits at position S (after the encoder keys), rotated here once
    bias_k_rot = _rotate_bias_k(kernel_params["adapter_attn"]["bias_k"], S, dh)

    xb = jnp.transpose(x, (1, 0, 2))                       # (B, T, E) batch-major tiles
    c3 = c[:, None, :]                                     # (B, 1, E) for clean (1,1,E) blocks
    x2, attn = _main_block(xb, c3, kernel_params, num_heads)
    y = _adapter_block(x2, enc, kernel_params, bias_k_rot,
                       cos_q, sin_q, cos_k, sin_k, num_heads)
    return jnp.transpose(y, (1, 0, 2)), attn


# ---------------------------------------------------------------------------
# Parameters: torch-layout init + one-time conversion to the kernel layout
# ---------------------------------------------------------------------------

def init_params(key, E, FFN, H, ENC_E):
    keys = iter(jax.random.split(key, 64))

    def nrm(shape, scale=0.05):
        return scale * jax.random.normal(next(keys), shape, dtype=jnp.float32)

    def lin_p(din, dout):
        return {"w": nrm((dout, din)), "b": nrm((dout,))}

    def mha_p(kdim, vdim):
        return {"q": lin_p(E, E), "k": lin_p(kdim, E), "v": lin_p(vdim, E),
                "out": lin_p(E, E), "bias_k": nrm((E,)), "bias_v": nrm((E,))}

    def cln_p():
        return {"weight": jnp.ones((E,), jnp.float32),
                "bias": jnp.zeros((E,), jnp.float32),
                "w_gamma": nrm((E, E)), "w_beta": nrm((E, E))}

    def ln_p():
        return {"weight": jnp.ones((E,), jnp.float32) + nrm((E,)),
                "bias": nrm((E,))}

    return {
        "self_attn": mha_p(E, E),
        "self_attn_layer_norm": cln_p(),
        "final_layer_norm": cln_p(),
        "fc1": lin_p(E, FFN),
        "fc2": lin_p(FFN, E),
        "adapter_attn_ln": ln_p(),
        "adapter_attn": mha_p(ENC_E, ENC_E),
        "adapter_ffn_ln": ln_p(),
        "adapter_fc1": lin_p(E, E // 2),
        "adapter_fc2": lin_p(E // 2, E),
    }


def prepare_params(params, embed_dim, num_heads):
    """One-time conversion: matmul weights head-split, pre-transposed and cast to bf16
    (MXU-native), biases kept f32, q projection pre-scaled by head_dim**-0.5, per-head
    rotate-half matrix precomputed."""
    dh = embed_dim // num_heads
    scale = dh ** -0.5
    bf16 = jnp.bfloat16

    def heads_in(w):                     # torch (E_out, D_in) -> (H, D_in, dh)
        d_in = w.shape[1]
        return jnp.transpose(w.reshape(num_heads, dh, d_in), (0, 2, 1))

    def heads_bias(b):                   # (E,) -> (H, 1, dh)
        return b.reshape(num_heads, 1, dh)

    def mha(p):
        return {
            "wq": (heads_in(p["q"]["w"]) * scale).astype(bf16),
            "bq": heads_bias(p["q"]["b"]) * scale,
            "wk": heads_in(p["k"]["w"]).astype(bf16),
            "bk": heads_bias(p["k"]["b"]),
            "wv": heads_in(p["v"]["w"]).astype(bf16),
            "bv": heads_bias(p["v"]["b"]),
            "bias_k": heads_bias(p["bias_k"]),
            "bias_v": heads_bias(p["bias_v"]),
            # out proj: per-head (dh, E) slices of W^T
            "wo": jnp.transpose(p["out"]["w"].reshape(embed_dim, num_heads, dh),
                                (1, 2, 0)).astype(bf16),
            "bo": p["out"]["b"].reshape(1, -1),
        }

    def lin(p):
        return {"w": jnp.transpose(p["w"]).astype(bf16), "b": p["b"].reshape(1, -1)}

    def cln(p):
        return {"weight": p["weight"].reshape(1, -1), "bias": p["bias"].reshape(1, -1),
                "w_gamma": jnp.transpose(p["w_gamma"]).astype(bf16),
                "w_beta": jnp.transpose(p["w_beta"]).astype(bf16)}

    def ln(p):
        return {"weight": p["weight"].reshape(1, -1), "bias": p["bias"].reshape(1, -1)}

    kp = {
        "self_attn": mha(params["self_attn"]),
        "self_attn_layer_norm": cln(params["self_attn_layer_norm"]),
        "final_layer_norm": cln(params["final_layer_norm"]),
        "fc1": lin(params["fc1"]),
        "fc2": lin(params["fc2"]),
        "adapter_attn_ln": ln(params["adapter_attn_ln"]),
        "adapter_attn": mha(params["adapter_attn"]),
        "adapter_ffn_ln": ln(params["adapter_ffn_ln"]),
        "adapter_fc1": lin(params["adapter_fc1"]),
        "adapter_fc2": lin(params["adapter_fc2"]),
    }
    kp["adapter_attn"]["rot"] = _rotate_half_matrix(dh)
    return kp


# ---------------------------------------------------------------------------
# Plain-JAX mirror of the torch module (for a numerical self-check)
# ---------------------------------------------------------------------------

def reference_forward(x, c, encoder_out, params, num_heads):
    def linear(h, p):
        return h @ p["w"].T + p["b"]

    def cln(h, p):
        gamma = p["weight"][None] + c @ p["w_gamma"].T
        beta = p["bias"][None] + c @ p["w_beta"].T
        mean = h.mean(-1, keepdims=True)
        var = ((h - mean) ** 2).mean(-1, keepdims=True)
        return (h - mean) / jnp.sqrt(var + CLN_EPS) * gamma[None] + beta[None]

    def ln(h, p):
        mean = h.mean(-1, keepdims=True)
        var = ((h - mean) ** 2).mean(-1, keepdims=True)
        return (h - mean) / jnp.sqrt(var + LN_EPS) * p["weight"] + p["bias"]

    def gelu(h):
        return 0.5 * h * (1.0 + jax.scipy.special.erf(h / jnp.sqrt(2.0)))

    def rot_half(t):
        t1, t2 = jnp.split(t, 2, axis=-1)
        return jnp.concatenate([-t2, t1], axis=-1)

    def apply_rot(t):                                   # t: (B*H, L, Dh)
        L, dh = t.shape[-2], t.shape[-1]
        inv_freq = 1.0 / (10000.0 ** (jnp.arange(0, dh, 2, dtype=jnp.float32) / dh))
        freqs = jnp.outer(jnp.arange(L, dtype=jnp.float32), inv_freq)
        emb = jnp.concatenate([freqs, freqs], axis=-1)
        return t * jnp.cos(emb)[None] + rot_half(t) * jnp.sin(emb)[None]

    def mha(xq, xk, xv, p, rotary):
        T_, B_, E_ = xq.shape
        H_ = num_heads
        dh = E_ // H_
        q = linear(xq, p["q"]) * dh ** -0.5
        k = linear(xk, p["k"])
        v = linear(xv, p["v"])
        k = jnp.concatenate([k, jnp.broadcast_to(p["bias_k"], (1, B_, E_))], axis=0)
        v = jnp.concatenate([v, jnp.broadcast_to(p["bias_v"], (1, B_, E_))], axis=0)

        def heads(t):
            L = t.shape[0]
            return t.reshape(L, B_, H_, dh).transpose(1, 2, 0, 3).reshape(B_ * H_, L, dh)

        qh, kh, vh = heads(q), heads(k), heads(v)
        if rotary:
            qh, kh = apply_rot(qh), apply_rot(kh)
        s = jnp.einsum("btd,bsd->bts", qh, kh)
        pw = jax.nn.softmax(s, axis=-1)
        ctx = jnp.einsum("bts,bsd->btd", pw, vh)
        ctx = ctx.reshape(B_, H_, T_, dh).transpose(2, 0, 1, 3).reshape(T_, B_, E_)
        return linear(ctx, p["out"]), pw.reshape(B_, H_, T_, -1).mean(axis=1)

    residual = x
    h = cln(x, params["self_attn_layer_norm"])
    h, attn = mha(h, h, h, params["self_attn"], rotary=False)
    x1 = residual + h

    residual = x1
    h = cln(x1, params["final_layer_norm"])
    h = gelu(linear(h, params["fc1"]))
    h = linear(h, params["fc2"])
    x2 = residual + h

    enc = jnp.transpose(encoder_out["aligned_feats"], (1, 0, 2))
    h = ln(x2, params["adapter_attn_ln"])
    h, _ = mha(h, enc, enc, params["adapter_attn"], rotary=True)
    a1 = x2 + h
    h = ln(a1, params["adapter_ffn_ln"])
    h = gelu(linear(h, params["adapter_fc1"]))
    h = linear(h, params["adapter_fc2"])
    a2 = a1 + h
    return x2 + a2, attn


if __name__ == "__main__":
    E, FFN, H, ENC_E = 32, 64, 4, 16        # embed_dim, ffn_embed_dim, heads, encoder_embed_dim
    T, B, S_ENC = 8, 2, 10                  # seq len, batch, encoder seq len

    key = jax.random.PRNGKey(0)
    kx, kc, ke, kparam = jax.random.split(key, 4)
    x = jax.random.normal(kx, (T, B, E), dtype=jnp.float32)
    c = jax.random.normal(kc, (B, E), dtype=jnp.float32)
    encoder_out = {"aligned_feats": jax.random.normal(ke, (B, S_ENC, ENC_E), dtype=jnp.float32)}

    params = init_params(kparam, E, FFN, H, ENC_E)          # torch-layout params
    kernel_params = prepare_params(params, E, H)            # kernel layout (one-time, bf16 weights)

    fwd = jax.jit(functools.partial(transformer_layer_forward, num_heads=H))
    y, attn = fwd(x, c, encoder_out, kernel_params)
    jax.block_until_ready((y, attn))

    assert y.shape == (T, B, E)
    assert attn.shape == (B, T, T + 1)                      # +1 source position from add_bias_kv

    # numerical self-check against a plain-JAX f32 mirror of the torch module
    # (bf16 MXU operands add ~1e-3 abs error at these scales -> 2e-2 tolerance)
    y_ref, attn_ref = reference_forward(x, c, encoder_out, params, H)
    assert bool(jnp.allclose(y, y_ref, atol=2e-2, rtol=2e-2)), \
        float(jnp.max(jnp.abs(y - y_ref)))
    assert bool(jnp.allclose(attn, attn_ref, atol=1e-2, rtol=1e-2)), \
        float(jnp.max(jnp.abs(attn - attn_ref)))

    print("KERNEL_OK")
</pallas_src>

<mosaic_0001>
module attributes {stable_mosaic.version = 11 : i64} {
  func.func @_main_kernel(%arg0: i32, %arg1: memref<1x8x32xf32, #tpu.memory_space<vmem>>, %arg2: memref<1x1x32xf32, #tpu.memory_space<vmem>>, %arg3: memref<1x32xf32, #tpu.memory_space<vmem>>, %arg4: memref<1x32xf32, #tpu.memory_space<vmem>>, %arg5: memref<32x32xbf16, #tpu.memory_space<vmem>>, %arg6: memref<32x32xbf16, #tpu.memory_space<vmem>>, %arg7: memref<4x32x8xbf16, #tpu.memory_space<vmem>>, %arg8: memref<4x1x8xf32, #tpu.memory_space<vmem>>, %arg9: memref<4x32x8xbf16, #tpu.memory_space<vmem>>, %arg10: memref<4x1x8xf32, #tpu.memory_space<vmem>>, %arg11: memref<4x32x8xbf16, #tpu.memory_space<vmem>>, %arg12: memref<4x1x8xf32, #tpu.memory_space<vmem>>, %arg13: memref<4x1x8xf32, #tpu.memory_space<vmem>>, %arg14: memref<4x1x8xf32, #tpu.memory_space<vmem>>, %arg15: memref<4x8x32xbf16, #tpu.memory_space<vmem>>, %arg16: memref<1x32xf32, #tpu.memory_space<vmem>>, %arg17: memref<1x32xf32, #tpu.memory_space<vmem>>, %arg18: memref<1x32xf32, #tpu.memory_space<vmem>>, %arg19: memref<32x32xbf16, #tpu.memory_space<vmem>>, %arg20: memref<32x32xbf16, #tpu.memory_space<vmem>>, %arg21: memref<32x64xbf16, #tpu.memory_space<vmem>>, %arg22: memref<1x64xf32, #tpu.memory_space<vmem>>, %arg23: memref<64x32xbf16, #tpu.memory_space<vmem>>, %arg24: memref<1x32xf32, #tpu.memory_space<vmem>>, %arg25: memref<1x8x32xf32, #tpu.memory_space<vmem>>, %arg26: memref<1x8x9xf32, #tpu.memory_space<vmem>>) attributes {dimension_semantics = [#tpu.dimension_semantics<parallel>], iteration_bounds = array<i64: 2>, scalar_prefetch = 0 : i64, scratch_operands = 0 : i64, tpu.core_type = #tpu.core_type<tc>, window_params = [{transform_indices = @transform_0, window_bounds = array<i64: 1, 8, 32>}, {transform_indices = @transform_1, window_bounds = array<i64: 1, 1, 32>}, {pipeline_mode = #tpu.pipeline_mode<synchronous>, transform_indices = @transform_2, window_bounds = array<i64: 1, 32>}, {pipeline_mode = #tpu.pipeline_mode<synchronous>, transform_indices = @transform_3, window_bounds = array<i64: 1, 32>}, {pipeline_mode = #tpu.pipeline_mode<synchronous>, transform_indices = @transform_4, window_bounds = array<i64: 32, 32>}, {pipeline_mode = #tpu.pipeline_mode<synchronous>, transform_indices = @transform_5, window_bounds = array<i64: 32, 32>}, {pipeline_mode = #tpu.pipeline_mode<synchronous>, transform_indices = @transform_6, window_bounds = array<i64: 4, 32, 8>}, {pipeline_mode = #tpu.pipeline_mode<synchronous>, transform_indices = @transform_7, window_bounds = array<i64: 4, 1, 8>}, {pipeline_mode = #tpu.pipeline_mode<synchronous>, transform_indices = @transform_8, window_bounds = array<i64: 4, 32, 8>}, {pipeline_mode = #tpu.pipeline_mode<synchronous>, transform_indices = @transform_9, window_bounds = array<i64: 4, 1, 8>}, {pipeline_mode = #tpu.pipeline_mode<synchronous>, transform_indices = @transform_10, window_bounds = array<i64: 4, 32, 8>}, {pipeline_mode = #tpu.pipeline_mode<synchronous>, transform_indices = @transform_11, window_bounds = array<i64: 4, 1, 8>}, {pipeline_mode = #tpu.pipeline_mode<synchronous>, transform_indices = @transform_12, window_bounds = array<i64: 4, 1, 8>}, {pipeline_mode = #tpu.pipeline_mode<synchronous>, transform_indices = @transform_13, window_bounds = array<i64: 4, 1, 8>}, {pipeline_mode = #tpu.pipeline_mode<synchronous>, transform_indices = @transform_14, window_bounds = array<i64: 4, 8, 32>}, {pipeline_mode = #tpu.pipeline_mode<synchronous>, transform_indices = @transform_15, window_bounds = array<i64: 1, 32>}, {pipeline_mode = #tpu.pipeline_mode<synchronous>, transform_indices = @transform_16, window_bounds = array<i64: 1, 32>}, {pipeline_mode = #tpu.pipeline_mode<synchronous>, transform_indices = @transform_17, window_bounds = array<i64: 1, 32>}, {pipeline_mode = #tpu.pipeline_mode<synchronous>, transform_indices = @transform_18, window_bounds = array<i64: 32, 32>}, {pipeline_mode = #tpu.pipeline_mode<synchronous>, transform_indices = @transform_19, window_bounds = array<i64: 32, 32>}, {pipeline_mode = #tpu.pipeline_mode<synchronous>, transform_indices = @transform_20, window_bounds = array<i64: 32, 64>}, {pipeline_mode = #tpu.pipeline_mode<synchronous>, transform_indices = @transform_21, window_bounds = array<i64: 1, 64>}, {pipeline_mode = #tpu.pipeline_mode<synchronous>, transform_indices = @transform_22, window_bounds = array<i64: 64, 32>}, {pipeline_mode = #tpu.pipeline_mode<synchronous>, transform_indices = @transform_23, window_bounds = array<i64: 1, 32>}, {transform_indices = @transform_24, window_bounds = array<i64: 1, 8, 32>}, {transform_indices = @transform_25, window_bounds = array<i64: 1, 8, 9>}]} {
    %c0 = arith.constant 0 : index
    %c0_0 = arith.constant 0 : index
    %c0_1 = arith.constant 0 : index
    %0 = vector.load %arg1[%c0, %c0_0, %c0_1] : memref<1x8x32xf32, #tpu.memory_space<vmem>>, vector<1x8x32xf32>
    %1 = vector.shape_cast %0 : vector<1x8x32xf32> to vector<8x32xf32>
    %c0_2 = arith.constant 0 : index
    %c0_3 = arith.constant 0 : index
    %c0_4 = arith.constant 0 : index
    %2 = vector.load %arg2[%c0_2, %c0_3, %c0_4] : memref<1x1x32xf32, #tpu.memory_space<vmem>>, vector<1x1x32xf32>
    %3 = vector.shape_cast %2 : vector<1x1x32xf32> to vector<1x32xf32>
    %4 = arith.truncf %3 : vector<1x32xf32> to vector<1x32xbf16>
    %c0_5 = arith.constant 0 : index
    %c0_6 = arith.constant 0 : index
    %5 = vector.load %arg3[%c0_5, %c0_6] : memref<1x32xf32, #tpu.memory_space<vmem>>, vector<1x32xf32>
    %c0_7 = arith.constant 0 : index
    %c0_8 = arith.constant 0 : index
    %6 = vector.load %arg5[%c0_7, %c0_8] : memref<32x32xbf16, #tpu.memory_space<vmem>>, vector<32x32xbf16>
    %cst = arith.constant dense<0.000000e+00> : vector<1x32xf32>
    %7 = tpu.matmul %4, %6, %cst {dimension_numbers = #tpu.dot_dimension_numbers<[1], [0], [0], [1], [0, 0, 1, 1], [], []>} : vector<1x32xbf16>, vector<32x32xbf16>, vector<1x32xf32> -> vector<1x32xf32>
    %8 = arith.addf %5, %7 : vector<1x32xf32>
    %c0_9 = arith.constant 0 : index
    %c0_10 = arith.constant 0 : index
    %9 = vector.load %arg4[%c0_9, %c0_10] : memref<1x32xf32, #tpu.memory_space<vmem>>, vector<1x32xf32>
    %c0_11 = arith.constant 0 : index
    %c0_12 = arith.constant 0 : index
    %10 = vector.load %arg6[%c0_11, %c0_12] : memref<32x32xbf16, #tpu.memory_space<vmem>>, vector<32x32xbf16>
    %cst_13 = arith.constant dense<0.000000e+00> : vector<1x32xf32>
    %11 = tpu.matmul %4, %10, %cst_13 {dimension_numbers = #tpu.dot_dimension_numbers<[1], [0], [0], [1], [0, 0, 1, 1], [], []>} : vector<1x32xbf16>, vector<32x32xbf16>, vector<1x32xf32> -> vector<1x32xf32>
    %12 = arith.addf %9, %11 : vector<1x32xf32>
    %cst_14 = arith.constant dense<0.000000e+00> : vector<8xf32>
    %13 = vector.multi_reduction <add>, %1, %cst_14 [1] : vector<8x32xf32> to vector<8xf32>
    %14 = vector.shape_cast %13 : vector<8xf32> to vector<8x1xf32>
    %cst_15 = arith.constant 3.200000e+01 : f32
    %15 = vector.broadcast %cst_15 : f32 to vector<8x1xf32>
    %16 = arith.divf %14, %15 : vector<8x1xf32>
    %17 = vector.broadcast %16 : vector<8x1xf32> to vector<8x32xf32>
    %18 = arith.subf %1, %17 : vector<8x32xf32>
    %19 = arith.mulf %18, %18 : vector<8x32xf32>
    %cst_16 = arith.constant dense<0.000000e+00> : vector<8xf32>
    %20 = vector.multi_reduction <add>, %19, %cst_16 [1] : vector<8x32xf32> to vector<8xf32>
    %21 = vector.shape_cast %20 : vector<8xf32> to vector<8x1xf32>
    %cst_17 = arith.constant 3.200000e+01 : f32
    %22 = vector.broadcast %cst_17 : f32 to vector<8x1xf32>
    %23 = arith.divf %21, %22 : vector<8x1xf32>
    %24 = vector.broadcast %16 : vector<8x1xf32> to vector<8x32xf32>
    %25 = arith.subf %1, %24 : vector<8x32xf32>
    %cst_18 = arith.constant 9.99999974E-6 : f32
    %26 = vector.broadcast %cst_18 : f32 to vector<8x1xf32>
    %27 = arith.addf %23, %26 : vector<8x1xf32>
    %28 = math.rsqrt %27 : vector<8x1xf32>
    %29 = vector.broadcast %28 : vector<8x1xf32> to vector<8x32xf32>
    %30 = arith.mulf %25, %29 : vector<8x32xf32>
    %31 = vector.broadcast %8 : vector<1x32xf32> to vector<8x32xf32>
    %32 = arith.mulf %30, %31 : vector<8x32xf32>
    %33 = vector.broadcast %12 : vector<1x32xf32> to vector<8x32xf32>
    %34 = arith.addf %32, %33 : vector<8x32xf32>
    %35 = arith.truncf %34 : vector<8x32xf32> to vector<8x32xbf16>
    %cst_19 = arith.constant 0.000000e+00 : f32
    %36 = vector.broadcast %cst_19 : f32 to vector<8x32xf32>
    %cst_20 = arith.constant 0.000000e+00 : f32
    %37 = vector.broadcast %cst_20 : f32 to vector<8x8xf32>
    %cst_21 = arith.constant 0.000000e+00 : f32
    %38 = vector.broadcast %cst_21 : f32 to vector<8x1xf32>
    %c0_22 = arith.constant 0 : index
    %c0_23 = arith.constant 0 : index
    %c0_24 = arith.constant 0 : index
    %39 = vector.load %arg7[%c0_22, %c0_23, %c0_24] : memref<4x32x8xbf16, #tpu.memory_space<vmem>>, vector<1x32x8xbf16>
    %40 = vector.shape_cast %39 : vector<1x32x8xbf16> to vector<32x8xbf16>
    %cst_25 = arith.constant dense<0.000000e+00> : vector<8x8xf32>
    %41 = tpu.matmul %35, %40, %cst_25 {dimension_numbers = #tpu.dot_dimension_numbers<[1], [0], [0], [1], [0, 0, 1, 1], [], []>} : vector<8x32xbf16>, vector<32x8xbf16>, vector<8x8xf32> -> vector<8x8xf32>
    %c0_26 = arith.constant 0 : index
    %c0_27 = arith.constant 0 : index
    %c0_28 = arith.constant 0 : index
    %42 = vector.load %arg8[%c0_26, %c0_27, %c0_28] : memref<4x1x8xf32, #tpu.memory_space<vmem>>, vector<1x1x8xf32>
    %43 = vector.shape_cast %42 : vector<1x1x8xf32> to vector<1x8xf32>
    %44 = vector.broadcast %43 : vector<1x8xf32> to vector<8x8xf32>
    %45 = arith.addf %41, %44 : vector<8x8xf32>
    %c0_29 = arith.constant 0 : index
    %c0_30 = arith.constant 0 : index
    %c0_31 = arith.constant 0 : index
    %46 = vector.load %arg9[%c0_29, %c0_30, %c0_31] : memref<4x32x8xbf16, #tpu.memory_space<vmem>>, vector<1x32x8xbf16>
    %47 = vector.shape_cast %46 : vector<1x32x8xbf16> to vector<32x8xbf16>
    %cst_32 = arith.constant dense<0.000000e+00> : vector<8x8xf32>
    %48 = tpu.matmul %35, %47, %cst_32 {dimension_numbers = #tpu.dot_dimension_numbers<[1], [0], [0], [1], [0, 0, 1, 1], [], []>} : vector<8x32xbf16>, vector<32x8xbf16>, vector<8x8xf32> -> vector<8x8xf32>
    %c0_33 = arith.constant 0 : index
    %c0_34 = arith.constant 0 : index
    %c0_35 = arith.constant 0 : index
    %49 = vector.load %arg10[%c0_33, %c0_34, %c0_35] : memref<4x1x8xf32, #tpu.memory_space<vmem>>, vector<1x1x8xf32>
    %50 = vector.shape_cast %49 : vector<1x1x8xf32> to vector<1x8xf32>
    %51 = vector.broadcast %50 : vector<1x8xf32> to vector<8x8xf32>
    %52 = arith.addf %48, %51 : vector<8x8xf32>
    %c0_36 = arith.constant 0 : index
    %c0_37 = arith.constant 0 : index
    %c0_38 = arith.constant 0 : index
    %53 = vector.load %arg11[%c0_36, %c0_37, %c0_38] : memref<4x32x8xbf16, #tpu.memory_space<vmem>>, vector<1x32x8xbf16>
    %54 = vector.shape_cast %53 : vector<1x32x8xbf16> to vector<32x8xbf16>
    %cst_39 = arith.constant dense<0.000000e+00> : vector<8x8xf32>
    %55 = tpu.matmul %35, %54, %cst_39 {dimension_numbers = #tpu.dot_dimension_numbers<[1], [0], [0], [1], [0, 0, 1, 1], [], []>} : vector<8x32xbf16>, vector<32x8xbf16>, vector<8x8xf32> -> vector<8x8xf32>
    %c0_40 = arith.constant 0 : index
    %c0_41 = arith.constant 0 : index
    %c0_42 = arith.constant 0 : index
    %56 = vector.load %arg12[%c0_40, %c0_41, %c0_42] : memref<4x1x8xf32, #tpu.memory_space<vmem>>, vector<1x1x8xf32>
    %57 = vector.shape_cast %56 : vector<1x1x8xf32> to vector<1x8xf32>
    %58 = vector.broadcast %57 : vector<1x8xf32> to vector<8x8xf32>
    %59 = arith.addf %55, %58 : vector<8x8xf32>
    %60 = arith.truncf %45 : vector<8x8xf32> to vector<8x8xbf16>
    %61 = arith.truncf %52 : vector<8x8xf32> to vector<8x8xbf16>
    %cst_43 = arith.constant dense<0.000000e+00> : vector<8x8xf32>
    %62 = tpu.matmul %60, %61, %cst_43 {dimension_numbers = #tpu.dot_dimension_numbers<[1], [1], [0], [0], [0, 0, 1, 0], [], []>} : vector<8x8xbf16>, vector<8x8xbf16>, vector<8x8xf32> -> vector<8x8xf32>
    %c0_44 = arith.constant 0 : index
    %c0_45 = arith.constant 0 : index
    %c0_46 = arith.constant 0 : index
    %63 = vector.load %arg13[%c0_44, %c0_45, %c0_46] : memref<4x1x8xf32, #tpu.memory_space<vmem>>, vector<1x1x8xf32>
    %64 = vector.shape_cast %63 : vector<1x1x8xf32> to vector<1x8xf32>
    %cst_47 = arith.constant dense<0.000000e+00> : vector<8x1xf32>
    %65 = tpu.matmul %45, %64, %cst_47 {dimension_numbers = #tpu.dot_dimension_numbers<[1], [1], [0], [0], [0, 0, 1, 0], [], []>} : vector<8x8xf32>, vector<1x8xf32>, vector<8x1xf32> -> vector<8x1xf32>
    %cst_48 = arith.constant dense<0xFF800000> : vector<8xf32>
    %66 = vector.multi_reduction <maximumf>, %62, %cst_48 [1] : vector<8x8xf32> to vector<8xf32>
    %67 = vector.shape_cast %66 : vector<8xf32> to vector<8x1xf32>
    %68 = arith.maximumf %67, %65 : vector<8x1xf32>
    %69 = vector.broadcast %68 : vector<8x1xf32> to vector<8x8xf32>
    %70 = arith.subf %62, %69 : vector<8x8xf32>
    %71 = math.exp %70 : vector<8x8xf32>
    %72 = arith.subf %65, %68 : vector<8x1xf32>
    %73 = math.exp %72 : vector<8x1xf32>
    %cst_49 = arith.constant dense<0.000000e+00> : vector<8xf32>
    %74 = vector.multi_reduction <add>, %71, %cst_49 [1] : vector<8x8xf32> to vector<8xf32>
    %75 = vector.shape_cast %74 : vector<8xf32> to vector<8x1xf32>
    %76 = arith.addf %75, %73 : vector<8x1xf32>
    %77 = tpu.reciprocal %76 {approx = true} : vector<8x1xf32> -> vector<8x1xf32>
    %78 = vector.broadcast %77 : vector<8x1xf32> to vector<8x8xf32>
    %79 = arith.mulf %71, %78 : vector<8x8xf32>
    %80 = arith.mulf %73, %77 : vector<8x1xf32>
    %81 = arith.addf %37, %79 : vector<8x8xf32>
    %82 = arith.addf %38, %80 : vector<8x1xf32>
    %83 = arith.truncf %79 : vector<8x8xf32> to vector<8x8xbf16>
    %84 = arith.truncf %59 : vector<8x8xf32> to vector<8x8xbf16>
    %cst_50 = arith.constant dense<0.000000e+00> : vector<8x8xf32>
    %85 = tpu.matmul %83, %84, %cst_50 {dimension_numbers = #tpu.dot_dimension_numbers<[1], [0], [0], [1], [0, 0, 1, 1], [], []>} : vector<8x8xbf16>, vector<8x8xbf16>, vector<8x8xf32> -> vector<8x8xf32>
    %c0_51 = arith.constant 0 : index
    %c0_52 = arith.constant 0 : index
    %c0_53 = arith.constant 0 : index
    %86 = vector.load %arg14[%c0_51, %c0_52, %c0_53] : memref<4x1x8xf32, #tpu.memory_space<vmem>>, vector<1x1x8xf32>
    %87 = vector.shape_cast %86 : vector<1x1x8xf32> to vector<1x8xf32>
    %88 = vector.broadcast %80 : vector<8x1xf32> to vector<8x8xf32>
    %89 = vector.broadcast %87 : vector<1x8xf32> to vector<8x8xf32>
    %90 = arith.mulf %88, %89 : vector<8x8xf32>
    %91 = arith.addf %85, %90 : vector<8x8xf32>
    %92 = arith.truncf %91 : vector<8x8xf32> to vector<8x8xbf16>
    %c0_54 = arith.constant 0 : index
    %c0_55 = arith.constant 0 : index
    %c0_56 = arith.constant 0 : index
    %93 = vector.load %arg15[%c0_54, %c0_55, %c0_56] : memref<4x8x32xbf16, #tpu.memory_space<vmem>>, vector<1x8x32xbf16>
    %94 = vector.shape_cast %93 : vector<1x8x32xbf16> to vector<8x32xbf16>
    %cst_57 = arith.constant dense<0.000000e+00> : vector<8x32xf32>
    %95 = tpu.matmul %92, %94, %cst_57 {dimension_numbers = #tpu.dot_dimension_numbers<[1], [0], [0], [1], [0, 0, 1, 1], [], []>} : vector<8x8xbf16>, vector<8x32xbf16>, vector<8x32xf32> -> vector<8x32xf32>
    %96 = arith.addf %36, %95 : vector<8x32xf32>
    %c1 = arith.constant 1 : index
    %c0_58 = arith.constant 0 : index
    %c0_59 = arith.constant 0 : index
    %97 = vector.load %arg7[%c1, %c0_58, %c0_59] : memref<4x32x8xbf16, #tpu.memory_space<vmem>>, vector<1x32x8xbf16>
    %98 = vector.shape_cast %97 : vector<1x32x8xbf16> to vector<32x8xbf16>
    %cst_60 = arith.constant dense<0.000000e+00> : vector<8x8xf32>
    %99 = tpu.matmul %35, %98, %cst_60 {dimension_numbers = #tpu.dot_dimension_numbers<[1], [0], [0], [1], [0, 0, 1, 1], [], []>} : vector<8x32xbf16>, vector<32x8xbf16>, vector<8x8xf32> -> vector<8x8xf32>
    %c1_61 = arith.constant 1 : index
    %c0_62 = arith.constant 0 : index
    %c0_63 = arith.constant 0 : index
    %100 = vector.load %arg8[%c1_61, %c0_62, %c0_63] : memref<4x1x8xf32, #tpu.memory_space<vmem>>, vector<1x1x8xf32>
    %101 = vector.shape_cast %100 : vector<1x1x8xf32> to vector<1x8xf32>
    %102 = vector.broadcast %101 : vector<1x8xf32> to vector<8x8xf32>
    %103 = arith.addf %99, %102 : vector<8x8xf32>
    %c1_64 = arith.constant 1 : index
    %c0_65 = arith.constant 0 : index
    %c0_66 = arith.constant 0 : index
    %104 = vector.load %arg9[%c1_64, %c0_65, %c0_66] : memref<4x32x8xbf16, #tpu.memory_space<vmem>>, vector<1x32x8xbf16>
    %105 = vector.shape_cast %104 : vector<1x32x8xbf16> to vector<32x8xbf16>
    %cst_67 = arith.constant dense<0.000000e+00> : vector<8x8xf32>
    %106 = tpu.matmul %35, %105, %cst_67 {dimension_numbers = #tpu.dot_dimension_numbers<[1], [0], [0], [1], [0, 0, 1, 1], [], []>} : vector<8x32xbf16>, vector<32x8xbf16>, vector<8x8xf32> -> vector<8x8xf32>
    %c1_68 = arith.constant 1 : index
    %c0_69 = arith.constant 0 : index
    %c0_70 = arith.constant 0 : index
    %107 = vector.load %arg10[%c1_68, %c0_69, %c0_70] : memref<4x1x8xf32, #tpu.memory_space<vmem>>, vector<1x1x8xf32>
    %108 = vector.shape_cast %107 : vector<1x1x8xf32> to vector<1x8xf32>
    %109 = vector.broadcast %108 : vector<1x8xf32> to vector<8x8xf32>
    %110 = arith.addf %106, %109 : vector<8x8xf32>
    %c1_71 = arith.constant 1 : index
    %c0_72 = arith.constant 0 : index
    %c0_73 = arith.constant 0 : index
    %111 = vector.load %arg11[%c1_71, %c0_72, %c0_73] : memref<4x32x8xbf16, #tpu.memory_space<vmem>>, vector<1x32x8xbf16>
    %112 = vector.shape_cast %111 : vector<1x32x8xbf16> to vector<32x8xbf16>
    %cst_74 = arith.constant dense<0.000000e+00> : vector<8x8xf32>
    %113 = tpu.matmul %35, %112, %cst_74 {dimension_numbers = #tpu.dot_dimension_numbers<[1], [0], [0], [1], [0, 0, 1, 1], [], []>} : vector<8x32xbf16>, vector<32x8xbf16>, vector<8x8xf32> -> vector<8x8xf32>
    %c1_75 = arith.constant 1 : index
    %c0_76 = arith.constant 0 : index
    %c0_77 = arith.constant 0 : index
    %114 = vector.load %arg12[%c1_75, %c0_76, %c0_77] : memref<4x1x8xf32, #tpu.memory_space<vmem>>, vector<1x1x8xf32>
    %115 = vector.shape_cast %114 : vector<1x1x8xf32> to vector<1x8xf32>
    %116 = vector.broadcast %115 : vector<1x8xf32> to vector<8x8xf32>
    %117 = arith.addf %113, %116 : vector<8x8xf32>
    %118 = arith.truncf %103 : vector<8x8xf32> to vector<8x8xbf16>
    %119 = arith.truncf %110 : vector<8x8xf32> to vector<8x8xbf16>
    %cst_78 = arith.constant dense<0.000000e+00> : vector<8x8xf32>
    %120 = tpu.matmul %118, %119, %cst_78 {dimension_numbers = #tpu.dot_dimension_numbers<[1], [1], [0], [0], [0, 0, 1, 0], [], []>} : vector<8x8xbf16>, vector<8x8xbf16>, vector<8x8xf32> -> vector<8x8xf32>
    %c1_79 = arith.constant 1 : index
    %c0_80 = arith.constant 0 : index
    %c0_81 = arith.constant 0 : index
    %121 = vector.load %arg13[%c1_79, %c0_80, %c0_81] : memref<4x1x8xf32, #tpu.memory_space<vmem>>, vector<1x1x8xf32>
    %122 = vector.shape_cast %121 : vector<1x1x8xf32> to vector<1x8xf32>
    %cst_82 = arith.constant dense<0.000000e+00> : vector<8x1xf32>
    %123 = tpu.matmul %103, %122, %cst_82 {dimension_numbers = #tpu.dot_dimension_numbers<[1], [1], [0], [0], [0, 0, 1, 0], [], []>} : vector<8x8xf32>, vector<1x8xf32>, vector<8x1xf32> -> vector<8x1xf32>
    %cst_83 = arith.constant dense<0xFF800000> : vector<8xf32>
    %124 = vector.multi_reduction <maximumf>, %120, %cst_83 [1] : vector<8x8xf32> to vector<8xf32>
    %125 = vector.shape_cast %124 : vector<8xf32> to vector<8x1xf32>
    %126 = arith.maximumf %125, %123 : vector<8x1xf32>
    %127 = vector.broadcast %126 : vector<8x1xf32> to vector<8x8xf32>
    %128 = arith.subf %120, %127 : vector<8x8xf32>
    %129 = math.exp %128 : vector<8x8xf32>
    %130 = arith.subf %123, %126 : vector<8x1xf32>
    %131 = math.exp %130 : vector<8x1xf32>
    %cst_84 = arith.constant dense<0.000000e+00> : vector<8xf32>
    %132 = vector.multi_reduction <add>, %129, %cst_84 [1] : vector<8x8xf32> to vector<8xf32>
    %133 = vector.shape_cast %132 : vector<8xf32> to vector<8x1xf32>
    %134 = arith.addf %133, %131 : vector<8x1xf32>
    %135 = tpu.reciprocal %134 {approx = true} : vector<8x1xf32> -> vector<8x1xf32>
    %136 = vector.broadcast %135 : vector<8x1xf32> to vector<8x8xf32>
    %137 = arith.mulf %129, %136 : vector<8x8xf32>
    %138 = arith.mulf %131, %135 : vector<8x1xf32>
    %139 = arith.addf %81, %137 : vector<8x8xf32>
    %140 = arith.addf %82, %138 : vector<8x1xf32>
    %141 = arith.truncf %137 : vector<8x8xf32> to vector<8x8xbf16>
    %142 = arith.truncf %117 : vector<8x8xf32> to vector<8x8xbf16>
    %cst_85 = arith.constant dense<0.000000e+00> : vector<8x8xf32>
    %143 = tpu.matmul %141, %142, %cst_85 {dimension_numbers = #tpu.dot_dimension_numbers<[1], [0], [0], [1], [0, 0, 1, 1], [], []>} : vector<8x8xbf16>, vector<8x8xbf16>, vector<8x8xf32> -> vector<8x8xf32>
    %c1_86 = arith.constant 1 : index
    %c0_87 = arith.constant 0 : index
    %c0_88 = arith.constant 0 : index
    %144 = vector.load %arg14[%c1_86, %c0_87, %c0_88] : memref<4x1x8xf32, #tpu.memory_space<vmem>>, vector<1x1x8xf32>
    %145 = vector.shape_cast %144 : vector<1x1x8xf32> to vector<1x8xf32>
    %146 = vector.broadcast %138 : vector<8x1xf32> to vector<8x8xf32>
    %147 = vector.broadcast %145 : vector<1x8xf32> to vector<8x8xf32>
    %148 = arith.mulf %146, %147 : vector<8x8xf32>
    %149 = arith.addf %143, %148 : vector<8x8xf32>
    %150 = arith.truncf %149 : vector<8x8xf32> to vector<8x8xbf16>
    %c1_89 = arith.constant 1 : index
    %c0_90 = arith.constant 0 : index
    %c0_91 = arith.constant 0 : index
    %151 = vector.load %arg15[%c1_89, %c0_90, %c0_91] : memref<4x8x32xbf16, #tpu.memory_space<vmem>>, vector<1x8x32xbf16>
    %152 = vector.shape_cast %151 : vector<1x8x32xbf16> to vector<8x32xbf16>
    %cst_92 = arith.constant dense<0.000000e+00> : vector<8x32xf32>
    %153 = tpu.matmul %150, %152, %cst_92 {dimension_numbers = #tpu.dot_dimension_numbers<[1], [0], [0], [1], [0, 0, 1, 1], [], []>} : vector<8x8xbf16>, vector<8x32xbf16>, vector<8x32xf32> -> vector<8x32xf32>
    %154 = arith.addf %96, %153 : vector<8x32xf32>
    %c2 = arith.constant 2 : index
    %c0_93 = arith.constant 0 : index
    %c0_94 = arith.constant 0 : index
    %155 = vector.load %arg7[%c2, %c0_93, %c0_94] : memref<4x32x8xbf16, #tpu.memory_space<vmem>>, vector<1x32x8xbf16>
    %156 = vector.shape_cast %155 : vector<1x32x8xbf16> to vector<32x8xbf16>
    %cst_95 = arith.constant dense<0.000000e+00> : vector<8x8xf32>
    %157 = tpu.matmul %35, %156, %cst_95 {dimension_numbers = #tpu.dot_dimension_numbers<[1], [0], [0], [1], [0, 0, 1, 1], [], []>} : vector<8x32xbf16>, vector<32x8xbf16>, vector<8x8xf32> -> vector<8x8xf32>
    %c2_96 = arith.constant 2 : index
    %c0_97 = arith.constant 0 : index
    %c0_98 = arith.constant 0 : index
    %158 = vector.load %arg8[%c2_96, %c0_97, %c0_98] : memref<4x1x8xf32, #tpu.memory_space<vmem>>, vector<1x1x8xf32>
    %159 = vector.shape_cast %158 : vector<1x1x8xf32> to vector<1x8xf32>
    %160 = vector.broadcast %159 : vector<1x8xf32> to vector<8x8xf32>
    %161 = arith.addf %157, %160 : vector<8x8xf32>
    %c2_99 = arith.constant 2 : index
    %c0_100 = arith.constant 0 : index
    %c0_101 = arith.constant 0 : index
    %162 = vector.load %arg9[%c2_99, %c0_100, %c0_101] : memref<4x32x8xbf16, #tpu.memory_space<vmem>>, vector<1x32x8xbf16>
    %163 = vector.shape_cast %162 : vector<1x32x8xbf16> to vector<32x8xbf16>
    %cst_102 = arith.constant dense<0.000000e+00> : vector<8x8xf32>
    %164 = tpu.matmul %35, %163, %cst_102 {dimension_numbers = #tpu.dot_dimension_numbers<[1], [0], [0], [1], [0, 0, 1, 1], [], []>} : vector<8x32xbf16>, vector<32x8xbf16>, vector<8x8xf32> -> vector<8x8xf32>
    %c2_103 = arith.constant 2 : index
    %c0_104 = arith.constant 0 : index
    %c0_105 = arith.constant 0 : index
    %165 = vector.load %arg10[%c2_103, %c0_104, %c0_105] : memref<4x1x8xf32, #tpu.memory_space<vmem>>, vector<1x1x8xf32>
    %166 = vector.shape_cast %165 : vector<1x1x8xf32> to vector<1x8xf32>
    %167 = vector.broadcast %166 : vector<1x8xf32> to vector<8x8xf32>
    %168 = arith.addf %164, %167 : vector<8x8xf32>
    %c2_106 = arith.constant 2 : index
    %c0_107 = arith.constant 0 : index
    %c0_108 = arith.constant 0 : index
    %169 = vector.load %arg11[%c2_106, %c0_107, %c0_108] : memref<4x32x8xbf16, #tpu.memory_space<vmem>>, vector<1x32x8xbf16>
    %170 = vector.shape_cast %169 : vector<1x32x8xbf16> to vector<32x8xbf16>
    %cst_109 = arith.constant dense<0.000000e+00> : vector<8x8xf32>
    %171 = tpu.matmul %35, %170, %cst_109 {dimension_numbers = #tpu.dot_dimension_numbers<[1], [0], [0], [1], [0, 0, 1, 1], [], []>} : vector<8x32xbf16>, vector<32x8xbf16>, vector<8x8xf32> -> vector<8x8xf32>
    %c2_110 = arith.constant 2 : index
    %c0_111 = arith.constant 0 : index
    %c0_112 = arith.constant 0 : index
    %172 = vector.load %arg12[%c2_110, %c0_111, %c0_112] : memref<4x1x8xf32, #tpu.memory_space<vmem>>, vector<1x1x8xf32>
    %173 = vector.shape_cast %172 : vector<1x1x8xf32> to vector<1x8xf32>
    %174 = vector.broadcast %173 : vector<1x8xf32> to vector<8x8xf32>
    %175 = arith.addf %171, %174 : vector<8x8xf32>
    %176 = arith.truncf %161 : vector<8x8xf32> to vector<8x8xbf16>
    %177 = arith.truncf %168 : vector<8x8xf32> to vector<8x8xbf16>
    %cst_113 = arith.constant dense<0.000000e+00> : vector<8x8xf32>
    %178 = tpu.matmul %176, %177, %cst_113 {dimension_numbers = #tpu.dot_dimension_numbers<[1], [1], [0], [0], [0, 0, 1, 0], [], []>} : vector<8x8xbf16>, vector<8x8xbf16>, vector<8x8xf32> -> vector<8x8xf32>
    %c2_114 = arith.constant 2 : index
    %c0_115 = arith.constant 0 : index
    %c0_116 = arith.constant 0 : index
    %179 = vector.load %arg13[%c2_114, %c0_115, %c0_116] : memref<4x1x8xf32, #tpu.memory_space<vmem>>, vector<1x1x8xf32>
    %180 = vector.shape_cast %179 : vector<1x1x8xf32> to vector<1x8xf32>
    %cst_117 = arith.constant dense<0.000000e+00> : vector<8x1xf32>
    %181 = tpu.matmul %161, %180, %cst_117 {dimension_numbers = #tpu.dot_dimension_numbers<[1], [1], [0], [0], [0, 0, 1, 0], [], []>} : vector<8x8xf32>, vector<1x8xf32>, vector<8x1xf32> -> vector<8x1xf32>
    %cst_118 = arith.constant dense<0xFF800000> : vector<8xf32>
    %182 = vector.multi_reduction <maximumf>, %178, %cst_118 [1] : vector<8x8xf32> to vector<8xf32>
    %183 = vector.shape_cast %182 : vector<8xf32> to vector<8x1xf32>
    %184 = arith.maximumf %183, %181 : vector<8x1xf32>
    %185 = vector.broadcast %184 : vector<8x1xf32> to vector<8x8xf32>
    %186 = arith.subf %178, %185 : vector<8x8xf32>
    %187 = math.exp %186 : vector<8x8xf32>
    %188 = arith.subf %181, %184 : vector<8x1xf32>
    %189 = math.exp %188 : vector<8x1xf32>
    %cst_119 = arith.constant dense<0.000000e+00> : vector<8xf32>
    %190 = vector.multi_reduction <add>, %187, %cst_119 [1] : vector<8x8xf32> to vector<8xf32>
    %191 = vector.shape_cast %190 : vector<8xf32> to vector<8x1xf32>
    %192 = arith.addf %191, %189 : vector<8x1xf32>
    %193 = tpu.reciprocal %192 {approx = true} : vector<8x1xf32> -> vector<8x1xf32>
    %194 = vector.broadcast %193 : vector<8x1xf32> to vector<8x8xf32>
    %195 = arith.mulf %187, %194 : vector<8x8xf32>
    %196 = arith.mulf %189, %193 : vector<8x1xf32>
    %197 = arith.addf %139, %195 : vector<8x8xf32>
    %198 = arith.addf %140, %196 : vector<8x1xf32>
    %199 = arith.truncf %195 : vector<8x8xf32> to vector<8x8xbf16>
    %200 = arith.truncf %175 : vector<8x8xf32> to vector<8x8xbf16>
    %cst_120 = arith.constant dense<0.000000e+00> : vector<8x8xf32>
    %201 = tpu.matmul %199, %200, %cst_120 {dimension_numbers = #tpu.dot_dimension_numbers<[1], [0], [0], [1], [0, 0, 1, 1], [], []>} : vector<8x8xbf16>, vector<8x8xbf16>, vector<8x8xf32> -> vector<8x8xf32>
    %c2_121 = arith.constant 2 : index
    %c0_122 = arith.constant 0 : index
    %c0_123 = arith.constant 0 : index
    %202 = vector.load %arg14[%c2_121, %c0_122, %c0_123] : memref<4x1x8xf32, #tpu.memory_space<vmem>>, vector<1x1x8xf32>
    %203 = vector.shape_cast %202 : vector<1x1x8xf32> to vector<1x8xf32>
    %204 = vector.broadcast %196 : vector<8x1xf32> to vector<8x8xf32>
    %205 = vector.broadcast %203 : vector<1x8xf32> to vector<8x8xf32>
    %206 = arith.mulf %204, %205 : vector<8x8xf32>
    %207 = arith.addf %201, %206 : vector<8x8xf32>
    %208 = arith.truncf %207 : vector<8x8xf32> to vector<8x8xbf16>
    %c2_124 = arith.constant 2 : index
    %c0_125 = arith.constant 0 : index
    %c0_126 = arith.constant 0 : index
    %209 = vector.load %arg15[%c2_124, %c0_125, %c0_126] : memref<4x8x32xbf16, #tpu.memory_space<vmem>>, vector<1x8x32xbf16>
    %210 = vector.shape_cast %209 : vector<1x8x32xbf16> to vector<8x32xbf16>
    %cst_127 = arith.constant dense<0.000000e+00> : vector<8x32xf32>
    %211 = tpu.matmul %208, %210, %cst_127 {dimension_numbers = #tpu.dot_dimension_numbers<[1], [0], [0], [1], [0, 0, 1, 1], [], []>} : vector<8x8xbf16>, vector<8x32xbf16>, vector<8x32xf32> -> vector<8x32xf32>
    %212 = arith.addf %154, %211 : vector<8x32xf32>
    %c3 = arith.constant 3 : index
    %c0_128 = arith.constant 0 : index
    %c0_129 = arith.constant 0 : index
    %213 = vector.load %arg7[%c3, %c0_128, %c0_129] : memref<4x32x8xbf16, #tpu.memory_space<vmem>>, vector<1x32x8xbf16>
    %214 = vector.shape_cast %213 : vector<1x32x8xbf16> to vector<32x8xbf16>
    %cst_130 = arith.constant dense<0.000000e+00> : vector<8x8xf32>
    %215 = tpu.matmul %35, %214, %cst_130 {dimension_numbers = #tpu.dot_dimension_numbers<[1], [0], [0], [1], [0, 0, 1, 1], [], []>} : vector<8x32xbf16>, vector<32x8xbf16>, vector<8x8xf32> -> vector<8x8xf32>
    %c3_131 = arith.constant 3 : index
    %c0_132 = arith.constant 0 : index
    %c0_133 = arith.constant 0 : index
    %216 = vector.load %arg8[%c3_131, %c0_132, %c0_133] : memref<4x1x8xf32, #tpu.memory_space<vmem>>, vector<1x1x8xf32>
    %217 = vector.shape_cast %216 : vector<1x1x8xf32> to vector<1x8xf32>
    %218 = vector.broadcast %217 : vector<1x8xf32> to vector<8x8xf32>
    %219 = arith.addf %215, %218 : vector<8x8xf32>
    %c3_134 = arith.constant 3 : index
    %c0_135 = arith.constant 0 : index
    %c0_136 = arith.constant 0 : index
    %220 = vector.load %arg9[%c3_134, %c0_135, %c0_136] : memref<4x32x8xbf16, #tpu.memory_space<vmem>>, vector<1x32x8xbf16>
    %221 = vector.shape_cast %220 : vector<1x32x8xbf16> to vector<32x8xbf16>
    %cst_137 = arith.constant dense<0.000000e+00> : vector<8x8xf32>
    %222 = tpu.matmul %35, %221, %cst_137 {dimension_numbers = #tpu.dot_dimension_numbers<[1], [0], [0], [1], [0, 0, 1, 1], [], []>} : vector<8x32xbf16>, vector<32x8xbf16>, vector<8x8xf32> -> vector<8x8xf32>
    %c3_138 = arith.constant 3 : index
    %c0_139 = arith.constant 0 : index
    %c0_140 = arith.constant 0 : index
    %223 = vector.load %arg10[%c3_138, %c0_139, %c0_140] : memref<4x1x8xf32, #tpu.memory_space<vmem>>, vector<1x1x8xf32>
    %224 = vector.shape_cast %223 : vector<1x1x8xf32> to vector<1x8xf32>
    %225 = vector.broadcast %224 : vector<1x8xf32> to vector<8x8xf32>
    %226 = arith.addf %222, %225 : vector<8x8xf32>
    %c3_141 = arith.constant 3 : index
    %c0_142 = arith.constant 0 : index
    %c0_143 = arith.constant 0 : index
    %227 = vector.load %arg11[%c3_141, %c0_142, %c0_143] : memref<4x32x8xbf16, #tpu.memory_space<vmem>>, vector<1x32x8xbf16>
    %228 = vector.shape_cast %227 : vector<1x32x8xbf16> to vector<32x8xbf16>
    %cst_144 = arith.constant dense<0.000000e+00> : vector<8x8xf32>
    %229 = tpu.matmul %35, %228, %cst_144 {dimension_numbers = #tpu.dot_dimension_numbers<[1], [0], [0], [1], [0, 0, 1, 1], [], []>} : vector<8x32xbf16>, vector<32x8xbf16>, vector<8x8xf32> -> vector<8x8xf32>
    %c3_145 = arith.constant 3 : index
    %c0_146 = arith.constant 0 : index
    %c0_147 = arith.constant 0 : index
    %230 = vector.load %arg12[%c3_145, %c0_146, %c0_147] : memref<4x1x8xf32, #tpu.memory_space<vmem>>, vector<1x1x8xf32>
    %231 = vector.shape_cast %230 : vector<1x1x8xf32> to vector<1x8xf32>
    %232 = vector.broadcast %231 : vector<1x8xf32> to vector<8x8xf32>
    %233 = arith.addf %229, %232 : vector<8x8xf32>
    %234 = arith.truncf %219 : vector<8x8xf32> to vector<8x8xbf16>
    %235 = arith.truncf %226 : vector<8x8xf32> to vector<8x8xbf16>
    %cst_148 = arith.constant dense<0.000000e+00> : vector<8x8xf32>
    %236 = tpu.matmul %234, %235, %cst_148 {dimension_numbers = #tpu.dot_dimension_numbers<[1], [1], [0], [0], [0, 0, 1, 0], [], []>} : vector<8x8xbf16>, vector<8x8xbf16>, vector<8x8xf32> -> vector<8x8xf32>
    %c3_149 = arith.constant 3 : index
    %c0_150 = arith.constant 0 : index
    %c0_151 = arith.constant 0 : index
    %237 = vector.load %arg13[%c3_149, %c0_150, %c0_151] : memref<4x1x8xf32, #tpu.memory_space<vmem>>, vector<1x1x8xf32>
    %238 = vector.shape_cast %237 : vector<1x1x8xf32> to vector<1x8xf32>
    %cst_152 = arith.constant dense<0.000000e+00> : vector<8x1xf32>
    %239 = tpu.matmul %219, %238, %cst_152 {dimension_numbers = #tpu.dot_dimension_numbers<[1], [1], [0], [0], [0, 0, 1, 0], [], []>} : vector<8x8xf32>, vector<1x8xf32>, vector<8x1xf32> -> vector<8x1xf32>
    %cst_153 = arith.constant dense<0xFF800000> : vector<8xf32>
    %240 = vector.multi_reduction <maximumf>, %236, %cst_153 [1] : vector<8x8xf32> to vector<8xf32>
    %241 = vector.shape_cast %240 : vector<8xf32> to vector<8x1xf32>
    %242 = arith.maximumf %241, %239 : vector<8x1xf32>
    %243 = vector.broadcast %242 : vector<8x1xf32> to vector<8x8xf32>
    %244 = arith.subf %236, %243 : vector<8x8xf32>
    %245 = math.exp %244 : vector<8x8xf32>
    %246 = arith.subf %239, %242 : vector<8x1xf32>
    %247 = math.exp %246 : vector<8x1xf32>
    %cst_154 = arith.constant dense<0.000000e+00> : vector<8xf32>
    %248 = vector.multi_reduction <add>, %245, %cst_154 [1] : vector<8x8xf32> to vector<8xf32>
    %249 = vector.shape_cast %248 : vector<8xf32> to vector<8x1xf32>
    %250 = arith.addf %249, %247 : vector<8x1xf32>
    %251 = tpu.reciprocal %250 {approx = true} : vector<8x1xf32> -> vector<8x1xf32>
    %252 = vector.broadcast %251 : vector<8x1xf32> to vector<8x8xf32>
    %253 = arith.mulf %245, %252 : vector<8x8xf32>
    %254 = arith.mulf %247, %251 : vector<8x1xf32>
    %255 = arith.addf %197, %253 : vector<8x8xf32>
    %256 = arith.addf %198, %254 : vector<8x1xf32>
    %257 = arith.truncf %253 : vector<8x8xf32> to vector<8x8xbf16>
    %258 = arith.truncf %233 : vector<8x8xf32> to vector<8x8xbf16>
    %cst_155 = arith.constant dense<0.000000e+00> : vector<8x8xf32>
    %259 = tpu.matmul %257, %258, %cst_155 {dimension_numbers = #tpu.dot_dimension_numbers<[1], [0], [0], [1], [0, 0, 1, 1], [], []>} : vector<8x8xbf16>, vector<8x8xbf16>, vector<8x8xf32> -> vector<8x8xf32>
    %c3_156 = arith.constant 3 : index
    %c0_157 = arith.constant 0 : index
    %c0_158 = arith.constant 0 : index
    %260 = vector.load %arg14[%c3_156, %c0_157, %c0_158] : memref<4x1x8xf32, #tpu.memory_space<vmem>>, vector<1x1x8xf32>
    %261 = vector.shape_cast %260 : vector<1x1x8xf32> to vector<1x8xf32>
    %262 = vector.broadcast %254 : vector<8x1xf32> to vector<8x8xf32>
    %263 = vector.broadcast %261 : vector<1x8xf32> to vector<8x8xf32>
    %264 = arith.mulf %262, %263 : vector<8x8xf32>
    %265 = arith.addf %259, %264 : vector<8x8xf32>
    %266 = arith.truncf %265 : vector<8x8xf32> to vector<8x8xbf16>
    %c3_159 = arith.constant 3 : index
    %c0_160 = arith.constant 0 : index
    %c0_161 = arith.constant 0 : index
    %267 = vector.load %arg15[%c3_159, %c0_160, %c0_161] : memref<4x8x32xbf16, #tpu.memory_space<vmem>>, vector<1x8x32xbf16>
    %268 = vector.shape_cast %267 : vector<1x8x32xbf16> to vector<8x32xbf16>
    %cst_162 = arith.constant dense<0.000000e+00> : vector<8x32xf32>
    %269 = tpu.matmul %266, %268, %cst_162 {dimension_numbers = #tpu.dot_dimension_numbers<[1], [0], [0], [1], [0, 0, 1, 1], [], []>} : vector<8x8xbf16>, vector<8x32xbf16>, vector<8x32xf32> -> vector<8x32xf32>
    %270 = arith.addf %212, %269 : vector<8x32xf32>
    %271 = arith.addf %1, %270 : vector<8x32xf32>
    %c0_163 = arith.constant 0 : index
    %c0_164 = arith.constant 0 : index
    %272 = vector.load %arg16[%c0_163, %c0_164] : memref<1x32xf32, #tpu.memory_space<vmem>>, vector<1x32xf32>
    %273 = vector.broadcast %272 : vector<1x32xf32> to vector<8x32xf32>
    %274 = arith.addf %271, %273 : vector<8x32xf32>
    %cst_165 = arith.constant 2.500000e-01 : f32
    %275 = vector.broadcast %cst_165 : f32 to vector<8x8xf32>
    %276 = arith.mulf %255, %275 : vector<8x8xf32>
    %c0_166 = arith.constant 0 : index
    %c0_167 = arith.constant 0 : index
    %c0_168 = arith.constant 0 : index
    %277 = vector.load %arg26[%c0_166, %c0_167, %c0_168] : memref<1x8x9xf32, #tpu.memory_space<vmem>>, vector<1x8x8xf32>
    %278 = vector.shape_cast %277 : vector<1x8x8xf32> to vector<8x8xf32>
    %279 = vector.shape_cast %276 : vector<8x8xf32> to vector<1x8x8xf32>
    tpu.vector_store %arg26[%c0_166, %c0_167, %c0_168], %279 {strides = array<i32>} : memref<1x8x9xf32, #tpu.memory_space<vmem>>, vector<1x8x8xf32>,
    %cst_169 = arith.constant 2.500000e-01 : f32
    %280 = vector.broadcast %cst_169 : f32 to vector<8x1xf32>
    %281 = arith.mulf %256, %280 : vector<8x1xf32>
    %c0_170 = arith.constant 0 : index
    %c0_171 = arith.constant 0 : index
    %c8 = arith.constant 8 : index
    %282 = vector.load %arg26[%c0_170, %c0_171, %c8] : memref<1x8x9xf32, #tpu.memory_space<vmem>>, vector<1x8x1xf32>
    %283 = vector.shape_cast %282 : vector<1x8x1xf32> to vector<8x1xf32>
    %284 = vector.shape_cast %281 : vector<8x1xf32> to vector<1x8x1xf32>
    tpu.vector_store %arg26[%c0_170, %c0_171, %c8], %284 {strides = array<i32>} : memref<1x8x9xf32, #tpu.memory_space<vmem>>, vector<1x8x1xf32>,
    %c0_172 = arith.constant 0 : index
    %c0_173 = arith.constant 0 : index
    %285 = vector.load %arg17[%c0_172, %c0_173] : memref<1x32xf32, #tpu.memory_space<vmem>>, vector<1x32xf32>
    %c0_174 = arith.constant 0 : index
    %c0_175 = arith.constant 0 : index
    %286 = vector.load %arg19[%c0_174, %c0_175] : memref<32x32xbf16, #tpu.memory_space<vmem>>, vector<32x32xbf16>
    %cst_176 = arith.constant dense<0.000000e+00> : vector<1x32xf32>
    %287 = tpu.matmul %4, %286, %cst_176 {dimension_numbers = #tpu.dot_dimension_numbers<[1], [0], [0], [1], [0, 0, 1, 1], [], []>} : vector<1x32xbf16>, vector<32x32xbf16>, vector<1x32xf32> -> vector<1x32xf32>
    %288 = arith.addf %285, %287 : vector<1x32xf32>
    %c0_177 = arith.constant 0 : index
    %c0_178 = arith.constant 0 : index
    %289 = vector.load %arg18[%c0_177, %c0_178] : memref<1x32xf32, #tpu.memory_space<vmem>>, vector<1x32xf32>
    %c0_179 = arith.constant 0 : index
    %c0_180 = arith.constant 0 : index
    %290 = vector.load %arg20[%c0_179, %c0_180] : memref<32x32xbf16, #tpu.memory_space<vmem>>, vector<32x32xbf16>
    %cst_181 = arith.constant dense<0.000000e+00> : vector<1x32xf32>
    %291 = tpu.matmul %4, %290, %cst_181 {dimension_numbers = #tpu.dot_dimension_numbers<[1], [0], [0], [1], [0, 0, 1, 1], [], []>} : vector<1x32xbf16>, vector<32x32xbf16>, vector<1x32xf32> -> vector<1x32xf32>
    %292 = arith.addf %289, %291 : vector<1x32xf32>
    %cst_182 = arith.constant dense<0.000000e+00> : vector<8xf32>
    %293 = vector.multi_reduction <add>, %274, %cst_182 [1] : vector<8x32xf32> to vector<8xf32>
    %294 = vector.shape_cast %293 : vector<8xf32> to vector<8x1xf32>
    %cst_183 = arith.constant 3.200000e+01 : f32
    %295 = vector.broadcast %cst_183 : f32 to vector<8x1xf32>
    %296 = arith.divf %294, %295 : vector<8x1xf32>
    %297 = vector.broadcast %296 : vector<8x1xf32> to vector<8x32xf32>
    %298 = arith.subf %274, %297 : vector<8x32xf32>
    %299 = arith.mulf %298, %298 : vector<8x32xf32>
    %cst_184 = arith.constant dense<0.000000e+00> : vector<8xf32>
    %300 = vector.multi_reduction <add>, %299, %cst_184 [1] : vector<8x32xf32> to vector<8xf32>
    %301 = vector.shape_cast %300 : vector<8xf32> to vector<8x1xf32>
    %cst_185 = arith.constant 3.200000e+01 : f32
    %302 = vector.broadcast %cst_185 : f32 to vector<8x1xf32>
    %303 = arith.divf %301, %302 : vector<8x1xf32>
    %304 = vector.broadcast %296 : vector<8x1xf32> to vector<8x32xf32>
    %305 = arith.subf %274, %304 : vector<8x32xf32>
    %cst_186 = arith.constant 9.99999974E-6 : f32
    %306 = vector.broadcast %cst_186 : f32 to vector<8x1xf32>
    %307 = arith.addf %303, %306 : vector<8x1xf32>
    %308 = math.rsqrt %307 : vector<8x1xf32>
    %309 = vector.broadcast %308 : vector<8x1xf32> to vector<8x32xf32>
    %310 = arith.mulf %305, %309 : vector<8x32xf32>
    %311 = vector.broadcast %288 : vector<1x32xf32> to vector<8x32xf32>
    %312 = arith.mulf %310, %311 : vector<8x32xf32>
    %313 = vector.broadcast %292 : vector<1x32xf32> to vector<8x32xf32>
    %314 = arith.addf %312, %313 : vector<8x32xf32>
    %315 = arith.truncf %314 : vector<8x32xf32> to vector<8x32xbf16>
    %c0_187 = arith.constant 0 : index
    %c0_188 = arith.constant 0 : index
    %316 = vector.load %arg21[%c0_187, %c0_188] : memref<32x64xbf16, #tpu.memory_space<vmem>>, vector<32x64xbf16>
    %cst_189 = arith.constant dense<0.000000e+00> : vector<8x64xf32>
    %317 = tpu.matmul %315, %316, %cst_189 {dimension_numbers = #tpu.dot_dimension_numbers<[1], [0], [0], [1], [0, 0, 1, 1], [], []>} : vector<8x32xbf16>, vector<32x64xbf16>, vector<8x64xf32> -> vector<8x64xf32>
    %c0_190 = arith.constant 0 : index
    %c0_191 = arith.constant 0 : index
    %318 = vector.load %arg22[%c0_190, %c0_191] : memref<1x64xf32, #tpu.memory_space<vmem>>, vector<1x64xf32>
    %319 = vector.broadcast %318 : vector<1x64xf32> to vector<8x64xf32>
    %320 = arith.addf %317, %319 : vector<8x64xf32>
    %cst_192 = arith.constant 5.000000e-01 : f32
    %321 = vector.broadcast %cst_192 : f32 to vector<8x64xf32>
    %322 = arith.mulf %321, %320 : vector<8x64xf32>
    %cst_193 = arith.constant 0.707106769 : f32
    %323 = vector.broadcast %cst_193 : f32 to vector<8x64xf32>
    %324 = arith.mulf %320, %323 : vector<8x64xf32>
    %325 = math.erf %324 : vector<8x64xf32>
    %cst_194 = arith.constant 1.000000e+00 : f32
    %326 = vector.broadcast %cst_194 : f32 to vector<8x64xf32>
    %327 = arith.addf %326, %325 : vector<8x64xf32>
    %328 = arith.mulf %322, %327 : vector<8x64xf32>
    %329 = arith.truncf %328 : vector<8x64xf32> to vector<8x64xbf16>
    %c0_195 = arith.constant 0 : index
    %c0_196 = arith.constant 0 : index
    %330 = vector.load %arg23[%c0_195, %c0_196] : memref<64x32xbf16, #tpu.memory_space<vmem>>, vector<64x32xbf16>
    %cst_197 = arith.constant dense<0.000000e+00> : vector<8x32xf32>
    %331 = tpu.matmul %329, %330, %cst_197 {dimension_numbers = #tpu.dot_dimension_numbers<[1], [0], [0], [1], [0, 0, 1, 1], [], []>} : vector<8x64xbf16>, vector<64x32xbf16>, vector<8x32xf32> -> vector<8x32xf32>
    %332 = arith.addf %274, %331 : vector<8x32xf32>
    %c0_198 = arith.constant 0 : index
    %c0_199 = arith.constant 0 : index
    %333 = vector.load %arg24[%c0_198, %c0_199] : memref<1x32xf32, #tpu.memory_space<vmem>>, vector<1x32xf32>
    %334 = vector.broadcast %333 : vector<1x32xf32> to vector<8x32xf32>
    %335 = arith.addf %332, %334 : vector<8x32xf32>
    %c0_200 = arith.constant 0 : index
    %c0_201 = arith.constant 0 : index
    %c0_202 = arith.constant 0 : index
    %336 = vector.load %arg25[%c0_200, %c0_201, %c0_202] : memref<1x8x32xf32, #tpu.memory_space<vmem>>, vector<1x8x32xf32>
    %337 = vector.shape_cast %336 : vector<1x8x32xf32> to vector<8x32xf32>
    %338 = vector.shape_cast %335 : vector<8x32xf32> to vector<1x8x32xf32>
    tpu.vector_store %arg25[%c0_200, %c0_201, %c0_202], %338 {strides = array<i32>} : memref<1x8x32xf32, #tpu.memory_space<vmem>>, vector<1x8x32xf32>,
    return
  }
  func.func @transform_0(%arg0: i32) -> (i32, i32, i32) {
    %c0_i32 = arith.constant 0 : i32
    %c0_i32_0 = arith.constant 0 : i32
    %c0_i32_1 = arith.constant 0 : i32
    return %arg0, %c0_i32, %c0_i32_0 : i32, i32, i32
  }
  func.func @transform_1(%arg0: i32) -> (i32, i32, i32) {
    %c0_i32 = arith.constant 0 : i32
    %c0_i32_0 = arith.constant 0 : i32
    %c0_i32_1 = arith.constant 0 : i32
    return %arg0, %c0_i32, %c0_i32_0 : i32, i32, i32
  }
  func.func @transform_2(%arg0: i32) -> (i32, i32) {
    %c0_i32 = arith.constant 0 : i32
    %c0_i32_0 = arith.constant 0 : i32
    %c0_i32_1 = arith.constant 0 : i32
    return %c0_i32, %c0_i32_0 : i32, i32
  }
  func.func @transform_3(%arg0: i32) -> (i32, i32) {
    %c0_i32 = arith.constant 0 : i32
    %c0_i32_0 = arith.constant 0 : i32
    %c0_i32_1 = arith.constant 0 : i32
    return %c0_i32, %c0_i32_0 : i32, i32
  }
  func.func @transform_4(%arg0: i32) -> (i32, i32) {
    %c0_i32 = arith.constant 0 : i32
    %c0_i32_0 = arith.constant 0 : i32
    %c0_i32_1 = arith.constant 0 : i32
    return %c0_i32, %c0_i32_0 : i32, i32
  }
  func.func @transform_5(%arg0: i32) -> (i32, i32) {
    %c0_i32 = arith.constant 0 : i32
    %c0_i32_0 = arith.constant 0 : i32
    %c0_i32_1 = arith.constant 0 : i32
    return %c0_i32, %c0_i32_0 : i32, i32
  }
  func.func @transform_6(%arg0: i32) -> (i32, i32, i32) {
    %c0_i32 = arith.constant 0 : i32
    %c0_i32_0 = arith.constant 0 : i32
    %c0_i32_1 = arith.constant 0 : i32
    %c0_i32_2 = arith.constant 0 : i32
    return %c0_i32, %c0_i32_0, %c0_i32_1 : i32, i32, i32
  }
  func.func @transform_7(%arg0: i32) -> (i32, i32, i32) {
    %c0_i32 = arith.constant 0 : i32
    %c0_i32_0 = arith.constant 0 : i32
    %c0_i32_1 = arith.constant 0 : i32
    %c0_i32_2 = arith.constant 0 : i32
    return %c0_i32, %c0_i32_0, %c0_i32_1 : i32, i32, i32
  }
  func.func @transform_8(%arg0: i32) -> (i32, i32, i32) {
    %c0_i32 = arith.constant 0 : i32
    %c0_i32_0 = arith.constant 0 : i32
    %c0_i32_1 = arith.constant 0 : i32
    %c0_i32_2 = arith.constant 0 : i32
    return %c0_i32, %c0_i32_0, %c0_i32_1 : i32, i32, i32
  }
  func.func @transform_9(%arg0: i32) -> (i32, i32, i32) {
    %c0_i32 = arith.constant 0 : i32
    %c0_i32_0 = arith.constant 0 : i32
    %c0_i32_1 = arith.constant 0 : i32
    %c0_i32_2 = arith.constant 0 : i32
    return %c0_i32, %c0_i32_0, %c0_i32_1 : i32, i32, i32
  }
  func.func @transform_10(%arg0: i32) -> (i32, i32, i32) {
    %c0_i32 = arith.constant 0 : i32
    %c0_i32_0 = arith.constant 0 : i32
    %c0_i32_1 = arith.constant 0 : i32
    %c0_i32_2 = arith.constant 0 : i32
    return %c0_i32, %c0_i32_0, %c0_i32_1 : i32, i32, i32
  }
  func.func @transform_11(%arg0: i32) -> (i32, i32, i32) {
    %c0_i32 = arith.constant 0 : i32
    %c0_i32_0 = arith.constant 0 : i32
    %c0_i32_1 = arith.constant 0 : i32
    %c0_i32_2 = arith.constant 0 : i32
    return %c0_i32, %c0_i32_0, %c0_i32_1 : i32, i32, i32
  }
  func.func @transform_12(%arg0: i32) -> (i32, i32, i32) {
    %c0_i32 = arith.constant 0 : i32
    %c0_i32_0 = arith.constant 0 : i32
    %c0_i32_1 = arith.constant 0 : i32
    %c0_i32_2 = arith.constant 0 : i32
    return %c0_i32, %c0_i32_0, %c0_i32_1 : i32, i32, i32
  }
  func.func @transform_13(%arg0: i32) -> (i32, i32, i32) {
    %c0_i32 = arith.constant 0 : i32
    %c0_i32_0 = arith.constant 0 : i32
    %c0_i32_1 = arith.constant 0 : i32
    %c0_i32_2 = arith.constant 0 : i32
    return %c0_i32, %c0_i32_0, %c0_i32_1 : i32, i32, i32
  }
  func.func @transform_14(%arg0: i32) -> (i32, i32, i32) {
    %c0_i32 = arith.constant 0 : i32
    %c0_i32_0 = arith.constant 0 : i32
    %c0_i32_1 = arith.constant 0 : i32
    %c0_i32_2 = arith.constant 0 : i32
    return %c0_i32, %c0_i32_0, %c0_i32_1 : i32, i32, i32
  }
  func.func @transform_15(%arg0: i32) -> (i32, i32) {
    %c0_i32 = arith.constant 0 : i32
    %c0_i32_0 = arith.constant 0 : i32
    %c0_i32_1 = arith.constant 0 : i32
    return %c0_i32, %c0_i32_0 : i32, i32
  }
  func.func @transform_16(%arg0: i32) -> (i32, i32) {
    %c0_i32 = arith.constant 0 : i32
    %c0_i32_0 = arith.constant 0 : i32
    %c0_i32_1 = arith.constant 0 : i32
    return %c0_i32, %c0_i32_0 : i32, i32
  }
  func.func @transform_17(%arg0: i32) -> (i32, i32) {
    %c0_i32 = arith.constant 0 : i32
    %c0_i32_0 = arith.constant 0 : i32
    %c0_i32_1 = arith.constant 0 : i32
    return %c0_i32, %c0_i32_0 : i32, i32
  }
  func.func @transform_18(%arg0: i32) -> (i32, i32) {
    %c0_i32 = arith.constant 0 : i32
    %c0_i32_0 = arith.constant 0 : i32
    %c0_i32_1 = arith.constant 0 : i32
    return %c0_i32, %c0_i32_0 : i32, i32
  }
  func.func @transform_19(%arg0: i32) -> (i32, i32) {
    %c0_i32 = arith.constant 0 : i32
    %c0_i32_0 = arith.constant 0 : i32
    %c0_i32_1 = arith.constant 0 : i32
    return %c0_i32, %c0_i32_0 : i32, i32
  }
  func.func @transform_20(%arg0: i32) -> (i32, i32) {
    %c0_i32 = arith.constant 0 : i32
    %c0_i32_0 = arith.constant 0 : i32
    %c0_i32_1 = arith.constant 0 : i32
    return %c0_i32, %c0_i32_0 : i32, i32
  }
  func.func @transform_21(%arg0: i32) -> (i32, i32) {
    %c0_i32 = arith.constant 0 : i32
    %c0_i32_0 = arith.constant 0 : i32
    %c0_i32_1 = arith.constant 0 : i32
    return %c0_i32, %c0_i32_0 : i32, i32
  }
  func.func @transform_22(%arg0: i32) -> (i32, i32) {
    %c0_i32 = arith.constant 0 : i32
    %c0_i32_0 = arith.constant 0 : i32
    %c0_i32_1 = arith.constant 0 : i32
    return %c0_i32, %c0_i32_0 : i32, i32
  }
  func.func @transform_23(%arg0: i32) -> (i32, i32) {
    %c0_i32 = arith.constant 0 : i32
    %c0_i32_0 = arith.constant 0 : i32
    %c0_i32_1 = arith.constant 0 : i32
    return %c0_i32, %c0_i32_0 : i32, i32
  }
  func.func @transform_24(%arg0: i32) -> (i32, i32, i32) {
    %c0_i32 = arith.constant 0 : i32
    %c0_i32_0 = arith.constant 0 : i32
    %c0_i32_1 = arith.constant 0 : i32
    return %arg0, %c0_i32, %c0_i32_0 : i32, i32, i32
  }
  func.func @transform_25(%arg0: i32) -> (i32, i32, i32) {
    %c0_i32 = arith.constant 0 : i32
    %c0_i32_0 = arith.constant 0 : i32
    %c0_i32_1 = arith.constant 0 : i32
    return %arg0, %c0_i32, %c0_i32_0 : i32, i32, i32
  }
}

module attributes {stable_mosaic.version = 11 : i64} {
  func.func @_adapter_kernel(%arg0: i32, %arg1: memref<1x8x32xf32, #tpu.memory_space<vmem>>, %arg2: memref<1x10x16xf32, #tpu.memory_space<vmem>>, %arg3: memref<1x32xf32, #tpu.memory_space<vmem>>, %arg4: memref<1x32xf32, #tpu.memory_space<vmem>>, %arg5: memref<4x32x8xbf16, #tpu.memory_space<vmem>>, %arg6: memref<4x1x8xf32, #tpu.memory_space<vmem>>, %arg7: memref<4x16x8xbf16, #tpu.memory_space<vmem>>, %arg8: memref<4x1x8xf32, #tpu.memory_space<vmem>>, %arg9: memref<4x16x8xbf16, #tpu.memory_space<vmem>>, %arg10: memref<4x1x8xf32, #tpu.memory_space<vmem>>, %arg11: memref<4x1x8xf32, #tpu.memory_space<vmem>>, %arg12: memref<4x1x8xf32, #tpu.memory_space<vmem>>, %arg13: memref<4x8x32xbf16, #tpu.memory_space<vmem>>, %arg14: memref<1x32xf32, #tpu.memory_space<vmem>>, %arg15: memref<8x8xf32, #tpu.memory_space<vmem>>, %arg16: memref<8x8xf32, #tpu.memory_space<vmem>>, %arg17: memref<8x8xf32, #tpu.memory_space<vmem>>, %arg18: memref<10x8xf32, #tpu.memory_space<vmem>>, %arg19: memref<10x8xf32, #tpu.memory_space<vmem>>, %arg20: memref<1x32xf32, #tpu.memory_space<vmem>>, %arg21: memref<1x32xf32, #tpu.memory_space<vmem>>, %arg22: memref<32x16xbf16, #tpu.memory_space<vmem>>, %arg23: memref<1x16xf32, #tpu.memory_space<vmem>>, %arg24: memref<16x32xbf16, #tpu.memory_space<vmem>>, %arg25: memref<1x32xf32, #tpu.memory_space<vmem>>, %arg26: memref<1x8x32xf32, #tpu.memory_space<vmem>>) attributes {dimension_semantics = [#tpu.dimension_semantics<parallel>], iteration_bounds = array<i64: 2>, scalar_prefetch = 0 : i64, scratch_operands = 0 : i64, tpu.core_type = #tpu.core_type<tc>, window_params = [{transform_indices = @transform_0, window_bounds = array<i64: 1, 8, 32>}, {transform_indices = @transform_1, window_bounds = array<i64: 1, 10, 16>}, {pipeline_mode = #tpu.pipeline_mode<synchronous>, transform_indices = @transform_2, window_bounds = array<i64: 1, 32>}, {pipeline_mode = #tpu.pipeline_mode<synchronous>, transform_indices = @transform_3, window_bounds = array<i64: 1, 32>}, {pipeline_mode = #tpu.pipeline_mode<synchronous>, transform_indices = @transform_4, window_bounds = array<i64: 4, 32, 8>}, {pipeline_mode = #tpu.pipeline_mode<synchronous>, transform_indices = @transform_5, window_bounds = array<i64: 4, 1, 8>}, {pipeline_mode = #tpu.pipeline_mode<synchronous>, transform_indices = @transform_6, window_bounds = array<i64: 4, 16, 8>}, {pipeline_mode = #tpu.pipeline_mode<synchronous>, transform_indices = @transform_7, window_bounds = array<i64: 4, 1, 8>}, {pipeline_mode = #tpu.pipeline_mode<synchronous>, transform_indices = @transform_8, window_bounds = array<i64: 4, 16, 8>}, {pipeline_mode = #tpu.pipeline_mode<synchronous>, transform_indices = @transform_9, window_bounds = array<i64: 4, 1, 8>}, {pipeline_mode = #tpu.pipeline_mode<synchronous>, transform_indices = @transform_10, window_bounds = array<i64: 4, 1, 8>}, {pipeline_mode = #tpu.pipeline_mode<synchronous>, transform_indices = @transform_11, window_bounds = array<i64: 4, 1, 8>}, {pipeline_mode = #tpu.pipeline_mode<synchronous>, transform_indices = @transform_12, window_bounds = array<i64: 4, 8, 32>}, {pipeline_mode = #tpu.pipeline_mode<synchronous>, transform_indices = @transform_13, window_bounds = array<i64: 1, 32>}, {pipeline_mode = #tpu.pipeline_mode<synchronous>, transform_indices = @transform_14, window_bounds = array<i64: 8, 8>}, {pipeline_mode = #tpu.pipeline_mode<synchronous>, transform_indices = @transform_15, window_bounds = array<i64: 8, 8>}, {pipeline_mode = #tpu.pipeline_mode<synchronous>, transform_indices = @transform_16, window_bounds = array<i64: 8, 8>}, {pipeline_mode = #tpu.pipeline_mode<synchronous>, transform_indices = @transform_17, window_bounds = array<i64: 10, 8>}, {pipeline_mode = #tpu.pipeline_mode<synchronous>, transform_indices = @transform_18, window_bounds = array<i64: 10, 8>}, {pipeline_mode = #tpu.pipeline_mode<synchronous>, transform_indices = @transform_19, window_bounds = array<i64: 1, 32>}, {pipeline_mode = #tpu.pipeline_mode<synchronous>, transform_indices = @transform_20, window_bounds = array<i64: 1, 32>}, {pipeline_mode = #tpu.pipeline_mode<synchronous>, transform_indices = @transform_21, window_bounds = array<i64: 32, 16>}, {pipeline_mode = #tpu.pipeline_mode<synchronous>, transform_indices = @transform_22, window_bounds = array<i64: 1, 16>}, {pipeline_mode = #tpu.pipeline_mode<synchronous>, transform_indices = @transform_23, window_bounds = array<i64: 16, 32>}, {pipeline_mode = #tpu.pipeline_mode<synchronous>, transform_indices = @transform_24, window_bounds = array<i64: 1, 32>}, {transform_indices = @transform_25, window_bounds = array<i64: 1, 8, 32>}]} {
    %c0 = arith.constant 0 : index
    %c0_0 = arith.constant 0 : index
    %c0_1 = arith.constant 0 : index
    %0 = vector.load %arg1[%c0, %c0_0, %c0_1] : memref<1x8x32xf32, #tpu.memory_space<vmem>>, vector<1x8x32xf32>
    %1 = vector.shape_cast %0 : vector<1x8x32xf32> to vector<8x32xf32>
    %c0_2 = arith.constant 0 : index
    %c0_3 = arith.constant 0 : index
    %c0_4 = arith.constant 0 : index
    %2 = vector.load %arg2[%c0_2, %c0_3, %c0_4] : memref<1x10x16xf32, #tpu.memory_space<vmem>>, vector<1x10x16xf32>
    %3 = vector.shape_cast %2 : vector<1x10x16xf32> to vector<10x16xf32>
    %cst = arith.constant dense<0.000000e+00> : vector<8xf32>
    %4 = vector.multi_reduction <add>, %1, %cst [1] : vector<8x32xf32> to vector<8xf32>
    %5 = vector.shape_cast %4 : vector<8xf32> to vector<8x1xf32>
    %cst_5 = arith.constant 3.200000e+01 : f32
    %6 = vector.broadcast %cst_5 : f32 to vector<8x1xf32>
    %7 = arith.divf %5, %6 : vector<8x1xf32>
    %8 = vector.broadcast %7 : vector<8x1xf32> to vector<8x32xf32>
    %9 = arith.subf %1, %8 : vector<8x32xf32>
    %10 = arith.mulf %9, %9 : vector<8x32xf32>
    %cst_6 = arith.constant dense<0.000000e+00> : vector<8xf32>
    %11 = vector.multi_reduction <add>, %10, %cst_6 [1] : vector<8x32xf32> to vector<8xf32>
    %12 = vector.shape_cast %11 : vector<8xf32> to vector<8x1xf32>
    %cst_7 = arith.constant 3.200000e+01 : f32
    %13 = vector.broadcast %cst_7 : f32 to vector<8x1xf32>
    %14 = arith.divf %12, %13 : vector<8x1xf32>
    %15 = vector.broadcast %7 : vector<8x1xf32> to vector<8x32xf32>
    %16 = arith.subf %1, %15 : vector<8x32xf32>
    %cst_8 = arith.constant 9.99999996E-13 : f32
    %17 = vector.broadcast %cst_8 : f32 to vector<8x1xf32>
    %18 = arith.addf %14, %17 : vector<8x1xf32>
    %19 = math.rsqrt %18 : vector<8x1xf32>
    %20 = vector.broadcast %19 : vector<8x1xf32> to vector<8x32xf32>
    %21 = arith.mulf %16, %20 : vector<8x32xf32>
    %c0_9 = arith.constant 0 : index
    %c0_10 = arith.constant 0 : index
    %22 = vector.load %arg3[%c0_9, %c0_10] : memref<1x32xf32, #tpu.memory_space<vmem>>, vector<1x32xf32>
    %23 = vector.broadcast %22 : vector<1x32xf32> to vector<8x32xf32>
    %24 = arith.mulf %21, %23 : vector<8x32xf32>
    %c0_11 = arith.constant 0 : index
    %c0_12 = arith.constant 0 : index
    %25 = vector.load %arg4[%c0_11, %c0_12] : memref<1x32xf32, #tpu.memory_space<vmem>>, vector<1x32xf32>
    %26 = vector.broadcast %25 : vector<1x32xf32> to vector<8x32xf32>
    %27 = arith.addf %24, %26 : vector<8x32xf32>
    %28 = arith.truncf %27 : vector<8x32xf32> to vector<8x32xbf16>
    %29 = arith.truncf %3 : vector<10x16xf32> to vector<10x16xbf16>
    %c0_13 = arith.constant 0 : index
    %c0_14 = arith.constant 0 : index
    %30 = vector.load %arg15[%c0_13, %c0_14] : memref<8x8xf32, #tpu.memory_space<vmem>>, vector<8x8xf32>
    %c0_15 = arith.constant 0 : index
    %c0_16 = arith.constant 0 : index
    %31 = vector.load %arg16[%c0_15, %c0_16] : memref<8x8xf32, #tpu.memory_space<vmem>>, vector<8x8xf32>
    %c0_17 = arith.constant 0 : index
    %c0_18 = arith.constant 0 : index
    %32 = vector.load %arg17[%c0_17, %c0_18] : memref<8x8xf32, #tpu.memory_space<vmem>>, vector<8x8xf32>
    %c0_19 = arith.constant 0 : index
    %c0_20 = arith.constant 0 : index
    %33 = vector.load %arg18[%c0_19, %c0_20] : memref<10x8xf32, #tpu.memory_space<vmem>>, vector<10x8xf32>
    %c0_21 = arith.constant 0 : index
    %c0_22 = arith.constant 0 : index
    %34 = vector.load %arg19[%c0_21, %c0_22] : memref<10x8xf32, #tpu.memory_space<vmem>>, vector<10x8xf32>
    %cst_23 = arith.constant 0.000000e+00 : f32
    %35 = vector.broadcast %cst_23 : f32 to vector<8x32xf32>
    %c0_24 = arith.constant 0 : index
    %c0_25 = arith.constant 0 : index
    %c0_26 = arith.constant 0 : index
    %36 = vector.load %arg5[%c0_24, %c0_25, %c0_26] : memref<4x32x8xbf16, #tpu.memory_space<vmem>>, vector<1x32x8xbf16>
    %37 = vector.shape_cast %36 : vector<1x32x8xbf16> to vector<32x8xbf16>
    %cst_27 = arith.constant dense<0.000000e+00> : vector<8x8xf32>
    %38 = tpu.matmul %28, %37, %cst_27 {dimension_numbers = #tpu.dot_dimension_numbers<[1], [0], [0], [1], [0, 0, 1, 1], [], []>} : vector<8x32xbf16>, vector<32x8xbf16>, vector<8x8xf32> -> vector<8x8xf32>
    %c0_28 = arith.constant 0 : index
    %c0_29 = arith.constant 0 : index
    %c0_30 = arith.constant 0 : index
    %39 = vector.load %arg6[%c0_28, %c0_29, %c0_30] : memref<4x1x8xf32, #tpu.memory_space<vmem>>, vector<1x1x8xf32>
    %40 = vector.shape_cast %39 : vector<1x1x8xf32> to vector<1x8xf32>
    %41 = vector.broadcast %40 : vector<1x8xf32> to vector<8x8xf32>
    %42 = arith.addf %38, %41 : vector<8x8xf32>
    %43 = arith.mulf %42, %31 : vector<8x8xf32>
    %cst_31 = arith.constant dense<0.000000e+00> : vector<8x8xf32>
    %44 = tpu.matmul %42, %30, %cst_31 {dimension_numbers = #tpu.dot_dimension_numbers<[1], [0], [0], [1], [0, 0, 1, 1], [], []>} : vector<8x8xf32>, vector<8x8xf32>, vector<8x8xf32> -> vector<8x8xf32>
    %45 = arith.mulf %44, %32 : vector<8x8xf32>
    %46 = arith.addf %43, %45 : vector<8x8xf32>
    %c0_32 = arith.constant 0 : index
    %c0_33 = arith.constant 0 : index
    %c0_34 = arith.constant 0 : index
    %47 = vector.load %arg7[%c0_32, %c0_33, %c0_34] : memref<4x16x8xbf16, #tpu.memory_space<vmem>>, vector<1x16x8xbf16>
    %48 = vector.shape_cast %47 : vector<1x16x8xbf16> to vector<16x8xbf16>
    %cst_35 = arith.constant dense<0.000000e+00> : vector<10x8xf32>
    %49 = tpu.matmul %29, %48, %cst_35 {dimension_numbers = #tpu.dot_dimension_numbers<[1], [0], [0], [1], [0, 0, 1, 1], [], []>} : vector<10x16xbf16>, vector<16x8xbf16>, vector<10x8xf32> -> vector<10x8xf32>
    %c0_36 = arith.constant 0 : index
    %c0_37 = arith.constant 0 : index
    %c0_38 = arith.constant 0 : index
    %50 = vector.load %arg8[%c0_36, %c0_37, %c0_38] : memref<4x1x8xf32, #tpu.memory_space<vmem>>, vector<1x1x8xf32>
    %51 = vector.shape_cast %50 : vector<1x1x8xf32> to vector<1x8xf32>
    %52 = vector.broadcast %51 : vector<1x8xf32> to vector<10x8xf32>
    %53 = arith.addf %49, %52 : vector<10x8xf32>
    %54 = arith.mulf %53, %33 : vector<10x8xf32>
    %cst_39 = arith.constant dense<0.000000e+00> : vector<10x8xf32>
    %55 = tpu.matmul %53, %30, %cst_39 {dimension_numbers = #tpu.dot_dimension_numbers<[1], [0], [0], [1], [0, 0, 1, 1], [], []>} : vector<10x8xf32>, vector<8x8xf32>, vector<10x8xf32> -> vector<10x8xf32>
    %56 = arith.mulf %55, %34 : vector<10x8xf32>
    %57 = arith.addf %54, %56 : vector<10x8xf32>
    %c0_40 = arith.constant 0 : index
    %c0_41 = arith.constant 0 : index
    %c0_42 = arith.constant 0 : index
    %58 = vector.load %arg9[%c0_40, %c0_41, %c0_42] : memref<4x16x8xbf16, #tpu.memory_space<vmem>>, vector<1x16x8xbf16>
    %59 = vector.shape_cast %58 : vector<1x16x8xbf16> to vector<16x8xbf16>
    %cst_43 = arith.constant dense<0.000000e+00> : vector<10x8xf32>
    %60 = tpu.matmul %29, %59, %cst_43 {dimension_numbers = #tpu.dot_dimension_numbers<[1], [0], [0], [1], [0, 0, 1, 1], [], []>} : vector<10x16xbf16>, vector<16x8xbf16>, vector<10x8xf32> -> vector<10x8xf32>
    %c0_44 = arith.constant 0 : index
    %c0_45 = arith.constant 0 : index
    %c0_46 = arith.constant 0 : index
    %61 = vector.load %arg10[%c0_44, %c0_45, %c0_46] : memref<4x1x8xf32, #tpu.memory_space<vmem>>, vector<1x1x8xf32>
    %62 = vector.shape_cast %61 : vector<1x1x8xf32> to vector<1x8xf32>
    %63 = vector.broadcast %62 : vector<1x8xf32> to vector<10x8xf32>
    %64 = arith.addf %60, %63 : vector<10x8xf32>
    %65 = arith.truncf %46 : vector<8x8xf32> to vector<8x8xbf16>
    %66 = arith.truncf %57 : vector<10x8xf32> to vector<10x8xbf16>
    %cst_47 = arith.constant dense<0.000000e+00> : vector<8x10xf32>
    %67 = tpu.matmul %65, %66, %cst_47 {dimension_numbers = #tpu.dot_dimension_numbers<[1], [1], [0], [0], [0, 0, 1, 0], [], []>} : vector<8x8xbf16>, vector<10x8xbf16>, vector<8x10xf32> -> vector<8x10xf32>
    %c0_48 = arith.constant 0 : index
    %c0_49 = arith.constant 0 : index
    %c0_50 = arith.constant 0 : index
    %68 = vector.load %arg11[%c0_48, %c0_49, %c0_50] : memref<4x1x8xf32, #tpu.memory_space<vmem>>, vector<1x1x8xf32>
    %69 = vector.shape_cast %68 : vector<1x1x8xf32> to vector<1x8xf32>
    %cst_51 = arith.constant dense<0.000000e+00> : vector<8x1xf32>
    %70 = tpu.matmul %46, %69, %cst_51 {dimension_numbers = #tpu.dot_dimension_numbers<[1], [1], [0], [0], [0, 0, 1, 0], [], []>} : vector<8x8xf32>, vector<1x8xf32>, vector<8x1xf32> -> vector<8x1xf32>
    %cst_52 = arith.constant dense<0xFF800000> : vector<8xf32>
    %71 = vector.multi_reduction <maximumf>, %67, %cst_52 [1] : vector<8x10xf32> to vector<8xf32>
    %72 = vector.shape_cast %71 : vector<8xf32> to vector<8x1xf32>
    %73 = arith.maximumf %72, %70 : vector<8x1xf32>
    %74 = vector.broadcast %73 : vector<8x1xf32> to vector<8x10xf32>
    %75 = arith.subf %67, %74 : vector<8x10xf32>
    %76 = math.exp %75 : vector<8x10xf32>
    %77 = arith.subf %70, %73 : vector<8x1xf32>
    %78 = math.exp %77 : vector<8x1xf32>
    %cst_53 = arith.constant dense<0.000000e+00> : vector<8xf32>
    %79 = vector.multi_reduction <add>, %76, %cst_53 [1] : vector<8x10xf32> to vector<8xf32>
    %80 = vector.shape_cast %79 : vector<8xf32> to vector<8x1xf32>
    %81 = arith.addf %80, %78 : vector<8x1xf32>
    %82 = tpu.reciprocal %81 {approx = true} : vector<8x1xf32> -> vector<8x1xf32>
    %83 = vector.broadcast %82 : vector<8x1xf32> to vector<8x10xf32>
    %84 = arith.mulf %76, %83 : vector<8x10xf32>
    %85 = arith.truncf %84 : vector<8x10xf32> to vector<8x10xbf16>
    %86 = arith.truncf %64 : vector<10x8xf32> to vector<10x8xbf16>
    %cst_54 = arith.constant dense<0.000000e+00> : vector<8x8xf32>
    %87 = tpu.matmul %85, %86, %cst_54 {dimension_numbers = #tpu.dot_dimension_numbers<[1], [0], [0], [1], [0, 0, 1, 1], [], []>} : vector<8x10xbf16>, vector<10x8xbf16>, vector<8x8xf32> -> vector<8x8xf32>
    %88 = arith.mulf %78, %82 : vector<8x1xf32>
    %c0_55 = arith.constant 0 : index
    %c0_56 = arith.constant 0 : index
    %c0_57 = arith.constant 0 : index
    %89 = vector.load %arg12[%c0_55, %c0_56, %c0_57] : memref<4x1x8xf32, #tpu.memory_space<vmem>>, vector<1x1x8xf32>
    %90 = vector.shape_cast %89 : vector<1x1x8xf32> to vector<1x8xf32>
    %91 = vector.broadcast %88 : vector<8x1xf32> to vector<8x8xf32>
    %92 = vector.broadcast %90 : vector<1x8xf32> to vector<8x8xf32>
    %93 = arith.mulf %91, %92 : vector<8x8xf32>
    %94 = arith.addf %87, %93 : vector<8x8xf32>
    %95 = arith.truncf %94 : vector<8x8xf32> to vector<8x8xbf16>
    %c0_58 = arith.constant 0 : index
    %c0_59 = arith.constant 0 : index
    %c0_60 = arith.constant 0 : index
    %96 = vector.load %arg13[%c0_58, %c0_59, %c0_60] : memref<4x8x32xbf16, #tpu.memory_space<vmem>>, vector<1x8x32xbf16>
    %97 = vector.shape_cast %96 : vector<1x8x32xbf16> to vector<8x32xbf16>
    %cst_61 = arith.constant dense<0.000000e+00> : vector<8x32xf32>
    %98 = tpu.matmul %95, %97, %cst_61 {dimension_numbers = #tpu.dot_dimension_numbers<[1], [0], [0], [1], [0, 0, 1, 1], [], []>} : vector<8x8xbf16>, vector<8x32xbf16>, vector<8x32xf32> -> vector<8x32xf32>
    %99 = arith.addf %35, %98 : vector<8x32xf32>
    %c1 = arith.constant 1 : index
    %c0_62 = arith.constant 0 : index
    %c0_63 = arith.constant 0 : index
    %100 = vector.load %arg5[%c1, %c0_62, %c0_63] : memref<4x32x8xbf16, #tpu.memory_space<vmem>>, vector<1x32x8xbf16>
    %101 = vector.shape_cast %100 : vector<1x32x8xbf16> to vector<32x8xbf16>
    %cst_64 = arith.constant dense<0.000000e+00> : vector<8x8xf32>
    %102 = tpu.matmul %28, %101, %cst_64 {dimension_numbers = #tpu.dot_dimension_numbers<[1], [0], [0], [1], [0, 0, 1, 1], [], []>} : vector<8x32xbf16>, vector<32x8xbf16>, vector<8x8xf32> -> vector<8x8xf32>
    %c1_65 = arith.constant 1 : index
    %c0_66 = arith.constant 0 : index
    %c0_67 = arith.constant 0 : index
    %103 = vector.load %arg6[%c1_65, %c0_66, %c0_67] : memref<4x1x8xf32, #tpu.memory_space<vmem>>, vector<1x1x8xf32>
    %104 = vector.shape_cast %103 : vector<1x1x8xf32> to vector<1x8xf32>
    %105 = vector.broadcast %104 : vector<1x8xf32> to vector<8x8xf32>
    %106 = arith.addf %102, %105 : vector<8x8xf32>
    %107 = arith.mulf %106, %31 : vector<8x8xf32>
    %cst_68 = arith.constant dense<0.000000e+00> : vector<8x8xf32>
    %108 = tpu.matmul %106, %30, %cst_68 {dimension_numbers = #tpu.dot_dimension_numbers<[1], [0], [0], [1], [0, 0, 1, 1], [], []>} : vector<8x8xf32>, vector<8x8xf32>, vector<8x8xf32> -> vector<8x8xf32>
    %109 = arith.mulf %108, %32 : vector<8x8xf32>
    %110 = arith.addf %107, %109 : vector<8x8xf32>
    %c1_69 = arith.constant 1 : index
    %c0_70 = arith.constant 0 : index
    %c0_71 = arith.constant 0 : index
    %111 = vector.load %arg7[%c1_69, %c0_70, %c0_71] : memref<4x16x8xbf16, #tpu.memory_space<vmem>>, vector<1x16x8xbf16>
    %112 = vector.shape_cast %111 : vector<1x16x8xbf16> to vector<16x8xbf16>
    %cst_72 = arith.constant dense<0.000000e+00> : vector<10x8xf32>
    %113 = tpu.matmul %29, %112, %cst_72 {dimension_numbers = #tpu.dot_dimension_numbers<[1], [0], [0], [1], [0, 0, 1, 1], [], []>} : vector<10x16xbf16>, vector<16x8xbf16>, vector<10x8xf32> -> vector<10x8xf32>
    %c1_73 = arith.constant 1 : index
    %c0_74 = arith.constant 0 : index
    %c0_75 = arith.constant 0 : index
    %114 = vector.load %arg8[%c1_73, %c0_74, %c0_75] : memref<4x1x8xf32, #tpu.memory_space<vmem>>, vector<1x1x8xf32>
    %115 = vector.shape_cast %114 : vector<1x1x8xf32> to vector<1x8xf32>
    %116 = vector.broadcast %115 : vector<1x8xf32> to vector<10x8xf32>
    %117 = arith.addf %113, %116 : vector<10x8xf32>
    %118 = arith.mulf %117, %33 : vector<10x8xf32>
    %cst_76 = arith.constant dense<0.000000e+00> : vector<10x8xf32>
    %119 = tpu.matmul %117, %30, %cst_76 {dimension_numbers = #tpu.dot_dimension_numbers<[1], [0], [0], [1], [0, 0, 1, 1], [], []>} : vector<10x8xf32>, vector<8x8xf32>, vector<10x8xf32> -> vector<10x8xf32>
    %120 = arith.mulf %119, %34 : vector<10x8xf32>
    %121 = arith.addf %118, %120 : vector<10x8xf32>
    %c1_77 = arith.constant 1 : index
    %c0_78 = arith.constant 0 : index
    %c0_79 = arith.constant 0 : index
    %122 = vector.load %arg9[%c1_77, %c0_78, %c0_79] : memref<4x16x8xbf16, #tpu.memory_space<vmem>>, vector<1x16x8xbf16>
    %123 = vector.shape_cast %122 : vector<1x16x8xbf16> to vector<16x8xbf16>
    %cst_80 = arith.constant dense<0.000000e+00> : vector<10x8xf32>
    %124 = tpu.matmul %29, %123, %cst_80 {dimension_numbers = #tpu.dot_dimension_numbers<[1], [0], [0], [1], [0, 0, 1, 1], [], []>} : vector<10x16xbf16>, vector<16x8xbf16>, vector<10x8xf32> -> vector<10x8xf32>
    %c1_81 = arith.constant 1 : index
    %c0_82 = arith.constant 0 : index
    %c0_83 = arith.constant 0 : index
    %125 = vector.load %arg10[%c1_81, %c0_82, %c0_83] : memref<4x1x8xf32, #tpu.memory_space<vmem>>, vector<1x1x8xf32>
    %126 = vector.shape_cast %125 : vector<1x1x8xf32> to vector<1x8xf32>
    %127 = vector.broadcast %126 : vector<1x8xf32> to vector<10x8xf32>
    %128 = arith.addf %124, %127 : vector<10x8xf32>
    %129 = arith.truncf %110 : vector<8x8xf32> to vector<8x8xbf16>
    %130 = arith.truncf %121 : vector<10x8xf32> to vector<10x8xbf16>
    %cst_84 = arith.constant dense<0.000000e+00> : vector<8x10xf32>
    %131 = tpu.matmul %129, %130, %cst_84 {dimension_numbers = #tpu.dot_dimension_numbers<[1], [1], [0], [0], [0, 0, 1, 0], [], []>} : vector<8x8xbf16>, vector<10x8xbf16>, vector<8x10xf32> -> vector<8x10xf32>
    %c1_85 = arith.constant 1 : index
    %c0_86 = arith.constant 0 : index
    %c0_87 = arith.constant 0 : index
    %132 = vector.load %arg11[%c1_85, %c0_86, %c0_87] : memref<4x1x8xf32, #tpu.memory_space<vmem>>, vector<1x1x8xf32>
    %133 = vector.shape_cast %132 : vector<1x1x8xf32> to vector<1x8xf32>
    %cst_88 = arith.constant dense<0.000000e+00> : vector<8x1xf32>
    %134 = tpu.matmul %110, %133, %cst_88 {dimension_numbers = #tpu.dot_dimension_numbers<[1], [1], [0], [0], [0, 0, 1, 0], [], []>} : vector<8x8xf32>, vector<1x8xf32>, vector<8x1xf32> -> vector<8x1xf32>
    %cst_89 = arith.constant dense<0xFF800000> : vector<8xf32>
    %135 = vector.multi_reduction <maximumf>, %131, %cst_89 [1] : vector<8x10xf32> to vector<8xf32>
    %136 = vector.shape_cast %135 : vector<8xf32> to vector<8x1xf32>
    %137 = arith.maximumf %136, %134 : vector<8x1xf32>
    %138 = vector.broadcast %137 : vector<8x1xf32> to vector<8x10xf32>
    %139 = arith.subf %131, %138 : vector<8x10xf32>
    %140 = math.exp %139 : vector<8x10xf32>
    %141 = arith.subf %134, %137 : vector<8x1xf32>
    %142 = math.exp %141 : vector<8x1xf32>
    %cst_90 = arith.constant dense<0.000000e+00> : vector<8xf32>
    %143 = vector.multi_reduction <add>, %140, %cst_90 [1] : vector<8x10xf32> to vector<8xf32>
    %144 = vector.shape_cast %143 : vector<8xf32> to vector<8x1xf32>
    %145 = arith.addf %144, %142 : vector<8x1xf32>
    %146 = tpu.reciprocal %145 {approx = true} : vector<8x1xf32> -> vector<8x1xf32>
    %147 = vector.broadcast %146 : vector<8x1xf32> to vector<8x10xf32>
    %148 = arith.mulf %140, %147 : vector<8x10xf32>
    %149 = arith.truncf %148 : vector<8x10xf32> to vector<8x10xbf16>
    %150 = arith.truncf %128 : vector<10x8xf32> to vector<10x8xbf16>
    %cst_91 = arith.constant dense<0.000000e+00> : vector<8x8xf32>
    %151 = tpu.matmul %149, %150, %cst_91 {dimension_numbers = #tpu.dot_dimension_numbers<[1], [0], [0], [1], [0, 0, 1, 1], [], []>} : vector<8x10xbf16>, vector<10x8xbf16>, vector<8x8xf32> -> vector<8x8xf32>
    %152 = arith.mulf %142, %146 : vector<8x1xf32>
    %c1_92 = arith.constant 1 : index
    %c0_93 = arith.constant 0 : index
    %c0_94 = arith.constant 0 : index
    %153 = vector.load %arg12[%c1_92, %c0_93, %c0_94] : memref<4x1x8xf32, #tpu.memory_space<vmem>>, vector<1x1x8xf32>
    %154 = vector.shape_cast %153 : vector<1x1x8xf32> to vector<1x8xf32>
    %155 = vector.broadcast %152 : vector<8x1xf32> to vector<8x8xf32>
    %156 = vector.broadcast %154 : vector<1x8xf32> to vector<8x8xf32>
    %157 = arith.mulf %155, %156 : vector<8x8xf32>
    %158 = arith.addf %151, %157 : vector<8x8xf32>
    %159 = arith.truncf %158 : vector<8x8xf32> to vector<8x8xbf16>
    %c1_95 = arith.constant 1 : index
    %c0_96 = arith.constant 0 : index
    %c0_97 = arith.constant 0 : index
    %160 = vector.load %arg13[%c1_95, %c0_96, %c0_97] : memref<4x8x32xbf16, #tpu.memory_space<vmem>>, vector<1x8x32xbf16>
    %161 = vector.shape_cast %160 : vector<1x8x32xbf16> to vector<8x32xbf16>
    %cst_98 = arith.constant dense<0.000000e+00> : vector<8x32xf32>
    %162 = tpu.matmul %159, %161, %cst_98 {dimension_numbers = #tpu.dot_dimension_numbers<[1], [0], [0], [1], [0, 0, 1, 1], [], []>} : vector<8x8xbf16>, vector<8x32xbf16>, vector<8x32xf32> -> vector<8x32xf32>
    %163 = arith.addf %99, %162 : vector<8x32xf32>
    %c2 = arith.constant 2 : index
    %c0_99 = arith.constant 0 : index
    %c0_100 = arith.constant 0 : index
    %164 = vector.load %arg5[%c2, %c0_99, %c0_100] : memref<4x32x8xbf16, #tpu.memory_space<vmem>>, vector<1x32x8xbf16>
    %165 = vector.shape_cast %164 : vector<1x32x8xbf16> to vector<32x8xbf16>
    %cst_101 = arith.constant dense<0.000000e+00> : vector<8x8xf32>
    %166 = tpu.matmul %28, %165, %cst_101 {dimension_numbers = #tpu.dot_dimension_numbers<[1], [0], [0], [1], [0, 0, 1, 1], [], []>} : vector<8x32xbf16>, vector<32x8xbf16>, vector<8x8xf32> -> vector<8x8xf32>
    %c2_102 = arith.constant 2 : index
    %c0_103 = arith.constant 0 : index
    %c0_104 = arith.constant 0 : index
    %167 = vector.load %arg6[%c2_102, %c0_103, %c0_104] : memref<4x1x8xf32, #tpu.memory_space<vmem>>, vector<1x1x8xf32>
    %168 = vector.shape_cast %167 : vector<1x1x8xf32> to vector<1x8xf32>
    %169 = vector.broadcast %168 : vector<1x8xf32> to vector<8x8xf32>
    %170 = arith.addf %166, %169 : vector<8x8xf32>
    %171 = arith.mulf %170, %31 : vector<8x8xf32>
    %cst_105 = arith.constant dense<0.000000e+00> : vector<8x8xf32>
    %172 = tpu.matmul %170, %30, %cst_105 {dimension_numbers = #tpu.dot_dimension_numbers<[1], [0], [0], [1], [0, 0, 1, 1], [], []>} : vector<8x8xf32>, vector<8x8xf32>, vector<8x8xf32> -> vector<8x8xf32>
    %173 = arith.mulf %172, %32 : vector<8x8xf32>
    %174 = arith.addf %171, %173 : vector<8x8xf32>
    %c2_106 = arith.constant 2 : index
    %c0_107 = arith.constant 0 : index
    %c0_108 = arith.constant 0 : index
    %175 = vector.load %arg7[%c2_106, %c0_107, %c0_108] : memref<4x16x8xbf16, #tpu.memory_space<vmem>>, vector<1x16x8xbf16>
    %176 = vector.shape_cast %175 : vector<1x16x8xbf16> to vector<16x8xbf16>
    %cst_109 = arith.constant dense<0.000000e+00> : vector<10x8xf32>
    %177 = tpu.matmul %29, %176, %cst_109 {dimension_numbers = #tpu.dot_dimension_numbers<[1], [0], [0], [1], [0, 0, 1, 1], [], []>} : vector<10x16xbf16>, vector<16x8xbf16>, vector<10x8xf32> -> vector<10x8xf32>
    %c2_110 = arith.constant 2 : index
    %c0_111 = arith.constant 0 : index
    %c0_112 = arith.constant 0 : index
    %178 = vector.load %arg8[%c2_110, %c0_111, %c0_112] : memref<4x1x8xf32, #tpu.memory_space<vmem>>, vector<1x1x8xf32>
    %179 = vector.shape_cast %178 : vector<1x1x8xf32> to vector<1x8xf32>
    %180 = vector.broadcast %179 : vector<1x8xf32> to vector<10x8xf32>
    %181 = arith.addf %177, %180 : vector<10x8xf32>
    %182 = arith.mulf %181, %33 : vector<10x8xf32>
    %cst_113 = arith.constant dense<0.000000e+00> : vector<10x8xf32>
    %183 = tpu.matmul %181, %30, %cst_113 {dimension_numbers = #tpu.dot_dimension_numbers<[1], [0], [0], [1], [0, 0, 1, 1], [], []>} : vector<10x8xf32>, vector<8x8xf32>, vector<10x8xf32> -> vector<10x8xf32>
    %184 = arith.mulf %183, %34 : vector<10x8xf32>
    %185 = arith.addf %182, %184 : vector<10x8xf32>
    %c2_114 = arith.constant 2 : index
    %c0_115 = arith.constant 0 : index
    %c0_116 = arith.constant 0 : index
    %186 = vector.load %arg9[%c2_114, %c0_115, %c0_116] : memref<4x16x8xbf16, #tpu.memory_space<vmem>>, vector<1x16x8xbf16>
    %187 = vector.shape_cast %186 : vector<1x16x8xbf16> to vector<16x8xbf16>
    %cst_117 = arith.constant dense<0.000000e+00> : vector<10x8xf32>
    %188 = tpu.matmul %29, %187, %cst_117 {dimension_numbers = #tpu.dot_dimension_numbers<[1], [0], [0], [1], [0, 0, 1, 1], [], []>} : vector<10x16xbf16>, vector<16x8xbf16>, vector<10x8xf32> -> vector<10x8xf32>
    %c2_118 = arith.constant 2 : index
    %c0_119 = arith.constant 0 : index
    %c0_120 = arith.constant 0 : index
    %189 = vector.load %arg10[%c2_118, %c0_119, %c0_120] : memref<4x1x8xf32, #tpu.memory_space<vmem>>, vector<1x1x8xf32>
    %190 = vector.shape_cast %189 : vector<1x1x8xf32> to vector<1x8xf32>
    %191 = vector.broadcast %190 : vector<1x8xf32> to vector<10x8xf32>
    %192 = arith.addf %188, %191 : vector<10x8xf32>
    %193 = arith.truncf %174 : vector<8x8xf32> to vector<8x8xbf16>
    %194 = arith.truncf %185 : vector<10x8xf32> to vector<10x8xbf16>
    %cst_121 = arith.constant dense<0.000000e+00> : vector<8x10xf32>
    %195 = tpu.matmul %193, %194, %cst_121 {dimension_numbers = #tpu.dot_dimension_numbers<[1], [1], [0], [0], [0, 0, 1, 0], [], []>} : vector<8x8xbf16>, vector<10x8xbf16>, vector<8x10xf32> -> vector<8x10xf32>
    %c2_122 = arith.constant 2 : index
    %c0_123 = arith.constant 0 : index
    %c0_124 = arith.constant 0 : index
    %196 = vector.load %arg11[%c2_122, %c0_123, %c0_124] : memref<4x1x8xf32, #tpu.memory_space<vmem>>, vector<1x1x8xf32>
    %197 = vector.shape_cast %196 : vector<1x1x8xf32> to vector<1x8xf32>
    %cst_125 = arith.constant dense<0.000000e+00> : vector<8x1xf32>
    %198 = tpu.matmul %174, %197, %cst_125 {dimension_numbers = #tpu.dot_dimension_numbers<[1], [1], [0], [0], [0, 0, 1, 0], [], []>} : vector<8x8xf32>, vector<1x8xf32>, vector<8x1xf32> -> vector<8x1xf32>
    %cst_126 = arith.constant dense<0xFF800000> : vector<8xf32>
    %199 = vector.multi_reduction <maximumf>, %195, %cst_126 [1] : vector<8x10xf32> to vector<8xf32>
    %200 = vector.shape_cast %199 : vector<8xf32> to vector<8x1xf32>
    %201 = arith.maximumf %200, %198 : vector<8x1xf32>
    %202 = vector.broadcast %201 : vector<8x1xf32> to vector<8x10xf32>
    %203 = arith.subf %195, %202 : vector<8x10xf32>
    %204 = math.exp %203 : vector<8x10xf32>
    %205 = arith.subf %198, %201 : vector<8x1xf32>
    %206 = math.exp %205 : vector<8x1xf32>
    %cst_127 = arith.constant dense<0.000000e+00> : vector<8xf32>
    %207 = vector.multi_reduction <add>, %204, %cst_127 [1] : vector<8x10xf32> to vector<8xf32>
    %208 = vector.shape_cast %207 : vector<8xf32> to vector<8x1xf32>
    %209 = arith.addf %208, %206 : vector<8x1xf32>
    %210 = tpu.reciprocal %209 {approx = true} : vector<8x1xf32> -> vector<8x1xf32>
    %211 = vector.broadcast %210 : vector<8x1xf32> to vector<8x10xf32>
    %212 = arith.mulf %204, %211 : vector<8x10xf32>
    %213 = arith.truncf %212 : vector<8x10xf32> to vector<8x10xbf16>
    %214 = arith.truncf %192 : vector<10x8xf32> to vector<10x8xbf16>
    %cst_128 = arith.constant dense<0.000000e+00> : vector<8x8xf32>
    %215 = tpu.matmul %213, %214, %cst_128 {dimension_numbers = #tpu.dot_dimension_numbers<[1], [0], [0], [1], [0, 0, 1, 1], [], []>} : vector<8x10xbf16>, vector<10x8xbf16>, vector<8x8xf32> -> vector<8x8xf32>
    %216 = arith.mulf %206, %210 : vector<8x1xf32>
    %c2_129 = arith.constant 2 : index
    %c0_130 = arith.constant 0 : index
    %c0_131 = arith.constant 0 : index
    %217 = vector.load %arg12[%c2_129, %c0_130, %c0_131] : memref<4x1x8xf32, #tpu.memory_space<vmem>>, vector<1x1x8xf32>
    %218 = vector.shape_cast %217 : vector<1x1x8xf32> to vector<1x8xf32>
    %219 = vector.broadcast %216 : vector<8x1xf32> to vector<8x8xf32>
    %220 = vector.broadcast %218 : vector<1x8xf32> to vector<8x8xf32>
    %221 = arith.mulf %219, %220 : vector<8x8xf32>
    %222 = arith.addf %215, %221 : vector<8x8xf32>
    %223 = arith.truncf %222 : vector<8x8xf32> to vector<8x8xbf16>
    %c2_132 = arith.constant 2 : index
    %c0_133 = arith.constant 0 : index
    %c0_134 = arith.constant 0 : index
    %224 = vector.load %arg13[%c2_132, %c0_133, %c0_134] : memref<4x8x32xbf16, #tpu.memory_space<vmem>>, vector<1x8x32xbf16>
    %225 = vector.shape_cast %224 : vector<1x8x32xbf16> to vector<8x32xbf16>
    %cst_135 = arith.constant dense<0.000000e+00> : vector<8x32xf32>
    %226 = tpu.matmul %223, %225, %cst_135 {dimension_numbers = #tpu.dot_dimension_numbers<[1], [0], [0], [1], [0, 0, 1, 1], [], []>} : vector<8x8xbf16>, vector<8x32xbf16>, vector<8x32xf32> -> vector<8x32xf32>
    %227 = arith.addf %163, %226 : vector<8x32xf32>
    %c3 = arith.constant 3 : index
    %c0_136 = arith.constant 0 : index
    %c0_137 = arith.constant 0 : index
    %228 = vector.load %arg5[%c3, %c0_136, %c0_137] : memref<4x32x8xbf16, #tpu.memory_space<vmem>>, vector<1x32x8xbf16>
    %229 = vector.shape_cast %228 : vector<1x32x8xbf16> to vector<32x8xbf16>
    %cst_138 = arith.constant dense<0.000000e+00> : vector<8x8xf32>
    %230 = tpu.matmul %28, %229, %cst_138 {dimension_numbers = #tpu.dot_dimension_numbers<[1], [0], [0], [1], [0, 0, 1, 1], [], []>} : vector<8x32xbf16>, vector<32x8xbf16>, vector<8x8xf32> -> vector<8x8xf32>
    %c3_139 = arith.constant 3 : index
    %c0_140 = arith.constant 0 : index
    %c0_141 = arith.constant 0 : index
    %231 = vector.load %arg6[%c3_139, %c0_140, %c0_141] : memref<4x1x8xf32, #tpu.memory_space<vmem>>, vector<1x1x8xf32>
    %232 = vector.shape_cast %231 : vector<1x1x8xf32> to vector<1x8xf32>
    %233 = vector.broadcast %232 : vector<1x8xf32> to vector<8x8xf32>
    %234 = arith.addf %230, %233 : vector<8x8xf32>
    %235 = arith.mulf %234, %31 : vector<8x8xf32>
    %cst_142 = arith.constant dense<0.000000e+00> : vector<8x8xf32>
    %236 = tpu.matmul %234, %30, %cst_142 {dimension_numbers = #tpu.dot_dimension_numbers<[1], [0], [0], [1], [0, 0, 1, 1], [], []>} : vector<8x8xf32>, vector<8x8xf32>, vector<8x8xf32> -> vector<8x8xf32>
    %237 = arith.mulf %236, %32 : vector<8x8xf32>
    %238 = arith.addf %235, %237 : vector<8x8xf32>
    %c3_143 = arith.constant 3 : index
    %c0_144 = arith.constant 0 : index
    %c0_145 = arith.constant 0 : index
    %239 = vector.load %arg7[%c3_143, %c0_144, %c0_145] : memref<4x16x8xbf16, #tpu.memory_space<vmem>>, vector<1x16x8xbf16>
    %240 = vector.shape_cast %239 : vector<1x16x8xbf16> to vector<16x8xbf16>
    %cst_146 = arith.constant dense<0.000000e+00> : vector<10x8xf32>
    %241 = tpu.matmul %29, %240, %cst_146 {dimension_numbers = #tpu.dot_dimension_numbers<[1], [0], [0], [1], [0, 0, 1, 1], [], []>} : vector<10x16xbf16>, vector<16x8xbf16>, vector<10x8xf32> -> vector<10x8xf32>
    %c3_147 = arith.constant 3 : index
    %c0_148 = arith.constant 0 : index
    %c0_149 = arith.constant 0 : index
    %242 = vector.load %arg8[%c3_147, %c0_148, %c0_149] : memref<4x1x8xf32, #tpu.memory_space<vmem>>, vector<1x1x8xf32>
    %243 = vector.shape_cast %242 : vector<1x1x8xf32> to vector<1x8xf32>
    %244 = vector.broadcast %243 : vector<1x8xf32> to vector<10x8xf32>
    %245 = arith.addf %241, %244 : vector<10x8xf32>
    %246 = arith.mulf %245, %33 : vector<10x8xf32>
    %cst_150 = arith.constant dense<0.000000e+00> : vector<10x8xf32>
    %247 = tpu.matmul %245, %30, %cst_150 {dimension_numbers = #tpu.dot_dimension_numbers<[1], [0], [0], [1], [0, 0, 1, 1], [], []>} : vector<10x8xf32>, vector<8x8xf32>, vector<10x8xf32> -> vector<10x8xf32>
    %248 = arith.mulf %247, %34 : vector<10x8xf32>
    %249 = arith.addf %246, %248 : vector<10x8xf32>
    %c3_151 = arith.constant 3 : index
    %c0_152 = arith.constant 0 : index
    %c0_153 = arith.constant 0 : index
    %250 = vector.load %arg9[%c3_151, %c0_152, %c0_153] : memref<4x16x8xbf16, #tpu.memory_space<vmem>>, vector<1x16x8xbf16>
    %251 = vector.shape_cast %250 : vector<1x16x8xbf16> to vector<16x8xbf16>
    %cst_154 = arith.constant dense<0.000000e+00> : vector<10x8xf32>
    %252 = tpu.matmul %29, %251, %cst_154 {dimension_numbers = #tpu.dot_dimension_numbers<[1], [0], [0], [1], [0, 0, 1, 1], [], []>} : vector<10x16xbf16>, vector<16x8xbf16>, vector<10x8xf32> -> vector<10x8xf32>
    %c3_155 = arith.constant 3 : index
    %c0_156 = arith.constant 0 : index
    %c0_157 = arith.constant 0 : index
    %253 = vector.load %arg10[%c3_155, %c0_156, %c0_157] : memref<4x1x8xf32, #tpu.memory_space<vmem>>, vector<1x1x8xf32>
    %254 = vector.shape_cast %253 : vector<1x1x8xf32> to vector<1x8xf32>
    %255 = vector.broadcast %254 : vector<1x8xf32> to vector<10x8xf32>
    %256 = arith.addf %252, %255 : vector<10x8xf32>
    %257 = arith.truncf %238 : vector<8x8xf32> to vector<8x8xbf16>
    %258 = arith.truncf %249 : vector<10x8xf32> to vector<10x8xbf16>
    %cst_158 = arith.constant dense<0.000000e+00> : vector<8x10xf32>
    %259 = tpu.matmul %257, %258, %cst_158 {dimension_numbers = #tpu.dot_dimension_numbers<[1], [1], [0], [0], [0, 0, 1, 0], [], []>} : vector<8x8xbf16>, vector<10x8xbf16>, vector<8x10xf32> -> vector<8x10xf32>
    %c3_159 = arith.constant 3 : index
    %c0_160 = arith.constant 0 : index
    %c0_161 = arith.constant 0 : index
    %260 = vector.load %arg11[%c3_159, %c0_160, %c0_161] : memref<4x1x8xf32, #tpu.memory_space<vmem>>, vector<1x1x8xf32>
    %261 = vector.shape_cast %260 : vector<1x1x8xf32> to vector<1x8xf32>
    %cst_162 = arith.constant dense<0.000000e+00> : vector<8x1xf32>
    %262 = tpu.matmul %238, %261, %cst_162 {dimension_numbers = #tpu.dot_dimension_numbers<[1], [1], [0], [0], [0, 0, 1, 0], [], []>} : vector<8x8xf32>, vector<1x8xf32>, vector<8x1xf32> -> vector<8x1xf32>
    %cst_163 = arith.constant dense<0xFF800000> : vector<8xf32>
    %263 = vector.multi_reduction <maximumf>, %259, %cst_163 [1] : vector<8x10xf32> to vector<8xf32>
    %264 = vector.shape_cast %263 : vector<8xf32> to vector<8x1xf32>
    %265 = arith.maximumf %264, %262 : vector<8x1xf32>
    %266 = vector.broadcast %265 : vector<8x1xf32> to vector<8x10xf32>
    %267 = arith.subf %259, %266 : vector<8x10xf32>
    %268 = math.exp %267 : vector<8x10xf32>
    %269 = arith.subf %262, %265 : vector<8x1xf32>
    %270 = math.exp %269 : vector<8x1xf32>
    %cst_164 = arith.constant dense<0.000000e+00> : vector<8xf32>
    %271 = vector.multi_reduction <add>, %268, %cst_164 [1] : vector<8x10xf32> to vector<8xf32>
    %272 = vector.shape_cast %271 : vector<8xf32> to vector<8x1xf32>
    %273 = arith.addf %272, %270 : vector<8x1xf32>
    %274 = tpu.reciprocal %273 {approx = true} : vector<8x1xf32> -> vector<8x1xf32>
    %275 = vector.broadcast %274 : vector<8x1xf32> to vector<8x10xf32>
    %276 = arith.mulf %268, %275 : vector<8x10xf32>
    %277 = arith.truncf %276 : vector<8x10xf32> to vector<8x10xbf16>
    %278 = arith.truncf %256 : vector<10x8xf32> to vector<10x8xbf16>
    %cst_165 = arith.constant dense<0.000000e+00> : vector<8x8xf32>
    %279 = tpu.matmul %277, %278, %cst_165 {dimension_numbers = #tpu.dot_dimension_numbers<[1], [0], [0], [1], [0, 0, 1, 1], [], []>} : vector<8x10xbf16>, vector<10x8xbf16>, vector<8x8xf32> -> vector<8x8xf32>
    %280 = arith.mulf %270, %274 : vector<8x1xf32>
    %c3_166 = arith.constant 3 : index
    %c0_167 = arith.constant 0 : index
    %c0_168 = arith.constant 0 : index
    %281 = vector.load %arg12[%c3_166, %c0_167, %c0_168] : memref<4x1x8xf32, #tpu.memory_space<vmem>>, vector<1x1x8xf32>
    %282 = vector.shape_cast %281 : vector<1x1x8xf32> to vector<1x8xf32>
    %283 = vector.broadcast %280 : vector<8x1xf32> to vector<8x8xf32>
    %284 = vector.broadcast %282 : vector<1x8xf32> to vector<8x8xf32>
    %285 = arith.mulf %283, %284 : vector<8x8xf32>
    %286 = arith.addf %279, %285 : vector<8x8xf32>
    %287 = arith.truncf %286 : vector<8x8xf32> to vector<8x8xbf16>
    %c3_169 = arith.constant 3 : index
    %c0_170 = arith.constant 0 : index
    %c0_171 = arith.constant 0 : index
    %288 = vector.load %arg13[%c3_169, %c0_170, %c0_171] : memref<4x8x32xbf16, #tpu.memory_space<vmem>>, vector<1x8x32xbf16>
    %289 = vector.shape_cast %288 : vector<1x8x32xbf16> to vector<8x32xbf16>
    %cst_172 = arith.constant dense<0.000000e+00> : vector<8x32xf32>
    %290 = tpu.matmul %287, %289, %cst_172 {dimension_numbers = #tpu.dot_dimension_numbers<[1], [0], [0], [1], [0, 0, 1, 1], [], []>} : vector<8x8xbf16>, vector<8x32xbf16>, vector<8x32xf32> -> vector<8x32xf32>
    %291 = arith.addf %227, %290 : vector<8x32xf32>
    %292 = arith.addf %1, %291 : vector<8x32xf32>
    %c0_173 = arith.constant 0 : index
    %c0_174 = arith.constant 0 : index
    %293 = vector.load %arg14[%c0_173, %c0_174] : memref<1x32xf32, #tpu.memory_space<vmem>>, vector<1x32xf32>
    %294 = vector.broadcast %293 : vector<1x32xf32> to vector<8x32xf32>
    %295 = arith.addf %292, %294 : vector<8x32xf32>
    %cst_175 = arith.constant dense<0.000000e+00> : vector<8xf32>
    %296 = vector.multi_reduction <add>, %295, %cst_175 [1] : vector<8x32xf32> to vector<8xf32>
    %297 = vector.shape_cast %296 : vector<8xf32> to vector<8x1xf32>
    %cst_176 = arith.constant 3.200000e+01 : f32
    %298 = vector.broadcast %cst_176 : f32 to vector<8x1xf32>
    %299 = arith.divf %297, %298 : vector<8x1xf32>
    %300 = vector.broadcast %299 : vector<8x1xf32> to vector<8x32xf32>
    %301 = arith.subf %295, %300 : vector<8x32xf32>
    %302 = arith.mulf %301, %301 : vector<8x32xf32>
    %cst_177 = arith.constant dense<0.000000e+00> : vector<8xf32>
    %303 = vector.multi_reduction <add>, %302, %cst_177 [1] : vector<8x32xf32> to vector<8xf32>
    %304 = vector.shape_cast %303 : vector<8xf32> to vector<8x1xf32>
    %cst_178 = arith.constant 3.200000e+01 : f32
    %305 = vector.broadcast %cst_178 : f32 to vector<8x1xf32>
    %306 = arith.divf %304, %305 : vector<8x1xf32>
    %307 = vector.broadcast %299 : vector<8x1xf32> to vector<8x32xf32>
    %308 = arith.subf %295, %307 : vector<8x32xf32>
    %cst_179 = arith.constant 9.99999996E-13 : f32
    %309 = vector.broadcast %cst_179 : f32 to vector<8x1xf32>
    %310 = arith.addf %306, %309 : vector<8x1xf32>
    %311 = math.rsqrt %310 : vector<8x1xf32>
    %312 = vector.broadcast %311 : vector<8x1xf32> to vector<8x32xf32>
    %313 = arith.mulf %308, %312 : vector<8x32xf32>
    %c0_180 = arith.constant 0 : index
    %c0_181 = arith.constant 0 : index
    %314 = vector.load %arg20[%c0_180, %c0_181] : memref<1x32xf32, #tpu.memory_space<vmem>>, vector<1x32xf32>
    %315 = vector.broadcast %314 : vector<1x32xf32> to vector<8x32xf32>
    %316 = arith.mulf %313, %315 : vector<8x32xf32>
    %c0_182 = arith.constant 0 : index
    %c0_183 = arith.constant 0 : index
    %317 = vector.load %arg21[%c0_182, %c0_183] : memref<1x32xf32, #tpu.memory_space<vmem>>, vector<1x32xf32>
    %318 = vector.broadcast %317 : vector<1x32xf32> to vector<8x32xf32>
    %319 = arith.addf %316, %318 : vector<8x32xf32>
    %320 = arith.truncf %319 : vector<8x32xf32> to vector<8x32xbf16>
    %c0_184 = arith.constant 0 : index
    %c0_185 = arith.constant 0 : index
    %321 = vector.load %arg22[%c0_184, %c0_185] : memref<32x16xbf16, #tpu.memory_space<vmem>>, vector<32x16xbf16>
    %cst_186 = arith.constant dense<0.000000e+00> : vector<8x16xf32>
    %322 = tpu.matmul %320, %321, %cst_186 {dimension_numbers = #tpu.dot_dimension_numbers<[1], [0], [0], [1], [0, 0, 1, 1], [], []>} : vector<8x32xbf16>, vector<32x16xbf16>, vector<8x16xf32> -> vector<8x16xf32>
    %c0_187 = arith.constant 0 : index
    %c0_188 = arith.constant 0 : index
    %323 = vector.load %arg23[%c0_187, %c0_188] : memref<1x16xf32, #tpu.memory_space<vmem>>, vector<1x16xf32>
    %324 = vector.broadcast %323 : vector<1x16xf32> to vector<8x16xf32>
    %325 = arith.addf %322, %324 : vector<8x16xf32>
    %cst_189 = arith.constant 5.000000e-01 : f32
    %326 = vector.broadcast %cst_189 : f32 to vector<8x16xf32>
    %327 = arith.mulf %326, %325 : vector<8x16xf32>
    %cst_190 = arith.constant 0.707106769 : f32
    %328 = vector.broadcast %cst_190 : f32 to vector<8x16xf32>
    %329 = arith.mulf %325, %328 : vector<8x16xf32>
    %330 = math.erf %329 : vector<8x16xf32>
    %cst_191 = arith.constant 1.000000e+00 : f32
    %331 = vector.broadcast %cst_191 : f32 to vector<8x16xf32>
    %332 = arith.addf %331, %330 : vector<8x16xf32>
    %333 = arith.mulf %327, %332 : vector<8x16xf32>
    %334 = arith.truncf %333 : vector<8x16xf32> to vector<8x16xbf16>
    %c0_192 = arith.constant 0 : index
    %c0_193 = arith.constant 0 : index
    %335 = vector.load %arg24[%c0_192, %c0_193] : memref<16x32xbf16, #tpu.memory_space<vmem>>, vector<16x32xbf16>
    %cst_194 = arith.constant dense<0.000000e+00> : vector<8x32xf32>
    %336 = tpu.matmul %334, %335, %cst_194 {dimension_numbers = #tpu.dot_dimension_numbers<[1], [0], [0], [1], [0, 0, 1, 1], [], []>} : vector<8x16xbf16>, vector<16x32xbf16>, vector<8x32xf32> -> vector<8x32xf32>
    %337 = arith.addf %295, %336 : vector<8x32xf32>
    %c0_195 = arith.constant 0 : index
    %c0_196 = arith.constant 0 : index
    %338 = vector.load %arg25[%c0_195, %c0_196] : memref<1x32xf32, #tpu.memory_space<vmem>>, vector<1x32xf32>
    %339 = vector.broadcast %338 : vector<1x32xf32> to vector<8x32xf32>
    %340 = arith.addf %337, %339 : vector<8x32xf32>
    %341 = arith.addf %1, %340 : vector<8x32xf32>
    %c0_197 = arith.constant 0 : index
    %c0_198 = arith.constant 0 : index
    %c0_199 = arith.constant 0 : index
    %342 = vector.load %arg26[%c0_197, %c0_198, %c0_199] : memref<1x8x32xf32, #tpu.memory_space<vmem>>, vector<1x8x32xf32>
    %343 = vector.shape_cast %342 : vector<1x8x32xf32> to vector<8x32xf32>
    %344 = vector.shape_cast %341 : vector<8x32xf32> to vector<1x8x32xf32>
    tpu.vector_store %arg26[%c0_197, %c0_198, %c0_199], %344 {strides = array<i32>} : memref<1x8x32xf32, #tpu.memory_space<vmem>>, vector<1x8x32xf32>,
    return
  }
  func.func @transform_0(%arg0: i32) -> (i32, i32, i32) {
    %c0_i32 = arith.constant 0 : i32
    %c0_i32_0 = arith.constant 0 : i32
    %c0_i32_1 = arith.constant 0 : i32
    return %arg0, %c0_i32, %c0_i32_0 : i32, i32, i32
  }
  func.func @transform_1(%arg0: i32) -> (i32, i32, i32) {
    %c0_i32 = arith.constant 0 : i32
    %c0_i32_0 = arith.constant 0 : i32
    %c0_i32_1 = arith.constant 0 : i32
    return %arg0, %c0_i32, %c0_i32_0 : i32, i32, i32
  }
  func.func @transform_2(%arg0: i32) -> (i32, i32) {
    %c0_i32 = arith.constant 0 : i32
    %c0_i32_0 = arith.constant 0 : i32
    %c0_i32_1 = arith.constant 0 : i32
    return %c0_i32, %c0_i32_0 : i32, i32
  }
  func.func @transform_3(%arg0: i32) -> (i32, i32) {
    %c0_i32 = arith.constant 0 : i32
    %c0_i32_0 = arith.constant 0 : i32
    %c0_i32_1 = arith.constant 0 : i32
    return %c0_i32, %c0_i32_0 : i32, i32
  }
  func.func @transform_4(%arg0: i32) -> (i32, i32, i32) {
    %c0_i32 = arith.constant 0 : i32
    %c0_i32_0 = arith.constant 0 : i32
    %c0_i32_1 = arith.constant 0 : i32
    %c0_i32_2 = arith.constant 0 : i32
    return %c0_i32, %c0_i32_0, %c0_i32_1 : i32, i32, i32
  }
  func.func @transform_5(%arg0: i32) -> (i32, i32, i32) {
    %c0_i32 = arith.constant 0 : i32
    %c0_i32_0 = arith.constant 0 : i32
    %c0_i32_1 = arith.constant 0 : i32
    %c0_i32_2 = arith.constant 0 : i32
    return %c0_i32, %c0_i32_0, %c0_i32_1 : i32, i32, i32
  }
  func.func @transform_6(%arg0: i32) -> (i32, i32, i32) {
    %c0_i32 = arith.constant 0 : i32
    %c0_i32_0 = arith.constant 0 : i32
    %c0_i32_1 = arith.constant 0 : i32
    %c0_i32_2 = arith.constant 0 : i32
    return %c0_i32, %c0_i32_0, %c0_i32_1 : i32, i32, i32
  }
  func.func @transform_7(%arg0: i32) -> (i32, i32, i32) {
    %c0_i32 = arith.constant 0 : i32
    %c0_i32_0 = arith.constant 0 : i32
    %c0_i32_1 = arith.constant 0 : i32
    %c0_i32_2 = arith.constant 0 : i32
    return %c0_i32, %c0_i32_0, %c0_i32_1 : i32, i32, i32
  }
  func.func @transform_8(%arg0: i32) -> (i32, i32, i32) {
    %c0_i32 = arith.constant 0 : i32
    %c0_i32_0 = arith.constant 0 : i32
    %c0_i32_1 = arith.constant 0 : i32
    %c0_i32_2 = arith.constant 0 : i32
    return %c0_i32, %c0_i32_0, %c0_i32_1 : i32, i32, i32
  }
  func.func @transform_9(%arg0: i32) -> (i32, i32, i32) {
    %c0_i32 = arith.constant 0 : i32
    %c0_i32_0 = arith.constant 0 : i32
    %c0_i32_1 = arith.constant 0 : i32
    %c0_i32_2 = arith.constant 0 : i32
    return %c0_i32, %c0_i32_0, %c0_i32_1 : i32, i32, i32
  }
  func.func @transform_10(%arg0: i32) -> (i32, i32, i32) {
    %c0_i32 = arith.constant 0 : i32
    %c0_i32_0 = arith.constant 0 : i32
    %c0_i32_1 = arith.constant 0 : i32
    %c0_i32_2 = arith.constant 0 : i32
    return %c0_i32, %c0_i32_0, %c0_i32_1 : i32, i32, i32
  }
  func.func @transform_11(%arg0: i32) -> (i32, i32, i32) {
    %c0_i32 = arith.constant 0 : i32
    %c0_i32_0 = arith.constant 0 : i32
    %c0_i32_1 = arith.constant 0 : i32
    %c0_i32_2 = arith.constant 0 : i32
    return %c0_i32, %c0_i32_0, %c0_i32_1 : i32, i32, i32
  }
  func.func @transform_12(%arg0: i32) -> (i32, i32, i32) {
    %c0_i32 = arith.constant 0 : i32
    %c0_i32_0 = arith.constant 0 : i32
    %c0_i32_1 = arith.constant 0 : i32
    %c0_i32_2 = arith.constant 0 : i32
    return %c0_i32, %c0_i32_0, %c0_i32_1 : i32, i32, i32
  }
  func.func @transform_13(%arg0: i32) -> (i32, i32) {
    %c0_i32 = arith.constant 0 : i32
    %c0_i32_0 = arith.constant 0 : i32
    %c0_i32_1 = arith.constant 0 : i32
    return %c0_i32, %c0_i32_0 : i32, i32
  }
  func.func @transform_14(%arg0: i32) -> (i32, i32) {
    %c0_i32 = arith.constant 0 : i32
    %c0_i32_0 = arith.constant 0 : i32
    %c0_i32_1 = arith.constant 0 : i32
    return %c0_i32, %c0_i32_0 : i32, i32
  }
  func.func @transform_15(%arg0: i32) -> (i32, i32) {
    %c0_i32 = arith.constant 0 : i32
    %c0_i32_0 = arith.constant 0 : i32
    %c0_i32_1 = arith.constant 0 : i32
    return %c0_i32, %c0_i32_0 : i32, i32
  }
  func.func @transform_16(%arg0: i32) -> (i32, i32) {
    %c0_i32 = arith.constant 0 : i32
    %c0_i32_0 = arith.constant 0 : i32
    %c0_i32_1 = arith.constant 0 : i32
    return %c0_i32, %c0_i32_0 : i32, i32
  }
  func.func @transform_17(%arg0: i32) -> (i32, i32) {
    %c0_i32 = arith.constant 0 : i32
    %c0_i32_0 = arith.constant 0 : i32
    %c0_i32_1 = arith.constant 0 : i32
    return %c0_i32, %c0_i32_0 : i32, i32
  }
  func.func @transform_18(%arg0: i32) -> (i32, i32) {
    %c0_i32 = arith.constant 0 : i32
    %c0_i32_0 = arith.constant 0 : i32
    %c0_i32_1 = arith.constant 0 : i32
    return %c0_i32, %c0_i32_0 : i32, i32
  }
  func.func @transform_19(%arg0: i32) -> (i32, i32) {
    %c0_i32 = arith.constant 0 : i32
    %c0_i32_0 = arith.constant 0 : i32
    %c0_i32_1 = arith.constant 0 : i32
    return %c0_i32, %c0_i32_0 : i32, i32
  }
  func.func @transform_20(%arg0: i32) -> (i32, i32) {
    %c0_i32 = arith.constant 0 : i32
    %c0_i32_0 = arith.constant 0 : i32
    %c0_i32_1 = arith.constant 0 : i32
    return %c0_i32, %c0_i32_0 : i32, i32
  }
  func.func @transform_21(%arg0: i32) -> (i32, i32) {
    %c0_i32 = arith.constant 0 : i32
    %c0_i32_0 = arith.constant 0 : i32
    %c0_i32_1 = arith.constant 0 : i32
    return %c0_i32, %c0_i32_0 : i32, i32
  }
  func.func @transform_22(%arg0: i32) -> (i32, i32) {
    %c0_i32 = arith.constant 0 : i32
    %c0_i32_0 = arith.constant 0 : i32
    %c0_i32_1 = arith.constant 0 : i32
    return %c0_i32, %c0_i32_0 : i32, i32
  }
  func.func @transform_23(%arg0: i32) -> (i32, i32) {
    %c0_i32 = arith.constant 0 : i32
    %c0_i32_0 = arith.constant 0 : i32
    %c0_i32_1 = arith.constant 0 : i32
    return %c0_i32, %c0_i32_0 : i32, i32
  }
  func.func @transform_24(%arg0: i32) -> (i32, i32) {
    %c0_i32 = arith.constant 0 : i32
    %c0_i32_0 = arith.constant 0 : i32
    %c0_i32_1 = arith.constant 0 : i32
    return %c0_i32, %c0_i32_0 : i32, i32
  }
  func.func @transform_25(%arg0: i32) -> (i32, i32, i32) {
    %c0_i32 = arith.constant 0 : i32
    %c0_i32_0 = arith.constant 0 : i32
    %c0_i32_1 = arith.constant 0 : i32
    return %arg0, %c0_i32, %c0_i32_0 : i32, i32, i32
  }
}

</mosaic_0001>

<llo_original>
// kernel: transformer_layer_forward.2
$region0: #{transformer_layer_forward.2}
  #allocation0 [shape = 'u32[]', space=smem, size = 0x4, offset = 0x4, fixed_abs, tag = 'smem constant byte address 0x4 - core index']
  #allocation1 [shape = 'u32[144,128]{1,0:T(1,128)}', space=vmem, size = 0x12000, scoped, tag = 'internal scratch']
  %s0 = inlined_call_operand.hbm [shape: f32[2,8,32], index: 0, kind: input, shape index: {}]
  %s1 = inlined_call_operand.hbm [shape: f32[2,1,32], index: 1, kind: input, shape index: {}]
  %s2 = inlined_call_operand.hbm [shape: f32[1,32], index: 2, kind: input, shape index: {}]
  %s3 = inlined_call_operand.hbm [shape: f32[1,32], index: 3, kind: input, shape index: {}]
  %s4 = inlined_call_operand.hbm [shape: bf16[32,32], index: 4, kind: input, shape index: {}]
  %s5 = inlined_call_operand.hbm [shape: bf16[32,32], index: 5, kind: input, shape index: {}]
  %s6 = inlined_call_operand.hbm [shape: bf16[4,32,8], index: 6, kind: input, shape index: {}]
  %s7 = inlined_call_operand.hbm [shape: f32[4,1,8], index: 7, kind: input, shape index: {}]
  %s8 = inlined_call_operand.hbm [shape: bf16[4,32,8], index: 8, kind: input, shape index: {}]
  %s9 = inlined_call_operand.hbm [shape: f32[4,1,8], index: 9, kind: input, shape index: {}]
  %s10 = inlined_call_operand.hbm [shape: bf16[4,32,8], index: 10, kind: input, shape index: {}]
  %s11 = inlined_call_operand.hbm [shape: f32[4,1,8], index: 11, kind: input, shape index: {}]
  %s12 = inlined_call_operand.hbm [shape: f32[4,1,8], index: 12, kind: input, shape index: {}]
  %s13 = inlined_call_operand.hbm [shape: f32[4,1,8], index: 13, kind: input, shape index: {}]
  %s14 = inlined_call_operand.hbm [shape: bf16[4,8,32], index: 14, kind: input, shape index: {}]
  %s15 = inlined_call_operand.hbm [shape: f32[1,32], index: 15, kind: input, shape index: {}]
  %s16 = inlined_call_operand.hbm [shape: f32[1,32], index: 16, kind: input, shape index: {}]
  %s17 = inlined_call_operand.hbm [shape: f32[1,32], index: 17, kind: input, shape index: {}]
  %s18 = inlined_call_operand.hbm [shape: bf16[32,32], index: 18, kind: input, shape index: {}]
  %s19 = inlined_call_operand.hbm [shape: bf16[32,32], index: 19, kind: input, shape index: {}]
  %s20 = inlined_call_operand.hbm [shape: bf16[32,64], index: 20, kind: input, shape index: {}]
  %s21 = inlined_call_operand.hbm [shape: f32[1,64], index: 21, kind: input, shape index: {}]
  %s22 = inlined_call_operand.hbm [shape: bf16[64,32], index: 22, kind: input, shape index: {}]
  %s23 = inlined_call_operand.hbm [shape: f32[1,32], index: 23, kind: input, shape index: {}]
  %s24 = inlined_call_operand.hbm [shape: f32[2,8,32], index: 24, kind: output, shape index: {0}]
  %s25 = inlined_call_operand.hbm [shape: f32[2,8,9], index: 25, kind: output, shape index: {1}]
  %26 = xla_tuple %s24, %s25
  %s27 = sld [smem:[#allocation0]]
  $region233: #{transformer_layer_forward.2} parent=0
    _
  %s29 = ssub.s32 1, %s27
  %s30 = scalar_select 0, %s29, %s27
  $region1: #{transformer_layer_forward.2} parent=0
    #allocation2 [shape = 'u8[8192]{0}', space=vmem, size = 0x2000, scoped, tag = 'input window, operand 0']
    #allocation3 [shape = 's32[2]{0}', space=sflag, size = 0x8, scoped, tag = 'scoped memory for transformer_layer_forward.2']
    #allocation4 [shape = 's32[2]{0}', space=sflag, size = 0x8, scoped, tag = 'scoped memory for transformer_layer_forward.2']
    #allocation5 [shape = 'u8[1024]{0}', space=vmem, size = 0x400, scoped, tag = 'input window, operand 1']
    #allocation6 [shape = 's32[2]{0}', space=sflag, size = 0x8, scoped, tag = 'scoped memory for transformer_layer_forward.2']
    #allocation7 [shape = 'u8[512]{0}', space=vmem, size = 0x400, scoped, tag = 'input window, operand 2, single buffered']
    #allocation8 [shape = 'u8[512]{0}', space=vmem, size = 0x400, scoped, tag = 'input window, operand 3, single buffered']
    #allocation9 [shape = 's32[1]{0}', space=sflag, size = 0x4, scoped, tag = 'scoped memory for transformer_layer_forward.2']
    #allocation10 [shape = 'u8[8192]{0}', space=vmem, size = 0x2000, scoped, tag = 'input window, operand 4, single buffered']
    #allocation11 [shape = 'u8[8192]{0}', space=vmem, size = 0x2000, scoped, tag = 'input window, operand 5, single buffered']
    #allocation12 [shape = 's32[1]{0}', space=sflag, size = 0x4, scoped, tag = 'scoped memory for transformer_layer_forward.2']
    #allocation13 [shape = 'u8[32768]{0}', space=vmem, size = 0x8000, scoped, tag = 'input window, operand 6, single buffered']
    #allocation14 [shape = 'u8[2048]{0}', space=vmem, size = 0x800, scoped, tag = 'input window, operand 7, single buffered']
    #allocation15 [shape = 's32[1]{0}', space=sflag, size = 0x4, scoped, tag = 'scoped memory for transformer_layer_forward.2']
    #allocation16 [shape = 'u8[32768]{0}', space=vmem, size = 0x8000, scoped, tag = 'input window, operand 8, single buffered']
    #allocation17 [shape = 'u8[2048]{0}', space=vmem, size = 0x800, scoped, tag = 'input window, operand 9, single buffered']
    #allocation18 [shape = 's32[1]{0}', space=sflag, size = 0x4, scoped, tag = 'scoped memory for transformer_layer_forward.2']
    #allocation19 [shape = 'u8[32768]{0}', space=vmem, size = 0x8000, scoped, tag = 'input window, operand 10, single buffered']
    #allocation20 [shape = 'u8[2048]{0}', space=vmem, size = 0x800, scoped, tag = 'input window, operand 11, single buffered']
    #allocation21 [shape = 's32[1]{0}', space=sflag, size = 0x4, scoped, tag = 'scoped memory for transformer_layer_forward.2']
    #allocation22 [shape = 'u8[2048]{0}', space=vmem, size = 0x800, scoped, tag = 'input window, operand 12, single buffered']
    #allocation23 [shape = 'u8[2048]{0}', space=vmem, size = 0x800, scoped, tag = 'input window, operand 13, single buffered']
    #allocation24 [shape = 's32[1]{0}', space=sflag, size = 0x4, scoped, tag = 'scoped memory for transformer_layer_forward.2']
    #allocation25 [shape = 'u8[8192]{0}', space=vmem, size = 0x2000, scoped, tag = 'input window, operand 14, single buffered']
    #allocation26 [shape = 'u8[512]{0}', space=vmem, size = 0x400, scoped, tag = 'input window, operand 15, single buffered']
    #allocation27 [shape = 's32[1]{0}', space=sflag, size = 0x4, scoped, tag = 'scoped memory for transformer_layer_forward.2']
    #allocation28 [shape = 'u8[512]{0}', space=vmem, size = 0x400, scoped, tag = 'input window, operand 16, single buffered']
    #allocation29 [shape = 'u8[512]{0}', space=vmem, size = 0x400, scoped, tag = 'input window, operand 17, single buffered']
    #allocation30 [shape = 's32[1]{0}', space=sflag, size = 0x4, scoped, tag = 'scoped memory for transformer_layer_forward.2']
    #allocation31 [shape = 'u8[8192]{0}', space=vmem, size = 0x2000, scoped, tag = 'input window, operand 18, single buffered']
    #allocation32 [shape = 'u8[8192]{0}', space=vmem, size = 0x2000, scoped, tag = 'input window, operand 19, single buffered']
    #allocation33 [shape = 's32[1]{0}', space=sflag, size = 0x4, scoped, tag = 'scoped memory for transformer_layer_forward.2']
    #allocation34 [shape = 'u8[8192]{0}', space=vmem, size = 0x2000, scoped, tag = 'input window, operand 20, single buffered']
    #allocation35 [shape = 'u8[512]{0}', space=vmem, size = 0x400, scoped, tag = 'input window, operand 21, single buffered']
    #allocation36 [shape = 's32[1]{0}', space=sflag, size = 0x4, scoped, tag = 'scoped memory for transformer_layer_forward.2']
    #allocation37 [shape = 'u8[16384]{0}', space=vmem, size = 0x4000, scoped, tag = 'input window, operand 22, single buffered']
    #allocation38 [shape = 'u8[512]{0}', space=vmem, size = 0x400, scoped, tag = 'input window, operand 23, single buffered']
    #allocation39 [shape = 's32[1]{0}', space=sflag, size = 0x4, scoped, tag = 'scoped memory for transformer_layer_forward.2']
    #allocation40 [shape = 'u8[8192]{0}', space=vmem, size = 0x2000, scoped, tag = 'output window, operand 0']
    #allocation41 [shape = 'u8[8192]{0}', space=vmem, size = 0x2000, scoped, tag = 'output window, operand 1']
    #allocation42 [shape = 's32[2]{0}', space=sflag, size = 0x8, scoped, tag = 'scoped memory for transformer_layer_forward.2']
    %31 = vsyncpa [#allocation3], 0
    %s32 = scalar_lea.sflag [#allocation3], 1
    %33 = vsyncpa %s32, 0
    %34 = vsyncpa [#allocation6], 0
    %s35 = scalar_lea.sflag [#allocation6], 1
    %36 = vsyncpa %s35, 0
    %37 = vsyncpa [#allocation9], 0
    %38 = vsyncpa [#allocation12], 0
    %39 = vsyncpa [#allocation15], 0
    %40 = vsyncpa [#allocation18], 0
    %41 = vsyncpa [#allocation21], 0
    %42 = vsyncpa [#allocation24], 0
    %43 = vsyncpa [#allocation27], 0
    %44 = vsyncpa [#allocation30], 0
    %45 = vsyncpa [#allocation33], 0
    %46 = vsyncpa [#allocation36], 0
    %47 = vsyncpa [#allocation39], 0
    %48 = vsyncpa [#allocation4], 0
    %s49 = scalar_lea.sflag [#allocation4], 1
    %50 = vsyncpa %s49, 0
    %51 = vsyncpa [#allocation42], 0
    %s52 = scalar_lea.sflag [#allocation42], 1
    %53 = vsyncpa %s52, 0
    loop: start=0, step=1, limit=4
    $region2: #{transformer_layer_forward.2} parent=1 // loop_pre_header
      _
    $region3: #{transformer_layer_forward.2} parent=1 // loop_header
      %s55 = sphi 0, %s59
      %p56 = scmp.ge.s32.totalorder %s55, 4
      %s65 = sphi 0, %s67
      %s68 = sphi 0, %s65
      %s69 = sphi 0, %s68
      %s85 = sphi 0, %s69
      %s91 = sphi 0, %s93
      %s94 = sphi 0, %s91
      %s95 = sphi 0, %s94
      %s111 = sphi 0, %s95
      %s115 = sphi 0, %s115
      %s117 = sphi 0, %s115
      %s118 = sphi 0, %s117
      %s132 = sphi 0, %s118
      %s136 = sphi 0, %s136
      %s138 = sphi 0, %s136
      %s139 = sphi 0, %s138
      %s153 = sphi 0, %s139
      %s157 = sphi 0, %s157
      %s159 = sphi 0, %s157
      %s160 = sphi 0, %s159
      %s174 = sphi 0, %s160
      %s178 = sphi 0, %s178
      %s180 = sphi 0, %s178
      %s181 = sphi 0, %s180
      %s195 = sphi 0, %s181
      %s199 = sphi 0, %s199
      %s201 = sphi 0, %s199
      %s202 = sphi 0, %s201
      %s216 = sphi 0, %s202
      %s220 = sphi 0, %s220
      %s222 = sphi 0, %s220
      %s223 = sphi 0, %s222
      %s237 = sphi 0, %s223
      %s241 = sphi 0, %s241
      %s243 = sphi 0, %s241
      %s244 = sphi 0, %s243
      %s258 = sphi 0, %s244
      %s262 = sphi 0, %s262
      %s264 = sphi 0, %s262
      %s265 = sphi 0, %s264
      %s279 = sphi 0, %s265
      %s283 = sphi 0, %s283
      %s285 = sphi 0, %s283
      %s286 = sphi 0, %s285
      %s300 = sphi 0, %s286
      %s304 = sphi 0, %s304
      %s306 = sphi 0, %s304
      %s307 = sphi 0, %s306
      %s321 = sphi 0, %s307
      %s325 = sphi 0, %s325
      %s327 = sphi 0, %s325
      %s328 = sphi 0, %s327
      %s342 = sphi 0, %s328
      %s346 = sphi 0, %s346
      %s348 = sphi 0, %s346
      %s349 = sphi 0, %s348
      %s363 = sphi 0, %s349
      %s367 = sphi 0, %s367
      %s369 = sphi 0, %s367
      %s370 = sphi 0, %s369
      %s384 = sphi 0, %s370
      %s388 = sphi 0, %s388
      %s390 = sphi 0, %s388
      %s391 = sphi 0, %s390
      %s405 = sphi 0, %s391
      %s409 = sphi 0, %s409
      %s411 = sphi 0, %s409
      %s412 = sphi 0, %s411
      %s426 = sphi 0, %s412
      %s430 = sphi 0, %s430
      %s432 = sphi 0, %s430
      %s433 = sphi 0, %s432
      %s447 = sphi 0, %s433
      %s451 = sphi 0, %s451
      %s453 = sphi 0, %s451
      %s454 = sphi 0, %s453
      %s468 = sphi 0, %s454
      %s472 = sphi 0, %s472
      %s474 = sphi 0, %s472
      %s475 = sphi 0, %s474
      %s489 = sphi 0, %s475
      %s493 = sphi 0, %s493
      %s495 = sphi 0, %s493
      %s496 = sphi 0, %s495
      %s510 = sphi 0, %s496
      %s514 = sphi 0, %s514
      %s516 = sphi 0, %s514
      %s517 = sphi 0, %s516
      %s531 = sphi 0, %s517
      %s535 = sphi 0, %s535
      %s537 = sphi 0, %s535
      %s538 = sphi 0, %s537
      %s552 = sphi 0, %s538
      %s556 = sphi 0, %s556
      %s558 = sphi 0, %s556
      %s559 = sphi 0, %s558
      %s573 = sphi 0, %s559
      %s579 = sphi 0, %s581
      %s582 = sphi 0, %s579
      %s583 = sphi 0, %s582
      %s599 = sphi 0, %s583
      %s605 = sphi 0, %s607
      %s608 = sphi 0, %s605
      %s609 = sphi 0, %s608
      %s625 = sphi 0, %s609
    $region4: #{transformer_layer_forward.2} parent=1 // loop_header_branch
      %58 = sbr.rel (%p56) target = $region8
    $region5: #{transformer_layer_forward.2} parent=1 // loop_body
      %s60 = ssub.s32 %s55, 1
      %s61 = ssub.s32 %s55, 2
      %s62 = sadd.s32 %s55, 1
      %s63 = ssub.s32 %s55, %s62
      %p64 = scmp.eq.s32.totalorder %s63, 0
      %s66 = sadd.s32 %s65, 1
      %s67 = scalar_select %p64, %s65, %s66
      %p70 = pneg %p64
      %p71 = scmp.eq.s32.totalorder %s55, 1
      %p72 = por %p70, %p71
      %p73 = scmp.ne.s32.totalorder %s65, %s68
      %p74 = scmp.eq.s32.totalorder %s55, 0
      %p75 = por %p73, %p74
      %p76 = scmp.ne.s32.totalorder %s65, %s68
      %p77 = scmp.eq.s32.totalorder %s60, 1
      %p78 = por %p76, %p77
      %p79 = scmp.ne.s32.totalorder %s68, %s69
      %p80 = scmp.eq.s32.totalorder %s60, 0
      %p81 = por %p79, %p80
      %p82 = scmp.ne.s32.totalorder %s68, %s69
      %p83 = scmp.eq.s32.totalorder %s61, 1
      %p84 = por %p82, %p83
      %p86 = scmp.ne.s32.totalorder %s69, %s85
      %p87 = scmp.eq.s32.totalorder %s61, 0
      %p88 = por %p86, %p87
      %s89 = ssub.s32 %s55, %s62
      %p90 = scmp.eq.s32.totalorder %s89, 0
      %s92 = sadd.s32 %s91, 1
      %s93 = scalar_select %p90, %s91, %s92
      %p96 = pneg %p90
      %p97 = scmp.eq.s32.totalorder %s55, 1
      %p98 = por %p96, %p97
      %p99 = scmp.ne.s32.totalorder %s91, %s94
      %p100 = scmp.eq.s32.totalorder %s55, 0
      %p101 = por %p99, %p100
      %p102 = scmp.ne.s32.totalorder %s91, %s94
      %p103 = scmp.eq.s32.totalorder %s60, 1
      %p104 = por %p102, %p103
      %p105 = scmp.ne.s32.totalorder %s94, %s95
      %p106 = scmp.eq.s32.totalorder %s60, 0
      %p107 = por %p105, %p106
      %p108 = scmp.ne.s32.totalorder %s94, %s95
      %p109 = scmp.eq.s32.totalorder %s61, 1
      %p110 = por %p108, %p109
      %p112 = scmp.ne.s32.totalorder %s95, %s111
      %p113 = scmp.eq.s32.totalorder %s61, 0
      %p114 = por %p112, %p113
      %s116 = sadd.s32 %s115, 1
      %p119 = scmp.eq.s32.totalorder %s55, 1
      %p120 = scmp.ne.s32.totalorder %s115, %s117
      %p121 = scmp.eq.s32.totalorder %s55, 0
      %p122 = por %p120, %p121
      %p123 = scmp.ne.s32.totalorder %s115, %s117
      %p124 = scmp.eq.s32.totalorder %s60, 1
      %p125 = por %p123, %p124
      %p126 = scmp.ne.s32.totalorder %s117, %s118
      %p127 = scmp.eq.s32.totalorder %s60, 0
      %p128 = por %p126, %p127
      %p129 = scmp.ne.s32.totalorder %s117, %s118
      %p130 = scmp.eq.s32.totalorder %s61, 1
      %p131 = por %p129, %p130
      %p133 = scmp.ne.s32.totalorder %s118, %s132
      %p134 = scmp.eq.s32.totalorder %s61, 0
      %p135 = por %p133, %p134
      %s137 = sadd.s32 %s136, 1
      %p140 = scmp.eq.s32.totalorder %s55, 1
      %p141 = scmp.ne.s32.totalorder %s136, %s138
      %p142 = scmp.eq.s32.totalorder %s55, 0
      %p143 = por %p141, %p142
      %p144 = scmp.ne.s32.totalorder %s136, %s138
      %p145 = scmp.eq.s32.totalorder %s60, 1
      %p146 = por %p144, %p145
      %p147 = scmp.ne.s32.totalorder %s138, %s139
      %p148 = scmp.eq.s32.totalorder %s60, 0
      %p149 = por %p147, %p148
      %p150 = scmp.ne.s32.totalorder %s138, %s139
      %p151 = scmp.eq.s32.totalorder %s61, 1
      %p152 = por %p150, %p151
      %p154 = scmp.ne.s32.totalorder %s139, %s153
      %p155 = scmp.eq.s32.totalorder %s61, 0
      %p156 = por %p154, %p155
      %s158 = sadd.s32 %s157, 1
      %p161 = scmp.eq.s32.totalorder %s55, 1
      %p162 = scmp.ne.s32.totalorder %s157, %s159
      %p163 = scmp.eq.s32.totalorder %s55, 0
      %p164 = por %p162, %p163
      %p165 = scmp.ne.s32.totalorder %s157, %s159
      %p166 = scmp.eq.s32.totalorder %s60, 1
      %p167 = por %p165, %p166
      %p168 = scmp.ne.s32.totalorder %s159, %s160
      %p169 = scmp.eq.s32.totalorder %s60, 0
      %p170 = por %p168, %p169
      %p171 = scmp.ne.s32.totalorder %s159, %s160
      %p172 = scmp.eq.s32.totalorder %s61, 1
      %p173 = por %p171, %p172
      %p175 = scmp.ne.s32.totalorder %s160, %s174
      %p176 = scmp.eq.s32.totalorder %s61, 0
      %p177 = por %p175, %p176
      %s179 = sadd.s32 %s178, 1
      %p182 = scmp.eq.s32.totalorder %s55, 1
      %p183 = scmp.ne.s32.totalorder %s178, %s180
      %p184 = scmp.eq.s32.totalorder %s55, 0
      %p185 = por %p183, %p184
      %p186 = scmp.ne.s32.totalorder %s178, %s180
      %p187 = scmp.eq.s32.totalorder %s60, 1
      %p188 = por %p186, %p187
      %p189 = scmp.ne.s32.totalorder %s180, %s181
      %p190 = scmp.eq.s32.totalorder %s60, 0
      %p191 = por %p189, %p190
      %p192 = scmp.ne.s32.totalorder %s180, %s181
      %p193 = scmp.eq.s32.totalorder %s61, 1
      %p194 = por %p192, %p193
      %p196 = scmp.ne.s32.totalorder %s181, %s195
      %p197 = scmp.eq.s32.totalorder %s61, 0
      %p198 = por %p196, %p197
      %s200 = sadd.s32 %s199, 1
      %p203 = scmp.eq.s32.totalorder %s55, 1
      %p204 = scmp.ne.s32.totalorder %s199, %s201
      %p205 = scmp.eq.s32.totalorder %s55, 0
      %p206 = por %p204, %p205
      %p207 = scmp.ne.s32.totalorder %s199, %s201
      %p208 = scmp.eq.s32.totalorder %s60, 1
      %p209 = por %p207, %p208
      %p210 = scmp.ne.s32.totalorder %s201, %s202
      %p211 = scmp.eq.s32.totalorder %s60, 0
      %p212 = por %p210, %p211
      %p213 = scmp.ne.s32.totalorder %s201, %s202
      %p214 = scmp.eq.s32.totalorder %s61, 1
      %p215 = por %p213, %p214
      %p217 = scmp.ne.s32.totalorder %s202, %s216
      %p218 = scmp.eq.s32.totalorder %s61, 0
      %p219 = por %p217, %p218
      %s221 = sadd.s32 %s220, 1
      %p224 = scmp.eq.s32.totalorder %s55, 1
      %p225 = scmp.ne.s32.totalorder %s220, %s222
      %p226 = scmp.eq.s32.totalorder %s55, 0
      %p227 = por %p225, %p226
      %p228 = scmp.ne.s32.totalorder %s220, %s222
      %p229 = scmp.eq.s32.totalorder %s60, 1
      %p230 = por %p228, %p229
      %p231 = scmp.ne.s32.totalorder %s222, %s223
      %p232 = scmp.eq.s32.totalorder %s60, 0
      %p233 = por %p231, %p232
      %p234 = scmp.ne.s32.totalorder %s222, %s223
      %p235 = scmp.eq.s32.totalorder %s61, 1
      %p236 = por %p234, %p235
      %p238 = scmp.ne.s32.totalorder %s223, %s237
      %p239 = scmp.eq.s32.totalorder %s61, 0
      %p240 = por %p238, %p239
      %s242 = sadd.s32 %s241, 1
      %p245 = scmp.eq.s32.totalorder %s55, 1
      %p246 = scmp.ne.s32.totalorder %s241, %s243
      %p247 = scmp.eq.s32.totalorder %s55, 0
      %p248 = por %p246, %p247
      %p249 = scmp.ne.s32.totalorder %s241, %s243
      %p250 = scmp.eq.s32.totalorder %s60, 1
      %p251 = por %p249, %p250
      %p252 = scmp.ne.s32.totalorder %s243, %s244
      %p253 = scmp.eq.s32.totalorder %s60, 0
      %p254 = por %p252, %p253
      %p255 = scmp.ne.s32.totalorder %s243, %s244
      %p256 = scmp.eq.s32.totalorder %s61, 1
      %p257 = por %p255, %p256
      %p259 = scmp.ne.s32.totalorder %s244, %s258
      %p260 = scmp.eq.s32.totalorder %s61, 0
      %p261 = por %p259, %p260
      %s263 = sadd.s32 %s262, 1
      %p266 = scmp.eq.s32.totalorder %s55, 1
      %p267 = scmp.ne.s32.totalorder %s262, %s264
      %p268 = scmp.eq.s32.totalorder %s55, 0
      %p269 = por %p267, %p268
      %p270 = scmp.ne.s32.totalorder %s262, %s264
      %p271 = scmp.eq.s32.totalorder %s60, 1
      %p272 = por %p270, %p271
      %p273 = scmp.ne.s32.totalorder %s264, %s265
      %p274 = scmp.eq.s32.totalorder %s60, 0
      %p275 = por %p273, %p274
      %p276 = scmp.ne.s32.totalorder %s264, %s265
      %p277 = scmp.eq.s32.totalorder %s61, 1
      %p278 = por %p276, %p277
      %p280 = scmp.ne.s32.totalorder %s265, %s279
      %p281 = scmp.eq.s32.totalorder %s61, 0
      %p282 = por %p280, %p281
      %s284 = sadd.s32 %s283, 1
      %p287 = scmp.eq.s32.totalorder %s55, 1
      %p288 = scmp.ne.s32.totalorder %s283, %s285
      %p289 = scmp.eq.s32.totalorder %s55, 0
      %p290 = por %p288, %p289
      %p291 = scmp.ne.s32.totalorder %s283, %s285
      %p292 = scmp.eq.s32.totalorder %s60, 1
      %p293 = por %p291, %p292
      %p294 = scmp.ne.s32.totalorder %s285, %s286
      %p295 = scmp.eq.s32.totalorder %s60, 0
      %p296 = por %p294, %p295
      %p297 = scmp.ne.s32.totalorder %s285, %s286
      %p298 = scmp.eq.s32.totalorder %s61, 1
      %p299 = por %p297, %p298
      %p301 = scmp.ne.s32.totalorder %s286, %s300
      %p302 = scmp.eq.s32.totalorder %s61, 0
      %p303 = por %p301, %p302
      %s305 = sadd.s32 %s304, 1
      %p308 = scmp.eq.s32.totalorder %s55, 1
      %p309 = scmp.ne.s32.totalorder %s304, %s306
      %p310 = scmp.eq.s32.totalorder %s55, 0
      %p311 = por %p309, %p310
      %p312 = scmp.ne.s32.totalorder %s304, %s306
      %p313 = scmp.eq.s32.totalorder %s60, 1
      %p314 = por %p312, %p313
      %p315 = scmp.ne.s32.totalorder %s306, %s307
      %p316 = scmp.eq.s32.totalorder %s60, 0
      %p317 = por %p315, %p316
      %p318 = scmp.ne.s32.totalorder %s306, %s307
      %p319 = scmp.eq.s32.totalorder %s61, 1
      %p320 = por %p318, %p319
      %p322 = scmp.ne.s32.totalorder %s307, %s321
      %p323 = scmp.eq.s32.totalorder %s61, 0
      %p324 = por %p322, %p323
      %s326 = sadd.s32 %s325, 1
      %p329 = scmp.eq.s32.totalorder %s55, 1
      %p330 = scmp.ne.s32.totalorder %s325, %s327
      %p331 = scmp.eq.s32.totalorder %s55, 0
      %p332 = por %p330, %p331
      %p333 = scmp.ne.s32.totalorder %s325, %s327
      %p334 = scmp.eq.s32.totalorder %s60, 1
      %p335 = por %p333, %p334
      %p336 = scmp.ne.s32.totalorder %s327, %s328
      %p337 = scmp.eq.s32.totalorder %s60, 0
      %p338 = por %p336, %p337
      %p339 = scmp.ne.s32.totalorder %s327, %s328
      %p340 = scmp.eq.s32.totalorder %s61, 1
      %p341 = por %p339, %p340
      %p343 = scmp.ne.s32.totalorder %s328, %s342
      %p344 = scmp.eq.s32.totalorder %s61, 0
      %p345 = por %p343, %p344
      %s347 = sadd.s32 %s346, 1
      %p350 = scmp.eq.s32.totalorder %s55, 1
      %p351 = scmp.ne.s32.totalorder %s346, %s348
      %p352 = scmp.eq.s32.totalorder %s55, 0
      %p353 = por %p351, %p352
      %p354 = scmp.ne.s32.totalorder %s346, %s348
      %p355 = scmp.eq.s32.totalorder %s60, 1
      %p356 = por %p354, %p355
      %p357 = scmp.ne.s32.totalorder %s348, %s349
      %p358 = scmp.eq.s32.totalorder %s60, 0
      %p359 = por %p357, %p358
      %p360 = scmp.ne.s32.totalorder %s348, %s349
      %p361 = scmp.eq.s32.totalorder %s61, 1
      %p362 = por %p360, %p361
      %p364 = scmp.ne.s32.totalorder %s349, %s363
      %p365 = scmp.eq.s32.totalorder %s61, 0
      %p366 = por %p364, %p365
      %s368 = sadd.s32 %s367, 1
      %p371 = scmp.eq.s32.totalorder %s55, 1
      %p372 = scmp.ne.s32.totalorder %s367, %s369
      %p373 = scmp.eq.s32.totalorder %s55, 0
      %p374 = por %p372, %p373
      %p375 = scmp.ne.s32.totalorder %s367, %s369
      %p376 = scmp.eq.s32.totalorder %s60, 1
      %p377 = por %p375, %p376
      %p378 = scmp.ne.s32.totalorder %s369, %s370
      %p379 = scmp.eq.s32.totalorder %s60, 0
      %p380 = por %p378, %p379
      %p381 = scmp.ne.s32.totalorder %s369, %s370
      %p382 = scmp.eq.s32.totalorder %s61, 1
      %p383 = por %p381, %p382
      %p385 = scmp.ne.s32.totalorder %s370, %s384
      %p386 = scmp.eq.s32.totalorder %s61, 0
      %p387 = por %p385, %p386
      %s389 = sadd.s32 %s388, 1
      %p392 = scmp.eq.s32.totalorder %s55, 1
      %p393 = scmp.ne.s32.totalorder %s388, %s390
      %p394 = scmp.eq.s32.totalorder %s55, 0
      %p395 = por %p393, %p394
      %p396 = scmp.ne.s32.totalorder %s388, %s390
      %p397 = scmp.eq.s32.totalorder %s60, 1
      %p398 = por %p396, %p397
      %p399 = scmp.ne.s32.totalorder %s390, %s391
      %p400 = scmp.eq.s32.totalorder %s60, 0
      %p401 = por %p399, %p400
      %p402 = scmp.ne.s32.totalorder %s390, %s391
      %p403 = scmp.eq.s32.totalorder %s61, 1
      %p404 = por %p402, %p403
      %p406 = scmp.ne.s32.totalorder %s391, %s405
      %p407 = scmp.eq.s32.totalorder %s61, 0
      %p408 = por %p406, %p407
      %s410 = sadd.s32 %s409, 1
      %p413 = scmp.eq.s32.totalorder %s55, 1
      %p414 = scmp.ne.s32.totalorder %s409, %s411
      %p415 = scmp.eq.s32.totalorder %s55, 0
      %p416 = por %p414, %p415
      %p417 = scmp.ne.s32.totalorder %s409, %s411
      %p418 = scmp.eq.s32.totalorder %s60, 1
      %p419 = por %p417, %p418
      %p420 = scmp.ne.s32.totalorder %s411, %s412
      %p421 = scmp.eq.s32.totalorder %s60, 0
      %p422 = por %p420, %p421
      %p423 = scmp.ne.s32.totalorder %s411, %s412
      %p424 = scmp.eq.s32.totalorder %s61, 1
      %p425 = por %p423, %p424
      %p427 = scmp.ne.s32.totalorder %s412, %s426
      %p428 = scmp.eq.s32.totalorder %s61, 0
      %p429 = por %p427, %p428
      %s431 = sadd.s32 %s430, 1
      %p434 = scmp.eq.s32.totalorder %s55, 1
      %p435 = scmp.ne.s32.totalorder %s430, %s432
      %p436 = scmp.eq.s32.totalorder %s55, 0
      %p437 = por %p435, %p436
      %p438 = scmp.ne.s32.totalorder %s430, %s432
      %p439 = scmp.eq.s32.totalorder %s60, 1
      %p440 = por %p438, %p439
      %p441 = scmp.ne.s32.totalorder %s432, %s433
      %p442 = scmp.eq.s32.totalorder %s60, 0
      %p443 = por %p441, %p442
      %p444 = scmp.ne.s32.totalorder %s432, %s433
      %p445 = scmp.eq.s32.totalorder %s61, 1
      %p446 = por %p444, %p445
      %p448 = scmp.ne.s32.totalorder %s433, %s447
      %p449 = scmp.eq.s32.totalorder %s61, 0
      %p450 = por %p448, %p449
      %s452 = sadd.s32 %s451, 1
      %p455 = scmp.eq.s32.totalorder %s55, 1
      %p456 = scmp.ne.s32.totalorder %s451, %s453
      %p457 = scmp.eq.s32.totalorder %s55, 0
      %p458 = por %p456, %p457
      %p459 = scmp.ne.s32.totalorder %s451, %s453
      %p460 = scmp.eq.s32.totalorder %s60, 1
      %p461 = por %p459, %p460
      %p462 = scmp.ne.s32.totalorder %s453, %s454
      %p463 = scmp.eq.s32.totalorder %s60, 0
      %p464 = por %p462, %p463
      %p465 = scmp.ne.s32.totalorder %s453, %s454
      %p466 = scmp.eq.s32.totalorder %s61, 1
      %p467 = por %p465, %p466
      %p469 = scmp.ne.s32.totalorder %s454, %s468
      %p470 = scmp.eq.s32.totalorder %s61, 0
      %p471 = por %p469, %p470
      %s473 = sadd.s32 %s472, 1
      %p476 = scmp.eq.s32.totalorder %s55, 1
      %p477 = scmp.ne.s32.totalorder %s472, %s474
      %p478 = scmp.eq.s32.totalorder %s55, 0
      %p479 = por %p477, %p478
      %p480 = scmp.ne.s32.totalorder %s472, %s474
      %p481 = scmp.eq.s32.totalorder %s60, 1
      %p482 = por %p480, %p481
      %p483 = scmp.ne.s32.totalorder %s474, %s475
      %p484 = scmp.eq.s32.totalorder %s60, 0
      %p485 = por %p483, %p484
      %p486 = scmp.ne.s32.totalorder %s474, %s475
      %p487 = scmp.eq.s32.totalorder %s61, 1
      %p488 = por %p486, %p487
      %p490 = scmp.ne.s32.totalorder %s475, %s489
      %p491 = scmp.eq.s32.totalorder %s61, 0
      %p492 = por %p490, %p491
      %s494 = sadd.s32 %s493, 1
      %p497 = scmp.eq.s32.totalorder %s55, 1
      %p498 = scmp.ne.s32.totalorder %s493, %s495
      %p499 = scmp.eq.s32.totalorder %s55, 0
      %p500 = por %p498, %p499
      %p501 = scmp.ne.s32.totalorder %s493, %s495
      %p502 = scmp.eq.s32.totalorder %s60, 1
      %p503 = por %p501, %p502
      %p504 = scmp.ne.s32.totalorder %s495, %s496
      %p505 = scmp.eq.s32.totalorder %s60, 0
      %p506 = por %p504, %p505
      %p507 = scmp.ne.s32.totalorder %s495, %s496
      %p508 = scmp.eq.s32.totalorder %s61, 1
      %p509 = por %p507, %p508
      %p511 = scmp.ne.s32.totalorder %s496, %s510
      %p512 = scmp.eq.s32.totalorder %s61, 0
      %p513 = por %p511, %p512
      %s515 = sadd.s32 %s514, 1
      %p518 = scmp.eq.s32.totalorder %s55, 1
      %p519 = scmp.ne.s32.totalorder %s514, %s516
      %p520 = scmp.eq.s32.totalorder %s55, 0
      %p521 = por %p519, %p520
      %p522 = scmp.ne.s32.totalorder %s514, %s516
      %p523 = scmp.eq.s32.totalorder %s60, 1
      %p524 = por %p522, %p523
      %p525 = scmp.ne.s32.totalorder %s516, %s517
      %p526 = scmp.eq.s32.totalorder %s60, 0
      %p527 = por %p525, %p526
      %p528 = scmp.ne.s32.totalorder %s516, %s517
      %p529 = scmp.eq.s32.totalorder %s61, 1
      %p530 = por %p528, %p529
      %p532 = scmp.ne.s32.totalorder %s517, %s531
      %p533 = scmp.eq.s32.totalorder %s61, 0
      %p534 = por %p532, %p533
      %s536 = sadd.s32 %s535, 1
      %p539 = scmp.eq.s32.totalorder %s55, 1
      %p540 = scmp.ne.s32.totalorder %s535, %s537
      %p541 = scmp.eq.s32.totalorder %s55, 0
      %p542 = por %p540, %p541
      %p543 = scmp.ne.s32.totalorder %s535, %s537
      %p544 = scmp.eq.s32.totalorder %s60, 1
      %p545 = por %p543, %p544
      %p546 = scmp.ne.s32.totalorder %s537, %s538
      %p547 = scmp.eq.s32.totalorder %s60, 0
      %p548 = por %p546, %p547
      %p549 = scmp.ne.s32.totalorder %s537, %s538
      %p550 = scmp.eq.s32.totalorder %s61, 1
      %p551 = por %p549, %p550
      %p553 = scmp.ne.s32.totalorder %s538, %s552
      %p554 = scmp.eq.s32.totalorder %s61, 0
      %p555 = por %p553, %p554
      %s557 = sadd.s32 %s556, 1
      %p560 = scmp.eq.s32.totalorder %s55, 1
      %p561 = scmp.ne.s32.totalorder %s556, %s558
      %p562 = scmp.eq.s32.totalorder %s55, 0
      %p563 = por %p561, %p562
      %p564 = scmp.ne.s32.totalorder %s556, %s558
      %p565 = scmp.eq.s32.totalorder %s60, 1
      %p566 = por %p564, %p565
      %p567 = scmp.ne.s32.totalorder %s558, %s559
      %p568 = scmp.eq.s32.totalorder %s60, 0
      %p569 = por %p567, %p568
      %p570 = scmp.ne.s32.totalorder %s558, %s559
      %p571 = scmp.eq.s32.totalorder %s61, 1
      %p572 = por %p570, %p571
      %p574 = scmp.ne.s32.totalorder %s559, %s573
      %p575 = scmp.eq.s32.totalorder %s61, 0
      %p576 = por %p574, %p575
      %s577 = ssub.s32 %s55, %s62
      %p578 = scmp.eq.s32.totalorder %s577, 0
      %s580 = sadd.s32 %s579, 1
      %s581 = scalar_select %p578, %s579, %s580
      %p584 = pneg %p578
      %p585 = scmp.eq.s32.totalorder %s55, 1
      %p586 = por %p584, %p585
      %p587 = scmp.ne.s32.totalorder %s579, %s582
      %p588 = scmp.eq.s32.totalorder %s55, 0
      %p589 = por %p587, %p588
      %p590 = scmp.ne.s32.totalorder %s579, %s582
      %p591 = scmp.eq.s32.totalorder %s60, 1
      %p592 = por %p590, %p591
      %p593 = scmp.ne.s32.totalorder %s582, %s583
      %p594 = scmp.eq.s32.totalorder %s60, 0
      %p595 = por %p593, %p594
      %p596 = scmp.ne.s32.totalorder %s582, %s583
      %p597 = scmp.eq.s32.totalorder %s61, 1
      %p598 = por %p596, %p597
      %p600 = scmp.ne.s32.totalorder %s583, %s599
      %p601 = scmp.eq.s32.totalorder %s61, 0
      %p602 = por %p600, %p601
      %s603 = ssub.s32 %s55, %s62
      %p604 = scmp.eq.s32.totalorder %s603, 0
      %s606 = sadd.s32 %s605, 1
      %s607 = scalar_select %p604, %s605, %s606
      %p610 = pneg %p604
      %p611 = scmp.eq.s32.totalorder %s55, 1
      %p612 = por %p610, %p611
      %p613 = scmp.ne.s32.totalorder %s605, %s608
      %p614 = scmp.eq.s32.totalorder %s55, 0
      %p615 = por %p613, %p614
      %p616 = scmp.ne.s32.totalorder %s605, %s608
      %p617 = scmp.eq.s32.totalorder %s60, 1
      %p618 = por %p616, %p617
      %p619 = scmp.ne.s32.totalorder %s608, %s609
      %p620 = scmp.eq.s32.totalorder %s60, 0
      %p621 = por %p619, %p620
      %p622 = scmp.ne.s32.totalorder %s608, %s609
      %p623 = scmp.eq.s32.totalorder %s61, 1
      %p624 = por %p622, %p623
      %p626 = scmp.ne.s32.totalorder %s609, %s625
      %p627 = scmp.eq.s32.totalorder %s61, 0
      %p628 = por %p626, %p627
      %p629 = scmp.le.s32.totalorder 1, %s55
      %p630 = scmp.lt.s32.totalorder %s55, 3
      %p631 = pnand %p629, %p630
      %p632 = pneg %p631
      // Predicated region
      $region9: #{transformer_layer_forward.2} parent=5 // pred_check
        _
      $region10: #{transformer_layer_forward.2} parent=5 // pred_check_branch
        %634 = sbr.rel (%p631) target = $region12
      $region11: #{transformer_layer_forward.2} parent=5 // pred_region
        %s635 = ssub.s32 %s55, 1
        // Predicated region
        $region13: #{transformer_layer_forward.2} parent=11 // pred_check
          %p636 = pneg %p128
        $region14: #{transformer_layer_forward.2} parent=11 // pred_check_branch
          %638 = sbr.rel (%p636) target = $region16
        $region15: #{transformer_layer_forward.2} parent=11 // pred_region
          %s640 = ssub.s32 16, 16
          %641 = vsyncadd [#allocation6], %s640
          %s643 = sshll.u32 [#allocation7], 4
          %s644 = int_to_ptr.vmem [resolvable:$true] %s643
          %646 = dma.hbm_to_vmem [thread:$0]  %s2, 16, %s644, [#allocation6]
        $region16: #{transformer_layer_forward.2} parent=11 // pred_fallthru
          _
        // Predicated region
        $region17: #{transformer_layer_forward.2} parent=11 // pred_check
          %p647 = pneg %p149
        $region18: #{transformer_layer_forward.2} parent=11 // pred_check_branch
          %649 = sbr.rel (%p647) target = $region20
        $region19: #{transformer_layer_forward.2} parent=11 // pred_region
          %s651 = ssub.s32 16, 16
          %652 = vsyncadd [#allocation9], %s651
          %s654 = sshll.u32 [#allocation8], 4
          %s655 = int_to_ptr.vmem [resolvable:$true] %s654
          %657 = dma.hbm_to_vmem [thread:$0]  %s3, 16, %s655, [#allocation9]
        $region20: #{transformer_layer_forward.2} parent=11 // pred_fallthru
          _
        // Predicated region
        $region21: #{transformer_layer_forward.2} parent=11 // pred_check
          %p658 = pneg %p170
        $region22: #{transformer_layer_forward.2} parent=11 // pred_check_branch
          %660 = sbr.rel (%p658) target = $region24
        $region23: #{transformer_layer_forward.2} parent=11 // pred_region
          %s662 = ssub.s32 256, 256
          %663 = vsyncadd [#allocation9], %s662
          %s664 = sshll.u32 [#allocation10], 4
          %s665 = int_to_ptr.vmem [resolvable:$true] %s664
          %670 = dma.hbm_to_vmem [thread:$0]  %s4, 256, %s665, [#allocation9], 64, 64, 4
        $region24: #{transformer_layer_forward.2} parent=11 // pred_fallthru
          _
        // Predicated region
        $region25: #{transformer_layer_forward.2} parent=11 // pred_check
          %p671 = pneg %p191
        $region26: #{transformer_layer_forward.2} parent=11 // pred_check_branch
          %673 = sbr.rel (%p671) target = $region28
        $region27: #{transformer_layer_forward.2} parent=11 // pred_region
          %s675 = ssub.s32 256, 256
          %676 = vsyncadd [#allocation12], %s675
          %s677 = sshll.u32 [#allocation11], 4
          %s678 = int_to_ptr.vmem [resolvable:$true] %s677
          %683 = dma.hbm_to_vmem [thread:$0]  %s5, 256, %s678, [#allocation12], 64, 64, 4
        $region28: #{transformer_layer_forward.2} parent=11 // pred_fallthru
          _
        // Predicated region
        $region29: #{transformer_layer_forward.2} parent=11 // pred_check
          %p684 = pneg %p212
        $region30: #{transformer_layer_forward.2} parent=11 // pred_check_branch
          %686 = sbr.rel (%p684) target = $region32
        $region31: #{transformer_layer_forward.2} parent=11 // pred_region
          %s688 = ssub.s32 1024, 1024
          %689 = vsyncadd [#allocation12], %s688
          %s690 = sshll.u32 [#allocation13], 4
          %s691 = int_to_ptr.vmem [resolvable:$true] %s690
          %696 = dma.hbm_to_vmem [thread:$0]  %s6, 1024, %s691, [#allocation12], 64, 64, 4
        $region32: #{transformer_layer_forward.2} parent=11 // pred_fallthru
          _
        // Predicated region
        $region33: #{transformer_layer_forward.2} parent=11 // pred_check
          %p697 = pneg %p233
        $region34: #{transformer_layer_forward.2} parent=11 // pred_check_branch
          %699 = sbr.rel (%p697) target = $region36
        $region35: #{transformer_layer_forward.2} parent=11 // pred_region
          %s701 = ssub.s32 64, 64
          %702 = vsyncadd [#allocation15], %s701
          %s703 = sshll.u32 [#allocation14], 4
          %s704 = int_to_ptr.vmem [resolvable:$true] %s703
          %709 = dma.hbm_to_vmem [thread:$0]  %s7, 64, %s704, [#allocation15], 16, 16, 1
        $region36: #{transformer_layer_forward.2} parent=11 // pred_fallthru
          _
        // Predicated region
        $region37: #{transformer_layer_forward.2} parent=11 // pred_check
          %p710 = pneg %p254
        $region38: #{transformer_layer_forward.2} parent=11 // pred_check_branch
          %712 = sbr.rel (%p710) target = $region40
        $region39: #{transformer_layer_forward.2} parent=11 // pred_region
          %s714 = ssub.s32 1024, 1024
          %715 = vsyncadd [#allocation15], %s714
          %s716 = sshll.u32 [#allocation16], 4
          %s717 = int_to_ptr.vmem [resolvable:$true] %s716
          %722 = dma.hbm_to_vmem [thread:$0]  %s8, 1024, %s717, [#allocation15], 64, 64, 4
        $region40: #{transformer_layer_forward.2} parent=11 // pred_fallthru
          _
        // Predicated region
        $region41: #{transformer_layer_forward.2} parent=11 // pred_check
          %p723 = pneg %p275
        $region42: #{transformer_layer_forward.2} parent=11 // pred_check_branch
          %725 = sbr.rel (%p723) target = $region44
        $region43: #{transformer_layer_forward.2} parent=11 // pred_region
          %s727 = ssub.s32 64, 64
          %728 = vsyncadd [#allocation18], %s727
          %s729 = sshll.u32 [#allocation17], 4
          %s730 = int_to_ptr.vmem [resolvable:$true] %s729
          %735 = dma.hbm_to_vmem [thread:$0]  %s9, 64, %s730, [#allocation18], 16, 16, 1
        $region44: #{transformer_layer_forward.2} parent=11 // pred_fallthru
          _
        // Predicated region
        $region45: #{transformer_layer_forward.2} parent=11 // pred_check
          %p736 = pneg %p296
        $region46: #{transformer_layer_forward.2} parent=11 // pred_check_branch
          %738 = sbr.rel (%p736) target = $region48
        $region47: #{transformer_layer_forward.2} parent=11 // pred_region
          %s740 = ssub.s32 1024, 1024
          %741 = vsyncadd [#allocation18], %s740
          %s742 = sshll.u32 [#allocation19], 4
          %s743 = int_to_ptr.vmem [resolvable:$true] %s742
          %748 = dma.hbm_to_vmem [thread:$0]  %s10, 1024, %s743, [#allocation18], 64, 64, 4
        $region48: #{transformer_layer_forward.2} parent=11 // pred_fallthru
          _
        // Predicated region
        $region49: #{transformer_layer_forward.2} parent=11 // pred_check
          %p749 = pneg %p317
        $region50: #{transformer_layer_forward.2} parent=11 // pred_check_branch
          %751 = sbr.rel (%p749) target = $region52
        $region51: #{transformer_layer_forward.2} parent=11 // pred_region
          %s753 = ssub.s32 64, 64
          %754 = vsyncadd [#allocation21], %s753
          %s755 = sshll.u32 [#allocation20], 4
          %s756 = int_to_ptr.vmem [resolvable:$true] %s755
          %761 = dma.hbm_to_vmem [thread:$0]  %s11, 64, %s756, [#allocation21], 16, 16, 1
        $region52: #{transformer_layer_forward.2} parent=11 // pred_fallthru
          _
        // Predicated region
        $region53: #{transformer_layer_forward.2} parent=11 // pred_check
          %p762 = pneg %p338
        $region54: #{transformer_layer_forward.2} parent=11 // pred_check_branch
          %764 = sbr.rel (%p762) target = $region56
        $region55: #{transformer_layer_forward.2} parent=11 // pred_region
          %s766 = ssub.s32 64, 64
          %767 = vsyncadd [#allocation21], %s766
          %s768 = sshll.u32 [#allocation22], 4
          %s769 = int_to_ptr.vmem [resolvable:$true] %s768
          %774 = dma.hbm_to_vmem [thread:$0]  %s12, 64, %s769, [#allocation21], 16, 16, 1
        $region56: #{transformer_layer_forward.2} parent=11 // pred_fallthru
          _
        // Predicated region
        $region57: #{transformer_layer_forward.2} parent=11 // pred_check
          %p775 = pneg %p359
        $region58: #{transformer_layer_forward.2} parent=11 // pred_check_branch
          %777 = sbr.rel (%p775) target = $region60
        $region59: #{transformer_layer_forward.2} parent=11 // pred_region
          %s779 = ssub.s32 64, 64
          %780 = vsyncadd [#allocation24], %s779
          %s781 = sshll.u32 [#allocation23], 4
          %s782 = int_to_ptr.vmem [resolvable:$true] %s781
          %787 = dma.hbm_to_vmem [thread:$0]  %s13, 64, %s782, [#allocation24], 16, 16, 1
        $region60: #{transformer_layer_forward.2} parent=11 // pred_fallthru
          _
        // Predicated region
        $region61: #{transformer_layer_forward.2} parent=11 // pred_check
          %p788 = pneg %p380
        $region62: #{transformer_layer_forward.2} parent=11 // pred_check_branch
          %790 = sbr.rel (%p788) target = $region64
        $region63: #{transformer_layer_forward.2} parent=11 // pred_region
          %s792 = ssub.s32 256, 256
          %793 = vsyncadd [#allocation24], %s792
          %s794 = sshll.u32 [#allocation25], 4
          %s795 = int_to_ptr.vmem [resolvable:$true] %s794
          %800 = dma.hbm_to_vmem [thread:$0]  %s14, 256, %s795, [#allocation24], 64, 64, 4
        $region64: #{transformer_layer_forward.2} parent=11 // pred_fallthru
          _
        // Predicated region
        $region65: #{transformer_layer_forward.2} parent=11 // pred_check
          %p801 = pneg %p401
        $region66: #{transformer_layer_forward.2} parent=11 // pred_check_branch
          %803 = sbr.rel (%p801) target = $region68
        $region67: #{transformer_layer_forward.2} parent=11 // pred_region
          %s805 = ssub.s32 16, 16
          %806 = vsyncadd [#allocation27], %s805
          %s808 = sshll.u32 [#allocation26], 4
          %s809 = int_to_ptr.vmem [resolvable:$true] %s808
          %811 = dma.hbm_to_vmem [thread:$0]  %s15, 16, %s809, [#allocation27]
        $region68: #{transformer_layer_forward.2} parent=11 // pred_fallthru
          _
        // Predicated region
        $region69: #{transformer_layer_forward.2} parent=11 // pred_check
          %p812 = pneg %p422
        $region70: #{transformer_layer_forward.2} parent=11 // pred_check_branch
          %814 = sbr.rel (%p812) target = $region72
        $region71: #{transformer_layer_forward.2} parent=11 // pred_region
          %s816 = ssub.s32 16, 16
          %817 = vsyncadd [#allocation27], %s816
          %s819 = sshll.u32 [#allocation28], 4
          %s820 = int_to_ptr.vmem [resolvable:$true] %s819
          %822 = dma.hbm_to_vmem [thread:$0]  %s16, 16, %s820, [#allocation27]
        $region72: #{transformer_layer_forward.2} parent=11 // pred_fallthru
          _
        // Predicated region
        $region73: #{transformer_layer_forward.2} parent=11 // pred_check
          %p823 = pneg %p443
        $region74: #{transformer_layer_forward.2} parent=11 // pred_check_branch
          %825 = sbr.rel (%p823) target = $region76
        $region75: #{transformer_layer_forward.2} parent=11 // pred_region
          %s827 = ssub.s32 16, 16
          %828 = vsyncadd [#allocation30], %s827
          %s830 = sshll.u32 [#allocation29], 4
          %s831 = int_to_ptr.vmem [resolvable:$true] %s830
          %833 = dma.hbm_to_vmem [thread:$0]  %s17, 16, %s831, [#allocation30]
        $region76: #{transformer_layer_forward.2} parent=11 // pred_fallthru
          _
        // Predicated region
        $region77: #{transformer_layer_forward.2} parent=11 // pred_check
          %p834 = pneg %p464
        $region78: #{transformer_layer_forward.2} parent=11 // pred_check_branch
          %836 = sbr.rel (%p834) target = $region80
        $region79: #{transformer_layer_forward.2} parent=11 // pred_region
          %s838 = ssub.s32 256, 256
          %839 = vsyncadd [#allocation30], %s838
          %s840 = sshll.u32 [#allocation31], 4
          %s841 = int_to_ptr.vmem [resolvable:$true] %s840
          %846 = dma.hbm_to_vmem [thread:$0]  %s18, 256, %s841, [#allocation30], 64, 64, 4
        $region80: #{transformer_layer_forward.2} parent=11 // pred_fallthru
          _
        // Predicated region
        $region81: #{transformer_layer_forward.2} parent=11 // pred_check
          %p847 = pneg %p485
        $region82: #{transformer_layer_forward.2} parent=11 // pred_check_branch
          %849 = sbr.rel (%p847) target = $region84
        $region83: #{transformer_layer_forward.2} parent=11 // pred_region
          %s851 = ssub.s32 256, 256
          %852 = vsyncadd [#allocation33], %s851
          %s853 = sshll.u32 [#allocation32], 4
          %s854 = int_to_ptr.vmem [resolvable:$true] %s853
          %859 = dma.hbm_to_vmem [thread:$0]  %s19, 256, %s854, [#allocation33], 64, 64, 4
        $region84: #{transformer_layer_forward.2} parent=11 // pred_fallthru
          _
        // Predicated region
        $region85: #{transformer_layer_forward.2} parent=11 // pred_check
          %p860 = pneg %p506
        $region86: #{transformer_layer_forward.2} parent=11 // pred_check_branch
          %862 = sbr.rel (%p860) target = $region88
        $region87: #{transformer_layer_forward.2} parent=11 // pred_region
          %s864 = ssub.s32 256, 256
          %865 = vsyncadd [#allocation33], %s864
          %s866 = sshll.u32 [#allocation34], 4
          %s867 = int_to_ptr.vmem [resolvable:$true] %s866
          %872 = dma.hbm_to_vmem [thread:$0]  %s20, 256, %s867, [#allocation33], 64, 64, 4
        $region88: #{transformer_layer_forward.2} parent=11 // pred_fallthru
          _
        // Predicated region
        $region89: #{transformer_layer_forward.2} parent=11 // pred_check
          %p873 = pneg %p527
        $region90: #{transformer_layer_forward.2} parent=11 // pred_check_branch
          %875 = sbr.rel (%p873) target = $region92
        $region91: #{transformer_layer_forward.2} parent=11 // pred_region
          %s877 = ssub.s32 16, 16
          %878 = vsyncadd [#allocation36], %s877
          %s880 = sshll.u32 [#allocation35], 4
          %s881 = int_to_ptr.vmem [resolvable:$true] %s880
          %883 = dma.hbm_to_vmem [thread:$0]  %s21, 16, %s881, [#allocation36]
        $region92: #{transformer_layer_forward.2} parent=11 // pred_fallthru
          _
        // Predicated region
        $region93: #{transformer_layer_forward.2} parent=11 // pred_check
          %p884 = pneg %p548
        $region94: #{transformer_layer_forward.2} parent=11 // pred_check_branch
          %886 = sbr.rel (%p884) target = $region96
        $region95: #{transformer_layer_forward.2} parent=11 // pred_region
          %s888 = ssub.s32 512, 512
          %889 = vsyncadd [#allocation36], %s888
          %s890 = sshll.u32 [#allocation37], 4
          %s891 = int_to_ptr.vmem [resolvable:$true] %s890
          %896 = dma.hbm_to_vmem [thread:$0]  %s22, 512, %s891, [#allocation36], 64, 64, 4
        $region96: #{transformer_layer_forward.2} parent=11 // pred_fallthru
          _
        // Predicated region
        $region97: #{transformer_layer_forward.2} parent=11 // pred_check
          %p897 = pneg %p569
        $region98: #{transformer_layer_forward.2} parent=11 // pred_check_branch
          %899 = sbr.rel (%p897) target = $region100
        $region99: #{transformer_layer_forward.2} parent=11 // pred_region
          %s901 = ssub.s32 16, 16
          %902 = vsyncadd [#allocation39], %s901
          %s904 = sshll.u32 [#allocation38], 4
          %s905 = int_to_ptr.vmem [resolvable:$true] %s904
          %907 = dma.hbm_to_vmem [thread:$0]  %s23, 16, %s905, [#allocation39]
        $region100: #{transformer_layer_forward.2} parent=11 // pred_fallthru
          _
      $region12: #{transformer_layer_forward.2} parent=5 // pred_fallthru
        _
      %p908 = scmp.lt.s32.totalorder %s55, 2
      // Predicated region
      $region101: #{transformer_layer_forward.2} parent=5 // pred_check
        %p909 = pneg %p908
      $region102: #{transformer_layer_forward.2} parent=5 // pred_check_branch
        %911 = sbr.rel (%p909) target = $region104
      $region103: #{transformer_layer_forward.2} parent=5 // pred_region
        // Predicated region
        $region105: #{transformer_layer_forward.2} parent=103 // pred_check
          %p912 = pneg %p75
        $region106: #{transformer_layer_forward.2} parent=103 // pred_check_branch
          %914 = sbr.rel (%p912) target = $region108
        $region107: #{transformer_layer_forward.2} parent=103 // pred_region
          %s915 = sand.u32 %s65, 1
          %s916 = scalar_lea.sflag [#allocation3], %s915
          %s917 = sand.u32 %s65, 1
          %s918 = smul.addr %s917, 8
          %s919 = scalar_lea.vmem [#allocation2], %s918
          %s921 = ssub.s32 128, 128
          %922 = vsyncadd %s916, %s921
          %s923 = smul.addr %s55, 128
          %s924 = scalar_lea.hbm %s0, %s923
          %s926 = sshll.u32 %s919, 4
          %s927 = int_to_ptr.vmem [resolvable:$true] %s926
          %929 = dma.hbm_to_vmem [thread:$0]  %s924, 128, %s927, %s916
        $region108: #{transformer_layer_forward.2} parent=103 // pred_fallthru
          _
        // Predicated region
        $region109: #{transformer_layer_forward.2} parent=103 // pred_check
          %p930 = pneg %p101
        $region110: #{transformer_layer_forward.2} parent=103 // pred_check_branch
          %932 = sbr.rel (%p930) target = $region112
        $region111: #{transformer_layer_forward.2} parent=103 // pred_region
          %s933 = sand.u32 %s55, 1
          %s934 = scalar_lea.sflag [#allocation6], %s933
          %s935 = sand.u32 %s91, 1
          %s936 = scalar_lea.vmem [#allocation5], %s935
          %s938 = ssub.s32 16, 16
          %939 = vsyncadd %s934, %s938
          %s940 = smul.addr %s55, 16
          %s941 = scalar_lea.hbm %s1, %s940
          %s943 = sshll.u32 %s936, 4
          %s944 = int_to_ptr.vmem [resolvable:$true] %s943
          %946 = dma.hbm_to_vmem [thread:$0]  %s941, 16, %s944, %s934
        $region112: #{transformer_layer_forward.2} parent=103 // pred_fallthru
          _
      $region104: #{transformer_layer_forward.2} parent=5 // pred_fallthru
        _
      %p947 = scmp.le.s32.totalorder 1, %s55
      %p948 = scmp.lt.s32.totalorder %s55, 3
      %p949 = pnand %p947, %p948
      %p950 = pneg %p949
      // Predicated region
      $region113: #{transformer_layer_forward.2} parent=5 // pred_check
        _
      $region114: #{transformer_layer_forward.2} parent=5 // pred_check_branch
        %952 = sbr.rel (%p949) target = $region116
      $region115: #{transformer_layer_forward.2} parent=5 // pred_region
        %s953 = ssub.s32 %s55, 1
        %s954 = sand.u32 %s68, 1
        %s955 = scalar_lea.sflag [#allocation3], %s954
        %s956 = sand.u32 %s68, 1
        %s957 = smul.addr %s956, 8
        %s958 = scalar_lea.vmem [#allocation2], %s957
        // Predicated region
        $region117: #{transformer_layer_forward.2} parent=115 // pred_check
          %p959 = pneg %p81
        $region118: #{transformer_layer_forward.2} parent=115 // pred_check_branch
          %961 = sbr.rel (%p959) target = $region120
        $region119: #{transformer_layer_forward.2} parent=115 // pred_region
          %962 = dma.done %s955, 128
        $region120: #{transformer_layer_forward.2} parent=115 // pred_fallthru
          _
        %s963 = sand.u32 %s60, 1
        %s964 = scalar_lea.sflag [#allocation6], %s963
        %s965 = sand.u32 %s94, 1
        %s966 = scalar_lea.vmem [#allocation5], %s965
        // Predicated region
        $region121: #{transformer_layer_forward.2} parent=115 // pred_check
          %p967 = pneg %p107
        $region122: #{transformer_layer_forward.2} parent=115 // pred_check_branch
          %969 = sbr.rel (%p967) target = $region124
        $region123: #{transformer_layer_forward.2} parent=115 // pred_region
          %970 = dma.done %s964, 16
        $region124: #{transformer_layer_forward.2} parent=115 // pred_fallthru
          _
        // Predicated region
        $region125: #{transformer_layer_forward.2} parent=115 // pred_check
          %p971 = pneg %p128
        $region126: #{transformer_layer_forward.2} parent=115 // pred_check_branch
          %973 = sbr.rel (%p971) target = $region128
        $region127: #{transformer_layer_forward.2} parent=115 // pred_region
          %974 = dma.done [#allocation6], 16
        $region128: #{transformer_layer_forward.2} parent=115 // pred_fallthru
          _
        // Predicated region
        $region129: #{transformer_layer_forward.2} parent=115 // pred_check
          %p975 = pneg %p149
        $region130: #{transformer_layer_forward.2} parent=115 // pred_check_branch
          %977 = sbr.rel (%p975) target = $region132
        $region131: #{transformer_layer_forward.2} parent=115 // pred_region
          %978 = dma.done [#allocation9], 16
        $region132: #{transformer_layer_forward.2} parent=115 // pred_fallthru
          _
        // Predicated region
        $region133: #{transformer_layer_forward.2} parent=115 // pred_check
          %p979 = pneg %p170
        $region134: #{transformer_layer_forward.2} parent=115 // pred_check_branch
          %981 = sbr.rel (%p979) target = $region136
        $region135: #{transformer_layer_forward.2} parent=115 // pred_region
          %982 = dma.done [#allocation9], 256
        $region136: #{transformer_layer_forward.2} parent=115 // pred_fallthru
          _
        // Predicated region
        $region137: #{transformer_layer_forward.2} parent=115 // pred_check
          %p983 = pneg %p191
        $region138: #{transformer_layer_forward.2} parent=115 // pred_check_branch
          %985 = sbr.rel (%p983) target = $region140
        $region139: #{transformer_layer_forward.2} parent=115 // pred_region
          %986 = dma.done [#allocation12], 256
        $region140: #{transformer_layer_forward.2} parent=115 // pred_fallthru
          _
        // Predicated region
        $region141: #{transformer_layer_forward.2} parent=115 // pred_check
          %p987 = pneg %p212
        $region142: #{transformer_layer_forward.2} parent=115 // pred_check_branch
          %989 = sbr.rel (%p987) target = $region144
        $region143: #{transformer_layer_forward.2} parent=115 // pred_region
          %990 = dma.done [#allocation12], 1024
        $region144: #{transformer_layer_forward.2} parent=115 // pred_fallthru
          _
        // Predicated region
        $region145: #{transformer_layer_forward.2} parent=115 // pred_check
          %p991 = pneg %p233
        $region146: #{transformer_layer_forward.2} parent=115 // pred_check_branch
          %993 = sbr.rel (%p991) target = $region148
        $region147: #{transformer_layer_forward.2} parent=115 // pred_region
          %994 = dma.done [#allocation15], 64
        $region148: #{transformer_layer_forward.2} parent=115 // pred_fallthru
          _
        // Predicated region
        $region149: #{transformer_layer_forward.2} parent=115 // pred_check
          %p995 = pneg %p254
        $region150: #{transformer_layer_forward.2} parent=115 // pred_check_branch
          %997 = sbr.rel (%p995) target = $region152
        $region151: #{transformer_layer_forward.2} parent=115 // pred_region
          %998 = dma.done [#allocation15], 1024
        $region152: #{transformer_layer_forward.2} parent=115 // pred_fallthru
          _
        // Predicated region
        $region153: #{transformer_layer_forward.2} parent=115 // pred_check
          %p999 = pneg %p275
        $region154: #{transformer_layer_forward.2} parent=115 // pred_check_branch
          %1001 = sbr.rel (%p999) target = $region156
        $region155: #{transformer_layer_forward.2} parent=115 // pred_region
          %1002 = dma.done [#allocation18], 64
        $region156: #{transformer_layer_forward.2} parent=115 // pred_fallthru
          _
        // Predicated region
        $region157: #{transformer_layer_forward.2} parent=115 // pred_check
          %p1003 = pneg %p296
        $region158: #{transformer_layer_forward.2} parent=115 // pred_check_branch
          %1005 = sbr.rel (%p1003) target = $region160
        $region159: #{transformer_layer_forward.2} parent=115 // pred_region
          %1006 = dma.done [#allocation18], 1024
        $region160: #{transformer_layer_forward.2} parent=115 // pred_fallthru
          _
        // Predicated region
        $region161: #{transformer_layer_forward.2} parent=115 // pred_check
          %p1007 = pneg %p317
        $region162: #{transformer_layer_forward.2} parent=115 // pred_check_branch
          %1009 = sbr.rel (%p1007) target = $region164
        $region163: #{transformer_layer_forward.2} parent=115 // pred_region
          %1010 = dma.done [#allocation21], 64
        $region164: #{transformer_layer_forward.2} parent=115 // pred_fallthru
          _
        // Predicated region
        $region165: #{transformer_layer_forward.2} parent=115 // pred_check
          %p1011 = pneg %p338
        $region166: #{transformer_layer_forward.2} parent=115 // pred_check_branch
          %1013 = sbr.rel (%p1011) target = $region168
        $region167: #{transformer_layer_forward.2} parent=115 // pred_region
          %1014 = dma.done [#allocation21], 64
        $region168: #{transformer_layer_forward.2} parent=115 // pred_fallthru
          _
        // Predicated region
        $region169: #{transformer_layer_forward.2} parent=115 // pred_check
          %p1015 = pneg %p359
        $region170: #{transformer_layer_forward.2} parent=115 // pred_check_branch
          %1017 = sbr.rel (%p1015) target = $region172
        $region171: #{transformer_layer_forward.2} parent=115 // pred_region
          %1018 = dma.done [#allocation24], 64
        $region172: #{transformer_layer_forward.2} parent=115 // pred_fallthru
          _
        // Predicated region
        $region173: #{transformer_layer_forward.2} parent=115 // pred_check
          %p1019 = pneg %p380
        $region174: #{transformer_layer_forward.2} parent=115 // pred_check_branch
          %1021 = sbr.rel (%p1019) target = $region176
        $region175: #{transformer_layer_forward.2} parent=115 // pred_region
          %1022 = dma.done [#allocation24], 256
        $region176: #{transformer_layer_forward.2} parent=115 // pred_fallthru
          _
        // Predicated region
        $region177: #{transformer_layer_forward.2} parent=115 // pred_check
          %p1023 = pneg %p401
        $region178: #{transformer_layer_forward.2} parent=115 // pred_check_branch
          %1025 = sbr.rel (%p1023) target = $region180
        $region179: #{transformer_layer_forward.2} parent=115 // pred_region
          %1026 = dma.done [#allocation27], 16
        $region180: #{transformer_layer_forward.2} parent=115 // pred_fallthru
          _
        // Predicated region
        $region181: #{transformer_layer_forward.2} parent=115 // pred_check
          %p1027 = pneg %p422
        $region182: #{transformer_layer_forward.2} parent=115 // pred_check_branch
          %1029 = sbr.rel (%p1027) target = $region184
        $region183: #{transformer_layer_forward.2} parent=115 // pred_region
          %1030 = dma.done [#allocation27], 16
        $region184: #{transformer_layer_forward.2} parent=115 // pred_fallthru
          _
        // Predicated region
        $region185: #{transformer_layer_forward.2} parent=115 // pred_check
          %p1031 = pneg %p443
        $region186: #{transformer_layer_forward.2} parent=115 // pred_check_branch
          %1033 = sbr.rel (%p1031) target = $region188
        $region187: #{transformer_layer_forward.2} parent=115 // pred_region
          %1034 = dma.done [#allocation30], 16
        $region188: #{transformer_layer_forward.2} parent=115 // pred_fallthru
          _
        // Predicated region
        $region189: #{transformer_layer_forward.2} parent=115 // pred_check
          %p1035 = pneg %p464
        $region190: #{transformer_layer_forward.2} parent=115 // pred_check_branch
          %1037 = sbr.rel (%p1035) target = $region192
        $region191: #{transformer_layer_forward.2} parent=115 // pred_region
          %1038 = dma.done [#allocation30], 256
        $region192: #{transformer_layer_forward.2} parent=115 // pred_fallthru
          _
        // Predicated region
        $region193: #{transformer_layer_forward.2} parent=115 // pred_check
          %p1039 = pneg %p485
        $region194: #{transformer_layer_forward.2} parent=115 // pred_check_branch
          %1041 = sbr.rel (%p1039) target = $region196
        $region195: #{transformer_layer_forward.2} parent=115 // pred_region
          %1042 = dma.done [#allocation33], 256
        $region196: #{transformer_layer_forward.2} parent=115 // pred_fallthru
          _
        // Predicated region
        $region197: #{transformer_layer_forward.2} parent=115 // pred_check
          %p1043 = pneg %p506
        $region198: #{transformer_layer_forward.2} parent=115 // pred_check_branch
          %1045 = sbr.rel (%p1043) target = $region200
        $region199: #{transformer_layer_forward.2} parent=115 // pred_region
          %1046 = dma.done [#allocation33], 256
        $region200: #{transformer_layer_forward.2} parent=115 // pred_fallthru
          _
        // Predicated region
        $region201: #{transformer_layer_forward.2} parent=115 // pred_check
          %p1047 = pneg %p527
        $region202: #{transformer_layer_forward.2} parent=115 // pred_check_branch
          %1049 = sbr.rel (%p1047) target = $region204
        $region203: #{transformer_layer_forward.2} parent=115 // pred_region
          %1050 = dma.done [#allocation36], 16
        $region204: #{transformer_layer_forward.2} parent=115 // pred_fallthru
          _
        // Predicated region
        $region205: #{transformer_layer_forward.2} parent=115 // pred_check
          %p1051 = pneg %p548
        $region206: #{transformer_layer_forward.2} parent=115 // pred_check_branch
          %1053 = sbr.rel (%p1051) target = $region208
        $region207: #{transformer_layer_forward.2} parent=115 // pred_region
          %1054 = dma.done [#allocation36], 512
        $region208: #{transformer_layer_forward.2} parent=115 // pred_fallthru
          _
        // Predicated region
        $region209: #{transformer_layer_forward.2} parent=115 // pred_check
          %p1055 = pneg %p569
        $region210: #{transformer_layer_forward.2} parent=115 // pred_check_branch
          %1057 = sbr.rel (%p1055) target = $region212
        $region211: #{transformer_layer_forward.2} parent=115 // pred_region
          %1058 = dma.done [#allocation39], 16
        $region212: #{transformer_layer_forward.2} parent=115 // pred_fallthru
          _
        %s1059 = sand.u32 %s68, 1
        %s1060 = scalar_lea.sflag [#allocation3], %s1059
        %s1061 = sand.u32 %s68, 1
        %s1062 = smul.addr %s1061, 8
        %s1063 = scalar_lea.vmem [#allocation2], %s1062
        %p1064 = pneg %p81
        %p1065 = pneg %p78
        %s1066 = sand.u32 %s60, 1
        %s1067 = scalar_lea.sflag [#allocation6], %s1066
        %s1068 = sand.u32 %s94, 1
        %s1069 = scalar_lea.vmem [#allocation5], %s1068
        %p1070 = pneg %p107
        %p1071 = pneg %p104
        %p1072 = pneg %p128
        %p1073 = pneg %p125
        %p1074 = pneg %p149
        %p1075 = pneg %p146
        %p1076 = pneg %p170
        %p1077 = pneg %p167
        %p1078 = pneg %p191
        %p1079 = pneg %p188
        %p1080 = pneg %p212
        %p1081 = pneg %p209
        %p1082 = pneg %p233
        %p1083 = pneg %p230
        %p1084 = pneg %p254
        %p1085 = pneg %p251
        %p1086 = pneg %p275
        %p1087 = pneg %p272
        %p1088 = pneg %p296
        %p1089 = pneg %p293
        %p1090 = pneg %p317
        %p1091 = pneg %p314
        %p1092 = pneg %p338
        %p1093 = pneg %p335
        %p1094 = pneg %p359
        %p1095 = pneg %p356
        %p1096 = pneg %p380
        %p1097 = pneg %p377
        %p1098 = pneg %p401
        %p1099 = pneg %p398
        %p1100 = pneg %p422
        %p1101 = pneg %p419
        %p1102 = pneg %p443
        %p1103 = pneg %p440
        %p1104 = pneg %p464
        %p1105 = pneg %p461
        %p1106 = pneg %p485
        %p1107 = pneg %p482
        %p1108 = pneg %p506
        %p1109 = pneg %p503
        %p1110 = pneg %p527
        %p1111 = pneg %p524
        %p1112 = pneg %p548
        %p1113 = pneg %p545
        %p1114 = pneg %p569
        %p1115 = pneg %p566
        %p1116 = pneg %p595
        %p1117 = pneg %p592
        %s1118 = sand.u32 %s582, 1
        %s1119 = scalar_lea.sflag [#allocation4], %s1118
        %s1120 = sand.u32 %s582, 1
        %s1121 = smul.addr %s1120, 8
        %s1122 = scalar_lea.vmem [#allocation40], %s1121
        %p1123 = pneg %p621
        %p1124 = pneg %p618
        %s1125 = sand.u32 %s608, 1
        %s1126 = scalar_lea.sflag [#allocation42], %s1125
        %s1127 = sand.u32 %s608, 1
        %s1128 = smul.addr %s1127, 8
        %s1129 = scalar_lea.vmem [#allocation41], %s1128
        %v1131 = vld [vmem:[%s958] sm:$0xff]
        %v1132 = vld [vmem:[%s966] sm:$0x1]
        %v1133 = vpack.c.bf16 %v1132, %v1132
        %v1134 = vld [vmem:[#allocation7] sm:$0x1]
        %v1135 = vld [vmem:[#allocation10] sm:$0xf]
        %v1136 = vld [vmem:[#allocation10 + $0x4] sm:$0xf]
        %v1137 = vld [vmem:[#allocation10 + $0x8] sm:$0xf]
        %v1138 = vld [vmem:[#allocation10 + $0xc] sm:$0xf]
        %v1143 = vunpack.c.l.b16 %v1135
        %v1144 = vunpack.c.l.b16 %v1136
        %v1145 = vunpack.c.l.b16 %v1137
        %v1146 = vunpack.c.l.b16 %v1138
        %v1147 = vpack.c.b16 %v1144, %v1143
        %v1148 = vpack.c.b16 %v1146, %v1145
        %vm1151 = vcmask 261120
        %v1153 = vsel %vm1151, %v1133, 0
        %1155 = vmatprep.subr.bf16.mxu0 0
        %1156 = vmatpush1.bf16.msra.mxu0 %v1147
        %1157 = vmatprep.subr.bf16.mxu0 0
        %1158 = vmatpush1.bf16.msra.mxu0 %v1148
        %1159 = vmatprep.subr.bf16.mxu0 0
        %1160 = vmatpush1.bf16.msra.mxu0 0
        %1161 = vmatprep.subr.bf16.mxu0 0
        %1162 = vmatpush1.bf16.msra.mxu0 0
        %1163 = vmatprep.subr.bf16.mxu0 0
        %1164 = vmatpush1.bf16.msra.mxu0 0
        %1165 = vmatprep.subr.bf16.mxu0 0
        %1166 = vmatpush1.bf16.msra.mxu0 0
        %1167 = vmatprep.subr.bf16.mxu0 0
        %1168 = vmatpush1.bf16.msra.mxu0 0
        %1169 = vmatprep.subr.bf16.mxu0 0
        %1170 = vmatpush1.bf16.msra.mxu0 0
        %1171 = vmatprep.subr.bf16.mxu0 0
        %1172 = vmatpush1.bf16.msra.mxu0 0
        %1173 = vmatprep.subr.bf16.mxu0 0
        %1174 = vmatpush1.bf16.msra.mxu0 0
        %1175 = vmatprep.subr.bf16.mxu0 0
        %1176 = vmatpush1.bf16.msra.mxu0 0
        %1177 = vmatprep.subr.bf16.mxu0 0
        %1178 = vmatpush1.bf16.msra.mxu0 0
        %1179 = vmatprep.subr.bf16.mxu0 0
        %1180 = vmatpush1.bf16.msra.mxu0 0
        %1181 = vmatprep.subr.bf16.mxu0 0
        %1182 = vmatpush1.bf16.msra.mxu0 0
        %1183 = vmatprep.subr.bf16.mxu0 0
        %1184 = vmatpush1.bf16.msra.mxu0 0
        %1185 = vmatprep.subr.bf16.mxu0 0
        %1186 = vmatpush1.bf16.msra.mxu0 0
        %1187 = vmatprep.mubr.bf16.mxu0 0
        %1188 = vmatmul.mubr.bf16.gmra.mrb[0].mxu0 %v1153
        %v1189 = vpop.f32.mrb[0].mxu0
        %v1190 = vadd.f32 0.0, %v1189
        %v1191 = vpop.f32.mrb[0].mxu0
        %v1192 = vpop.f32.mrb[0].mxu0
        %v1193 = vpop.f32.mrb[0].mxu0
        %1194 = vdwg.mxu0
        %v1195 = vadd.f32 %v1134, %v1190
        %v1196 = vld [vmem:[#allocation8] sm:$0x1]
        %v1197 = vld [vmem:[#allocation11] sm:$0xf]
        %v1198 = vld [vmem:[#allocation11 + $0x4] sm:$0xf]
        %v1199 = vld [vmem:[#allocation11 + $0x8] sm:$0xf]
        %v1200 = vld [vmem:[#allocation11 + $0xc] sm:$0xf]
        %v1205 = vunpack.c.l.b16 %v1197
        %v1206 = vunpack.c.l.b16 %v1198
        %v1207 = vunpack.c.l.b16 %v1199
        %v1208 = vunpack.c.l.b16 %v1200
        %v1209 = vpack.c.b16 %v1206, %v1205
        %v1210 = vpack.c.b16 %v1208, %v1207
        %1213 = vmatprep.subr.bf16.mxu0 0
        %1214 = vmatpush1.bf16.msra.mxu0 %v1209
        %1215 = vmatprep.subr.bf16.mxu0 0
        %1216 = vmatpush1.bf16.msra.mxu0 %v1210
        %1217 = vmatprep.subr.bf16.mxu0 0
        %1218 = vmatpush1.bf16.msra.mxu0 0
        %1219 = vmatprep.subr.bf16.mxu0 0
        %1220 = vmatpush1.bf16.msra.mxu0 0
        %1221 = vmatprep.subr.bf16.mxu0 0
        %1222 = vmatpush1.bf16.msra.mxu0 0
        %1223 = vmatprep.subr.bf16.mxu0 0
        %1224 = vmatpush1.bf16.msra.mxu0 0
        %1225 = vmatprep.subr.bf16.mxu0 0
        %1226 = vmatpush1.bf16.msra.mxu0 0
        %1227 = vmatprep.subr.bf16.mxu0 0
        %1228 = vmatpush1.bf16.msra.mxu0 0
        %1229 = vmatprep.subr.bf16.mxu0 0
        %1230 = vmatpush1.bf16.msra.mxu0 0
        %1231 = vmatprep.subr.bf16.mxu0 0
        %1232 = vmatpush1.bf16.msra.mxu0 0
        %1233 = vmatprep.subr.bf16.mxu0 0
        %1234 = vmatpush1.bf16.msra.mxu0 0
        %1235 = vmatprep.subr.bf16.mxu0 0
        %1236 = vmatpush1.bf16.msra.mxu0 0
        %1237 = vmatprep.subr.bf16.mxu0 0
        %1238 = vmatpush1.bf16.msra.mxu0 0
        %1239 = vmatprep.subr.bf16.mxu0 0
        %1240 = vmatpush1.bf16.msra.mxu0 0
        %1241 = vmatprep.subr.bf16.mxu0 0
        %1242 = vmatpush1.bf16.msra.mxu0 0
        %1243 = vmatprep.subr.bf16.mxu0 0
        %1244 = vmatpush1.bf16.msra.mxu0 0
        %1245 = vmatprep.mubr.bf16.mxu0 0
        %1246 = vmatmul.mubr.bf16.gmra.mrb[0].mxu0 %v1153
        %v1247 = vpop.f32.mrb[0].mxu0
        %v1248 = vadd.f32 0.0, %v1247
        %v1249 = vpop.f32.mrb[0].mxu0
        %v1250 = vpop.f32.mrb[0].mxu0
        %v1251 = vpop.f32.mrb[0].mxu0
        %1252 = vdwg.mxu0
        %v1253 = vadd.f32 %v1196, %v1248
        %v1254 = vsel %vm1151, %v1131, 0.0
        %1255 = vadd.xlane.f32.xlu0 %v1254
        %v1256 = vpop.xlane.xlu0 %1255
        %v1257 = vrcp.pop 32.0
        %v1258 = vmul.f32 %v1256, %v1257
        %v1259 = vsub.f32 %v1131, %v1258
        %v1260 = vmul.f32 %v1259, %v1259
        %v1261 = vsel %vm1151, %v1260, 0.0
        %1262 = vadd.xlane.f32.xlu0 %v1261
        %v1263 = vpop.xlane.xlu0 %1262
        %v1264 = vmul.f32 %v1263, %v1257
        %v1265 = vadd.f32 %v1264, 1e-05
        %v1266 = vrsqrt.pop %v1265
        %v1267 = vmul.f32 %v1259, %v1266
        %v1269 = vlaneseq
        %v1270 = vshrl.u32 %v1269, 7
        %v1271 = vsub.s32 0, %v1270
        %v1272 = vrot.slane %v1195, %v1271
        %v1274 = vmul.f32 %v1267, %v1272
        %v1276 = vlaneseq
        %v1277 = vshrl.u32 %v1276, 7
        %v1278 = vsub.s32 0, %v1277
        %v1279 = vrot.slane %v1253, %v1278
        %v1281 = vadd.f32 %v1274, %v1279
        %v1282 = vpack.c.bf16 %v1281, %v1281
        %v1283 = vld [vmem:[#allocation13] sm:$0xf]
        %v1284 = vld [vmem:[#allocation13 + $0x4] sm:$0xf]
        %v1285 = vld [vmem:[#allocation13 + $0x8] sm:$0xf]
        %v1286 = vld [vmem:[#allocation13 + $0xc] sm:$0xf]
        %v1287 = vld [vmem:[#allocation14] sm:$0x1]
        %v1289 = vlaneseq
        %v1290 = vshrl.u32 %v1289, 7
        %v1291 = vsub.s32 0, %v1290
        %v1292 = vrot.slane %v1287, %v1291
        %v1298 = vunpack.c.l.b16 %v1283
        %v1299 = vunpack.c.l.b16 %v1284
        %v1300 = vunpack.c.l.b16 %v1285
        %v1301 = vunpack.c.l.b16 %v1286
        %v1302 = vpack.c.b16 %v1299, %v1298
        %v1303 = vpack.c.b16 %v1301, %v1300
        %v1307 = vsel %vm1151, %v1282, 0
        %1309 = vmatprep.subr.bf16.mxu0 0
        %1310 = vmatpush1.bf16.msra.mxu0 %v1302
        %1311 = vmatprep.subr.bf16.mxu0 0
        %1312 = vmatpush1.bf16.msra.mxu0 %v1303
        %1313 = vmatprep.subr.bf16.mxu0 0
        %1314 = vmatpush1.bf16.msra.mxu0 0
        %1315 = vmatprep.subr.bf16.mxu0 0
        %1316 = vmatpush1.bf16.msra.mxu0 0
        %1317 = vmatprep.subr.bf16.mxu0 0
        %1318 = vmatpush1.bf16.msra.mxu0 0
        %1319 = vmatprep.subr.bf16.mxu0 0
        %1320 = vmatpush1.bf16.msra.mxu0 0
        %1321 = vmatprep.subr.bf16.mxu0 0
        %1322 = vmatpush1.bf16.msra.mxu0 0
        %1323 = vmatprep.subr.bf16.mxu0 0
        %1324 = vmatpush1.bf16.msra.mxu0 0
        %1325 = vmatprep.subr.bf16.mxu0 0
        %1326 = vmatpush1.bf16.msra.mxu0 0
        %1327 = vmatprep.subr.bf16.mxu0 0
        %1328 = vmatpush1.bf16.msra.mxu0 0
        %1329 = vmatprep.subr.bf16.mxu0 0
        %1330 = vmatpush1.bf16.msra.mxu0 0
        %1331 = vmatprep.subr.bf16.mxu0 0
        %1332 = vmatpush1.bf16.msra.mxu0 0
        %1333 = vmatprep.subr.bf16.mxu0 0
        %1334 = vmatpush1.bf16.msra.mxu0 0
        %1335 = vmatprep.subr.bf16.mxu0 0
        %1336 = vmatpush1.bf16.msra.mxu0 0
        %1337 = vmatprep.subr.bf16.mxu0 0
        %1338 = vmatpush1.bf16.msra.mxu0 0
        %1339 = vmatprep.subr.bf16.mxu0 0
        %1340 = vmatpush1.bf16.msra.mxu0 0
        %1341 = vmatprep.mubr.bf16.mxu0 0
        %1342 = vmatmul.mubr.bf16.gmra.mrb[0].mxu0 %v1307
        %v1343 = vpop.f32.mrb[0].mxu0
        %v1344 = vadd.f32 %v1292, %v1343
        %v1345 = vpop.f32.mrb[0].mxu0
        %v1346 = vpop.f32.mrb[0].mxu0
        %v1347 = vpop.f32.mrb[0].mxu0
        %1348 = vdwg.mxu0
        %v1349 = vld [vmem:[#allocation16] sm:$0xf]
        %v1350 = vld [vmem:[#allocation16 + $0x4] sm:$0xf]
        %v1351 = vld [vmem:[#allocation16 + $0x8] sm:$0xf]
        %v1352 = vld [vmem:[#allocation16 + $0xc] sm:$0xf]
        %v1353 = vld [vmem:[#allocation17] sm:$0x1]
        %v1355 = vlaneseq
        %v1356 = vshrl.u32 %v1355, 7
        %v1357 = vsub.s32 0, %v1356
        %v1358 = vrot.slane %v1353, %v1357
        %v1364 = vunpack.c.l.b16 %v1349
        %v1365 = vunpack.c.l.b16 %v1350
        %v1366 = vunpack.c.l.b16 %v1351
        %v1367 = vunpack.c.l.b16 %v1352
        %v1368 = vpack.c.b16 %v1365, %v1364
        %v1369 = vpack.c.b16 %v1367, %v1366
        %1372 = vmatprep.subr.bf16.mxu0 0
        %1373 = vmatpush1.bf16.msra.mxu0 %v1368
        %1374 = vmatprep.subr.bf16.mxu0 0
        %1375 = vmatpush1.bf16.msra.mxu0 %v1369
        %1376 = vmatprep.subr.bf16.mxu0 0
        %1377 = vmatpush1.bf16.msra.mxu0 0
        %1378 = vmatprep.subr.bf16.mxu0 0
        %1379 = vmatpush1.bf16.msra.mxu0 0
        %1380 = vmatprep.subr.bf16.mxu0 0
        %1381 = vmatpush1.bf16.msra.mxu0 0
        %1382 = vmatprep.subr.bf16.mxu0 0
        %1383 = vmatpush1.bf16.msra.mxu0 0
        %1384 = vmatprep.subr.bf16.mxu0 0
        %1385 = vmatpush1.bf16.msra.mxu0 0
        %1386 = vmatprep.subr.bf16.mxu0 0
        %1387 = vmatpush1.bf16.msra.mxu0 0
        %1388 = vmatprep.subr.bf16.mxu0 0
        %1389 = vmatpush1.bf16.msra.mxu0 0
        %1390 = vmatprep.subr.bf16.mxu0 0
        %1391 = vmatpush1.bf16.msra.mxu0 0
        %1392 = vmatprep.subr.bf16.mxu0 0
        %1393 = vmatpush1.bf16.msra.mxu0 0
        %1394 = vmatprep.subr.bf16.mxu0 0
        %1395 = vmatpush1.bf16.msra.mxu0 0
        %1396 = vmatprep.subr.bf16.mxu0 0
        %1397 = vmatpush1.bf16.msra.mxu0 0
        %1398 = vmatprep.subr.bf16.mxu0 0
        %1399 = vmatpush1.bf16.msra.mxu0 0
        %1400 = vmatprep.subr.bf16.mxu0 0
        %1401 = vmatpush1.bf16.msra.mxu0 0
        %1402 = vmatprep.subr.bf16.mxu0 0
        %1403 = vmatpush1.bf16.msra.mxu0 0
        %1404 = vmatprep.mubr.bf16.mxu0 0
        %1405 = vmatmul.mubr.bf16.gmra.mrb[0].mxu0 %v1307
        %v1406 = vpop.f32.mrb[0].mxu0
        %v1407 = vadd.f32 %v1358, %v1406
        %v1408 = vpop.f32.mrb[0].mxu0
        %v1409 = vpop.f32.mrb[0].mxu0
        %v1410 = vpop.f32.mrb[0].mxu0
        %1411 = vdwg.mxu0
        %v1412 = vld [vmem:[#allocation19] sm:$0xf]
        %v1413 = vld [vmem:[#allocation19 + $0x4] sm:$0xf]
        %v1414 = vld [vmem:[#allocation19 + $0x8] sm:$0xf]
        %v1415 = vld [vmem:[#allocation19 + $0xc] sm:$0xf]
        %v1416 = vld [vmem:[#allocation20] sm:$0x1]
        %v1418 = vlaneseq
        %v1419 = vshrl.u32 %v1418, 7
        %v1420 = vsub.s32 0, %v1419
        %v1421 = vrot.slane %v1416, %v1420
        %v1427 = vunpack.c.l.b16 %v1412
        %v1428 = vunpack.c.l.b16 %v1413
        %v1429 = vunpack.c.l.b16 %v1414
        %v1430 = vunpack.c.l.b16 %v1415
        %v1431 = vpack.c.b16 %v1428, %v1427
        %v1432 = vpack.c.b16 %v1430, %v1429
        %1435 = vmatprep.subr.bf16.mxu0 0
        %1436 = vmatpush1.bf16.msra.mxu0 %v1431
        %1437 = vmatprep.subr.bf16.mxu0 0
        %1438 = vmatpush1.bf16.msra.mxu0 %v1432
        %1439 = vmatprep.subr.bf16.mxu0 0
        %1440 = vmatpush1.bf16.msra.mxu0 0
        %1441 = vmatprep.subr.bf16.mxu0 0
        %1442 = vmatpush1.bf16.msra.mxu0 0
        %1443 = vmatprep.subr.bf16.mxu0 0
        %1444 = vmatpush1.bf16.msra.mxu0 0
        %1445 = vmatprep.subr.bf16.mxu0 0
        %1446 = vmatpush1.bf16.msra.mxu0 0
        %1447 = vmatprep.subr.bf16.mxu0 0
        %1448 = vmatpush1.bf16.msra.mxu0 0
        %1449 = vmatprep.subr.bf16.mxu0 0
        %1450 = vmatpush1.bf16.msra.mxu0 0
        %1451 = vmatprep.subr.bf16.mxu0 0
        %1452 = vmatpush1.bf16.msra.mxu0 0
        %1453 = vmatprep.subr.bf16.mxu0 0
        %1454 = vmatpush1.bf16.msra.mxu0 0
        %1455 = vmatprep.subr.bf16.mxu0 0
        %1456 = vmatpush1.bf16.msra.mxu0 0
        %1457 = vmatprep.subr.bf16.mxu0 0
        %1458 = vmatpush1.bf16.msra.mxu0 0
        %1459 = vmatprep.subr.bf16.mxu0 0
        %1460 = vmatpush1.bf16.msra.mxu0 0
        %1461 = vmatprep.subr.bf16.mxu0 0
        %1462 = vmatpush1.bf16.msra.mxu0 0
        %1463 = vmatprep.subr.bf16.mxu0 0
        %1464 = vmatpush1.bf16.msra.mxu0 0
        %1465 = vmatprep.subr.bf16.mxu0 0
        %1466 = vmatpush1.bf16.msra.mxu0 0
        %1467 = vmatprep.mubr.bf16.mxu0 0
        %1468 = vmatmul.mubr.bf16.gmra.mrb[0].mxu0 %v1307
        %v1469 = vpop.f32.mrb[0].mxu0
        %v1470 = vadd.f32 %v1421, %v1469
        %v1471 = vpop.f32.mrb[0].mxu0
        %v1472 = vpop.f32.mrb[0].mxu0
        %v1473 = vpop.f32.mrb[0].mxu0
        %1474 = vdwg.mxu0
        %v1475 = vpack.c.bf16 %v1344, %v1344
        %v1476 = vpack.c.bf16 %v1407, %v1407
        %vm1477 = vcmask 64512
        %v1479 = vsel %vm1477, %v1475, 0
        %v1482 = vsel %vm1477, %v1476, 0
        %1484 = vmatprep.subr.bf16.mxu0 0
        %1485 = vmatpush1.bf16.xpose.msra.mxu0 %v1482
        %1486 = vmatprep.subr.bf16.mxu0 0
        %1487 = vmatpush1.bf16.xpose.msra.mxu0 0
        %1488 = vmatprep.subr.bf16.mxu0 0
        %1489 = vmatpush1.bf16.xpose.msra.mxu0 0
        %1490 = vmatprep.subr.bf16.mxu0 0
        %1491 = vmatpush1.bf16.xpose.msra.mxu0 0
        %1492 = vmatprep.subr.bf16.mxu0 0
        %1493 = vmatpush1.bf16.xpose.msra.mxu0 0
        %1494 = vmatprep.subr.bf16.mxu0 0
        %1495 = vmatpush1.bf16.xpose.msra.mxu0 0
        %1496 = vmatprep.subr.bf16.mxu0 0
        %1497 = vmatpush1.bf16.xpose.msra.mxu0 0
        %1498 = vmatprep.subr.bf16.mxu0 0
        %1499 = vmatpush1.bf16.xpose.msra.mxu0 0
        %1500 = vmatprep.subr.bf16.mxu0 0
        %1501 = vmatpush1.bf16.xpose.msra.mxu0 0
        %1502 = vmatprep.subr.bf16.mxu0 0
        %1503 = vmatpush1.bf16.xpose.msra.mxu0 0
        %1504 = vmatprep.subr.bf16.mxu0 0
        %1505 = vmatpush1.bf16.xpose.msra.mxu0 0
        %1506 = vmatprep.subr.bf16.mxu0 0
        %1507 = vmatpush1.bf16.xpose.msra.mxu0 0
        %1508 = vmatprep.subr.bf16.mxu0 0
        %1509 = vmatpush1.bf16.xpose.msra.mxu0 0
        %1510 = vmatprep.subr.bf16.mxu0 0
        %1511 = vmatpush1.bf16.xpose.msra.mxu0 0
        %1512 = vmatprep.subr.bf16.mxu0 0
        %1513 = vmatpush1.bf16.xpose.msra.mxu0 0
        %1514 = vmatprep.subr.bf16.mxu0 0
        %1515 = vmatpush1.bf16.xpose.msra.mxu0 0
        %1516 = vmatprep.mubr.bf16.mxu0 0
        %1517 = vmatmul.mubr.bf16.gmra.mrb[0].mxu0 %v1479
        %v1518 = vpop.f32.mrb[0].mxu0
        %v1519 = vadd.f32 0.0, %v1518
        %v1520 = vpop.f32.mrb[0].mxu0
        %v1521 = vpop.f32.mrb[0].mxu0
        %v1522 = vpop.f32.mrb[0].mxu0
        %1523 = vdwg.mxu0
        %v1524 = vld [vmem:[#allocation22] sm:$0x1]
        %v1526 = vlaneseq
        %v1527 = vshrl.u32 %v1526, 7
        %v1528 = vsub.s32 0, %v1527
        %v1529 = vrot.slane %v1524, %v1528
        %v1531 = vmul.f32 %v1344, %v1529
        %v1532 = vsel %vm1477, %v1531, 0.0
        %1533 = vadd.xlane.f32.xlu0 %v1532
        %v1534 = vpop.xlane.xlu0 %1533
        %v1535 = vsel %vm1477, %v1519, -inf
        %1536 = vmax.xlane.f32.xlu0 %v1535
        %v1537 = vpop.xlane.xlu0 %1536
        %v1538 = vmax.f32 %v1537, %v1534
        %v1539 = vsub.f32 %v1519, %v1538
        %v1540 = vmul.f32 %v1539, 1.442695
        %v1541 = vpow.pop %v1540
        %v1542 = vsub.f32 %v1534, %v1538
        %v1543 = vmul.f32 %v1542, 1.442695
        %v1544 = vpow.pop %v1543
        %v1545 = vsel %vm1477, %v1541, 0.0
        %1546 = vadd.xlane.f32.xlu0 %v1545
        %v1547 = vpop.xlane.xlu0 %1546
        %v1548 = vadd.f32 %v1547, %v1544
        %v1549 = vrcp.pop %v1548
        %v1550 = vmul.f32 %v1541, %v1549
        %v1551 = vmul.f32 %v1544, %v1549
        %v1552 = vadd.f32 %v1550, 0.0
        %v1553 = vadd.f32 %v1551, 0.0
        %v1554 = vpack.c.bf16 %v1550, %v1550
        %v1555 = vpack.c.bf16 %v1470, %v1470
        %v1556 = vld [vmem:[#allocation23] sm:$0x1]
        %v1558 = vlaneseq
        %v1559 = vshrl.u32 %v1558, 7
        %v1560 = vsub.s32 0, %v1559
        %v1561 = vrot.slane %v1556, %v1560
        %v1563 = vmul.f32 %v1551, %v1561
        %v1565 = vsel %vm1477, %v1554, 0
        %vm1567 = vcmask 1043456
        %v1569 = vsel %vm1567, %v1555, 0
        %1571 = vmatprep.subr.bf16.mxu0 0
        %1572 = vmatpush1.bf16.msra.mxu0 %v1569
        %1573 = vmatprep.subr.bf16.mxu0 0
        %1574 = vmatpush1.bf16.msra.mxu0 0
        %1575 = vmatprep.subr.bf16.mxu0 0
        %1576 = vmatpush1.bf16.msra.mxu0 0
        %1577 = vmatprep.subr.bf16.mxu0 0
        %1578 = vmatpush1.bf16.msra.mxu0 0
        %1579 = vmatprep.subr.bf16.mxu0 0
        %1580 = vmatpush1.bf16.msra.mxu0 0
        %1581 = vmatprep.subr.bf16.mxu0 0
        %1582 = vmatpush1.bf16.msra.mxu0 0
        %1583 = vmatprep.subr.bf16.mxu0 0
        %1584 = vmatpush1.bf16.msra.mxu0 0
        %1585 = vmatprep.subr.bf16.mxu0 0
        %1586 = vmatpush1.bf16.msra.mxu0 0
        %1587 = vmatprep.subr.bf16.mxu0 0
        %1588 = vmatpush1.bf16.msra.mxu0 0
        %1589 = vmatprep.subr.bf16.mxu0 0
        %1590 = vmatpush1.bf16.msra.mxu0 0
        %1591 = vmatprep.subr.bf16.mxu0 0
        %1592 = vmatpush1.bf16.msra.mxu0 0
        %1593 = vmatprep.subr.bf16.mxu0 0
        %1594 = vmatpush1.bf16.msra.mxu0 0
        %1595 = vmatprep.subr.bf16.mxu0 0
        %1596 = vmatpush1.bf16.msra.mxu0 0
        %1597 = vmatprep.subr.bf16.mxu0 0
        %1598 = vmatpush1.bf16.msra.mxu0 0
        %1599 = vmatprep.subr.bf16.mxu0 0
        %1600 = vmatpush1.bf16.msra.mxu0 0
        %1601 = vmatprep.subr.bf16.mxu0 0
        %1602 = vmatpush1.bf16.msra.mxu0 0
        %1603 = vmatprep.mubr.bf16.mxu0 0
        %1604 = vmatmul.mubr.bf16.gmra.mrb[0].mxu0 %v1565
        %v1605 = vpop.f32.mrb[0].mxu0
        %v1606 = vadd.f32 %v1563, %v1605
        %v1607 = vpop.f32.mrb[0].mxu0
        %v1608 = vpop.f32.mrb[0].mxu0
        %v1609 = vpop.f32.mrb[0].mxu0
        %1610 = vdwg.mxu0
        %v1611 = vpack.c.bf16 %v1606, %v1606
        %v1612 = vld [vmem:[#allocation25] sm:$0xf]
        %s1613 = scalar_lea.vmem [#allocation13], 16
        %v1614 = vld [vmem:[%s1613] sm:$0xf]
        %v1615 = vld [vmem:[%s1613 + $0x4] sm:$0xf]
        %v1616 = vld [vmem:[%s1613 + $0x8] sm:$0xf]
        %v1617 = vld [vmem:[%s1613 + $0xc] sm:$0xf]
        %s1618 = scalar_lea.vmem [#allocation14], 1
        %v1619 = vld [vmem:[%s1618] sm:$0x1]
        %v1621 = vlaneseq
        %v1622 = vshrl.u32 %v1621, 7
        %v1623 = vsub.s32 0, %v1622
        %v1624 = vrot.slane %v1619, %v1623
        %v1630 = vunpack.c.l.b16 %v1614
        %v1631 = vunpack.c.l.b16 %v1615
        %v1632 = vunpack.c.l.b16 %v1616
        %v1633 = vunpack.c.l.b16 %v1617
        %v1634 = vpack.c.b16 %v1631, %v1630
        %v1635 = vpack.c.b16 %v1633, %v1632
        %1638 = vmatprep.subr.bf16.mxu0 0
        %1639 = vmatpush1.bf16.msra.mxu0 %v1634
        %1640 = vmatprep.subr.bf16.mxu0 0
        %1641 = vmatpush1.bf16.msra.mxu0 %v1635
        %1642 = vmatprep.subr.bf16.mxu0 0
        %1643 = vmatpush1.bf16.msra.mxu0 0
        %1644 = vmatprep.subr.bf16.mxu0 0
        %1645 = vmatpush1.bf16.msra.mxu0 0
        %1646 = vmatprep.subr.bf16.mxu0 0
        %1647 = vmatpush1.bf16.msra.mxu0 0
        %1648 = vmatprep.subr.bf16.mxu0 0
        %1649 = vmatpush1.bf16.msra.mxu0 0
        %1650 = vmatprep.subr.bf16.mxu0 0
        %1651 = vmatpush1.bf16.msra.mxu0 0
        %1652 = vmatprep.subr.bf16.mxu0 0
        %1653 = vmatpush1.bf16.msra.mxu0 0
        %1654 = vmatprep.subr.bf16.mxu0 0
        %1655 = vmatpush1.bf16.msra.mxu0 0
        %1656 = vmatprep.subr.bf16.mxu0 0
        %1657 = vmatpush1.bf16.msra.mxu0 0
        %1658 = vmatprep.subr.bf16.mxu0 0
        %1659 = vmatpush1.bf16.msra.mxu0 0
        %1660 = vmatprep.subr.bf16.mxu0 0
        %1661 = vmatpush1.bf16.msra.mxu0 0
        %1662 = vmatprep.subr.bf16.mxu0 0
        %1663 = vmatpush1.bf16.msra.mxu0 0
        %1664 = vmatprep.subr.bf16.mxu0 0
        %1665 = vmatpush1.bf16.msra.mxu0 0
        %1666 = vmatprep.subr.bf16.mxu0 0
        %1667 = vmatpush1.bf16.msra.mxu0 0
        %1668 = vmatprep.subr.bf16.mxu0 0
        %1669 = vmatpush1.bf16.msra.mxu0 0
        %1670 = vmatprep.mubr.bf16.mxu0 0
        %1671 = vmatmul.mubr.bf16.gmra.mrb[0].mxu0 %v1307
        %v1672 = vpop.f32.mrb[0].mxu0
        %v1673 = vadd.f32 %v1624, %v1672
        %v1674 = vpop.f32.mrb[0].mxu0
        %v1675 = vpop.f32.mrb[0].mxu0
        %v1676 = vpop.f32.mrb[0].mxu0
        %1677 = vdwg.mxu0
        %s1678 = scalar_lea.vmem [#allocation16], 16
        %v1679 = vld [vmem:[%s1678] sm:$0xf]
        %v1680 = vld [vmem:[%s1678 + $0x4] sm:$0xf]
        %v1681 = vld [vmem:[%s1678 + $0x8] sm:$0xf]
        %v1682 = vld [vmem:[%s1678 + $0xc] sm:$0xf]
        %s1683 = scalar_lea.vmem [#allocation17], 1
        %v1684 = vld [vmem:[%s1683] sm:$0x1]
        %v1686 = vlaneseq
        %v1687 = vshrl.u32 %v1686, 7
        %v1688 = vsub.s32 0, %v1687
        %v1689 = vrot.slane %v1684, %v1688
        %v1695 = vunpack.c.l.b16 %v1679
        %v1696 = vunpack.c.l.b16 %v1680
        %v1697 = vunpack.c.l.b16 %v1681
        %v1698 = vunpack.c.l.b16 %v1682
        %v1699 = vpack.c.b16 %v1696, %v1695
        %v1700 = vpack.c.b16 %v1698, %v1697
        %1703 = vmatprep.subr.bf16.mxu0 0
        %1704 = vmatpush1.bf16.msra.mxu0 %v1699
        %1705 = vmatprep.subr.bf16.mxu0 0
        %1706 = vmatpush1.bf16.msra.mxu0 %v1700
        %1707 = vmatprep.subr.bf16.mxu0 0
        %1708 = vmatpush1.bf16.msra.mxu0 0
        %1709 = vmatprep.subr.bf16.mxu0 0
        %1710 = vmatpush1.bf16.msra.mxu0 0
        %1711 = vmatprep.subr.bf16.mxu0 0
        %1712 = vmatpush1.bf16.msra.mxu0 0
        %1713 = vmatprep.subr.bf16.mxu0 0
        %1714 = vmatpush1.bf16.msra.mxu0 0
        %1715 = vmatprep.subr.bf16.mxu0 0
        %1716 = vmatpush1.bf16.msra.mxu0 0
        %1717 = vmatprep.subr.bf16.mxu0 0
        %1718 = vmatpush1.bf16.msra.mxu0 0
        %1719 = vmatprep.subr.bf16.mxu0 0
        %1720 = vmatpush1.bf16.msra.mxu0 0
        %1721 = vmatprep.subr.bf16.mxu0 0
        %1722 = vmatpush1.bf16.msra.mxu0 0
        %1723 = vmatprep.subr.bf16.mxu0 0
        %1724 = vmatpush1.bf16.msra.mxu0 0
        %1725 = vmatprep.subr.bf16.mxu0 0
        %1726 = vmatpush1.bf16.msra.mxu0 0
        %1727 = vmatprep.subr.bf16.mxu0 0
        %1728 = vmatpush1.bf16.msra.mxu0 0
        %1729 = vmatprep.subr.bf16.mxu0 0
        %1730 = vmatpush1.bf16.msra.mxu0 0
        %1731 = vmatprep.subr.bf16.mxu0 0
        %1732 = vmatpush1.bf16.msra.mxu0 0
        %1733 = vmatprep.subr.bf16.mxu0 0
        %1734 = vmatpush1.bf16.msra.mxu0 0
        %1735 = vmatprep.mubr.bf16.mxu0 0
        %1736 = vmatmul.mubr.bf16.gmra.mrb[0].mxu0 %v1307
        %v1737 = vpop.f32.mrb[0].mxu0
        %v1738 = vadd.f32 %v1689, %v1737
        %v1739 = vpop.f32.mrb[0].mxu0
        %v1740 = vpop.f32.mrb[0].mxu0
        %v1741 = vpop.f32.mrb[0].mxu0
        %1742 = vdwg.mxu0
        %s1743 = scalar_lea.vmem [#allocation19], 16
        %v1744 = vld [vmem:[%s1743] sm:$0xf]
        %v1745 = vld [vmem:[%s1743 + $0x4] sm:$0xf]
        %v1746 = vld [vmem:[%s1743 + $0x8] sm:$0xf]
        %v1747 = vld [vmem:[%s1743 + $0xc] sm:$0xf]
        %s1748 = scalar_lea.vmem [#allocation20], 1
        %v1749 = vld [vmem:[%s1748] sm:$0x1]
        %v1751 = vlaneseq
        %v1752 = vshrl.u32 %v1751, 7
        %v1753 = vsub.s32 0, %v1752
        %v1754 = vrot.slane %v1749, %v1753
        %v1760 = vunpack.c.l.b16 %v1744
        %v1761 = vunpack.c.l.b16 %v1745
        %v1762 = vunpack.c.l.b16 %v1746
        %v1763 = vunpack.c.l.b16 %v1747
        %v1764 = vpack.c.b16 %v1761, %v1760
        %v1765 = vpack.c.b16 %v1763, %v1762
        %1768 = vmatprep.subr.bf16.mxu0 0
        %1769 = vmatpush1.bf16.msra.mxu0 %v1764
        %1770 = vmatprep.subr.bf16.mxu0 0
        %1771 = vmatpush1.bf16.msra.mxu0 %v1765
        %1772 = vmatprep.subr.bf16.mxu0 0
        %1773 = vmatpush1.bf16.msra.mxu0 0
        %1774 = vmatprep.subr.bf16.mxu0 0
        %1775 = vmatpush1.bf16.msra.mxu0 0
        %1776 = vmatprep.subr.bf16.mxu0 0
        %1777 = vmatpush1.bf16.msra.mxu0 0
        %1778 = vmatprep.subr.bf16.mxu0 0
        %1779 = vmatpush1.bf16.msra.mxu0 0
        %1780 = vmatprep.subr.bf16.mxu0 0
        %1781 = vmatpush1.bf16.msra.mxu0 0
        %1782 = vmatprep.subr.bf16.mxu0 0
        %1783 = vmatpush1.bf16.msra.mxu0 0
        %1784 = vmatprep.subr.bf16.mxu0 0
        %1785 = vmatpush1.bf16.msra.mxu0 0
        %1786 = vmatprep.subr.bf16.mxu0 0
        %1787 = vmatpush1.bf16.msra.mxu0 0
        %1788 = vmatprep.subr.bf16.mxu0 0
        %1789 = vmatpush1.bf16.msra.mxu0 0
        %1790 = vmatprep.subr.bf16.mxu0 0
        %1791 = vmatpush1.bf16.msra.mxu0 0
        %1792 = vmatprep.subr.bf16.mxu0 0
        %1793 = vmatpush1.bf16.msra.mxu0 0
        %1794 = vmatprep.subr.bf16.mxu0 0
        %1795 = vmatpush1.bf16.msra.mxu0 0
        %1796 = vmatprep.subr.bf16.mxu0 0
        %1797 = vmatpush1.bf16.msra.mxu0 0
        %1798 = vmatprep.subr.bf16.mxu0 0
        %1799 = vmatpush1.bf16.msra.mxu0 0
        %1800 = vmatprep.mubr.bf16.mxu0 0
        %1801 = vmatmul.mubr.bf16.gmra.mrb[0].mxu0 %v1307
        %v1802 = vpop.f32.mrb[0].mxu0
        %v1803 = vadd.f32 %v1754, %v1802
        %v1804 = vpop.f32.mrb[0].mxu0
        %v1805 = vpop.f32.mrb[0].mxu0
        %v1806 = vpop.f32.mrb[0].mxu0
        %1807 = vdwg.mxu0
        %v1808 = vpack.c.bf16 %v1673, %v1673
        %v1809 = vpack.c.bf16 %v1738, %v1738
        %v1811 = vsel %vm1477, %v1808, 0
        %v1814 = vsel %vm1477, %v1809, 0
        %1816 = vmatprep.subr.bf16.mxu0 0
        %1817 = vmatpush1.bf16.xpose.msra.mxu0 %v1814
        %1818 = vmatprep.subr.bf16.mxu0 0
        %1819 = vmatpush1.bf16.xpose.msra.mxu0 0
        %1820 = vmatprep.subr.bf16.mxu0 0
        %1821 = vmatpush1.bf16.xpose.msra.mxu0 0
        %1822 = vmatprep.subr.bf16.mxu0 0
        %1823 = vmatpush1.bf16.xpose.msra.mxu0 0
        %1824 = vmatprep.subr.bf16.mxu0 0
        %1825 = vmatpush1.bf16.xpose.msra.mxu0 0
        %1826 = vmatprep.subr.bf16.mxu0 0
        %1827 = vmatpush1.bf16.xpose.msra.mxu0 0
        %1828 = vmatprep.subr.bf16.mxu0 0
        %1829 = vmatpush1.bf16.xpose.msra.mxu0 0
        %1830 = vmatprep.subr.bf16.mxu0 0
        %1831 = vmatpush1.bf16.xpose.msra.mxu0 0
        %1832 = vmatprep.subr.bf16.mxu0 0
        %1833 = vmatpush1.bf16.xpose.msra.mxu0 0
        %1834 = vmatprep.subr.bf16.mxu0 0
        %1835 = vmatpush1.bf16.xpose.msra.mxu0 0
        %1836 = vmatprep.subr.bf16.mxu0 0
        %1837 = vmatpush1.bf16.xpose.msra.mxu0 0
        %1838 = vmatprep.subr.bf16.mxu0 0
        %1839 = vmatpush1.bf16.xpose.msra.mxu0 0
        %1840 = vmatprep.subr.bf16.mxu0 0
        %1841 = vmatpush1.bf16.xpose.msra.mxu0 0
        %1842 = vmatprep.subr.bf16.mxu0 0
        %1843 = vmatpush1.bf16.xpose.msra.mxu0 0
        %1844 = vmatprep.subr.bf16.mxu0 0
        %1845 = vmatpush1.bf16.xpose.msra.mxu0 0
        %1846 = vmatprep.subr.bf16.mxu0 0
        %1847 = vmatpush1.bf16.xpose.msra.mxu0 0
        %1848 = vmatprep.mubr.bf16.mxu0 0
        %1849 = vmatmul.mubr.bf16.gmra.mrb[0].mxu0 %v1811
        %v1850 = vpop.f32.mrb[0].mxu0
        %v1851 = vadd.f32 0.0, %v1850
        %v1852 = vpop.f32.mrb[0].mxu0
        %v1853 = vpop.f32.mrb[0].mxu0
        %v1854 = vpop.f32.mrb[0].mxu0
        %1855 = vdwg.mxu0
        %s1856 = scalar_lea.vmem [#allocation22], 1
        %v1857 = vld [vmem:[%s1856] sm:$0x1]
        %v1859 = vlaneseq
        %v1860 = vshrl.u32 %v1859, 7
        %v1861 = vsub.s32 0, %v1860
        %v1862 = vrot.slane %v1857, %v1861
        %v1864 = vmul.f32 %v1673, %v1862
        %v1865 = vsel %vm1477, %v1864, 0.0
        %1866 = vadd.xlane.f32.xlu0 %v1865
        %v1867 = vpop.xlane.xlu0 %1866
        %v1868 = vsel %vm1477, %v1851, -inf
        %1869 = vmax.xlane.f32.xlu0 %v1868
        %v1870 = vpop.xlane.xlu0 %1869
        %v1871 = vmax.f32 %v1870, %v1867
        %v1872 = vsub.f32 %v1851, %v1871
        %v1873 = vmul.f32 %v1872, 1.442695
        %v1874 = vpow.pop %v1873
        %v1875 = vsub.f32 %v1867, %v1871
        %v1876 = vmul.f32 %v1875, 1.442695
        %v1877 = vpow.pop %v1876
        %v1878 = vsel %vm1477, %v1874, 0.0
        %1879 = vadd.xlane.f32.xlu0 %v1878
        %v1880 = vpop.xlane.xlu0 %1879
        %v1881 = vadd.f32 %v1880, %v1877
        %v1882 = vrcp.pop %v1881
        %v1883 = vmul.f32 %v1874, %v1882
        %v1884 = vmul.f32 %v1877, %v1882
        %v1885 = vadd.f32 %v1552, %v1883
        %v1886 = vadd.f32 %v1553, %v1884
        %v1887 = vpack.c.bf16 %v1883, %v1883
        %v1888 = vpack.c.bf16 %v1803, %v1803
        %s1889 = scalar_lea.vmem [#allocation23], 1
        %v1890 = vld [vmem:[%s1889] sm:$0x1]
        %v1892 = vlaneseq
        %v1893 = vshrl.u32 %v1892, 7
        %v1894 = vsub.s32 0, %v1893
        %v1895 = vrot.slane %v1890, %v1894
        %v1897 = vmul.f32 %v1884, %v1895
        %v1899 = vsel %vm1477, %v1887, 0
        %v1902 = vsel %vm1567, %v1888, 0
        %1904 = vmatprep.subr.bf16.mxu0 0
        %1905 = vmatpush1.bf16.msra.mxu0 %v1902
        %1906 = vmatprep.subr.bf16.mxu0 0
        %1907 = vmatpush1.bf16.msra.mxu0 0
        %1908 = vmatprep.subr.bf16.mxu0 0
        %1909 = vmatpush1.bf16.msra.mxu0 0
        %1910 = vmatprep.subr.bf16.mxu0 0
        %1911 = vmatpush1.bf16.msra.mxu0 0
        %1912 = vmatprep.subr.bf16.mxu0 0
        %1913 = vmatpush1.bf16.msra.mxu0 0
        %1914 = vmatprep.subr.bf16.mxu0 0
        %1915 = vmatpush1.bf16.msra.mxu0 0
        %1916 = vmatprep.subr.bf16.mxu0 0
        %1917 = vmatpush1.bf16.msra.mxu0 0
        %1918 = vmatprep.subr.bf16.mxu0 0
        %1919 = vmatpush1.bf16.msra.mxu0 0
        %1920 = vmatprep.subr.bf16.mxu0 0
        %1921 = vmatpush1.bf16.msra.mxu0 0
        %1922 = vmatprep.subr.bf16.mxu0 0
        %1923 = vmatpush1.bf16.msra.mxu0 0
        %1924 = vmatprep.subr.bf16.mxu0 0
        %1925 = vmatpush1.bf16.msra.mxu0 0
        %1926 = vmatprep.subr.bf16.mxu0 0
        %1927 = vmatpush1.bf16.msra.mxu0 0
        %1928 = vmatprep.subr.bf16.mxu0 0
        %1929 = vmatpush1.bf16.msra.mxu0 0
        %1930 = vmatprep.subr.bf16.mxu0 0
        %1931 = vmatpush1.bf16.msra.mxu0 0
        %1932 = vmatprep.subr.bf16.mxu0 0
        %1933 = vmatpush1.bf16.msra.mxu0 0
        %1934 = vmatprep.subr.bf16.mxu0 0
        %1935 = vmatpush1.bf16.msra.mxu0 0
        %1936 = vmatprep.mubr.bf16.mxu0 0
        %1937 = vmatmul.mubr.bf16.gmra.mrb[0].mxu0 %v1899
        %v1938 = vpop.f32.mrb[0].mxu0
        %v1939 = vadd.f32 %v1897, %v1938
        %v1940 = vpop.f32.mrb[0].mxu0
        %v1941 = vpop.f32.mrb[0].mxu0
        %v1942 = vpop.f32.mrb[0].mxu0
        %1943 = vdwg.mxu0
        %v1944 = vpack.c.bf16 %v1939, %v1939
        %s1945 = scalar_lea.vmem [#allocation25], 4
        %v1946 = vld [vmem:[%s1945] sm:$0xf]
        %v1948 = vsel %vm1477, %v1944, 0
        %v1951 = vsel %vm1567, %v1946, 0
        %1953 = vmatprep.subr.bf16.mxu0 0
        %1954 = vmatpush1.bf16.msra.mxu0 %v1951
        %1955 = vmatprep.subr.bf16.mxu0 0
        %1956 = vmatpush1.bf16.msra.mxu0 0
        %1957 = vmatprep.subr.bf16.mxu0 0
        %1958 = vmatpush1.bf16.msra.mxu0 0
        %1959 = vmatprep.subr.bf16.mxu0 0
        %1960 = vmatpush1.bf16.msra.mxu0 0
        %1961 = vmatprep.subr.bf16.mxu0 0
        %1962 = vmatpush1.bf16.msra.mxu0 0
        %1963 = vmatprep.subr.bf16.mxu0 0
        %1964 = vmatpush1.bf16.msra.mxu0 0
        %1965 = vmatprep.subr.bf16.mxu0 0
        %1966 = vmatpush1.bf16.msra.mxu0 0
        %1967 = vmatprep.subr.bf16.mxu0 0
        %1968 = vmatpush1.bf16.msra.mxu0 0
        %1969 = vmatprep.subr.bf16.mxu0 0
        %1970 = vmatpush1.bf16.msra.mxu0 0
        %1971 = vmatprep.subr.bf16.mxu0 0
        %1972 = vmatpush1.bf16.msra.mxu0 0
        %1973 = vmatprep.subr.bf16.mxu0 0
        %1974 = vmatpush1.bf16.msra.mxu0 0
        %1975 = vmatprep.subr.bf16.mxu0 0
        %1976 = vmatpush1.bf16.msra.mxu0 0
        %1977 = vmatprep.subr.bf16.mxu0 0
        %1978 = vmatpush1.bf16.msra.mxu0 0
        %1979 = vmatprep.subr.bf16.mxu0 0
        %1980 = vmatpush1.bf16.msra.mxu0 0
        %1981 = vmatprep.subr.bf16.mxu0 0
        %1982 = vmatpush1.bf16.msra.mxu0 0
        %1983 = vmatprep.subr.bf16.mxu0 0
        %1984 = vmatpush1.bf16.msra.mxu0 0
        %1985 = vmatprep.mubr.bf16.mxu0 0
        %1986 = vmatmul.mubr.bf16.gmra.mrb[0].mxu0 %v1948
        %v1987 = vpop.f32.mrb[0].mxu0
        %v1988 = vadd.f32 0.0, %v1987
        %v1989 = vpop.f32.mrb[0].mxu0
        %v1990 = vpop.f32.mrb[0].mxu0
        %v1991 = vpop.f32.mrb[0].mxu0
        %1992 = vdwg.mxu0
        %v1994 = vsel %vm1477, %v1611, 0
        %v1997 = vsel %vm1567, %v1612, 0
        %1999 = vmatprep.subr.bf16.mxu0 0
        %2000 = vmatpush1.bf16.msra.mxu0 %v1997
        %2001 = vmatprep.subr.bf16.mxu0 0
        %2002 = vmatpush1.bf16.msra.mxu0 0
        %2003 = vmatprep.subr.bf16.mxu0 0
        %2004 = vmatpush1.bf16.msra.mxu0 0
        %2005 = vmatprep.subr.bf16.mxu0 0
        %2006 = vmatpush1.bf16.msra.mxu0 0
        %2007 = vmatprep.subr.bf16.mxu0 0
        %2008 = vmatpush1.bf16.msra.mxu0 0
        %2009 = vmatprep.subr.bf16.mxu0 0
        %2010 = vmatpush1.bf16.msra.mxu0 0
        %2011 = vmatprep.subr.bf16.mxu0 0
        %2012 = vmatpush1.bf16.msra.mxu0 0
        %2013 = vmatprep.subr.bf16.mxu0 0
        %2014 = vmatpush1.bf16.msra.mxu0 0
        %2015 = vmatprep.subr.bf16.mxu0 0
        %2016 = vmatpush1.bf16.msra.mxu0 0
        %2017 = vmatprep.subr.bf16.mxu0 0
        %2018 = vmatpush1.bf16.msra.mxu0 0
        %2019 = vmatprep.subr.bf16.mxu0 0
        %2020 = vmatpush1.bf16.msra.mxu0 0
        %2021 = vmatprep.subr.bf16.mxu0 0
        %2022 = vmatpush1.bf16.msra.mxu0 0
        %2023 = vmatprep.subr.bf16.mxu0 0
        %2024 = vmatpush1.bf16.msra.mxu0 0
        %2025 = vmatprep.subr.bf16.mxu0 0
        %2026 = vmatpush1.bf16.msra.mxu0 0
        %2027 = vmatprep.subr.bf16.mxu0 0
        %2028 = vmatpush1.bf16.msra.mxu0 0
        %2029 = vmatprep.subr.bf16.mxu0 0
        %2030 = vmatpush1.bf16.msra.mxu0 0
        %2031 = vmatprep.mubr.bf16.mxu0 0
        %2032 = vmatmul.mubr.bf16.gmra.mrb[0].mxu0 %v1994
        %v2033 = vpop.f32.mrb[0].mxu0
        %v2034 = vadd.f32 %v1988, %v2033
        %v2035 = vpop.f32.mrb[0].mxu0
        %v2036 = vpop.f32.mrb[0].mxu0
        %v2037 = vpop.f32.mrb[0].mxu0
        %2038 = vdwg.mxu0
        %s2039 = scalar_lea.vmem [#allocation13], 32
        %v2040 = vld [vmem:[%s2039] sm:$0xf]
        %v2041 = vld [vmem:[%s2039 + $0x4] sm:$0xf]
        %v2042 = vld [vmem:[%s2039 + $0x8] sm:$0xf]
        %v2043 = vld [vmem:[%s2039 + $0xc] sm:$0xf]
        %s2044 = scalar_lea.vmem [#allocation14], 2
        %v2045 = vld [vmem:[%s2044] sm:$0x1]
        %v2047 = vlaneseq
        %v2048 = vshrl.u32 %v2047, 7
        %v2049 = vsub.s32 0, %v2048
        %v2050 = vrot.slane %v2045, %v2049
        %v2056 = vunpack.c.l.b16 %v2040
        %v2057 = vunpack.c.l.b16 %v2041
        %v2058 = vunpack.c.l.b16 %v2042
        %v2059 = vunpack.c.l.b16 %v2043
        %v2060 = vpack.c.b16 %v2057, %v2056
        %v2061 = vpack.c.b16 %v2059, %v2058
        %2064 = vmatprep.subr.bf16.mxu0 0
        %2065 = vmatpush1.bf16.msra.mxu0 %v2060
        %2066 = vmatprep.subr.bf16.mxu0 0
        %2067 = vmatpush1.bf16.msra.mxu0 %v2061
        %2068 = vmatprep.subr.bf16.mxu0 0
        %2069 = vmatpush1.bf16.msra.mxu0 0
        %2070 = vmatprep.subr.bf16.mxu0 0
        %2071 = vmatpush1.bf16.msra.mxu0 0
        %2072 = vmatprep.subr.bf16.mxu0 0
        %2073 = vmatpush1.bf16.msra.mxu0 0
        %2074 = vmatprep.subr.bf16.mxu0 0
        %2075 = vmatpush1.bf16.msra.mxu0 0
        %2076 = vmatprep.subr.bf16.mxu0 0
        %2077 = vmatpush1.bf16.msra.mxu0 0
        %2078 = vmatprep.subr.bf16.mxu0 0
        %2079 = vmatpush1.bf16.msra.mxu0 0
        %2080 = vmatprep.subr.bf16.mxu0 0
        %2081 = vmatpush1.bf16.msra.mxu0 0
        %2082 = vmatprep.subr.bf16.mxu0 0
        %2083 = vmatpush1.bf16.msra.mxu0 0
        %2084 = vmatprep.subr.bf16.mxu0 0
        %2085 = vmatpush1.bf16.msra.mxu0 0
        %2086 = vmatprep.subr.bf16.mxu0 0
        %2087 = vmatpush1.bf16.msra.mxu0 0
        %2088 = vmatprep.subr.bf16.mxu0 0
        %2089 = vmatpush1.bf16.msra.mxu0 0
        %2090 = vmatprep.subr.bf16.mxu0 0
        %2091 = vmatpush1.bf16.msra.mxu0 0
        %2092 = vmatprep.subr.bf16.mxu0 0
        %2093 = vmatpush1.bf16.msra.mxu0 0
        %2094 = vmatprep.subr.bf16.mxu0 0
        %2095 = vmatpush1.bf16.msra.mxu0 0
        %2096 = vmatprep.mubr.bf16.mxu0 0
        %2097 = vmatmul.mubr.bf16.gmra.mrb[0].mxu0 %v1307
        %v2098 = vpop.f32.mrb[0].mxu0
        %v2099 = vadd.f32 %v2050, %v2098
        %v2100 = vpop.f32.mrb[0].mxu0
        %v2101 = vpop.f32.mrb[0].mxu0
        %v2102 = vpop.f32.mrb[0].mxu0
        %2103 = vdwg.mxu0
        %s2104 = scalar_lea.vmem [#allocation16], 32
        %v2105 = vld [vmem:[%s2104] sm:$0xf]
        %v2106 = vld [vmem:[%s2104 + $0x4] sm:$0xf]
        %v2107 = vld [vmem:[%s2104 + $0x8] sm:$0xf]
        %v2108 = vld [vmem:[%s2104 + $0xc] sm:$0xf]
        %s2109 = scalar_lea.vmem [#allocation17], 2
        %v2110 = vld [vmem:[%s2109] sm:$0x1]
        %v2112 = vlaneseq
        %v2113 = vshrl.u32 %v2112, 7
        %v2114 = vsub.s32 0, %v2113
        %v2115 = vrot.slane %v2110, %v2114
        %v2121 = vunpack.c.l.b16 %v2105
        %v2122 = vunpack.c.l.b16 %v2106
        %v2123 = vunpack.c.l.b16 %v2107
        %v2124 = vunpack.c.l.b16 %v2108
        %v2125 = vpack.c.b16 %v2122, %v2121
        %v2126 = vpack.c.b16 %v2124, %v2123
        %2129 = vmatprep.subr.bf16.mxu0 0
        %2130 = vmatpush1.bf16.msra.mxu0 %v2125
        %2131 = vmatprep.subr.bf16.mxu0 0
        %2132 = vmatpush1.bf16.msra.mxu0 %v2126
        %2133 = vmatprep.subr.bf16.mxu0 0
        %2134 = vmatpush1.bf16.msra.mxu0 0
        %2135 = vmatprep.subr.bf16.mxu0 0
        %2136 = vmatpush1.bf16.msra.mxu0 0
        %2137 = vmatprep.subr.bf16.mxu0 0
        %2138 = vmatpush1.bf16.msra.mxu0 0
        %2139 = vmatprep.subr.bf16.mxu0 0
        %2140 = vmatpush1.bf16.msra.mxu0 0
        %2141 = vmatprep.subr.bf16.mxu0 0
        %2142 = vmatpush1.bf16.msra.mxu0 0
        %2143 = vmatprep.subr.bf16.mxu0 0
        %2144 = vmatpush1.bf16.msra.mxu0 0
        %2145 = vmatprep.subr.bf16.mxu0 0
        %2146 = vmatpush1.bf16.msra.mxu0 0
        %2147 = vmatprep.subr.bf16.mxu0 0
        %2148 = vmatpush1.bf16.msra.mxu0 0
        %2149 = vmatprep.subr.bf16.mxu0 0
        %2150 = vmatpush1.bf16.msra.mxu0 0
        %2151 = vmatprep.subr.bf16.mxu0 0
        %2152 = vmatpush1.bf16.msra.mxu0 0
        %2153 = vmatprep.subr.bf16.mxu0 0
        %2154 = vmatpush1.bf16.msra.mxu0 0
        %2155 = vmatprep.subr.bf16.mxu0 0
        %2156 = vmatpush1.bf16.msra.mxu0 0
        %2157 = vmatprep.subr.bf16.mxu0 0
        %2158 = vmatpush1.bf16.msra.mxu0 0
        %2159 = vmatprep.subr.bf16.mxu0 0
        %2160 = vmatpush1.bf16.msra.mxu0 0
        %2161 = vmatprep.mubr.bf16.mxu0 0
        %2162 = vmatmul.mubr.bf16.gmra.mrb[0].mxu0 %v1307
        %v2163 = vpop.f32.mrb[0].mxu0
        %v2164 = vadd.f32 %v2115, %v2163
        %v2165 = vpop.f32.mrb[0].mxu0
        %v2166 = vpop.f32.mrb[0].mxu0
        %v2167 = vpop.f32.mrb[0].mxu0
        %2168 = vdwg.mxu0
        %s2169 = scalar_lea.vmem [#allocation19], 32
        %v2170 = vld [vmem:[%s2169] sm:$0xf]
        %v2171 = vld [vmem:[%s2169 + $0x4] sm:$0xf]
        %v2172 = vld [vmem:[%s2169 + $0x8] sm:$0xf]
        %v2173 = vld [vmem:[%s2169 + $0xc] sm:$0xf]
        %s2174 = scalar_lea.vmem [#allocation20], 2
        %v2175 = vld [vmem:[%s2174] sm:$0x1]
        %v2177 = vlaneseq
        %v2178 = vshrl.u32 %v2177, 7
        %v2179 = vsub.s32 0, %v2178
        %v2180 = vrot.slane %v2175, %v2179
        %v2186 = vunpack.c.l.b16 %v2170
        %v2187 = vunpack.c.l.b16 %v2171
        %v2188 = vunpack.c.l.b16 %v2172
        %v2189 = vunpack.c.l.b16 %v2173
        %v2190 = vpack.c.b16 %v2187, %v2186
        %v2191 = vpack.c.b16 %v2189, %v2188
        %2194 = vmatprep.subr.bf16.mxu0 0
        %2195 = vmatpush1.bf16.msra.mxu0 %v2190
        %2196 = vmatprep.subr.bf16.mxu0 0
        %2197 = vmatpush1.bf16.msra.mxu0 %v2191
        %2198 = vmatprep.subr.bf16.mxu0 0
        %2199 = vmatpush1.bf16.msra.mxu0 0
        %2200 = vmatprep.subr.bf16.mxu0 0
        %2201 = vmatpush1.bf16.msra.mxu0 0
        %2202 = vmatprep.subr.bf16.mxu0 0
        %2203 = vmatpush1.bf16.msra.mxu0 0
        %2204 = vmatprep.subr.bf16.mxu0 0
        %2205 = vmatpush1.bf16.msra.mxu0 0
        %2206 = vmatprep.subr.bf16.mxu0 0
        %2207 = vmatpush1.bf16.msra.mxu0 0
        %2208 = vmatprep.subr.bf16.mxu0 0
        %2209 = vmatpush1.bf16.msra.mxu0 0
        %2210 = vmatprep.subr.bf16.mxu0 0
        %2211 = vmatpush1.bf16.msra.mxu0 0
        %2212 = vmatprep.subr.bf16.mxu0 0
        %2213 = vmatpush1.bf16.msra.mxu0 0
        %2214 = vmatprep.subr.bf16.mxu0 0
        %2215 = vmatpush1.bf16.msra.mxu0 0
        %2216 = vmatprep.subr.bf16.mxu0 0
        %2217 = vmatpush1.bf16.msra.mxu0 0
        %2218 = vmatprep.subr.bf16.mxu0 0
        %2219 = vmatpush1.bf16.msra.mxu0 0
        %2220 = vmatprep.subr.bf16.mxu0 0
        %2221 = vmatpush1.bf16.msra.mxu0 0
        %2222 = vmatprep.subr.bf16.mxu0 0
        %2223 = vmatpush1.bf16.msra.mxu0 0
        %2224 = vmatprep.subr.bf16.mxu0 0
        %2225 = vmatpush1.bf16.msra.mxu0 0
        %2226 = vmatprep.mubr.bf16.mxu0 0
        %2227 = vmatmul.mubr.bf16.gmra.mrb[0].mxu0 %v1307
        %v2228 = vpop.f32.mrb[0].mxu0
        %v2229 = vadd.f32 %v2180, %v2228
        %v2230 = vpop.f32.mrb[0].mxu0
        %v2231 = vpop.f32.mrb[0].mxu0
        %v2232 = vpop.f32.mrb[0].mxu0
        %2233 = vdwg.mxu0
        %v2234 = vpack.c.bf16 %v2099, %v2099
        %v2235 = vpack.c.bf16 %v2164, %v2164
        %v2237 = vsel %vm1477, %v2234, 0
        %v2240 = vsel %vm1477, %v2235, 0
        %2242 = vmatprep.subr.bf16.mxu0 0
        %2243 = vmatpush1.bf16.xpose.msra.mxu0 %v2240
        %2244 = vmatprep.subr.bf16.mxu0 0
        %2245 = vmatpush1.bf16.xpose.msra.mxu0 0
        %2246 = vmatprep.subr.bf16.mxu0 0
        %2247 = vmatpush1.bf16.xpose.msra.mxu0 0
        %2248 = vmatprep.subr.bf16.mxu0 0
        %2249 = vmatpush1.bf16.xpose.msra.mxu0 0
        %2250 = vmatprep.subr.bf16.mxu0 0
        %2251 = vmatpush1.bf16.xpose.msra.mxu0 0
        %2252 = vmatprep.subr.bf16.mxu0 0
        %2253 = vmatpush1.bf16.xpose.msra.mxu0 0
        %2254 = vmatprep.subr.bf16.mxu0 0
        %2255 = vmatpush1.bf16.xpose.msra.mxu0 0
        %2256 = vmatprep.subr.bf16.mxu0 0
        %2257 = vmatpush1.bf16.xpose.msra.mxu0 0
        %2258 = vmatprep.subr.bf16.mxu0 0
        %2259 = vmatpush1.bf16.xpose.msra.mxu0 0
        %2260 = vmatprep.subr.bf16.mxu0 0
        %2261 = vmatpush1.bf16.xpose.msra.mxu0 0
        %2262 = vmatprep.subr.bf16.mxu0 0
        %2263 = vmatpush1.bf16.xpose.msra.mxu0 0
        %2264 = vmatprep.subr.bf16.mxu0 0
        %2265 = vmatpush1.bf16.xpose.msra.mxu0 0
        %2266 = vmatprep.subr.bf16.mxu0 0
        %2267 = vmatpush1.bf16.xpose.msra.mxu0 0
        %2268 = vmatprep.subr.bf16.mxu0 0
        %2269 = vmatpush1.bf16.xpose.msra.mxu0 0
        %2270 = vmatprep.subr.bf16.mxu0 0
        %2271 = vmatpush1.bf16.xpose.msra.mxu0 0
        %2272 = vmatprep.subr.bf16.mxu0 0
        %2273 = vmatpush1.bf16.xpose.msra.mxu0 0
        %2274 = vmatprep.mubr.bf16.mxu0 0
        %2275 = vmatmul.mubr.bf16.gmra.mrb[0].mxu0 %v2237
        %v2276 = vpop.f32.mrb[0].mxu0
        %v2277 = vadd.f32 0.0, %v2276
        %v2278 = vpop.f32.mrb[0].mxu0
        %v2279 = vpop.f32.mrb[0].mxu0
        %v2280 = vpop.f32.mrb[0].mxu0
        %2281 = vdwg.mxu0
        %s2282 = scalar_lea.vmem [#allocation22], 2
        %v2283 = vld [vmem:[%s2282] sm:$0x1]
        %v2285 = vlaneseq
        %v2286 = vshrl.u32 %v2285, 7
        %v2287 = vsub.s32 0, %v2286
        %v2288 = vrot.slane %v2283, %v2287
        %v2290 = vmul.f32 %v2099, %v2288
        %v2291 = vsel %vm1477, %v2290, 0.0
        %2292 = vadd.xlane.f32.xlu0 %v2291
        %v2293 = vpop.xlane.xlu0 %2292
        %v2294 = vsel %vm1477, %v2277, -inf
        %2295 = vmax.xlane.f32.xlu0 %v2294
        %v2296 = vpop.xlane.xlu0 %2295
        %v2297 = vmax.f32 %v2296, %v2293
        %v2298 = vsub.f32 %v2277, %v2297
        %v2299 = vmul.f32 %v2298, 1.442695
        %v2300 = vpow.pop %v2299
        %v2301 = vsub.f32 %v2293, %v2297
        %v2302 = vmul.f32 %v2301, 1.442695
        %v2303 = vpow.pop %v2302
        %v2304 = vsel %vm1477, %v2300, 0.0
        %2305 = vadd.xlane.f32.xlu0 %v2304
        %v2306 = vpop.xlane.xlu0 %2305
        %v2307 = vadd.f32 %v2306, %v2303
        %v2308 = vrcp.pop %v2307
        %v2309 = vmul.f32 %v2300, %v2308
        %v2310 = vmul.f32 %v2303, %v2308
        %v2311 = vadd.f32 %v1885, %v2309
        %v2312 = vadd.f32 %v1886, %v2310
        %v2313 = vpack.c.bf16 %v2309, %v2309
        %v2314 = vpack.c.bf16 %v2229, %v2229
        %s2315 = scalar_lea.vmem [#allocation23], 2
        %v2316 = vld [vmem:[%s2315] sm:$0x1]
        %v2318 = vlaneseq
        %v2319 = vshrl.u32 %v2318, 7
        %v2320 = vsub.s32 0, %v2319
        %v2321 = vrot.slane %v2316, %v2320
        %v2323 = vmul.f32 %v2310, %v2321
        %v2325 = vsel %vm1477, %v2313, 0
        %v2328 = vsel %vm1567, %v2314, 0
        %2330 = vmatprep.subr.bf16.mxu0 0
        %2331 = vmatpush1.bf16.msra.mxu0 %v2328
        %2332 = vmatprep.subr.bf16.mxu0 0
        %2333 = vmatpush1.bf16.msra.mxu0 0
        %2334 = vmatprep.subr.bf16.mxu0 0
        %2335 = vmatpush1.bf16.msra.mxu0 0
        %2336 = vmatprep.subr.bf16.mxu0 0
        %2337 = vmatpush1.bf16.msra.mxu0 0
        %2338 = vmatprep.subr.bf16.mxu0 0
        %2339 = vmatpush1.bf16.msra.mxu0 0
        %2340 = vmatprep.subr.bf16.mxu0 0
        %2341 = vmatpush1.bf16.msra.mxu0 0
        %2342 = vmatprep.subr.bf16.mxu0 0
        %2343 = vmatpush1.bf16.msra.mxu0 0
        %2344 = vmatprep.subr.bf16.mxu0 0
        %2345 = vmatpush1.bf16.msra.mxu0 0
        %2346 = vmatprep.subr.bf16.mxu0 0
        %2347 = vmatpush1.bf16.msra.mxu0 0
        %2348 = vmatprep.subr.bf16.mxu0 0
        %2349 = vmatpush1.bf16.msra.mxu0 0
        %2350 = vmatprep.subr.bf16.mxu0 0
        %2351 = vmatpush1.bf16.msra.mxu0 0
        %2352 = vmatprep.subr.bf16.mxu0 0
        %2353 = vmatpush1.bf16.msra.mxu0 0
        %2354 = vmatprep.subr.bf16.mxu0 0
        %2355 = vmatpush1.bf16.msra.mxu0 0
        %2356 = vmatprep.subr.bf16.mxu0 0
        %2357 = vmatpush1.bf16.msra.mxu0 0
        %2358 = vmatprep.subr.bf16.mxu0 0
        %2359 = vmatpush1.bf16.msra.mxu0 0
        %2360 = vmatprep.subr.bf16.mxu0 0
        %2361 = vmatpush1.bf16.msra.mxu0 0
        %2362 = vmatprep.mubr.bf16.mxu0 0
        %2363 = vmatmul.mubr.bf16.gmra.mrb[0].mxu0 %v2325
        %v2364 = vpop.f32.mrb[0].mxu0
        %v2365 = vadd.f32 %v2323, %v2364
        %v2366 = vpop.f32.mrb[0].mxu0
        %v2367 = vpop.f32.mrb[0].mxu0
        %v2368 = vpop.f32.mrb[0].mxu0
        %2369 = vdwg.mxu0
        %v2370 = vpack.c.bf16 %v2365, %v2365
        %s2371 = scalar_lea.vmem [#allocation25], 8
        %v2372 = vld [vmem:[%s2371] sm:$0xf]
        %v2374 = vsel %vm1477, %v2370, 0
        %v2377 = vsel %vm1567, %v2372, 0
        %2379 = vmatprep.subr.bf16.mxu0 0
        %2380 = vmatpush1.bf16.msra.mxu0 %v2377
        %2381 = vmatprep.subr.bf16.mxu0 0
        %2382 = vmatpush1.bf16.msra.mxu0 0
        %2383 = vmatprep.subr.bf16.mxu0 0
        %2384 = vmatpush1.bf16.msra.mxu0 0
        %2385 = vmatprep.subr.bf16.mxu0 0
        %2386 = vmatpush1.bf16.msra.mxu0 0
        %2387 = vmatprep.subr.bf16.mxu0 0
        %2388 = vmatpush1.bf16.msra.mxu0 0
        %2389 = vmatprep.subr.bf16.mxu0 0
        %2390 = vmatpush1.bf16.msra.mxu0 0
        %2391 = vmatprep.subr.bf16.mxu0 0
        %2392 = vmatpush1.bf16.msra.mxu0 0
        %2393 = vmatprep.subr.bf16.mxu0 0
        %2394 = vmatpush1.bf16.msra.mxu0 0
        %2395 = vmatprep.subr.bf16.mxu0 0
        %2396 = vmatpush1.bf16.msra.mxu0 0
        %2397 = vmatprep.subr.bf16.mxu0 0
        %2398 = vmatpush1.bf16.msra.mxu0 0
        %2399 = vmatprep.subr.bf16.mxu0 0
        %2400 = vmatpush1.bf16.msra.mxu0 0
        %2401 = vmatprep.subr.bf16.mxu0 0
        %2402 = vmatpush1.bf16.msra.mxu0 0
        %2403 = vmatprep.subr.bf16.mxu0 0
        %2404 = vmatpush1.bf16.msra.mxu0 0
        %2405 = vmatprep.subr.bf16.mxu0 0
        %2406 = vmatpush1.bf16.msra.mxu0 0
        %2407 = vmatprep.subr.bf16.mxu0 0
        %2408 = vmatpush1.bf16.msra.mxu0 0
        %2409 = vmatprep.subr.bf16.mxu0 0
        %2410 = vmatpush1.bf16.msra.mxu0 0
        %2411 = vmatprep.mubr.bf16.mxu0 0
        %2412 = vmatmul.mubr.bf16.gmra.mrb[0].mxu0 %v2374
        %v2413 = vpop.f32.mrb[0].mxu0
        %v2414 = vadd.f32 0.0, %v2413
        %v2415 = vpop.f32.mrb[0].mxu0
        %v2416 = vpop.f32.mrb[0].mxu0
        %v2417 = vpop.f32.mrb[0].mxu0
        %2418 = vdwg.mxu0
        %v2419 = vadd.f32 %v2034, %v2414
        %s2420 = scalar_lea.vmem [#allocation13], 48
        %v2421 = vld [vmem:[%s2420] sm:$0xf]
        %v2422 = vld [vmem:[%s2420 + $0x4] sm:$0xf]
        %v2423 = vld [vmem:[%s2420 + $0x8] sm:$0xf]
        %v2424 = vld [vmem:[%s2420 + $0xc] sm:$0xf]
        %s2425 = scalar_lea.vmem [#allocation14], 3
        %v2426 = vld [vmem:[%s2425] sm:$0x1]
        %v2428 = vlaneseq
        %v2429 = vshrl.u32 %v2428, 7
        %v2430 = vsub.s32 0, %v2429
        %v2431 = vrot.slane %v2426, %v2430
        %v2437 = vunpack.c.l.b16 %v2421
        %v2438 = vunpack.c.l.b16 %v2422
        %v2439 = vunpack.c.l.b16 %v2423
        %v2440 = vunpack.c.l.b16 %v2424
        %v2441 = vpack.c.b16 %v2438, %v2437
        %v2442 = vpack.c.b16 %v2440, %v2439
        %2445 = vmatprep.subr.bf16.mxu0 0
        %2446 = vmatpush1.bf16.msra.mxu0 %v2441
        %2447 = vmatprep.subr.bf16.mxu0 0
        %2448 = vmatpush1.bf16.msra.mxu0 %v2442
        %2449 = vmatprep.subr.bf16.mxu0 0
        %2450 = vmatpush1.bf16.msra.mxu0 0
        %2451 = vmatprep.subr.bf16.mxu0 0
        %2452 = vmatpush1.bf16.msra.mxu0 0
        %2453 = vmatprep.subr.bf16.mxu0 0
        %2454 = vmatpush1.bf16.msra.mxu0 0
        %2455 = vmatprep.subr.bf16.mxu0 0
        %2456 = vmatpush1.bf16.msra.mxu0 0
        %2457 = vmatprep.subr.bf16.mxu0 0
        %2458 = vmatpush1.bf16.msra.mxu0 0
        %2459 = vmatprep.subr.bf16.mxu0 0
        %2460 = vmatpush1.bf16.msra.mxu0 0
        %2461 = vmatprep.subr.bf16.mxu0 0
        %2462 = vmatpush1.bf16.msra.mxu0 0
        %2463 = vmatprep.subr.bf16.mxu0 0
        %2464 = vmatpush1.bf16.msra.mxu0 0
        %2465 = vmatprep.subr.bf16.mxu0 0
        %2466 = vmatpush1.bf16.msra.mxu0 0
        %2467 = vmatprep.subr.bf16.mxu0 0
        %2468 = vmatpush1.bf16.msra.mxu0 0
        %2469 = vmatprep.subr.bf16.mxu0 0
        %2470 = vmatpush1.bf16.msra.mxu0 0
        %2471 = vmatprep.subr.bf16.mxu0 0
        %2472 = vmatpush1.bf16.msra.mxu0 0
        %2473 = vmatprep.subr.bf16.mxu0 0
        %2474 = vmatpush1.bf16.msra.mxu0 0
        %2475 = vmatprep.subr.bf16.mxu0 0
        %2476 = vmatpush1.bf16.msra.mxu0 0
        %2477 = vmatprep.mubr.bf16.mxu0 0
        %2478 = vmatmul.mubr.bf16.gmra.mrb[0].mxu0 %v1307
        %v2479 = vpop.f32.mrb[0].mxu0
        %v2480 = vadd.f32 %v2431, %v2479
        %v2481 = vpop.f32.mrb[0].mxu0
        %v2482 = vpop.f32.mrb[0].mxu0
        %v2483 = vpop.f32.mrb[0].mxu0
        %2484 = vdwg.mxu0
        %s2485 = scalar_lea.vmem [#allocation16], 48
        %v2486 = vld [vmem:[%s2485] sm:$0xf]
        %v2487 = vld [vmem:[%s2485 + $0x4] sm:$0xf]
        %v2488 = vld [vmem:[%s2485 + $0x8] sm:$0xf]
        %v2489 = vld [vmem:[%s2485 + $0xc] sm:$0xf]
        %s2490 = scalar_lea.vmem [#allocation17], 3
        %v2491 = vld [vmem:[%s2490] sm:$0x1]
        %v2493 = vlaneseq
        %v2494 = vshrl.u32 %v2493, 7
        %v2495 = vsub.s32 0, %v2494
        %v2496 = vrot.slane %v2491, %v2495
        %v2502 = vunpack.c.l.b16 %v2486
        %v2503 = vunpack.c.l.b16 %v2487
        %v2504 = vunpack.c.l.b16 %v2488
        %v2505 = vunpack.c.l.b16 %v2489
        %v2506 = vpack.c.b16 %v2503, %v2502
        %v2507 = vpack.c.b16 %v2505, %v2504
        %2510 = vmatprep.subr.bf16.mxu0 0
        %2511 = vmatpush1.bf16.msra.mxu0 %v2506
        %2512 = vmatprep.subr.bf16.mxu0 0
        %2513 = vmatpush1.bf16.msra.mxu0 %v2507
        %2514 = vmatprep.subr.bf16.mxu0 0
        %2515 = vmatpush1.bf16.msra.mxu0 0
        %2516 = vmatprep.subr.bf16.mxu0 0
        %2517 = vmatpush1.bf16.msra.mxu0 0
        %2518 = vmatprep.subr.bf16.mxu0 0
        %2519 = vmatpush1.bf16.msra.mxu0 0
        %2520 = vmatprep.subr.bf16.mxu0 0
        %2521 = vmatpush1.bf16.msra.mxu0 0
        %2522 = vmatprep.subr.bf16.mxu0 0
        %2523 = vmatpush1.bf16.msra.mxu0 0
        %2524 = vmatprep.subr.bf16.mxu0 0
        %2525 = vmatpush1.bf16.msra.mxu0 0
        %2526 = vmatprep.subr.bf16.mxu0 0
        %2527 = vmatpush1.bf16.msra.mxu0 0
        %2528 = vmatprep.subr.bf16.mxu0 0
        %2529 = vmatpush1.bf16.msra.mxu0 0
        %2530 = vmatprep.subr.bf16.mxu0 0
        %2531 = vmatpush1.bf16.msra.mxu0 0
        %2532 = vmatprep.subr.bf16.mxu0 0
        %2533 = vmatpush1.bf16.msra.mxu0 0
        %2534 = vmatprep.subr.bf16.mxu0 0
        %2535 = vmatpush1.bf16.msra.mxu0 0
        %2536 = vmatprep.subr.bf16.mxu0 0
        %2537 = vmatpush1.bf16.msra.mxu0 0
        %2538 = vmatprep.subr.bf16.mxu0 0
        %2539 = vmatpush1.bf16.msra.mxu0 0
        %2540 = vmatprep.subr.bf16.mxu0 0
        %2541 = vmatpush1.bf16.msra.mxu0 0
        %2542 = vmatprep.mubr.bf16.mxu0 0
        %2543 = vmatmul.mubr.bf16.gmra.mrb[0].mxu0 %v1307
        %v2544 = vpop.f32.mrb[0].mxu0
        %v2545 = vadd.f32 %v2496, %v2544
        %v2546 = vpop.f32.mrb[0].mxu0
        %v2547 = vpop.f32.mrb[0].mxu0
        %v2548 = vpop.f32.mrb[0].mxu0
        %2549 = vdwg.mxu0
        %s2550 = scalar_lea.vmem [#allocation19], 48
        %v2551 = vld [vmem:[%s2550] sm:$0xf]
        %v2552 = vld [vmem:[%s2550 + $0x4] sm:$0xf]
        %v2553 = vld [vmem:[%s2550 + $0x8] sm:$0xf]
        %v2554 = vld [vmem:[%s2550 + $0xc] sm:$0xf]
        %s2555 = scalar_lea.vmem [#allocation20], 3
        %v2556 = vld [vmem:[%s2555] sm:$0x1]
        %v2558 = vlaneseq
        %v2559 = vshrl.u32 %v2558, 7
        %v2560 = vsub.s32 0, %v2559
        %v2561 = vrot.slane %v2556, %v2560
        %v2567 = vunpack.c.l.b16 %v2551
        %v2568 = vunpack.c.l.b16 %v2552
        %v2569 = vunpack.c.l.b16 %v2553
        %v2570 = vunpack.c.l.b16 %v2554
        %v2571 = vpack.c.b16 %v2568, %v2567
        %v2572 = vpack.c.b16 %v2570, %v2569
        %2575 = vmatprep.subr.bf16.mxu0 0
        %2576 = vmatpush1.bf16.msra.mxu0 %v2571
        %2577 = vmatprep.subr.bf16.mxu0 0
        %2578 = vmatpush1.bf16.msra.mxu0 %v2572
        %2579 = vmatprep.subr.bf16.mxu0 0
        %2580 = vmatpush1.bf16.msra.mxu0 0
        %2581 = vmatprep.subr.bf16.mxu0 0
        %2582 = vmatpush1.bf16.msra.mxu0 0
        %2583 = vmatprep.subr.bf16.mxu0 0
        %2584 = vmatpush1.bf16.msra.mxu0 0
        %2585 = vmatprep.subr.bf16.mxu0 0
        %2586 = vmatpush1.bf16.msra.mxu0 0
        %2587 = vmatprep.subr.bf16.mxu0 0
        %2588 = vmatpush1.bf16.msra.mxu0 0
        %2589 = vmatprep.subr.bf16.mxu0 0
        %2590 = vmatpush1.bf16.msra.mxu0 0
        %2591 = vmatprep.subr.bf16.mxu0 0
        %2592 = vmatpush1.bf16.msra.mxu0 0
        %2593 = vmatprep.subr.bf16.mxu0 0
        %2594 = vmatpush1.bf16.msra.mxu0 0
        %2595 = vmatprep.subr.bf16.mxu0 0
        %2596 = vmatpush1.bf16.msra.mxu0 0
        %2597 = vmatprep.subr.bf16.mxu0 0
        %2598 = vmatpush1.bf16.msra.mxu0 0
        %2599 = vmatprep.subr.bf16.mxu0 0
        %2600 = vmatpush1.bf16.msra.mxu0 0
        %2601 = vmatprep.subr.bf16.mxu0 0
        %2602 = vmatpush1.bf16.msra.mxu0 0
        %2603 = vmatprep.subr.bf16.mxu0 0
        %2604 = vmatpush1.bf16.msra.mxu0 0
        %2605 = vmatprep.subr.bf16.mxu0 0
        %2606 = vmatpush1.bf16.msra.mxu0 0
        %2607 = vmatprep.mubr.bf16.mxu0 0
        %2608 = vmatmul.mubr.bf16.gmra.mrb[0].mxu0 %v1307
        %v2609 = vpop.f32.mrb[0].mxu0
        %v2610 = vadd.f32 %v2561, %v2609
        %v2611 = vpop.f32.mrb[0].mxu0
        %v2612 = vpop.f32.mrb[0].mxu0
        %v2613 = vpop.f32.mrb[0].mxu0
        %2614 = vdwg.mxu0
        %v2615 = vpack.c.bf16 %v2480, %v2480
        %v2616 = vpack.c.bf16 %v2545, %v2545
        %v2618 = vsel %vm1477, %v2615, 0
        %v2621 = vsel %vm1477, %v2616, 0
        %2623 = vmatprep.subr.bf16.mxu0 0
        %2624 = vmatpush1.bf16.xpose.msra.mxu0 %v2621
        %2625 = vmatprep.subr.bf16.mxu0 0
        %2626 = vmatpush1.bf16.xpose.msra.mxu0 0
        %2627 = vmatprep.subr.bf16.mxu0 0
        %2628 = vmatpush1.bf16.xpose.msra.mxu0 0
        %2629 = vmatprep.subr.bf16.mxu0 0
        %2630 = vmatpush1.bf16.xpose.msra.mxu0 0
        %2631 = vmatprep.subr.bf16.mxu0 0
        %2632 = vmatpush1.bf16.xpose.msra.mxu0 0
        %2633 = vmatprep.subr.bf16.mxu0 0
        %2634 = vmatpush1.bf16.xpose.msra.mxu0 0
        %2635 = vmatprep.subr.bf16.mxu0 0
        %2636 = vmatpush1.bf16.xpose.msra.mxu0 0
        %2637 = vmatprep.subr.bf16.mxu0 0
        %2638 = vmatpush1.bf16.xpose.msra.mxu0 0
        %2639 = vmatprep.subr.bf16.mxu0 0
        %2640 = vmatpush1.bf16.xpose.msra.mxu0 0
        %2641 = vmatprep.subr.bf16.mxu0 0
        %2642 = vmatpush1.bf16.xpose.msra.mxu0 0
        %2643 = vmatprep.subr.bf16.mxu0 0
        %2644 = vmatpush1.bf16.xpose.msra.mxu0 0
        %2645 = vmatprep.subr.bf16.mxu0 0
        %2646 = vmatpush1.bf16.xpose.msra.mxu0 0
        %2647 = vmatprep.subr.bf16.mxu0 0
        %2648 = vmatpush1.bf16.xpose.msra.mxu0 0
        %2649 = vmatprep.subr.bf16.mxu0 0
        %2650 = vmatpush1.bf16.xpose.msra.mxu0 0
        %2651 = vmatprep.subr.bf16.mxu0 0
        %2652 = vmatpush1.bf16.xpose.msra.mxu0 0
        %2653 = vmatprep.subr.bf16.mxu0 0
        %2654 = vmatpush1.bf16.xpose.msra.mxu0 0
        %2655 = vmatprep.mubr.bf16.mxu0 0
        %2656 = vmatmul.mubr.bf16.gmra.mrb[0].mxu0 %v2618
        %v2657 = vpop.f32.mrb[0].mxu0
        %v2658 = vadd.f32 0.0, %v2657
        %v2659 = vpop.f32.mrb[0].mxu0
        %v2660 = vpop.f32.mrb[0].mxu0
        %v2661 = vpop.f32.mrb[0].mxu0
        %2662 = vdwg.mxu0
        %s2663 = scalar_lea.vmem [#allocation22], 3
        %v2664 = vld [vmem:[%s2663] sm:$0x1]
        %v2666 = vlaneseq
        %v2667 = vshrl.u32 %v2666, 7
        %v2668 = vsub.s32 0, %v2667
        %v2669 = vrot.slane %v2664, %v2668
        %v2671 = vmul.f32 %v2480, %v2669
        %v2672 = vsel %vm1477, %v2671, 0.0
        %2673 = vadd.xlane.f32.xlu0 %v2672
        %v2674 = vpop.xlane.xlu0 %2673
        %v2675 = vsel %vm1477, %v2658, -inf
        %2676 = vmax.xlane.f32.xlu0 %v2675
        %v2677 = vpop.xlane.xlu0 %2676
        %v2678 = vmax.f32 %v2677, %v2674
        %v2679 = vsub.f32 %v2658, %v2678
        %v2680 = vmul.f32 %v2679, 1.442695
        %v2681 = vpow.pop %v2680
        %v2682 = vsub.f32 %v2674, %v2678
        %v2683 = vmul.f32 %v2682, 1.442695
        %v2684 = vpow.pop %v2683
        %v2685 = vsel %vm1477, %v2681, 0.0
        %2686 = vadd.xlane.f32.xlu0 %v2685
        %v2687 = vpop.xlane.xlu0 %2686
        %v2688 = vadd.f32 %v2687, %v2684
        %v2689 = vrcp.pop %v2688
        %v2690 = vmul.f32 %v2681, %v2689
        %v2691 = vmul.f32 %v2684, %v2689
        %v2692 = vadd.f32 %v2311, %v2690
        %v2693 = vadd.f32 %v2312, %v2691
        %v2694 = vpack.c.bf16 %v2690, %v2690
        %v2695 = vpack.c.bf16 %v2610, %v2610
        %s2696 = scalar_lea.vmem [#allocation23], 3
        %v2697 = vld [vmem:[%s2696] sm:$0x1]
        %v2699 = vlaneseq
        %v2700 = vshrl.u32 %v2699, 7
        %v2701 = vsub.s32 0, %v2700
        %v2702 = vrot.slane %v2697, %v2701
        %v2704 = vmul.f32 %v2691, %v2702
        %v2706 = vsel %vm1477, %v2694, 0
        %v2709 = vsel %vm1567, %v2695, 0
        %2711 = vmatprep.subr.bf16.mxu0 0
        %2712 = vmatpush1.bf16.msra.mxu0 %v2709
        %2713 = vmatprep.subr.bf16.mxu0 0
        %2714 = vmatpush1.bf16.msra.mxu0 0
        %2715 = vmatprep.subr.bf16.mxu0 0
        %2716 = vmatpush1.bf16.msra.mxu0 0
        %2717 = vmatprep.subr.bf16.mxu0 0
        %2718 = vmatpush1.bf16.msra.mxu0 0
        %2719 = vmatprep.subr.bf16.mxu0 0
        %2720 = vmatpush1.bf16.msra.mxu0 0
        %2721 = vmatprep.subr.bf16.mxu0 0
        %2722 = vmatpush1.bf16.msra.mxu0 0
        %2723 = vmatprep.subr.bf16.mxu0 0
        %2724 = vmatpush1.bf16.msra.mxu0 0
        %2725 = vmatprep.subr.bf16.mxu0 0
        %2726 = vmatpush1.bf16.msra.mxu0 0
        %2727 = vmatprep.subr.bf16.mxu0 0
        %2728 = vmatpush1.bf16.msra.mxu0 0
        %2729 = vmatprep.subr.bf16.mxu0 0
        %2730 = vmatpush1.bf16.msra.mxu0 0
        %2731 = vmatprep.subr.bf16.mxu0 0
        %2732 = vmatpush1.bf16.msra.mxu0 0
        %2733 = vmatprep.subr.bf16.mxu0 0
        %2734 = vmatpush1.bf16.msra.mxu0 0
        %2735 = vmatprep.subr.bf16.mxu0 0
        %2736 = vmatpush1.bf16.msra.mxu0 0
        %2737 = vmatprep.subr.bf16.mxu0 0
        %2738 = vmatpush1.bf16.msra.mxu0 0
        %2739 = vmatprep.subr.bf16.mxu0 0
        %2740 = vmatpush1.bf16.msra.mxu0 0
        %2741 = vmatprep.subr.bf16.mxu0 0
        %2742 = vmatpush1.bf16.msra.mxu0 0
        %2743 = vmatprep.mubr.bf16.mxu0 0
        %2744 = vmatmul.mubr.bf16.gmra.mrb[0].mxu0 %v2706
        %v2745 = vpop.f32.mrb[0].mxu0
        %v2746 = vadd.f32 %v2704, %v2745
        %v2747 = vpop.f32.mrb[0].mxu0
        %v2748 = vpop.f32.mrb[0].mxu0
        %v2749 = vpop.f32.mrb[0].mxu0
        %2750 = vdwg.mxu0
        %v2751 = vpack.c.bf16 %v2746, %v2746
        %s2752 = scalar_lea.vmem [#allocation25], 12
        %v2753 = vld [vmem:[%s2752] sm:$0xf]
        %v2755 = vsel %vm1477, %v2751, 0
        %v2758 = vsel %vm1567, %v2753, 0
        %2760 = vmatprep.subr.bf16.mxu0 0
        %2761 = vmatpush1.bf16.msra.mxu0 %v2758
        %2762 = vmatprep.subr.bf16.mxu0 0
        %2763 = vmatpush1.bf16.msra.mxu0 0
        %2764 = vmatprep.subr.bf16.mxu0 0
        %2765 = vmatpush1.bf16.msra.mxu0 0
        %2766 = vmatprep.subr.bf16.mxu0 0
        %2767 = vmatpush1.bf16.msra.mxu0 0
        %2768 = vmatprep.subr.bf16.mxu0 0
        %2769 = vmatpush1.bf16.msra.mxu0 0
        %2770 = vmatprep.subr.bf16.mxu0 0
        %2771 = vmatpush1.bf16.msra.mxu0 0
        %2772 = vmatprep.subr.bf16.mxu0 0
        %2773 = vmatpush1.bf16.msra.mxu0 0
        %2774 = vmatprep.subr.bf16.mxu0 0
        %2775 = vmatpush1.bf16.msra.mxu0 0
        %2776 = vmatprep.subr.bf16.mxu0 0
        %2777 = vmatpush1.bf16.msra.mxu0 0
        %2778 = vmatprep.subr.bf16.mxu0 0
        %2779 = vmatpush1.bf16.msra.mxu0 0
        %2780 = vmatprep.subr.bf16.mxu0 0
        %2781 = vmatpush1.bf16.msra.mxu0 0
        %2782 = vmatprep.subr.bf16.mxu0 0
        %2783 = vmatpush1.bf16.msra.mxu0 0
        %2784 = vmatprep.subr.bf16.mxu0 0
        %2785 = vmatpush1.bf16.msra.mxu0 0
        %2786 = vmatprep.subr.bf16.mxu0 0
        %2787 = vmatpush1.bf16.msra.mxu0 0
        %2788 = vmatprep.subr.bf16.mxu0 0
        %2789 = vmatpush1.bf16.msra.mxu0 0
        %2790 = vmatprep.subr.bf16.mxu0 0
        %2791 = vmatpush1.bf16.msra.mxu0 0
        %2792 = vmatprep.mubr.bf16.mxu0 0
        %2793 = vmatmul.mubr.bf16.gmra.mrb[0].mxu0 %v2755
        %v2794 = vpop.f32.mrb[0].mxu0
        %v2795 = vadd.f32 0.0, %v2794
        %v2796 = vpop.f32.mrb[0].mxu0
        %v2797 = vpop.f32.mrb[0].mxu0
        %v2798 = vpop.f32.mrb[0].mxu0
        %2799 = vdwg.mxu0
        %v2800 = vadd.f32 %v2419, %v2795
        %v2801 = vadd.f32 %v1131, %v2800
        %v2802 = vld [vmem:[#allocation26] sm:$0x1]
        %v2804 = vlaneseq
        %v2805 = vshrl.u32 %v2804, 7
        %v2806 = vsub.s32 0, %v2805
        %v2807 = vrot.slane %v2802, %v2806
        %v2809 = vadd.f32 %v2801, %v2807
        %v2810 = vmul.f32 %v2692, 0.25
        %2811 = vst.msk [vmem:[%s1129] sm:$0xff] %vm1477, %v2810
        %v2812 = vmul.f32 %v2693, 0.25
        %vm2813 = vcmask 72768
        %2814 = vst.msk [vmem:[%s1129] sm:$0xff] %vm2813, %v2812
        %v2815 = vld [vmem:[#allocation28] sm:$0x1]
        %v2816 = vld [vmem:[#allocation31] sm:$0xf]
        %v2817 = vld [vmem:[#allocation31 + $0x4] sm:$0xf]
        %v2818 = vld [vmem:[#allocation31 + $0x8] sm:$0xf]
        %v2819 = vld [vmem:[#allocation31 + $0xc] sm:$0xf]
        %v2824 = vunpack.c.l.b16 %v2816
        %v2825 = vunpack.c.l.b16 %v2817
        %v2826 = vunpack.c.l.b16 %v2818
        %v2827 = vunpack.c.l.b16 %v2819
        %v2828 = vpack.c.b16 %v2825, %v2824
        %v2829 = vpack.c.b16 %v2827, %v2826
        %2832 = vmatprep.subr.bf16.mxu0 0
        %2833 = vmatpush1.bf16.msra.mxu0 %v2828
        %2834 = vmatprep.subr.bf16.mxu0 0
        %2835 = vmatpush1.bf16.msra.mxu0 %v2829
        %2836 = vmatprep.subr.bf16.mxu0 0
        %2837 = vmatpush1.bf16.msra.mxu0 0
        %2838 = vmatprep.subr.bf16.mxu0 0
        %2839 = vmatpush1.bf16.msra.mxu0 0
        %2840 = vmatprep.subr.bf16.mxu0 0
        %2841 = vmatpush1.bf16.msra.mxu0 0
        %2842 = vmatprep.subr.bf16.mxu0 0
        %2843 = vmatpush1.bf16.msra.mxu0 0
        %2844 = vmatprep.subr.bf16.mxu0 0
        %2845 = vmatpush1.bf16.msra.mxu0 0
        %2846 = vmatprep.subr.bf16.mxu0 0
        %2847 = vmatpush1.bf16.msra.mxu0 0
        %2848 = vmatprep.subr.bf16.mxu0 0
        %2849 = vmatpush1.bf16.msra.mxu0 0
        %2850 = vmatprep.subr.bf16.mxu0 0
        %2851 = vmatpush1.bf16.msra.mxu0 0
        %2852 = vmatprep.subr.bf16.mxu0 0
        %2853 = vmatpush1.bf16.msra.mxu0 0
        %2854 = vmatprep.subr.bf16.mxu0 0
        %2855 = vmatpush1.bf16.msra.mxu0 0
        %2856 = vmatprep.subr.bf16.mxu0 0
        %2857 = vmatpush1.bf16.msra.mxu0 0
        %2858 = vmatprep.subr.bf16.mxu0 0
        %2859 = vmatpush1.bf16.msra.mxu0 0
        %2860 = vmatprep.subr.bf16.mxu0 0
        %2861 = vmatpush1.bf16.msra.mxu0 0
        %2862 = vmatprep.subr.bf16.mxu0 0
        %2863 = vmatpush1.bf16.msra.mxu0 0
        %2864 = vmatprep.mubr.bf16.mxu0 0
        %2865 = vmatmul.mubr.bf16.gmra.mrb[0].mxu0 %v1153
        %v2866 = vpop.f32.mrb[0].mxu0
        %v2867 = vadd.f32 0.0, %v2866
        %v2868 = vpop.f32.mrb[0].mxu0
        %v2869 = vpop.f32.mrb[0].mxu0
        %v2870 = vpop.f32.mrb[0].mxu0
        %2871 = vdwg.mxu0
        %v2872 = vadd.f32 %v2815, %v2867
        %v2873 = vld [vmem:[#allocation29] sm:$0x1]
        %v2874 = vld [vmem:[#allocation32] sm:$0xf]
        %v2875 = vld [vmem:[#allocation32 + $0x4] sm:$0xf]
        %v2876 = vld [vmem:[#allocation32 + $0x8] sm:$0xf]
        %v2877 = vld [vmem:[#allocation32 + $0xc] sm:$0xf]
        %v2882 = vunpack.c.l.b16 %v2874
        %v2883 = vunpack.c.l.b16 %v2875
        %v2884 = vunpack.c.l.b16 %v2876
        %v2885 = vunpack.c.l.b16 %v2877
        %v2886 = vpack.c.b16 %v2883, %v2882
        %v2887 = vpack.c.b16 %v2885, %v2884
        %2890 = vmatprep.subr.bf16.mxu0 0
        %2891 = vmatpush1.bf16.msra.mxu0 %v2886
        %2892 = vmatprep.subr.bf16.mxu0 0
        %2893 = vmatpush1.bf16.msra.mxu0 %v2887
        %2894 = vmatprep.subr.bf16.mxu0 0
        %2895 = vmatpush1.bf16.msra.mxu0 0
        %2896 = vmatprep.subr.bf16.mxu0 0
        %2897 = vmatpush1.bf16.msra.mxu0 0
        %2898 = vmatprep.subr.bf16.mxu0 0
        %2899 = vmatpush1.bf16.msra.mxu0 0
        %2900 = vmatprep.subr.bf16.mxu0 0
        %2901 = vmatpush1.bf16.msra.mxu0 0
        %2902 = vmatprep.subr.bf16.mxu0 0
        %2903 = vmatpush1.bf16.msra.mxu0 0
        %2904 = vmatprep.subr.bf16.mxu0 0
        %2905 = vmatpush1.bf16.msra.mxu0 0
        %2906 = vmatprep.subr.bf16.mxu0 0
        %2907 = vmatpush1.bf16.msra.mxu0 0
        %2908 = vmatprep.subr.bf16.mxu0 0
        %2909 = vmatpush1.bf16.msra.mxu0 0
        %2910 = vmatprep.subr.bf16.mxu0 0
        %2911 = vmatpush1.bf16.msra.mxu0 0
        %2912 = vmatprep.subr.bf16.mxu0 0
        %2913 = vmatpush1.bf16.msra.mxu0 0
        %2914 = vmatprep.subr.bf16.mxu0 0
        %2915 = vmatpush1.bf16.msra.mxu0 0
        %2916 = vmatprep.subr.bf16.mxu0 0
        %2917 = vmatpush1.bf16.msra.mxu0 0
        %2918 = vmatprep.subr.bf16.mxu0 0
        %2919 = vmatpush1.bf16.msra.mxu0 0
        %2920 = vmatprep.subr.bf16.mxu0 0
        %2921 = vmatpush1.bf16.msra.mxu0 0
        %2922 = vmatprep.mubr.bf16.mxu0 0
        %2923 = vmatmul.mubr.bf16.gmra.mrb[0].mxu0 %v1153
        %v2924 = vpop.f32.mrb[0].mxu0
        %v2925 = vadd.f32 0.0, %v2924
        %v2926 = vpop.f32.mrb[0].mxu0
        %v2927 = vpop.f32.mrb[0].mxu0
        %v2928 = vpop.f32.mrb[0].mxu0
        %2929 = vdwg.mxu0
        %v2930 = vadd.f32 %v2873, %v2925
        %v2931 = vsel %vm1151, %v2809, 0.0
        %2932 = vadd.xlane.f32.xlu0 %v2931
        %v2933 = vpop.xlane.xlu0 %2932
        %v2934 = vmul.f32 %v2933, %v1257
        %v2935 = vsub.f32 %v2809, %v2934
        %v2936 = vmul.f32 %v2935, %v2935
        %v2937 = vsel %vm1151, %v2936, 0.0
        %2938 = vadd.xlane.f32.xlu0 %v2937
        %v2939 = vpop.xlane.xlu0 %2938
        %v2940 = vmul.f32 %v2939, %v1257
        %v2941 = vadd.f32 %v2940, 1e-05
        %v2942 = vrsqrt.pop %v2941
        %v2943 = vmul.f32 %v2935, %v2942
        %v2945 = vlaneseq
        %v2946 = vshrl.u32 %v2945, 7
        %v2947 = vsub.s32 0, %v2946
        %v2948 = vrot.slane %v2872, %v2947
        %v2950 = vmul.f32 %v2943, %v2948
        %v2952 = vlaneseq
        %v2953 = vshrl.u32 %v2952, 7
        %v2954 = vsub.s32 0, %v2953
        %v2955 = vrot.slane %v2930, %v2954
        %v2957 = vadd.f32 %v2950, %v2955
        %v2958 = vpack.c.bf16 %v2957, %v2957
        %v2959 = vld [vmem:[#allocation34] sm:$0xf]
        %v2960 = vld [vmem:[#allocation34 + $0x4] sm:$0xf]
        %v2961 = vld [vmem:[#allocation34 + $0x8] sm:$0xf]
        %v2962 = vld [vmem:[#allocation34 + $0xc] sm:$0xf]
        %v2963 = vld [vmem:[#allocation35] sm:$0x1]
        %v2965 = vlaneseq
        %v2966 = vshrl.u32 %v2965, 7
        %v2967 = vsub.s32 0, %v2966
        %v2968 = vrot.slane %v2963, %v2967
        %v2974 = vunpack.c.l.b16 %v2959
        %v2975 = vunpack.c.l.b16 %v2960
        %v2976 = vunpack.c.l.b16 %v2961
        %v2977 = vunpack.c.l.b16 %v2962
        %v2978 = vpack.c.b16 %v2975, %v2974
        %v2979 = vpack.c.b16 %v2977, %v2976
        %v2983 = vsel %vm1151, %v2958, 0
        %2985 = vmatprep.subr.bf16.mxu0 0
        %2986 = vmatpush1.bf16.msra.mxu0 %v2978
        %2987 = vmatprep.subr.bf16.mxu0 0
        %2988 = vmatpush1.bf16.msra.mxu0 %v2979
        %2989 = vmatprep.subr.bf16.mxu0 0
        %2990 = vmatpush1.bf16.msra.mxu0 0
        %2991 = vmatprep.subr.bf16.mxu0 0
        %2992 = vmatpush1.bf16.msra.mxu0 0
        %2993 = vmatprep.subr.bf16.mxu0 0
        %2994 = vmatpush1.bf16.msra.mxu0 0
        %2995 = vmatprep.subr.bf16.mxu0 0
        %2996 = vmatpush1.bf16.msra.mxu0 0
        %2997 = vmatprep.subr.bf16.mxu0 0
        %2998 = vmatpush1.bf16.msra.mxu0 0
        %2999 = vmatprep.subr.bf16.mxu0 0
        %3000 = vmatpush1.bf16.msra.mxu0 0
        %3001 = vmatprep.subr.bf16.mxu0 0
        %3002 = vmatpush1.bf16.msra.mxu0 0
        %3003 = vmatprep.subr.bf16.mxu0 0
        %3004 = vmatpush1.bf16.msra.mxu0 0
        %3005 = vmatprep.subr.bf16.mxu0 0
        %3006 = vmatpush1.bf16.msra.mxu0 0
        %3007 = vmatprep.subr.bf16.mxu0 0
        %3008 = vmatpush1.bf16.msra.mxu0 0
        %3009 = vmatprep.subr.bf16.mxu0 0
        %3010 = vmatpush1.bf16.msra.mxu0 0
        %3011 = vmatprep.subr.bf16.mxu0 0
        %3012 = vmatpush1.bf16.msra.mxu0 0
        %3013 = vmatprep.subr.bf16.mxu0 0
        %3014 = vmatpush1.bf16.msra.mxu0 0
        %3015 = vmatprep.subr.bf16.mxu0 0
        %3016 = vmatpush1.bf16.msra.mxu0 0
        %3017 = vmatprep.mubr.bf16.mxu0 0
        %3018 = vmatmul.mubr.bf16.gmra.mrb[0].mxu0 %v2983
        %v3019 = vpop.f32.mrb[0].mxu0
        %v3020 = vadd.f32 %v2968, %v3019
        %v3021 = vpop.f32.mrb[0].mxu0
        %v3022 = vpop.f32.mrb[0].mxu0
        %v3023 = vpop.f32.mrb[0].mxu0
        %3024 = vdwg.mxu0
        %v3025 = vmul.f32 %v3020, 0.5
        %v3026 = vmul.f32 %v3020, 0.70710677
        %v3027 = verf.f32.pop %v3026
        %v3028 = vadd.f32 %v3027, 1.0
        %v3029 = vmul.f32 %v3025, %v3028
        %v3030 = vpack.c.bf16 %v3029, %v3029
        %v3031 = vld [vmem:[#allocation37] sm:$0xf]
        %v3032 = vld [vmem:[#allocation37 + $0x4] sm:$0xf]
        %v3033 = vld [vmem:[#allocation37 + $0x8] sm:$0xf]
        %v3034 = vld [vmem:[#allocation37 + $0xc] sm:$0xf]
        %v3035 = vld [vmem:[#allocation37 + $0x10] sm:$0xf]
        %v3036 = vld [vmem:[#allocation37 + $0x14] sm:$0xf]
        %v3037 = vld [vmem:[#allocation37 + $0x18] sm:$0xf]
        %v3038 = vld [vmem:[#allocation37 + $0x1c] sm:$0xf]
        %v3047 = vunpack.c.l.b16 %v3031
        %v3048 = vunpack.c.l.b16 %v3032
        %v3049 = vunpack.c.l.b16 %v3033
        %v3050 = vunpack.c.l.b16 %v3034
        %v3051 = vunpack.c.l.b16 %v3035
        %v3052 = vunpack.c.l.b16 %v3036
        %v3053 = vunpack.c.l.b16 %v3037
        %v3054 = vunpack.c.l.b16 %v3038
        %v3055 = vpack.c.b16 %v3048, %v3047
        %v3056 = vpack.c.b16 %v3050, %v3049
        %v3057 = vpack.c.b16 %v3052, %v3051
        %v3058 = vpack.c.b16 %v3054, %v3053
        %vm3063 = vcmask 523264
        %v3065 = vsel %vm3063, %v3030, 0
        %3067 = vmatprep.subr.bf16.mxu0 0
        %3068 = vmatpush1.bf16.msra.mxu0 %v3055
        %3069 = vmatprep.subr.bf16.mxu0 0
        %3070 = vmatpush1.bf16.msra.mxu0 %v3056
        %3071 = vmatprep.subr.bf16.mxu0 0
        %3072 = vmatpush1.bf16.msra.mxu0 %v3057
        %3073 = vmatprep.subr.bf16.mxu0 0
        %3074 = vmatpush1.bf16.msra.mxu0 %v3058
        %3075 = vmatprep.subr.bf16.mxu0 0
        %3076 = vmatpush1.bf16.msra.mxu0 0
        %3077 = vmatprep.subr.bf16.mxu0 0
        %3078 = vmatpush1.bf16.msra.mxu0 0
        %3079 = vmatprep.subr.bf16.mxu0 0
        %3080 = vmatpush1.bf16.msra.mxu0 0
        %3081 = vmatprep.subr.bf16.mxu0 0
        %3082 = vmatpush1.bf16.msra.mxu0 0
        %3083 = vmatprep.subr.bf16.mxu0 0
        %3084 = vmatpush1.bf16.msra.mxu0 0
        %3085 = vmatprep.subr.bf16.mxu0 0
        %3086 = vmatpush1.bf16.msra.mxu0 0
        %3087 = vmatprep.subr.bf16.mxu0 0
        %3088 = vmatpush1.bf16.msra.mxu0 0
        %3089 = vmatprep.subr.bf16.mxu0 0
        %3090 = vmatpush1.bf16.msra.mxu0 0
        %3091 = vmatprep.subr.bf16.mxu0 0
        %3092 = vmatpush1.bf16.msra.mxu0 0
        %3093 = vmatprep.subr.bf16.mxu0 0
        %3094 = vmatpush1.bf16.msra.mxu0 0
        %3095 = vmatprep.subr.bf16.mxu0 0
        %3096 = vmatpush1.bf16.msra.mxu0 0
        %3097 = vmatprep.subr.bf16.mxu0 0
        %3098 = vmatpush1.bf16.msra.mxu0 0
        %3099 = vmatprep.mubr.bf16.mxu0 0
        %3100 = vmatmul.mubr.bf16.gmra.mrb[0].mxu0 %v3065
        %v3101 = vpop.f32.mrb[0].mxu0
        %v3102 = vadd.f32 0.0, %v3101
        %v3103 = vpop.f32.mrb[0].mxu0
        %v3104 = vpop.f32.mrb[0].mxu0
        %v3105 = vpop.f32.mrb[0].mxu0
        %3106 = vdwg.mxu0
        %v3107 = vadd.f32 %v2809, %v3102
        %v3108 = vld [vmem:[#allocation38] sm:$0x1]
        %v3110 = vlaneseq
        %v3111 = vshrl.u32 %v3110, 7
        %v3112 = vsub.s32 0, %v3111
        %v3113 = vrot.slane %v3108, %v3112
        %v3115 = vadd.f32 %v3107, %v3113
        %3116 = vst.msk [vmem:[%s1122] sm:$0xff] %vm1151, %v3115
        %s3117 = sand.u32 %s582, 1
        %s3118 = scalar_lea.sflag [#allocation4], %s3117
        %s3119 = sand.u32 %s582, 1
        %s3120 = smul.addr %s3119, 8
        %s3121 = scalar_lea.vmem [#allocation40], %s3120
        %s3122 = sand.u32 %s608, 1
        %s3123 = scalar_lea.sflag [#allocation42], %s3122
        %s3124 = sand.u32 %s608, 1
        %s3125 = smul.addr %s3124, 8
        %s3126 = scalar_lea.vmem [#allocation41], %s3125
        // Predicated region
        $region213: #{transformer_layer_forward.2} parent=115 // pred_check
          %p3127 = pneg %p592
        $region214: #{transformer_layer_forward.2} parent=115 // pred_check_branch
          %3129 = sbr.rel (%p3127) target = $region216
        $region215: #{transformer_layer_forward.2} parent=115 // pred_region
          %s3131 = ssub.s32 128, 128
          %3132 = vsyncadd %s3118, %s3131
          %s3133 = smul.addr %s60, 128
          %s3134 = scalar_lea.hbm %s24, %s3133
          %s3136 = sshll.u32 %s3121, 4
          %s3137 = int_to_ptr.vmem [resolvable:$true] %s3136
          %3139 = dma.vmem_to_hbm [thread:$0]  %s3137, 128, %s3134, %s3118
        $region216: #{transformer_layer_forward.2} parent=115 // pred_fallthru
          _
        // Predicated region
        $region217: #{transformer_layer_forward.2} parent=115 // pred_check
          %p3140 = pneg %p618
        $region218: #{transformer_layer_forward.2} parent=115 // pred_check_branch
          %3142 = sbr.rel (%p3140) target = $region220
        $region219: #{transformer_layer_forward.2} parent=115 // pred_region
          %s3144 = ssub.s32 128, 128
          %3145 = vsyncadd %s3123, %s3144
          %s3146 = smul.addr %s60, 128
          %s3147 = scalar_lea.hbm %s25, %s3146
          %s3149 = sshll.u32 %s3126, 4
          %s3150 = int_to_ptr.vmem [resolvable:$true] %s3149
          %3152 = dma.vmem_to_hbm [thread:$0]  %s3150, 128, %s3147, %s3123
        $region220: #{transformer_layer_forward.2} parent=115 // pred_fallthru
          _
      $region116: #{transformer_layer_forward.2} parent=5 // pred_fallthru
        _
      %p3153 = scmp.le.s32.totalorder 2, %s55
      // Predicated region
      $region221: #{transformer_layer_forward.2} parent=5 // pred_check
        %p3154 = pneg %p3153
      $region222: #{transformer_layer_forward.2} parent=5 // pred_check_branch
        %3156 = sbr.rel (%p3154) target = $region224
      $region223: #{transformer_layer_forward.2} parent=5 // pred_region
        %s3157 = ssub.s32 %s55, 2
        // Predicated region
        $region225: #{transformer_layer_forward.2} parent=223 // pred_check
          %p3158 = pneg %p598
        $region226: #{transformer_layer_forward.2} parent=223 // pred_check_branch
          %3160 = sbr.rel (%p3158) target = $region228
        $region227: #{transformer_layer_forward.2} parent=223 // pred_region
          %s3161 = sand.u32 %s583, 1
          %s3162 = scalar_lea.sflag [#allocation4], %s3161
          %s3163 = sand.u32 %s583, 1
          %s3164 = smul.addr %s3163, 8
          %s3165 = scalar_lea.vmem [#allocation40], %s3164
          %3166 = dma.done %s3162, 128
        $region228: #{transformer_layer_forward.2} parent=223 // pred_fallthru
          _
        // Predicated region
        $region229: #{transformer_layer_forward.2} parent=223 // pred_check
          %p3167 = pneg %p624
        $region230: #{transformer_layer_forward.2} parent=223 // pred_check_branch
          %3169 = sbr.rel (%p3167) target = $region232
        $region231: #{transformer_layer_forward.2} parent=223 // pred_region
          %s3170 = sand.u32 %s609, 1
          %s3171 = scalar_lea.sflag [#allocation42], %s3170
          %s3172 = sand.u32 %s609, 1
          %s3173 = smul.addr %s3172, 8
          %s3174 = scalar_lea.vmem [#allocation41], %s3173
          %3175 = dma.done %s3171, 128
        $region232: #{transformer_layer_forward.2} parent=223 // pred_fallthru
          _
      $region224: #{transformer_layer_forward.2} parent=5 // pred_fallthru
        _
    $region6: #{transformer_layer_forward.2} parent=1 // loop_footer
      %s59 = sadd.s32 1, %s55
    $region7: #{transformer_layer_forward.2} parent=1 // loop_footer_branch
      %54 = sbr.rel target = $region3
    $region8: #{transformer_layer_forward.2} parent=1 // loop_exit
      _
    %3176 = vsyncpa [#allocation3], 1
    %s3177 = scalar_lea.sflag [#allocation3], 1
    %3178 = vsyncpa %s3177, 1
    %3179 = vsyncpa [#allocation6], 1
    %s3180 = scalar_lea.sflag [#allocation6], 1
    %3181 = vsyncpa %s3180, 1
    %3182 = vsyncpa [#allocation9], 1
    %3183 = vsyncpa [#allocation12], 1
    %3184 = vsyncpa [#allocation15], 1
    %3185 = vsyncpa [#allocation18], 1
    %3186 = vsyncpa [#allocation21], 1
    %3187 = vsyncpa [#allocation24], 1
    %3188 = vsyncpa [#allocation27], 1
    %3189 = vsyncpa [#allocation30], 1
    %3190 = vsyncpa [#allocation33], 1
    %3191 = vsyncpa [#allocation36], 1
    %3192 = vsyncpa [#allocation39], 1
    %3193 = vsyncpa [#allocation4], 1
    %s3194 = scalar_lea.sflag [#allocation4], 1
    %3195 = vsyncpa %s3194, 1
    %3196 = vsyncpa [#allocation42], 1
    %s3197 = scalar_lea.sflag [#allocation42], 1
    %3198 = vsyncpa %s3197, 1

// kernel: transformer_layer_forward.3
$region0: #{transformer_layer_forward.3}
  #allocation0 [shape = 'u32[]', space=smem, size = 0x4, offset = 0x4, fixed_abs, tag = 'smem constant byte address 0x4 - core index']
  #allocation1 [shape = 'u32[144,128]{1,0:T(1,128)}', space=vmem, size = 0x12000, scoped, tag = 'internal scratch']
  %s0 = inlined_call_operand.hbm [shape: f32[2,8,32], index: 0, kind: input, shape index: {}]
  %s1 = inlined_call_operand.hbm [shape: f32[2,10,16], index: 1, kind: input, shape index: {}]
  %s2 = inlined_call_operand.hbm [shape: f32[1,32], index: 2, kind: input, shape index: {}]
  %s3 = inlined_call_operand.hbm [shape: f32[1,32], index: 3, kind: input, shape index: {}]
  %s4 = inlined_call_operand.hbm [shape: bf16[4,32,8], index: 4, kind: input, shape index: {}]
  %s5 = inlined_call_operand.hbm [shape: f32[4,1,8], index: 5, kind: input, shape index: {}]
  %s6 = inlined_call_operand.hbm [shape: bf16[4,16,8], index: 6, kind: input, shape index: {}]
  %s7 = inlined_call_operand.hbm [shape: f32[4,1,8], index: 7, kind: input, shape index: {}]
  %s8 = inlined_call_operand.hbm [shape: bf16[4,16,8], index: 8, kind: input, shape index: {}]
  %s9 = inlined_call_operand.hbm [shape: f32[4,1,8], index: 9, kind: input, shape index: {}]
  %s10 = inlined_call_operand.hbm [shape: f32[4,1,8], index: 10, kind: input, shape index: {}]
  %s11 = inlined_call_operand.hbm [shape: f32[4,1,8], index: 11, kind: input, shape index: {}]
  %s12 = inlined_call_operand.hbm [shape: bf16[4,8,32], index: 12, kind: input, shape index: {}]
  %s13 = inlined_call_operand.hbm [shape: f32[1,32], index: 13, kind: input, shape index: {}]
  %s14 = inlined_call_operand.hbm [shape: f32[8,8], index: 14, kind: input, shape index: {}]
  %s15 = inlined_call_operand.hbm [shape: f32[8,8], index: 15, kind: input, shape index: {}]
  %s16 = inlined_call_operand.hbm [shape: f32[8,8], index: 16, kind: input, shape index: {}]
  %s17 = inlined_call_operand.hbm [shape: f32[10,8], index: 17, kind: input, shape index: {}]
  %s18 = inlined_call_operand.hbm [shape: f32[10,8], index: 18, kind: input, shape index: {}]
  %s19 = inlined_call_operand.hbm [shape: f32[1,32], index: 19, kind: input, shape index: {}]
  %s20 = inlined_call_operand.hbm [shape: f32[1,32], index: 20, kind: input, shape index: {}]
  %s21 = inlined_call_operand.hbm [shape: bf16[32,16], index: 21, kind: input, shape index: {}]
  %s22 = inlined_call_operand.hbm [shape: f32[1,16], index: 22, kind: input, shape index: {}]
  %s23 = inlined_call_operand.hbm [shape: bf16[16,32], index: 23, kind: input, shape index: {}]
  %s24 = inlined_call_operand.hbm [shape: f32[1,32], index: 24, kind: input, shape index: {}]
  %s25 = inlined_call_operand.hbm [shape: f32[2,8,32], index: 25, kind: output, shape index: {}]
  %s26 = sld [smem:[#allocation0]]
  $region233: #{transformer_layer_forward.3} parent=0
    _
  %s28 = ssub.s32 1, %s26
  %s29 = scalar_select 0, %s28, %s26
  $region1: #{transformer_layer_forward.3} parent=0
    #allocation2 [shape = 'u8[8192]{0}', space=vmem, size = 0x2000, scoped, tag = 'input window, operand 0']
    #allocation3 [shape = 's32[2]{0}', space=sflag, size = 0x8, scoped, tag = 'scoped memory for transformer_layer_forward.3']
    #allocation4 [shape = 's32[2]{0}', space=sflag, size = 0x8, scoped, tag = 'scoped memory for transformer_layer_forward.3']
    #allocation5 [shape = 'u8[16384]{0}', space=vmem, size = 0x4000, scoped, tag = 'input window, operand 1']
    #allocation6 [shape = 's32[2]{0}', space=sflag, size = 0x8, scoped, tag = 'scoped memory for transformer_layer_forward.3']
    #allocation7 [shape = 'u8[512]{0}', space=vmem, size = 0x400, scoped, tag = 'input window, operand 2, single buffered']
    #allocation8 [shape = 'u8[512]{0}', space=vmem, size = 0x400, scoped, tag = 'input window, operand 3, single buffered']
    #allocation9 [shape = 's32[1]{0}', space=sflag, size = 0x4, scoped, tag = 'scoped memory for transformer_layer_forward.3']
    #allocation10 [shape = 'u8[32768]{0}', space=vmem, size = 0x8000, scoped, tag = 'input window, operand 4, single buffered']
    #allocation11 [shape = 'u8[2048]{0}', space=vmem, size = 0x800, scoped, tag = 'input window, operand 5, single buffered']
    #allocation12 [shape = 's32[1]{0}', space=sflag, size = 0x4, scoped, tag = 'scoped memory for transformer_layer_forward.3']
    #allocation13 [shape = 'u8[16384]{0}', space=vmem, size = 0x4000, scoped, tag = 'input window, operand 6, single buffered']
    #allocation14 [shape = 'u8[2048]{0}', space=vmem, size = 0x800, scoped, tag = 'input window, operand 7, single buffered']
    #allocation15 [shape = 's32[1]{0}', space=sflag, size = 0x4, scoped, tag = 'scoped memory for transformer_layer_forward.3']
    #allocation16 [shape = 'u8[16384]{0}', space=vmem, size = 0x4000, scoped, tag = 'input window, operand 8, single buffered']
    #allocation17 [shape = 'u8[2048]{0}', space=vmem, size = 0x800, scoped, tag = 'input window, operand 9, single buffered']
    #allocation18 [shape = 's32[1]{0}', space=sflag, size = 0x4, scoped, tag = 'scoped memory for transformer_layer_forward.3']
    #allocation19 [shape = 'u8[2048]{0}', space=vmem, size = 0x800, scoped, tag = 'input window, operand 10, single buffered']
    #allocation20 [shape = 'u8[2048]{0}', space=vmem, size = 0x800, scoped, tag = 'input window, operand 11, single buffered']
    #allocation21 [shape = 's32[1]{0}', space=sflag, size = 0x4, scoped, tag = 'scoped memory for transformer_layer_forward.3']
    #allocation22 [shape = 'u8[8192]{0}', space=vmem, size = 0x2000, scoped, tag = 'input window, operand 12, single buffered']
    #allocation23 [shape = 'u8[512]{0}', space=vmem, size = 0x400, scoped, tag = 'input window, operand 13, single buffered']
    #allocation24 [shape = 's32[1]{0}', space=sflag, size = 0x4, scoped, tag = 'scoped memory for transformer_layer_forward.3']
    #allocation25 [shape = 'u8[4096]{0}', space=vmem, size = 0x1000, scoped, tag = 'input window, operand 14, single buffered']
    #allocation26 [shape = 'u8[4096]{0}', space=vmem, size = 0x1000, scoped, tag = 'input window, operand 15, single buffered']
    #allocation27 [shape = 's32[1]{0}', space=sflag, size = 0x4, scoped, tag = 'scoped memory for transformer_layer_forward.3']
    #allocation28 [shape = 'u8[4096]{0}', space=vmem, size = 0x1000, scoped, tag = 'input window, operand 16, single buffered']
    #allocation29 [shape = 'u8[8192]{0}', space=vmem, size = 0x2000, scoped, tag = 'input window, operand 17, single buffered']
    #allocation30 [shape = 's32[1]{0}', space=sflag, size = 0x4, scoped, tag = 'scoped memory for transformer_layer_forward.3']
    #allocation31 [shape = 'u8[8192]{0}', space=vmem, size = 0x2000, scoped, tag = 'input window, operand 18, single buffered']
    #allocation32 [shape = 'u8[512]{0}', space=vmem, size = 0x400, scoped, tag = 'input window, operand 19, single buffered']
    #allocation33 [shape = 's32[1]{0}', space=sflag, size = 0x4, scoped, tag = 'scoped memory for transformer_layer_forward.3']
    #allocation34 [shape = 'u8[512]{0}', space=vmem, size = 0x400, scoped, tag = 'input window, operand 20, single buffered']
    #allocation35 [shape = 'u8[8192]{0}', space=vmem, size = 0x2000, scoped, tag = 'input window, operand 21, single buffered']
    #allocation36 [shape = 's32[1]{0}', space=sflag, size = 0x4, scoped, tag = 'scoped memory for transformer_layer_forward.3']
    #allocation37 [shape = 'u8[512]{0}', space=vmem, size = 0x400, scoped, tag = 'input window, operand 22, single buffered']
    #allocation38 [shape = 'u8[4096]{0}', space=vmem, size = 0x1000, scoped, tag = 'input window, operand 23, single buffered']
    #allocation39 [shape = 's32[1]{0}', space=sflag, size = 0x4, scoped, tag = 'scoped memory for transformer_layer_forward.3']
    #allocation40 [shape = 'u8[512]{0}', space=vmem, size = 0x400, scoped, tag = 'input window, operand 24, single buffered']
    #allocation41 [shape = 'u8[8192]{0}', space=vmem, size = 0x2000, scoped, tag = 'output window, operand 0']
    %30 = vsyncpa [#allocation3], 0
    %s31 = scalar_lea.sflag [#allocation3], 1
    %32 = vsyncpa %s31, 0
    %33 = vsyncpa [#allocation6], 0
    %s34 = scalar_lea.sflag [#allocation6], 1
    %35 = vsyncpa %s34, 0
    %36 = vsyncpa [#allocation9], 0
    %37 = vsyncpa [#allocation12], 0
    %38 = vsyncpa [#allocation15], 0
    %39 = vsyncpa [#allocation18], 0
    %40 = vsyncpa [#allocation21], 0
    %41 = vsyncpa [#allocation24], 0
    %42 = vsyncpa [#allocation27], 0
    %43 = vsyncpa [#allocation30], 0
    %44 = vsyncpa [#allocation33], 0
    %45 = vsyncpa [#allocation36], 0
    %46 = vsyncpa [#allocation39], 0
    %47 = vsyncpa [#allocation4], 0
    %s48 = scalar_lea.sflag [#allocation4], 1
    %49 = vsyncpa %s48, 0
    loop: start=0, step=1, limit=4
    $region2: #{transformer_layer_forward.3} parent=1 // loop_pre_header
      _
    $region3: #{transformer_layer_forward.3} parent=1 // loop_header
      %s51 = sphi 0, %s55
      %p52 = scmp.ge.s32.totalorder %s51, 4
      %s61 = sphi 0, %s63
      %s64 = sphi 0, %s61
      %s65 = sphi 0, %s64
      %s81 = sphi 0, %s65
      %s87 = sphi 0, %s89
      %s90 = sphi 0, %s87
      %s91 = sphi 0, %s90
      %s107 = sphi 0, %s91
      %s111 = sphi 0, %s111
      %s113 = sphi 0, %s111
      %s114 = sphi 0, %s113
      %s128 = sphi 0, %s114
      %s132 = sphi 0, %s132
      %s134 = sphi 0, %s132
      %s135 = sphi 0, %s134
      %s149 = sphi 0, %s135
      %s153 = sphi 0, %s153
      %s155 = sphi 0, %s153
      %s156 = sphi 0, %s155
      %s170 = sphi 0, %s156
      %s174 = sphi 0, %s174
      %s176 = sphi 0, %s174
      %s177 = sphi 0, %s176
      %s191 = sphi 0, %s177
      %s195 = sphi 0, %s195
      %s197 = sphi 0, %s195
      %s198 = sphi 0, %s197
      %s212 = sphi 0, %s198
      %s216 = sphi 0, %s216
      %s218 = sphi 0, %s216
      %s219 = sphi 0, %s218
      %s233 = sphi 0, %s219
      %s237 = sphi 0, %s237
      %s239 = sphi 0, %s237
      %s240 = sphi 0, %s239
      %s254 = sphi 0, %s240
      %s258 = sphi 0, %s258
      %s260 = sphi 0, %s258
      %s261 = sphi 0, %s260
      %s275 = sphi 0, %s261
      %s279 = sphi 0, %s279
      %s281 = sphi 0, %s279
      %s282 = sphi 0, %s281
      %s296 = sphi 0, %s282
      %s300 = sphi 0, %s300
      %s302 = sphi 0, %s300
      %s303 = sphi 0, %s302
      %s317 = sphi 0, %s303
      %s321 = sphi 0, %s321
      %s323 = sphi 0, %s321
      %s324 = sphi 0, %s323
      %s338 = sphi 0, %s324
      %s342 = sphi 0, %s342
      %s344 = sphi 0, %s342
      %s345 = sphi 0, %s344
      %s359 = sphi 0, %s345
      %s363 = sphi 0, %s363
      %s365 = sphi 0, %s363
      %s366 = sphi 0, %s365
      %s380 = sphi 0, %s366
      %s384 = sphi 0, %s384
      %s386 = sphi 0, %s384
      %s387 = sphi 0, %s386
      %s401 = sphi 0, %s387
      %s405 = sphi 0, %s405
      %s407 = sphi 0, %s405
      %s408 = sphi 0, %s407
      %s422 = sphi 0, %s408
      %s426 = sphi 0, %s426
      %s428 = sphi 0, %s426
      %s429 = sphi 0, %s428
      %s443 = sphi 0, %s429
      %s447 = sphi 0, %s447
      %s449 = sphi 0, %s447
      %s450 = sphi 0, %s449
      %s464 = sphi 0, %s450
      %s468 = sphi 0, %s468
      %s470 = sphi 0, %s468
      %s471 = sphi 0, %s470
      %s485 = sphi 0, %s471
      %s489 = sphi 0, %s489
      %s491 = sphi 0, %s489
      %s492 = sphi 0, %s491
      %s506 = sphi 0, %s492
      %s510 = sphi 0, %s510
      %s512 = sphi 0, %s510
      %s513 = sphi 0, %s512
      %s527 = sphi 0, %s513
      %s531 = sphi 0, %s531
      %s533 = sphi 0, %s531
      %s534 = sphi 0, %s533
      %s548 = sphi 0, %s534
      %s552 = sphi 0, %s552
      %s554 = sphi 0, %s552
      %s555 = sphi 0, %s554
      %s569 = sphi 0, %s555
      %s573 = sphi 0, %s573
      %s575 = sphi 0, %s573
      %s576 = sphi 0, %s575
      %s590 = sphi 0, %s576
      %s596 = sphi 0, %s598
      %s599 = sphi 0, %s596
      %s600 = sphi 0, %s599
      %s616 = sphi 0, %s600
    $region4: #{transformer_layer_forward.3} parent=1 // loop_header_branch
      %54 = sbr.rel (%p52) target = $region8
    $region5: #{transformer_layer_forward.3} parent=1 // loop_body
      %s56 = ssub.s32 %s51, 1
      %s57 = ssub.s32 %s51, 2
      %s58 = sadd.s32 %s51, 1
      %s59 = ssub.s32 %s51, %s58
      %p60 = scmp.eq.s32.totalorder %s59, 0
      %s62 = sadd.s32 %s61, 1
      %s63 = scalar_select %p60, %s61, %s62
      %p66 = pneg %p60
      %p67 = scmp.eq.s32.totalorder %s51, 1
      %p68 = por %p66, %p67
      %p69 = scmp.ne.s32.totalorder %s61, %s64
      %p70 = scmp.eq.s32.totalorder %s51, 0
      %p71 = por %p69, %p70
      %p72 = scmp.ne.s32.totalorder %s61, %s64
      %p73 = scmp.eq.s32.totalorder %s56, 1
      %p74 = por %p72, %p73
      %p75 = scmp.ne.s32.totalorder %s64, %s65
      %p76 = scmp.eq.s32.totalorder %s56, 0
      %p77 = por %p75, %p76
      %p78 = scmp.ne.s32.totalorder %s64, %s65
      %p79 = scmp.eq.s32.totalorder %s57, 1
      %p80 = por %p78, %p79
      %p82 = scmp.ne.s32.totalorder %s65, %s81
      %p83 = scmp.eq.s32.totalorder %s57, 0
      %p84 = por %p82, %p83
      %s85 = ssub.s32 %s51, %s58
      %p86 = scmp.eq.s32.totalorder %s85, 0
      %s88 = sadd.s32 %s87, 1
      %s89 = scalar_select %p86, %s87, %s88
      %p92 = pneg %p86
      %p93 = scmp.eq.s32.totalorder %s51, 1
      %p94 = por %p92, %p93
      %p95 = scmp.ne.s32.totalorder %s87, %s90
      %p96 = scmp.eq.s32.totalorder %s51, 0
      %p97 = por %p95, %p96
      %p98 = scmp.ne.s32.totalorder %s87, %s90
      %p99 = scmp.eq.s32.totalorder %s56, 1
      %p100 = por %p98, %p99
      %p101 = scmp.ne.s32.totalorder %s90, %s91
      %p102 = scmp.eq.s32.totalorder %s56, 0
      %p103 = por %p101, %p102
      %p104 = scmp.ne.s32.totalorder %s90, %s91
      %p105 = scmp.eq.s32.totalorder %s57, 1
      %p106 = por %p104, %p105
      %p108 = scmp.ne.s32.totalorder %s91, %s107
      %p109 = scmp.eq.s32.totalorder %s57, 0
      %p110 = por %p108, %p109
      %s112 = sadd.s32 %s111, 1
      %p115 = scmp.eq.s32.totalorder %s51, 1
      %p116 = scmp.ne.s32.totalorder %s111, %s113
      %p117 = scmp.eq.s32.totalorder %s51, 0
      %p118 = por %p116, %p117
      %p119 = scmp.ne.s32.totalorder %s111, %s113
      %p120 = scmp.eq.s32.totalorder %s56, 1
      %p121 = por %p119, %p120
      %p122 = scmp.ne.s32.totalorder %s113, %s114
      %p123 = scmp.eq.s32.totalorder %s56, 0
      %p124 = por %p122, %p123
      %p125 = scmp.ne.s32.totalorder %s113, %s114
      %p126 = scmp.eq.s32.totalorder %s57, 1
      %p127 = por %p125, %p126
      %p129 = scmp.ne.s32.totalorder %s114, %s128
      %p130 = scmp.eq.s32.totalorder %s57, 0
      %p131 = por %p129, %p130
      %s133 = sadd.s32 %s132, 1
      %p136 = scmp.eq.s32.totalorder %s51, 1
      %p137 = scmp.ne.s32.totalorder %s132, %s134
      %p138 = scmp.eq.s32.totalorder %s51, 0
      %p139 = por %p137, %p138
      %p140 = scmp.ne.s32.totalorder %s132, %s134
      %p141 = scmp.eq.s32.totalorder %s56, 1
      %p142 = por %p140, %p141
      %p143 = scmp.ne.s32.totalorder %s134, %s135
      %p144 = scmp.eq.s32.totalorder %s56, 0
      %p145 = por %p143, %p144
      %p146 = scmp.ne.s32.totalorder %s134, %s135
      %p147 = scmp.eq.s32.totalorder %s57, 1
      %p148 = por %p146, %p147
      %p150 = scmp.ne.s32.totalorder %s135, %s149
      %p151 = scmp.eq.s32.totalorder %s57, 0
      %p152 = por %p150, %p151
      %s154 = sadd.s32 %s153, 1
      %p157 = scmp.eq.s32.totalorder %s51, 1
      %p158 = scmp.ne.s32.totalorder %s153, %s155
      %p159 = scmp.eq.s32.totalorder %s51, 0
      %p160 = por %p158, %p159
      %p161 = scmp.ne.s32.totalorder %s153, %s155
      %p162 = scmp.eq.s32.totalorder %s56, 1
      %p163 = por %p161, %p162
      %p164 = scmp.ne.s32.totalorder %s155, %s156
      %p165 = scmp.eq.s32.totalorder %s56, 0
      %p166 = por %p164, %p165
      %p167 = scmp.ne.s32.totalorder %s155, %s156
      %p168 = scmp.eq.s32.totalorder %s57, 1
      %p169 = por %p167, %p168
      %p171 = scmp.ne.s32.totalorder %s156, %s170
      %p172 = scmp.eq.s32.totalorder %s57, 0
      %p173 = por %p171, %p172
      %s175 = sadd.s32 %s174, 1
      %p178 = scmp.eq.s32.totalorder %s51, 1
      %p179 = scmp.ne.s32.totalorder %s174, %s176
      %p180 = scmp.eq.s32.totalorder %s51, 0
      %p181 = por %p179, %p180
      %p182 = scmp.ne.s32.totalorder %s174, %s176
      %p183 = scmp.eq.s32.totalorder %s56, 1
      %p184 = por %p182, %p183
      %p185 = scmp.ne.s32.totalorder %s176, %s177
      %p186 = scmp.eq.s32.totalorder %s56, 0
      %p187 = por %p185, %p186
      %p188 = scmp.ne.s32.totalorder %s176, %s177
      %p189 = scmp.eq.s32.totalorder %s57, 1
      %p190 = por %p188, %p189
      %p192 = scmp.ne.s32.totalorder %s177, %s191
      %p193 = scmp.eq.s32.totalorder %s57, 0
      %p194 = por %p192, %p193
      %s196 = sadd.s32 %s195, 1
      %p199 = scmp.eq.s32.totalorder %s51, 1
      %p200 = scmp.ne.s32.totalorder %s195, %s197
      %p201 = scmp.eq.s32.totalorder %s51, 0
      %p202 = por %p200, %p201
      %p203 = scmp.ne.s32.totalorder %s195, %s197
      %p204 = scmp.eq.s32.totalorder %s56, 1
      %p205 = por %p203, %p204
      %p206 = scmp.ne.s32.totalorder %s197, %s198
      %p207 = scmp.eq.s32.totalorder %s56, 0
      %p208 = por %p206, %p207
      %p209 = scmp.ne.s32.totalorder %s197, %s198
      %p210 = scmp.eq.s32.totalorder %s57, 1
      %p211 = por %p209, %p210
      %p213 = scmp.ne.s32.totalorder %s198, %s212
      %p214 = scmp.eq.s32.totalorder %s57, 0
      %p215 = por %p213, %p214
      %s217 = sadd.s32 %s216, 1
      %p220 = scmp.eq.s32.totalorder %s51, 1
      %p221 = scmp.ne.s32.totalorder %s216, %s218
      %p222 = scmp.eq.s32.totalorder %s51, 0
      %p223 = por %p221, %p222
      %p224 = scmp.ne.s32.totalorder %s216, %s218
      %p225 = scmp.eq.s32.totalorder %s56, 1
      %p226 = por %p224, %p225
      %p227 = scmp.ne.s32.totalorder %s218, %s219
      %p228 = scmp.eq.s32.totalorder %s56, 0
      %p229 = por %p227, %p228
      %p230 = scmp.ne.s32.totalorder %s218, %s219
      %p231 = scmp.eq.s32.totalorder %s57, 1
      %p232 = por %p230, %p231
      %p234 = scmp.ne.s32.totalorder %s219, %s233
      %p235 = scmp.eq.s32.totalorder %s57, 0
      %p236 = por %p234, %p235
      %s238 = sadd.s32 %s237, 1
      %p241 = scmp.eq.s32.totalorder %s51, 1
      %p242 = scmp.ne.s32.totalorder %s237, %s239
      %p243 = scmp.eq.s32.totalorder %s51, 0
      %p244 = por %p242, %p243
      %p245 = scmp.ne.s32.totalorder %s237, %s239
      %p246 = scmp.eq.s32.totalorder %s56, 1
      %p247 = por %p245, %p246
      %p248 = scmp.ne.s32.totalorder %s239, %s240
      %p249 = scmp.eq.s32.totalorder %s56, 0
      %p250 = por %p248, %p249
      %p251 = scmp.ne.s32.totalorder %s239, %s240
      %p252 = scmp.eq.s32.totalorder %s57, 1
      %p253 = por %p251, %p252
      %p255 = scmp.ne.s32.totalorder %s240, %s254
      %p256 = scmp.eq.s32.totalorder %s57, 0
      %p257 = por %p255, %p256
      %s259 = sadd.s32 %s258, 1
      %p262 = scmp.eq.s32.totalorder %s51, 1
      %p263 = scmp.ne.s32.totalorder %s258, %s260
      %p264 = scmp.eq.s32.totalorder %s51, 0
      %p265 = por %p263, %p264
      %p266 = scmp.ne.s32.totalorder %s258, %s260
      %p267 = scmp.eq.s32.totalorder %s56, 1
      %p268 = por %p266, %p267
      %p269 = scmp.ne.s32.totalorder %s260, %s261
      %p270 = scmp.eq.s32.totalorder %s56, 0
      %p271 = por %p269, %p270
      %p272 = scmp.ne.s32.totalorder %s260, %s261
      %p273 = scmp.eq.s32.totalorder %s57, 1
      %p274 = por %p272, %p273
      %p276 = scmp.ne.s32.totalorder %s261, %s275
      %p277 = scmp.eq.s32.totalorder %s57, 0
      %p278 = por %p276, %p277
      %s280 = sadd.s32 %s279, 1
      %p283 = scmp.eq.s32.totalorder %s51, 1
      %p284 = scmp.ne.s32.totalorder %s279, %s281
      %p285 = scmp.eq.s32.totalorder %s51, 0
      %p286 = por %p284, %p285
      %p287 = scmp.ne.s32.totalorder %s279, %s281
      %p288 = scmp.eq.s32.totalorder %s56, 1
      %p289 = por %p287, %p288
      %p290 = scmp.ne.s32.totalorder %s281, %s282
      %p291 = scmp.eq.s32.totalorder %s56, 0
      %p292 = por %p290, %p291
      %p293 = scmp.ne.s32.totalorder %s281, %s282
      %p294 = scmp.eq.s32.totalorder %s57, 1
      %p295 = por %p293, %p294
      %p297 = scmp.ne.s32.totalorder %s282, %s296
      %p298 = scmp.eq.s32.totalorder %s57, 0
      %p299 = por %p297, %p298
      %s301 = sadd.s32 %s300, 1
      %p304 = scmp.eq.s32.totalorder %s51, 1
      %p305 = scmp.ne.s32.totalorder %s300, %s302
      %p306 = scmp.eq.s32.totalorder %s51, 0
      %p307 = por %p305, %p306
      %p308 = scmp.ne.s32.totalorder %s300, %s302
      %p309 = scmp.eq.s32.totalorder %s56, 1
      %p310 = por %p308, %p309
      %p311 = scmp.ne.s32.totalorder %s302, %s303
      %p312 = scmp.eq.s32.totalorder %s56, 0
      %p313 = por %p311, %p312
      %p314 = scmp.ne.s32.totalorder %s302, %s303
      %p315 = scmp.eq.s32.totalorder %s57, 1
      %p316 = por %p314, %p315
      %p318 = scmp.ne.s32.totalorder %s303, %s317
      %p319 = scmp.eq.s32.totalorder %s57, 0
      %p320 = por %p318, %p319
      %s322 = sadd.s32 %s321, 1
      %p325 = scmp.eq.s32.totalorder %s51, 1
      %p326 = scmp.ne.s32.totalorder %s321, %s323
      %p327 = scmp.eq.s32.totalorder %s51, 0
      %p328 = por %p326, %p327
      %p329 = scmp.ne.s32.totalorder %s321, %s323
      %p330 = scmp.eq.s32.totalorder %s56, 1
      %p331 = por %p329, %p330
      %p332 = scmp.ne.s32.totalorder %s323, %s324
      %p333 = scmp.eq.s32.totalorder %s56, 0
      %p334 = por %p332, %p333
      %p335 = scmp.ne.s32.totalorder %s323, %s324
      %p336 = scmp.eq.s32.totalorder %s57, 1
      %p337 = por %p335, %p336
      %p339 = scmp.ne.s32.totalorder %s324, %s338
      %p340 = scmp.eq.s32.totalorder %s57, 0
      %p341 = por %p339, %p340
      %s343 = sadd.s32 %s342, 1
      %p346 = scmp.eq.s32.totalorder %s51, 1
      %p347 = scmp.ne.s32.totalorder %s342, %s344
      %p348 = scmp.eq.s32.totalorder %s51, 0
      %p349 = por %p347, %p348
      %p350 = scmp.ne.s32.totalorder %s342, %s344
      %p351 = scmp.eq.s32.totalorder %s56, 1
      %p352 = por %p350, %p351
      %p353 = scmp.ne.s32.totalorder %s344, %s345
      %p354 = scmp.eq.s32.totalorder %s56, 0
      %p355 = por %p353, %p354
      %p356 = scmp.ne.s32.totalorder %s344, %s345
      %p357 = scmp.eq.s32.totalorder %s57, 1
      %p358 = por %p356, %p357
      %p360 = scmp.ne.s32.totalorder %s345, %s359
      %p361 = scmp.eq.s32.totalorder %s57, 0
      %p362 = por %p360, %p361
      %s364 = sadd.s32 %s363, 1
      %p367 = scmp.eq.s32.totalorder %s51, 1
      %p368 = scmp.ne.s32.totalorder %s363, %s365
      %p369 = scmp.eq.s32.totalorder %s51, 0
      %p370 = por %p368, %p369
      %p371 = scmp.ne.s32.totalorder %s363, %s365
      %p372 = scmp.eq.s32.totalorder %s56, 1
      %p373 = por %p371, %p372
      %p374 = scmp.ne.s32.totalorder %s365, %s366
      %p375 = scmp.eq.s32.totalorder %s56, 0
      %p376 = por %p374, %p375
      %p377 = scmp.ne.s32.totalorder %s365, %s366
      %p378 = scmp.eq.s32.totalorder %s57, 1
      %p379 = por %p377, %p378
      %p381 = scmp.ne.s32.totalorder %s366, %s380
      %p382 = scmp.eq.s32.totalorder %s57, 0
      %p383 = por %p381, %p382
      %s385 = sadd.s32 %s384, 1
      %p388 = scmp.eq.s32.totalorder %s51, 1
      %p389 = scmp.ne.s32.totalorder %s384, %s386
      %p390 = scmp.eq.s32.totalorder %s51, 0
      %p391 = por %p389, %p390
      %p392 = scmp.ne.s32.totalorder %s384, %s386
      %p393 = scmp.eq.s32.totalorder %s56, 1
      %p394 = por %p392, %p393
      %p395 = scmp.ne.s32.totalorder %s386, %s387
      %p396 = scmp.eq.s32.totalorder %s56, 0
      %p397 = por %p395, %p396
      %p398 = scmp.ne.s32.totalorder %s386, %s387
      %p399 = scmp.eq.s32.totalorder %s57, 1
      %p400 = por %p398, %p399
      %p402 = scmp.ne.s32.totalorder %s387, %s401
      %p403 = scmp.eq.s32.totalorder %s57, 0
      %p404 = por %p402, %p403
      %s406 = sadd.s32 %s405, 1
      %p409 = scmp.eq.s32.totalorder %s51, 1
      %p410 = scmp.ne.s32.totalorder %s405, %s407
      %p411 = scmp.eq.s32.totalorder %s51, 0
      %p412 = por %p410, %p411
      %p413 = scmp.ne.s32.totalorder %s405, %s407
      %p414 = scmp.eq.s32.totalorder %s56, 1
      %p415 = por %p413, %p414
      %p416 = scmp.ne.s32.totalorder %s407, %s408
      %p417 = scmp.eq.s32.totalorder %s56, 0
      %p418 = por %p416, %p417
      %p419 = scmp.ne.s32.totalorder %s407, %s408
      %p420 = scmp.eq.s32.totalorder %s57, 1
      %p421 = por %p419, %p420
      %p423 = scmp.ne.s32.totalorder %s408, %s422
      %p424 = scmp.eq.s32.totalorder %s57, 0
      %p425 = por %p423, %p424
      %s427 = sadd.s32 %s426, 1
      %p430 = scmp.eq.s32.totalorder %s51, 1
      %p431 = scmp.ne.s32.totalorder %s426, %s428
      %p432 = scmp.eq.s32.totalorder %s51, 0
      %p433 = por %p431, %p432
      %p434 = scmp.ne.s32.totalorder %s426, %s428
      %p435 = scmp.eq.s32.totalorder %s56, 1
      %p436 = por %p434, %p435
      %p437 = scmp.ne.s32.totalorder %s428, %s429
      %p438 = scmp.eq.s32.totalorder %s56, 0
      %p439 = por %p437, %p438
      %p440 = scmp.ne.s32.totalorder %s428, %s429
      %p441 = scmp.eq.s32.totalorder %s57, 1
      %p442 = por %p440, %p441
      %p444 = scmp.ne.s32.totalorder %s429, %s443
      %p445 = scmp.eq.s32.totalorder %s57, 0
      %p446 = por %p444, %p445
      %s448 = sadd.s32 %s447, 1
      %p451 = scmp.eq.s32.totalorder %s51, 1
      %p452 = scmp.ne.s32.totalorder %s447, %s449
      %p453 = scmp.eq.s32.totalorder %s51, 0
      %p454 = por %p452, %p453
      %p455 = scmp.ne.s32.totalorder %s447, %s449
      %p456 = scmp.eq.s32.totalorder %s56, 1
      %p457 = por %p455, %p456
      %p458 = scmp.ne.s32.totalorder %s449, %s450
      %p459 = scmp.eq.s32.totalorder %s56, 0
      %p460 = por %p458, %p459
      %p461 = scmp.ne.s32.totalorder %s449, %s450
      %p462 = scmp.eq.s32.totalorder %s57, 1
      %p463 = por %p461, %p462
      %p465 = scmp.ne.s32.totalorder %s450, %s464
      %p466 = scmp.eq.s32.totalorder %s57, 0
      %p467 = por %p465, %p466
      %s469 = sadd.s32 %s468, 1
      %p472 = scmp.eq.s32.totalorder %s51, 1
      %p473 = scmp.ne.s32.totalorder %s468, %s470
      %p474 = scmp.eq.s32.totalorder %s51, 0
      %p475 = por %p473, %p474
      %p476 = scmp.ne.s32.totalorder %s468, %s470
      %p477 = scmp.eq.s32.totalorder %s56, 1
      %p478 = por %p476, %p477
      %p479 = scmp.ne.s32.totalorder %s470, %s471
      %p480 = scmp.eq.s32.totalorder %s56, 0
      %p481 = por %p479, %p480
      %p482 = scmp.ne.s32.totalorder %s470, %s471
      %p483 = scmp.eq.s32.totalorder %s57, 1
      %p484 = por %p482, %p483
      %p486 = scmp.ne.s32.totalorder %s471, %s485
      %p487 = scmp.eq.s32.totalorder %s57, 0
      %p488 = por %p486, %p487
      %s490 = sadd.s32 %s489, 1
      %p493 = scmp.eq.s32.totalorder %s51, 1
      %p494 = scmp.ne.s32.totalorder %s489, %s491
      %p495 = scmp.eq.s32.totalorder %s51, 0
      %p496 = por %p494, %p495
      %p497 = scmp.ne.s32.totalorder %s489, %s491
      %p498 = scmp.eq.s32.totalorder %s56, 1
      %p499 = por %p497, %p498
      %p500 = scmp.ne.s32.totalorder %s491, %s492
      %p501 = scmp.eq.s32.totalorder %s56, 0
      %p502 = por %p500, %p501
      %p503 = scmp.ne.s32.totalorder %s491, %s492
      %p504 = scmp.eq.s32.totalorder %s57, 1
      %p505 = por %p503, %p504
      %p507 = scmp.ne.s32.totalorder %s492, %s506
      %p508 = scmp.eq.s32.totalorder %s57, 0
      %p509 = por %p507, %p508
      %s511 = sadd.s32 %s510, 1
      %p514 = scmp.eq.s32.totalorder %s51, 1
      %p515 = scmp.ne.s32.totalorder %s510, %s512
      %p516 = scmp.eq.s32.totalorder %s51, 0
      %p517 = por %p515, %p516
      %p518 = scmp.ne.s32.totalorder %s510, %s512
      %p519 = scmp.eq.s32.totalorder %s56, 1
      %p520 = por %p518, %p519
      %p521 = scmp.ne.s32.totalorder %s512, %s513
      %p522 = scmp.eq.s32.totalorder %s56, 0
      %p523 = por %p521, %p522
      %p524 = scmp.ne.s32.totalorder %s512, %s513
      %p525 = scmp.eq.s32.totalorder %s57, 1
      %p526 = por %p524, %p525
      %p528 = scmp.ne.s32.totalorder %s513, %s527
      %p529 = scmp.eq.s32.totalorder %s57, 0
      %p530 = por %p528, %p529
      %s532 = sadd.s32 %s531, 1
      %p535 = scmp.eq.s32.totalorder %s51, 1
      %p536 = scmp.ne.s32.totalorder %s531, %s533
      %p537 = scmp.eq.s32.totalorder %s51, 0
      %p538 = por %p536, %p537
      %p539 = scmp.ne.s32.totalorder %s531, %s533
      %p540 = scmp.eq.s32.totalorder %s56, 1
      %p541 = por %p539, %p540
      %p542 = scmp.ne.s32.totalorder %s533, %s534
      %p543 = scmp.eq.s32.totalorder %s56, 0
      %p544 = por %p542, %p543
      %p545 = scmp.ne.s32.totalorder %s533, %s534
      %p546 = scmp.eq.s32.totalorder %s57, 1
      %p547 = por %p545, %p546
      %p549 = scmp.ne.s32.totalorder %s534, %s548
      %p550 = scmp.eq.s32.totalorder %s57, 0
      %p551 = por %p549, %p550
      %s553 = sadd.s32 %s552, 1
      %p556 = scmp.eq.s32.totalorder %s51, 1
      %p557 = scmp.ne.s32.totalorder %s552, %s554
      %p558 = scmp.eq.s32.totalorder %s51, 0
      %p559 = por %p557, %p558
      %p560 = scmp.ne.s32.totalorder %s552, %s554
      %p561 = scmp.eq.s32.totalorder %s56, 1
      %p562 = por %p560, %p561
      %p563 = scmp.ne.s32.totalorder %s554, %s555
      %p564 = scmp.eq.s32.totalorder %s56, 0
      %p565 = por %p563, %p564
      %p566 = scmp.ne.s32.totalorder %s554, %s555
      %p567 = scmp.eq.s32.totalorder %s57, 1
      %p568 = por %p566, %p567
      %p570 = scmp.ne.s32.totalorder %s555, %s569
      %p571 = scmp.eq.s32.totalorder %s57, 0
      %p572 = por %p570, %p571
      %s574 = sadd.s32 %s573, 1
      %p577 = scmp.eq.s32.totalorder %s51, 1
      %p578 = scmp.ne.s32.totalorder %s573, %s575
      %p579 = scmp.eq.s32.totalorder %s51, 0
      %p580 = por %p578, %p579
      %p581 = scmp.ne.s32.totalorder %s573, %s575
      %p582 = scmp.eq.s32.totalorder %s56, 1
      %p583 = por %p581, %p582
      %p584 = scmp.ne.s32.totalorder %s575, %s576
      %p585 = scmp.eq.s32.totalorder %s56, 0
      %p586 = por %p584, %p585
      %p587 = scmp.ne.s32.totalorder %s575, %s576
      %p588 = scmp.eq.s32.totalorder %s57, 1
      %p589 = por %p587, %p588
      %p591 = scmp.ne.s32.totalorder %s576, %s590
      %p592 = scmp.eq.s32.totalorder %s57, 0
      %p593 = por %p591, %p592
      %s594 = ssub.s32 %s51, %s58
      %p595 = scmp.eq.s32.totalorder %s594, 0
      %s597 = sadd.s32 %s596, 1
      %s598 = scalar_select %p595, %s596, %s597
      %p601 = pneg %p595
      %p602 = scmp.eq.s32.totalorder %s51, 1
      %p603 = por %p601, %p602
      %p604 = scmp.ne.s32.totalorder %s596, %s599
      %p605 = scmp.eq.s32.totalorder %s51, 0
      %p606 = por %p604, %p605
      %p607 = scmp.ne.s32.totalorder %s596, %s599
      %p608 = scmp.eq.s32.totalorder %s56, 1
      %p609 = por %p607, %p608
      %p610 = scmp.ne.s32.totalorder %s599, %s600
      %p611 = scmp.eq.s32.totalorder %s56, 0
      %p612 = por %p610, %p611
      %p613 = scmp.ne.s32.totalorder %s599, %s600
      %p614 = scmp.eq.s32.totalorder %s57, 1
      %p615 = por %p613, %p614
      %p617 = scmp.ne.s32.totalorder %s600, %s616
      %p618 = scmp.eq.s32.totalorder %s57, 0
      %p619 = por %p617, %p618
      %p620 = scmp.le.s32.totalorder 1, %s51
      %p621 = scmp.lt.s32.totalorder %s51, 3
      %p622 = pnand %p620, %p621
      %p623 = pneg %p622
      // Predicated region
      $region9: #{transformer_layer_forward.3} parent=5 // pred_check
        _
      $region10: #{transformer_layer_forward.3} parent=5 // pred_check_branch
        %625 = sbr.rel (%p622) target = $region12
      $region11: #{transformer_layer_forward.3} parent=5 // pred_region
        %s626 = ssub.s32 %s51, 1
        // Predicated region
        $region13: #{transformer_layer_forward.3} parent=11 // pred_check
          %p627 = pneg %p124
        $region14: #{transformer_layer_forward.3} parent=11 // pred_check_branch
          %629 = sbr.rel (%p627) target = $region16
        $region15: #{transformer_layer_forward.3} parent=11 // pred_region
          %s631 = ssub.s32 16, 16
          %632 = vsyncadd [#allocation6], %s631
          %s634 = sshll.u32 [#allocation7], 4
          %s635 = int_to_ptr.vmem [resolvable:$true] %s634
          %637 = dma.hbm_to_vmem [thread:$0]  %s2, 16, %s635, [#allocation6]
        $region16: #{transformer_layer_forward.3} parent=11 // pred_fallthru
          _
        // Predicated region
        $region17: #{transformer_layer_forward.3} parent=11 // pred_check
          %p638 = pneg %p145
        $region18: #{transformer_layer_forward.3} parent=11 // pred_check_branch
          %640 = sbr.rel (%p638) target = $region20
        $region19: #{transformer_layer_forward.3} parent=11 // pred_region
          %s642 = ssub.s32 16, 16
          %643 = vsyncadd [#allocation9], %s642
          %s645 = sshll.u32 [#allocation8], 4
          %s646 = int_to_ptr.vmem [resolvable:$true] %s645
          %648 = dma.hbm_to_vmem [thread:$0]  %s3, 16, %s646, [#allocation9]
        $region20: #{transformer_layer_forward.3} parent=11 // pred_fallthru
          _
        // Predicated region
        $region21: #{transformer_layer_forward.3} parent=11 // pred_check
          %p649 = pneg %p166
        $region22: #{transformer_layer_forward.3} parent=11 // pred_check_branch
          %651 = sbr.rel (%p649) target = $region24
        $region23: #{transformer_layer_forward.3} parent=11 // pred_region
          %s653 = ssub.s32 1024, 1024
          %654 = vsyncadd [#allocation9], %s653
          %s655 = sshll.u32 [#allocation10], 4
          %s656 = int_to_ptr.vmem [resolvable:$true] %s655
          %661 = dma.hbm_to_vmem [thread:$0]  %s4, 1024, %s656, [#allocation9], 64, 64, 4
        $region24: #{transformer_layer_forward.3} parent=11 // pred_fallthru
          _
        // Predicated region
        $region25: #{transformer_layer_forward.3} parent=11 // pred_check
          %p662 = pneg %p187
        $region26: #{transformer_layer_forward.3} parent=11 // pred_check_branch
          %664 = sbr.rel (%p662) target = $region28
        $region27: #{transformer_layer_forward.3} parent=11 // pred_region
          %s666 = ssub.s32 64, 64
          %667 = vsyncadd [#allocation12], %s666
          %s668 = sshll.u32 [#allocation11], 4
          %s669 = int_to_ptr.vmem [resolvable:$true] %s668
          %674 = dma.hbm_to_vmem [thread:$0]  %s5, 64, %s669, [#allocation12], 16, 16, 1
        $region28: #{transformer_layer_forward.3} parent=11 // pred_fallthru
          _
        // Predicated region
        $region29: #{transformer_layer_forward.3} parent=11 // pred_check
          %p675 = pneg %p208
        $region30: #{transformer_layer_forward.3} parent=11 // pred_check_branch
          %677 = sbr.rel (%p675) target = $region32
        $region31: #{transformer_layer_forward.3} parent=11 // pred_region
          %s679 = ssub.s32 512, 512
          %680 = vsyncadd [#allocation12], %s679
          %s681 = sshll.u32 [#allocation13], 4
          %s682 = int_to_ptr.vmem [resolvable:$true] %s681
          %687 = dma.hbm_to_vmem [thread:$0]  %s6, 512, %s682, [#allocation12], 64, 64, 4
        $region32: #{transformer_layer_forward.3} parent=11 // pred_fallthru
          _
        // Predicated region
        $region33: #{transformer_layer_forward.3} parent=11 // pred_check
          %p688 = pneg %p229
        $region34: #{transformer_layer_forward.3} parent=11 // pred_check_branch
          %690 = sbr.rel (%p688) target = $region36
        $region35: #{transformer_layer_forward.3} parent=11 // pred_region
          %s692 = ssub.s32 64, 64
          %693 = vsyncadd [#allocation15], %s692
          %s694 = sshll.u32 [#allocation14], 4
          %s695 = int_to_ptr.vmem [resolvable:$true] %s694
          %700 = dma.hbm_to_vmem [thread:$0]  %s7, 64, %s695, [#allocation15], 16, 16, 1
        $region36: #{transformer_layer_forward.3} parent=11 // pred_fallthru
          _
        // Predicated region
        $region37: #{transformer_layer_forward.3} parent=11 // pred_check
          %p701 = pneg %p250
        $region38: #{transformer_layer_forward.3} parent=11 // pred_check_branch
          %703 = sbr.rel (%p701) target = $region40
        $region39: #{transformer_layer_forward.3} parent=11 // pred_region
          %s705 = ssub.s32 512, 512
          %706 = vsyncadd [#allocation15], %s705
          %s707 = sshll.u32 [#allocation16], 4
          %s708 = int_to_ptr.vmem [resolvable:$true] %s707
          %713 = dma.hbm_to_vmem [thread:$0]  %s8, 512, %s708, [#allocation15], 64, 64, 4
        $region40: #{transformer_layer_forward.3} parent=11 // pred_fallthru
          _
        // Predicated region
        $region41: #{transformer_layer_forward.3} parent=11 // pred_check
          %p714 = pneg %p271
        $region42: #{transformer_layer_forward.3} parent=11 // pred_check_branch
          %716 = sbr.rel (%p714) target = $region44
        $region43: #{transformer_layer_forward.3} parent=11 // pred_region
          %s718 = ssub.s32 64, 64
          %719 = vsyncadd [#allocation18], %s718
          %s720 = sshll.u32 [#allocation17], 4
          %s721 = int_to_ptr.vmem [resolvable:$true] %s720
          %726 = dma.hbm_to_vmem [thread:$0]  %s9, 64, %s721, [#allocation18], 16, 16, 1
        $region44: #{transformer_layer_forward.3} parent=11 // pred_fallthru
          _
        // Predicated region
        $region45: #{transformer_layer_forward.3} parent=11 // pred_check
          %p727 = pneg %p292
        $region46: #{transformer_layer_forward.3} parent=11 // pred_check_branch
          %729 = sbr.rel (%p727) target = $region48
        $region47: #{transformer_layer_forward.3} parent=11 // pred_region
          %s731 = ssub.s32 64, 64
          %732 = vsyncadd [#allocation18], %s731
          %s733 = sshll.u32 [#allocation19], 4
          %s734 = int_to_ptr.vmem [resolvable:$true] %s733
          %739 = dma.hbm_to_vmem [thread:$0]  %s10, 64, %s734, [#allocation18], 16, 16, 1
        $region48: #{transformer_layer_forward.3} parent=11 // pred_fallthru
          _
        // Predicated region
        $region49: #{transformer_layer_forward.3} parent=11 // pred_check
          %p740 = pneg %p313
        $region50: #{transformer_layer_forward.3} parent=11 // pred_check_branch
          %742 = sbr.rel (%p740) target = $region52
        $region51: #{transformer_layer_forward.3} parent=11 // pred_region
          %s744 = ssub.s32 64, 64
          %745 = vsyncadd [#allocation21], %s744
          %s746 = sshll.u32 [#allocation20], 4
          %s747 = int_to_ptr.vmem [resolvable:$true] %s746
          %752 = dma.hbm_to_vmem [thread:$0]  %s11, 64, %s747, [#allocation21], 16, 16, 1
        $region52: #{transformer_layer_forward.3} parent=11 // pred_fallthru
          _
        // Predicated region
        $region53: #{transformer_layer_forward.3} parent=11 // pred_check
          %p753 = pneg %p334
        $region54: #{transformer_layer_forward.3} parent=11 // pred_check_branch
          %755 = sbr.rel (%p753) target = $region56
        $region55: #{transformer_layer_forward.3} parent=11 // pred_region
          %s757 = ssub.s32 256, 256
          %758 = vsyncadd [#allocation21], %s757
          %s759 = sshll.u32 [#allocation22], 4
          %s760 = int_to_ptr.vmem [resolvable:$true] %s759
          %765 = dma.hbm_to_vmem [thread:$0]  %s12, 256, %s760, [#allocation21], 64, 64, 4
        $region56: #{transformer_layer_forward.3} parent=11 // pred_fallthru
          _
        // Predicated region
        $region57: #{transformer_layer_forward.3} parent=11 // pred_check
          %p766 = pneg %p355
        $region58: #{transformer_layer_forward.3} parent=11 // pred_check_branch
          %768 = sbr.rel (%p766) target = $region60
        $region59: #{transformer_layer_forward.3} parent=11 // pred_region
          %s770 = ssub.s32 16, 16
          %771 = vsyncadd [#allocation24], %s770
          %s773 = sshll.u32 [#allocation23], 4
          %s774 = int_to_ptr.vmem [resolvable:$true] %s773
          %776 = dma.hbm_to_vmem [thread:$0]  %s13, 16, %s774, [#allocation24]
        $region60: #{transformer_layer_forward.3} parent=11 // pred_fallthru
          _
        // Predicated region
        $region61: #{transformer_layer_forward.3} parent=11 // pred_check
          %p777 = pneg %p376
        $region62: #{transformer_layer_forward.3} parent=11 // pred_check_branch
          %779 = sbr.rel (%p777) target = $region64
        $region63: #{transformer_layer_forward.3} parent=11 // pred_region
          %s781 = ssub.s32 128, 128
          %782 = vsyncadd [#allocation24], %s781
          %s784 = sshll.u32 [#allocation25], 4
          %s785 = int_to_ptr.vmem [resolvable:$true] %s784
          %787 = dma.hbm_to_vmem [thread:$0]  %s14, 128, %s785, [#allocation24]
        $region64: #{transformer_layer_forward.3} parent=11 // pred_fallthru
          _
        // Predicated region
        $region65: #{transformer_layer_forward.3} parent=11 // pred_check
          %p788 = pneg %p397
        $region66: #{transformer_layer_forward.3} parent=11 // pred_check_branch
          %790 = sbr.rel (%p788) target = $region68
        $region67: #{transformer_layer_forward.3} parent=11 // pred_region
          %s792 = ssub.s32 128, 128
          %793 = vsyncadd [#allocation27], %s792
          %s795 = sshll.u32 [#allocation26], 4
          %s796 = int_to_ptr.vmem [resolvable:$true] %s795
          %798 = dma.hbm_to_vmem [thread:$0]  %s15, 128, %s796, [#allocation27]
        $region68: #{transformer_layer_forward.3} parent=11 // pred_fallthru
          _
        // Predicated region
        $region69: #{transformer_layer_forward.3} parent=11 // pred_check
          %p799 = pneg %p418
        $region70: #{transformer_layer_forward.3} parent=11 // pred_check_branch
          %801 = sbr.rel (%p799) target = $region72
        $region71: #{transformer_layer_forward.3} parent=11 // pred_region
          %s803 = ssub.s32 128, 128
          %804 = vsyncadd [#allocation27], %s803
          %s806 = sshll.u32 [#allocation28], 4
          %s807 = int_to_ptr.vmem [resolvable:$true] %s806
          %809 = dma.hbm_to_vmem [thread:$0]  %s16, 128, %s807, [#allocation27]
        $region72: #{transformer_layer_forward.3} parent=11 // pred_fallthru
          _
        // Predicated region
        $region73: #{transformer_layer_forward.3} parent=11 // pred_check
          %p810 = pneg %p439
        $region74: #{transformer_layer_forward.3} parent=11 // pred_check_branch
          %812 = sbr.rel (%p810) target = $region76
        $region75: #{transformer_layer_forward.3} parent=11 // pred_region
          %s814 = ssub.s32 256, 256
          %815 = vsyncadd [#allocation30], %s814
          %s816 = sshll.u32 [#allocation29], 4
          %s817 = int_to_ptr.vmem [resolvable:$true] %s816
          %822 = dma.hbm_to_vmem [thread:$0]  %s17, 256, %s817, [#allocation30], 128, 128, 8
        $region76: #{transformer_layer_forward.3} parent=11 // pred_fallthru
          _
        // Predicated region
        $region77: #{transformer_layer_forward.3} parent=11 // pred_check
          %p823 = pneg %p460
        $region78: #{transformer_layer_forward.3} parent=11 // pred_check_branch
          %825 = sbr.rel (%p823) target = $region80
        $region79: #{transformer_layer_forward.3} parent=11 // pred_region
          %s827 = ssub.s32 256, 256
          %828 = vsyncadd [#allocation30], %s827
          %s829 = sshll.u32 [#allocation31], 4
          %s830 = int_to_ptr.vmem [resolvable:$true] %s829
          %835 = dma.hbm_to_vmem [thread:$0]  %s18, 256, %s830, [#allocation30], 128, 128, 8
        $region80: #{transformer_layer_forward.3} parent=11 // pred_fallthru
          _
        // Predicated region
        $region81: #{transformer_layer_forward.3} parent=11 // pred_check
          %p836 = pneg %p481
        $region82: #{transformer_layer_forward.3} parent=11 // pred_check_branch
          %838 = sbr.rel (%p836) target = $region84
        $region83: #{transformer_layer_forward.3} parent=11 // pred_region
          %s840 = ssub.s32 16, 16
          %841 = vsyncadd [#allocation33], %s840
          %s843 = sshll.u32 [#allocation32], 4
          %s844 = int_to_ptr.vmem [resolvable:$true] %s843
          %846 = dma.hbm_to_vmem [thread:$0]  %s19, 16, %s844, [#allocation33]
        $region84: #{transformer_layer_forward.3} parent=11 // pred_fallthru
          _
        // Predicated region
        $region85: #{transformer_layer_forward.3} parent=11 // pred_check
          %p847 = pneg %p502
        $region86: #{transformer_layer_forward.3} parent=11 // pred_check_branch
          %849 = sbr.rel (%p847) target = $region88
        $region87: #{transformer_layer_forward.3} parent=11 // pred_region
          %s851 = ssub.s32 16, 16
          %852 = vsyncadd [#allocation33], %s851
          %s854 = sshll.u32 [#allocation34], 4
          %s855 = int_to_ptr.vmem [resolvable:$true] %s854
          %857 = dma.hbm_to_vmem [thread:$0]  %s20, 16, %s855, [#allocation33]
        $region88: #{transformer_layer_forward.3} parent=11 // pred_fallthru
          _
        // Predicated region
        $region89: #{transformer_layer_forward.3} parent=11 // pred_check
          %p858 = pneg %p523
        $region90: #{transformer_layer_forward.3} parent=11 // pred_check_branch
          %860 = sbr.rel (%p858) target = $region92
        $region91: #{transformer_layer_forward.3} parent=11 // pred_region
          %s862 = ssub.s32 256, 256
          %863 = vsyncadd [#allocation36], %s862
          %s864 = sshll.u32 [#allocation35], 4
          %s865 = int_to_ptr.vmem [resolvable:$true] %s864
          %870 = dma.hbm_to_vmem [thread:$0]  %s21, 256, %s865, [#allocation36], 64, 64, 4
        $region92: #{transformer_layer_forward.3} parent=11 // pred_fallthru
          _
        // Predicated region
        $region93: #{transformer_layer_forward.3} parent=11 // pred_check
          %p871 = pneg %p544
        $region94: #{transformer_layer_forward.3} parent=11 // pred_check_branch
          %873 = sbr.rel (%p871) target = $region96
        $region95: #{transformer_layer_forward.3} parent=11 // pred_region
          %s875 = ssub.s32 16, 16
          %876 = vsyncadd [#allocation36], %s875
          %s878 = sshll.u32 [#allocation37], 4
          %s879 = int_to_ptr.vmem [resolvable:$true] %s878
          %881 = dma.hbm_to_vmem [thread:$0]  %s22, 16, %s879, [#allocation36]
        $region96: #{transformer_layer_forward.3} parent=11 // pred_fallthru
          _
        // Predicated region
        $region97: #{transformer_layer_forward.3} parent=11 // pred_check
          %p882 = pneg %p565
        $region98: #{transformer_layer_forward.3} parent=11 // pred_check_branch
          %884 = sbr.rel (%p882) target = $region100
        $region99: #{transformer_layer_forward.3} parent=11 // pred_region
          %s886 = ssub.s32 128, 128
          %887 = vsyncadd [#allocation39], %s886
          %s888 = sshll.u32 [#allocation38], 4
          %s889 = int_to_ptr.vmem [resolvable:$true] %s888
          %894 = dma.hbm_to_vmem [thread:$0]  %s23, 128, %s889, [#allocation39], 64, 64, 4
        $region100: #{transformer_layer_forward.3} parent=11 // pred_fallthru
          _
        // Predicated region
        $region101: #{transformer_layer_forward.3} parent=11 // pred_check
          %p895 = pneg %p586
        $region102: #{transformer_layer_forward.3} parent=11 // pred_check_branch
          %897 = sbr.rel (%p895) target = $region104
        $region103: #{transformer_layer_forward.3} parent=11 // pred_region
          %s899 = ssub.s32 16, 16
          %900 = vsyncadd [#allocation39], %s899
          %s902 = sshll.u32 [#allocation40], 4
          %s903 = int_to_ptr.vmem [resolvable:$true] %s902
          %905 = dma.hbm_to_vmem [thread:$0]  %s24, 16, %s903, [#allocation39]
        $region104: #{transformer_layer_forward.3} parent=11 // pred_fallthru
          _
      $region12: #{transformer_layer_forward.3} parent=5 // pred_fallthru
        _
      %p906 = scmp.lt.s32.totalorder %s51, 2
      // Predicated region
      $region105: #{transformer_layer_forward.3} parent=5 // pred_check
        %p907 = pneg %p906
      $region106: #{transformer_layer_forward.3} parent=5 // pred_check_branch
        %909 = sbr.rel (%p907) target = $region108
      $region107: #{transformer_layer_forward.3} parent=5 // pred_region
        // Predicated region
        $region109: #{transformer_layer_forward.3} parent=107 // pred_check
          %p910 = pneg %p71
        $region110: #{transformer_layer_forward.3} parent=107 // pred_check_branch
          %912 = sbr.rel (%p910) target = $region112
        $region111: #{transformer_layer_forward.3} parent=107 // pred_region
          %s913 = sand.u32 %s61, 1
          %s914 = scalar_lea.sflag [#allocation3], %s913
          %s915 = sand.u32 %s61, 1
          %s916 = smul.addr %s915, 8
          %s917 = scalar_lea.vmem [#allocation2], %s916
          %s919 = ssub.s32 128, 128
          %920 = vsyncadd %s914, %s919
          %s921 = smul.addr %s51, 128
          %s922 = scalar_lea.hbm %s0, %s921
          %s924 = sshll.u32 %s917, 4
          %s925 = int_to_ptr.vmem [resolvable:$true] %s924
          %927 = dma.hbm_to_vmem [thread:$0]  %s922, 128, %s925, %s914
        $region112: #{transformer_layer_forward.3} parent=107 // pred_fallthru
          _
        // Predicated region
        $region113: #{transformer_layer_forward.3} parent=107 // pred_check
          %p928 = pneg %p97
        $region114: #{transformer_layer_forward.3} parent=107 // pred_check_branch
          %930 = sbr.rel (%p928) target = $region116
        $region115: #{transformer_layer_forward.3} parent=107 // pred_region
          %s931 = sand.u32 %s51, 1
          %s932 = scalar_lea.sflag [#allocation6], %s931
          %s933 = sand.u32 %s87, 1
          %s934 = smul.addr %s933, 16
          %s935 = scalar_lea.vmem [#allocation5], %s934
          %s937 = ssub.s32 256, 256
          %938 = vsyncadd %s932, %s937
          %s939 = smul.addr %s51, 2
          %s940 = smul.addr %s939, 128
          %s941 = scalar_lea.hbm %s1, %s940
          %s942 = sshll.u32 %s935, 4
          %s943 = int_to_ptr.vmem [resolvable:$true] %s942
          %948 = dma.hbm_to_vmem [thread:$0]  %s941, 256, %s943, %s932, 128, 128, 8
        $region116: #{transformer_layer_forward.3} parent=107 // pred_fallthru
          _
      $region108: #{transformer_layer_forward.3} parent=5 // pred_fallthru
        _
      %p949 = scmp.le.s32.totalorder 1, %s51
      %p950 = scmp.lt.s32.totalorder %s51, 3
      %p951 = pnand %p949, %p950
      %p952 = pneg %p951
      // Predicated region
      $region117: #{transformer_layer_forward.3} parent=5 // pred_check
        _
      $region118: #{transformer_layer_forward.3} parent=5 // pred_check_branch
        %954 = sbr.rel (%p951) target = $region120
      $region119: #{transformer_layer_forward.3} parent=5 // pred_region
        %s955 = ssub.s32 %s51, 1
        %s956 = sand.u32 %s64, 1
        %s957 = scalar_lea.sflag [#allocation3], %s956
        %s958 = sand.u32 %s64, 1
        %s959 = smul.addr %s958, 8
        %s960 = scalar_lea.vmem [#allocation2], %s959
        // Predicated region
        $region121: #{transformer_layer_forward.3} parent=119 // pred_check
          %p961 = pneg %p77
        $region122: #{transformer_layer_forward.3} parent=119 // pred_check_branch
          %963 = sbr.rel (%p961) target = $region124
        $region123: #{transformer_layer_forward.3} parent=119 // pred_region
          %964 = dma.done %s957, 128
        $region124: #{transformer_layer_forward.3} parent=119 // pred_fallthru
          _
        %s965 = sand.u32 %s56, 1
        %s966 = scalar_lea.sflag [#allocation6], %s965
        %s967 = sand.u32 %s90, 1
        %s968 = smul.addr %s967, 16
        %s969 = scalar_lea.vmem [#allocation5], %s968
        // Predicated region
        $region125: #{transformer_layer_forward.3} parent=119 // pred_check
          %p970 = pneg %p103
        $region126: #{transformer_layer_forward.3} parent=119 // pred_check_branch
          %972 = sbr.rel (%p970) target = $region128
        $region127: #{transformer_layer_forward.3} parent=119 // pred_region
          %973 = dma.done %s966, 256
        $region128: #{transformer_layer_forward.3} parent=119 // pred_fallthru
          _
        // Predicated region
        $region129: #{transformer_layer_forward.3} parent=119 // pred_check
          %p974 = pneg %p124
        $region130: #{transformer_layer_forward.3} parent=119 // pred_check_branch
          %976 = sbr.rel (%p974) target = $region132
        $region131: #{transformer_layer_forward.3} parent=119 // pred_region
          %977 = dma.done [#allocation6], 16
        $region132: #{transformer_layer_forward.3} parent=119 // pred_fallthru
          _
        // Predicated region
        $region133: #{transformer_layer_forward.3} parent=119 // pred_check
          %p978 = pneg %p145
        $region134: #{transformer_layer_forward.3} parent=119 // pred_check_branch
          %980 = sbr.rel (%p978) target = $region136
        $region135: #{transformer_layer_forward.3} parent=119 // pred_region
          %981 = dma.done [#allocation9], 16
        $region136: #{transformer_layer_forward.3} parent=119 // pred_fallthru
          _
        // Predicated region
        $region137: #{transformer_layer_forward.3} parent=119 // pred_check
          %p982 = pneg %p166
        $region138: #{transformer_layer_forward.3} parent=119 // pred_check_branch
          %984 = sbr.rel (%p982) target = $region140
        $region139: #{transformer_layer_forward.3} parent=119 // pred_region
          %985 = dma.done [#allocation9], 1024
        $region140: #{transformer_layer_forward.3} parent=119 // pred_fallthru
          _
        // Predicated region
        $region141: #{transformer_layer_forward.3} parent=119 // pred_check
          %p986 = pneg %p187
        $region142: #{transformer_layer_forward.3} parent=119 // pred_check_branch
          %988 = sbr.rel (%p986) target = $region144
        $region143: #{transformer_layer_forward.3} parent=119 // pred_region
          %989 = dma.done [#allocation12], 64
        $region144: #{transformer_layer_forward.3} parent=119 // pred_fallthru
          _
        // Predicated region
        $region145: #{transformer_layer_forward.3} parent=119 // pred_check
          %p990 = pneg %p208
        $region146: #{transformer_layer_forward.3} parent=119 // pred_check_branch
          %992 = sbr.rel (%p990) target = $region148
        $region147: #{transformer_layer_forward.3} parent=119 // pred_region
          %993 = dma.done [#allocation12], 512
        $region148: #{transformer_layer_forward.3} parent=119 // pred_fallthru
          _
        // Predicated region
        $region149: #{transformer_layer_forward.3} parent=119 // pred_check
          %p994 = pneg %p229
        $region150: #{transformer_layer_forward.3} parent=119 // pred_check_branch
          %996 = sbr.rel (%p994) target = $region152
        $region151: #{transformer_layer_forward.3} parent=119 // pred_region
          %997 = dma.done [#allocation15], 64
        $region152: #{transformer_layer_forward.3} parent=119 // pred_fallthru
          _
        // Predicated region
        $region153: #{transformer_layer_forward.3} parent=119 // pred_check
          %p998 = pneg %p250
        $region154: #{transformer_layer_forward.3} parent=119 // pred_check_branch
          %1000 = sbr.rel (%p998) target = $region156
        $region155: #{transformer_layer_forward.3} parent=119 // pred_region
          %1001 = dma.done [#allocation15], 512
        $region156: #{transformer_layer_forward.3} parent=119 // pred_fallthru
          _
        // Predicated region
        $region157: #{transformer_layer_forward.3} parent=119 // pred_check
          %p1002 = pneg %p271
        $region158: #{transformer_layer_forward.3} parent=119 // pred_check_branch
          %1004 = sbr.rel (%p1002) target = $region160
        $region159: #{transformer_layer_forward.3} parent=119 // pred_region
          %1005 = dma.done [#allocation18], 64
        $region160: #{transformer_layer_forward.3} parent=119 // pred_fallthru
          _
        // Predicated region
        $region161: #{transformer_layer_forward.3} parent=119 // pred_check
          %p1006 = pneg %p292
        $region162: #{transformer_layer_forward.3} parent=119 // pred_check_branch
          %1008 = sbr.rel (%p1006) target = $region164
        $region163: #{transformer_layer_forward.3} parent=119 // pred_region
          %1009 = dma.done [#allocation18], 64
        $region164: #{transformer_layer_forward.3} parent=119 // pred_fallthru
          _
        // Predicated region
        $region165: #{transformer_layer_forward.3} parent=119 // pred_check
          %p1010 = pneg %p313
        $region166: #{transformer_layer_forward.3} parent=119 // pred_check_branch
          %1012 = sbr.rel (%p1010) target = $region168
        $region167: #{transformer_layer_forward.3} parent=119 // pred_region
          %1013 = dma.done [#allocation21], 64
        $region168: #{transformer_layer_forward.3} parent=119 // pred_fallthru
          _
        // Predicated region
        $region169: #{transformer_layer_forward.3} parent=119 // pred_check
          %p1014 = pneg %p334
        $region170: #{transformer_layer_forward.3} parent=119 // pred_check_branch
          %1016 = sbr.rel (%p1014) target = $region172
        $region171: #{transformer_layer_forward.3} parent=119 // pred_region
          %1017 = dma.done [#allocation21], 256
        $region172: #{transformer_layer_forward.3} parent=119 // pred_fallthru
          _
        // Predicated region
        $region173: #{transformer_layer_forward.3} parent=119 // pred_check
          %p1018 = pneg %p355
        $region174: #{transformer_layer_forward.3} parent=119 // pred_check_branch
          %1020 = sbr.rel (%p1018) target = $region176
        $region175: #{transformer_layer_forward.3} parent=119 // pred_region
          %1021 = dma.done [#allocation24], 16
        $region176: #{transformer_layer_forward.3} parent=119 // pred_fallthru
          _
        // Predicated region
        $region177: #{transformer_layer_forward.3} parent=119 // pred_check
          %p1022 = pneg %p376
        $region178: #{transformer_layer_forward.3} parent=119 // pred_check_branch
          %1024 = sbr.rel (%p1022) target = $region180
        $region179: #{transformer_layer_forward.3} parent=119 // pred_region
          %1025 = dma.done [#allocation24], 128
        $region180: #{transformer_layer_forward.3} parent=119 // pred_fallthru
          _
        // Predicated region
        $region181: #{transformer_layer_forward.3} parent=119 // pred_check
          %p1026 = pneg %p397
        $region182: #{transformer_layer_forward.3} parent=119 // pred_check_branch
          %1028 = sbr.rel (%p1026) target = $region184
        $region183: #{transformer_layer_forward.3} parent=119 // pred_region
          %1029 = dma.done [#allocation27], 128
        $region184: #{transformer_layer_forward.3} parent=119 // pred_fallthru
          _
        // Predicated region
        $region185: #{transformer_layer_forward.3} parent=119 // pred_check
          %p1030 = pneg %p418
        $region186: #{transformer_layer_forward.3} parent=119 // pred_check_branch
          %1032 = sbr.rel (%p1030) target = $region188
        $region187: #{transformer_layer_forward.3} parent=119 // pred_region
          %1033 = dma.done [#allocation27], 128
        $region188: #{transformer_layer_forward.3} parent=119 // pred_fallthru
          _
        // Predicated region
        $region189: #{transformer_layer_forward.3} parent=119 // pred_check
          %p1034 = pneg %p439
        $region190: #{transformer_layer_forward.3} parent=119 // pred_check_branch
          %1036 = sbr.rel (%p1034) target = $region192
        $region191: #{transformer_layer_forward.3} parent=119 // pred_region
          %1037 = dma.done [#allocation30], 256
        $region192: #{transformer_layer_forward.3} parent=119 // pred_fallthru
          _
        // Predicated region
        $region193: #{transformer_layer_forward.3} parent=119 // pred_check
          %p1038 = pneg %p460
        $region194: #{transformer_layer_forward.3} parent=119 // pred_check_branch
          %1040 = sbr.rel (%p1038) target = $region196
        $region195: #{transformer_layer_forward.3} parent=119 // pred_region
          %1041 = dma.done [#allocation30], 256
        $region196: #{transformer_layer_forward.3} parent=119 // pred_fallthru
          _
        // Predicated region
        $region197: #{transformer_layer_forward.3} parent=119 // pred_check
          %p1042 = pneg %p481
        $region198: #{transformer_layer_forward.3} parent=119 // pred_check_branch
          %1044 = sbr.rel (%p1042) target = $region200
        $region199: #{transformer_layer_forward.3} parent=119 // pred_region
          %1045 = dma.done [#allocation33], 16
        $region200: #{transformer_layer_forward.3} parent=119 // pred_fallthru
          _
        // Predicated region
        $region201: #{transformer_layer_forward.3} parent=119 // pred_check
          %p1046 = pneg %p502
        $region202: #{transformer_layer_forward.3} parent=119 // pred_check_branch
          %1048 = sbr.rel (%p1046) target = $region204
        $region203: #{transformer_layer_forward.3} parent=119 // pred_region
          %1049 = dma.done [#allocation33], 16
        $region204: #{transformer_layer_forward.3} parent=119 // pred_fallthru
          _
        // Predicated region
        $region205: #{transformer_layer_forward.3} parent=119 // pred_check
          %p1050 = pneg %p523
        $region206: #{transformer_layer_forward.3} parent=119 // pred_check_branch
          %1052 = sbr.rel (%p1050) target = $region208
        $region207: #{transformer_layer_forward.3} parent=119 // pred_region
          %1053 = dma.done [#allocation36], 256
        $region208: #{transformer_layer_forward.3} parent=119 // pred_fallthru
          _
        // Predicated region
        $region209: #{transformer_layer_forward.3} parent=119 // pred_check
          %p1054 = pneg %p544
        $region210: #{transformer_layer_forward.3} parent=119 // pred_check_branch
          %1056 = sbr.rel (%p1054) target = $region212
        $region211: #{transformer_layer_forward.3} parent=119 // pred_region
          %1057 = dma.done [#allocation36], 16
        $region212: #{transformer_layer_forward.3} parent=119 // pred_fallthru
          _
        // Predicated region
        $region213: #{transformer_layer_forward.3} parent=119 // pred_check
          %p1058 = pneg %p565
        $region214: #{transformer_layer_forward.3} parent=119 // pred_check_branch
          %1060 = sbr.rel (%p1058) target = $region216
        $region215: #{transformer_layer_forward.3} parent=119 // pred_region
          %1061 = dma.done [#allocation39], 128
        $region216: #{transformer_layer_forward.3} parent=119 // pred_fallthru
          _
        // Predicated region
        $region217: #{transformer_layer_forward.3} parent=119 // pred_check
          %p1062 = pneg %p586
        $region218: #{transformer_layer_forward.3} parent=119 // pred_check_branch
          %1064 = sbr.rel (%p1062) target = $region220
        $region219: #{transformer_layer_forward.3} parent=119 // pred_region
          %1065 = dma.done [#allocation39], 16
        $region220: #{transformer_layer_forward.3} parent=119 // pred_fallthru
          _
        %s1066 = sand.u32 %s64, 1
        %s1067 = scalar_lea.sflag [#allocation3], %s1066
        %s1068 = sand.u32 %s64, 1
        %s1069 = smul.addr %s1068, 8
        %s1070 = scalar_lea.vmem [#allocation2], %s1069
        %p1071 = pneg %p77
        %p1072 = pneg %p74
        %s1073 = sand.u32 %s56, 1
        %s1074 = scalar_lea.sflag [#allocation6], %s1073
        %s1075 = sand.u32 %s90, 1
        %s1076 = smul.addr %s1075, 16
        %s1077 = scalar_lea.vmem [#allocation5], %s1076
        %p1078 = pneg %p103
        %p1079 = pneg %p100
        %p1080 = pneg %p124
        %p1081 = pneg %p121
        %p1082 = pneg %p145
        %p1083 = pneg %p142
        %p1084 = pneg %p166
        %p1085 = pneg %p163
        %p1086 = pneg %p187
        %p1087 = pneg %p184
        %p1088 = pneg %p208
        %p1089 = pneg %p205
        %p1090 = pneg %p229
        %p1091 = pneg %p226
        %p1092 = pneg %p250
        %p1093 = pneg %p247
        %p1094 = pneg %p271
        %p1095 = pneg %p268
        %p1096 = pneg %p292
        %p1097 = pneg %p289
        %p1098 = pneg %p313
        %p1099 = pneg %p310
        %p1100 = pneg %p334
        %p1101 = pneg %p331
        %p1102 = pneg %p355
        %p1103 = pneg %p352
        %p1104 = pneg %p376
        %p1105 = pneg %p373
        %p1106 = pneg %p397
        %p1107 = pneg %p394
        %p1108 = pneg %p418
        %p1109 = pneg %p415
        %p1110 = pneg %p439
        %p1111 = pneg %p436
        %p1112 = pneg %p460
        %p1113 = pneg %p457
        %p1114 = pneg %p481
        %p1115 = pneg %p478
        %p1116 = pneg %p502
        %p1117 = pneg %p499
        %p1118 = pneg %p523
        %p1119 = pneg %p520
        %p1120 = pneg %p544
        %p1121 = pneg %p541
        %p1122 = pneg %p565
        %p1123 = pneg %p562
        %p1124 = pneg %p586
        %p1125 = pneg %p583
        %p1126 = pneg %p612
        %p1127 = pneg %p609
        %s1128 = sand.u32 %s599, 1
        %s1129 = scalar_lea.sflag [#allocation4], %s1128
        %s1130 = sand.u32 %s599, 1
        %s1131 = smul.addr %s1130, 8
        %s1132 = scalar_lea.vmem [#allocation41], %s1131
        %v1134 = vld [vmem:[%s960] sm:$0xff]
        %v1135 = vld [vmem:[%s969] sm:$0xff]
        %v1136 = vld [vmem:[%s969 + $0x8] sm:$0x3]
        %vm1137 = vcmask 261120
        %v1138 = vsel %vm1137, %v1134, 0.0
        %1139 = vadd.xlane.f32.xlu0 %v1138
        %v1140 = vpop.xlane.xlu0 %1139
        %v1141 = vrcp.pop 32.0
        %v1142 = vmul.f32 %v1140, %v1141
        %v1143 = vsub.f32 %v1134, %v1142
        %v1144 = vmul.f32 %v1143, %v1143
        %v1145 = vsel %vm1137, %v1144, 0.0
        %1146 = vadd.xlane.f32.xlu0 %v1145
        %v1147 = vpop.xlane.xlu0 %1146
        %v1148 = vmul.f32 %v1147, %v1141
        %v1149 = vadd.f32 %v1148, 1e-12
        %v1150 = vrsqrt.pop %v1149
        %v1151 = vmul.f32 %v1143, %v1150
        %v1152 = vld [vmem:[#allocation7] sm:$0x1]
        %v1154 = vlaneseq
        %v1155 = vshrl.u32 %v1154, 7
        %v1156 = vsub.s32 0, %v1155
        %v1157 = vrot.slane %v1152, %v1156
        %v1159 = vmul.f32 %v1151, %v1157
        %v1160 = vld [vmem:[#allocation8] sm:$0x1]
        %v1162 = vlaneseq
        %v1163 = vshrl.u32 %v1162, 7
        %v1164 = vsub.s32 0, %v1163
        %v1165 = vrot.slane %v1160, %v1164
        %v1167 = vadd.f32 %v1159, %v1165
        %v1168 = vpack.c.bf16 %v1167, %v1167
        %v1169 = vpack.c.bf16 %v1136, %v1135
        %v1170 = vld [vmem:[#allocation25] sm:$0xff]
        %v1171 = vld [vmem:[#allocation26] sm:$0xff]
        %v1172 = vld [vmem:[#allocation28] sm:$0xff]
        %v1173 = vld [vmem:[#allocation29] sm:$0xff]
        %v1174 = vld [vmem:[#allocation29 + $0x8] sm:$0x3]
        %v1175 = vld [vmem:[#allocation31] sm:$0xff]
        %v1176 = vld [vmem:[#allocation31 + $0x8] sm:$0x3]
        %v1177 = vld [vmem:[#allocation10] sm:$0xf]
        %v1178 = vld [vmem:[#allocation10 + $0x4] sm:$0xf]
        %v1179 = vld [vmem:[#allocation10 + $0x8] sm:$0xf]
        %v1180 = vld [vmem:[#allocation10 + $0xc] sm:$0xf]
        %v1181 = vld [vmem:[#allocation11] sm:$0x1]
        %v1183 = vlaneseq
        %v1184 = vshrl.u32 %v1183, 7
        %v1185 = vsub.s32 0, %v1184
        %v1186 = vrot.slane %v1181, %v1185
        %v1192 = vunpack.c.l.b16 %v1177
        %v1193 = vunpack.c.l.b16 %v1178
        %v1194 = vunpack.c.l.b16 %v1179
        %v1195 = vunpack.c.l.b16 %v1180
        %v1196 = vpack.c.b16 %v1193, %v1192
        %v1197 = vpack.c.b16 %v1195, %v1194
        %v1201 = vsel %vm1137, %v1168, 0
        %1203 = vmatprep.subr.bf16.mxu0 0
        %1204 = vmatpush1.bf16.msra.mxu0 %v1196
        %1205 = vmatprep.subr.bf16.mxu0 0
        %1206 = vmatpush1.bf16.msra.mxu0 %v1197
        %1207 = vmatprep.subr.bf16.mxu0 0
        %1208 = vmatpush1.bf16.msra.mxu0 0
        %1209 = vmatprep.subr.bf16.mxu0 0
        %1210 = vmatpush1.bf16.msra.mxu0 0
        %1211 = vmatprep.subr.bf16.mxu0 0
        %1212 = vmatpush1.bf16.msra.mxu0 0
        %1213 = vmatprep.subr.bf16.mxu0 0
        %1214 = vmatpush1.bf16.msra.mxu0 0
        %1215 = vmatprep.subr.bf16.mxu0 0
        %1216 = vmatpush1.bf16.msra.mxu0 0
        %1217 = vmatprep.subr.bf16.mxu0 0
        %1218 = vmatpush1.bf16.msra.mxu0 0
        %1219 = vmatprep.subr.bf16.mxu0 0
        %1220 = vmatpush1.bf16.msra.mxu0 0
        %1221 = vmatprep.subr.bf16.mxu0 0
        %1222 = vmatpush1.bf16.msra.mxu0 0
        %1223 = vmatprep.subr.bf16.mxu0 0
        %1224 = vmatpush1.bf16.msra.mxu0 0
        %1225 = vmatprep.subr.bf16.mxu0 0
        %1226 = vmatpush1.bf16.msra.mxu0 0
        %1227 = vmatprep.subr.bf16.mxu0 0
        %1228 = vmatpush1.bf16.msra.mxu0 0
        %1229 = vmatprep.subr.bf16.mxu0 0
        %1230 = vmatpush1.bf16.msra.mxu0 0
        %1231 = vmatprep.subr.bf16.mxu0 0
        %1232 = vmatpush1.bf16.msra.mxu0 0
        %1233 = vmatprep.subr.bf16.mxu0 0
        %1234 = vmatpush1.bf16.msra.mxu0 0
        %1235 = vmatprep.mubr.bf16.mxu0 0
        %1236 = vmatmul.mubr.bf16.gmra.mrb[0].mxu0 %v1201
        %v1237 = vpop.f32.mrb[0].mxu0
        %v1238 = vadd.f32 %v1186, %v1237
        %v1239 = vpop.f32.mrb[0].mxu0
        %v1240 = vpop.f32.mrb[0].mxu0
        %v1241 = vpop.f32.mrb[0].mxu0
        %1242 = vdwg.mxu0
        %v1243 = vmul.f32 %v1238, %v1171
        %vm1244 = vcmask 64512
        %v1246 = vsel %vm1244, %v1238, 0
        %1248 = vmatprep.subr.mxu0 0.0
        %1249 = vmatpush1.msra.mxu0 %v1170
        %1250 = vmatprep.subr.mxu0 0.0
        %1251 = vmatpush1.msra.mxu0 0.0
        %1252 = vmatprep.subr.mxu0 0.0
        %1253 = vmatpush1.msra.mxu0 0.0
        %1254 = vmatprep.subr.mxu0 0.0
        %1255 = vmatpush1.msra.mxu0 0.0
        %1256 = vmatprep.subr.mxu0 0.0
        %1257 = vmatpush1.msra.mxu0 0.0
        %1258 = vmatprep.subr.mxu0 0.0
        %1259 = vmatpush1.msra.mxu0 0.0
        %1260 = vmatprep.subr.mxu0 0.0
        %1261 = vmatpush1.msra.mxu0 0.0
        %1262 = vmatprep.subr.mxu0 0.0
        %1263 = vmatpush1.msra.mxu0 0.0
        %1264 = vmatprep.subr.mxu0 0.0
        %1265 = vmatpush1.msra.mxu0 0.0
        %1266 = vmatprep.subr.mxu0 0.0
        %1267 = vmatpush1.msra.mxu0 0.0
        %1268 = vmatprep.subr.mxu0 0.0
        %1269 = vmatpush1.msra.mxu0 0.0
        %1270 = vmatprep.subr.mxu0 0.0
        %1271 = vmatpush1.msra.mxu0 0.0
        %1272 = vmatprep.subr.mxu0 0.0
        %1273 = vmatpush1.msra.mxu0 0.0
        %1274 = vmatprep.subr.mxu0 0.0
        %1275 = vmatpush1.msra.mxu0 0.0
        %1276 = vmatprep.subr.mxu0 0.0
        %1277 = vmatpush1.msra.mxu0 0.0
        %1278 = vmatprep.subr.mxu0 0.0
        %1279 = vmatpush1.msra.mxu0 0.0
        %1280 = vmatprep.subr.mxu0 0.0
        %1281 = vmatpush1.msra.mxu0 0.0
        %1282 = vmatprep.subr.mxu0 0.0
        %1283 = vmatpush1.msra.mxu0 0.0
        %1284 = vmatprep.subr.mxu0 0.0
        %1285 = vmatpush1.msra.mxu0 0.0
        %1286 = vmatprep.subr.mxu0 0.0
        %1287 = vmatpush1.msra.mxu0 0.0
        %1288 = vmatprep.subr.mxu0 0.0
        %1289 = vmatpush1.msra.mxu0 0.0
        %1290 = vmatprep.subr.mxu0 0.0
        %1291 = vmatpush1.msra.mxu0 0.0
        %1292 = vmatprep.subr.mxu0 0.0
        %1293 = vmatpush1.msra.mxu0 0.0
        %1294 = vmatprep.subr.mxu0 0.0
        %1295 = vmatpush1.msra.mxu0 0.0
        %1296 = vmatprep.subr.mxu0 0.0
        %1297 = vmatpush1.msra.mxu0 0.0
        %1298 = vmatprep.subr.mxu0 0.0
        %1299 = vmatpush1.msra.mxu0 0.0
        %1300 = vmatprep.subr.mxu0 0.0
        %1301 = vmatpush1.msra.mxu0 0.0
        %1302 = vmatprep.subr.mxu0 0.0
        %1303 = vmatpush1.msra.mxu0 0.0
        %1304 = vmatprep.subr.mxu0 0.0
        %1305 = vmatpush1.msra.mxu0 0.0
        %1306 = vmatprep.subr.mxu0 0.0
        %1307 = vmatpush1.msra.mxu0 0.0
        %1308 = vmatprep.subr.mxu0 0.0
        %1309 = vmatpush1.msra.mxu0 0.0
        %1310 = vmatprep.subr.mxu0 0.0
        %1311 = vmatpush1.msra.mxu0 0.0
        %1312 = vmatprep.mubr.f32.mxu0 0.0
        %1313 = vmatmul.mubr.f32.gmra.mrb[0].mxu0 %v1246
        %v1314 = vpop.f32.mrb[0].mxu0
        %v1315 = vadd.f32 0.0, %v1314
        %v1316 = vpop.f32.mrb[0].mxu0
        %1317 = vdwg.mxu0
        %v1318 = vmul.f32 %v1315, %v1172
        %v1319 = vadd.f32 %v1243, %v1318
        %v1320 = vld [vmem:[#allocation13] sm:$0xf]
        %v1321 = vld [vmem:[#allocation13 + $0x4] sm:$0xf]
        %v1322 = vld [vmem:[#allocation14] sm:$0x1]
        %v1324 = vlaneseq
        %v1325 = vshrl.u32 %v1324, 7
        %v1326 = vsub.s32 0, %v1325
        %v1327 = vrot.slane %v1322, %v1326
        %v1331 = vunpack.c.l.b16 %v1320
        %v1332 = vunpack.c.l.b16 %v1321
        %v1333 = vpack.c.b16 %v1332, %v1331
        %vm1335 = vcmask 130048
        %v1337 = vsel %vm1335, %v1169, 0
        %1339 = vmatprep.subr.bf16.mxu0 0
        %1340 = vmatpush1.bf16.msra.mxu0 %v1333
        %1341 = vmatprep.subr.bf16.mxu0 0
        %1342 = vmatpush1.bf16.msra.mxu0 0
        %1343 = vmatprep.subr.bf16.mxu0 0
        %1344 = vmatpush1.bf16.msra.mxu0 0
        %1345 = vmatprep.subr.bf16.mxu0 0
        %1346 = vmatpush1.bf16.msra.mxu0 0
        %1347 = vmatprep.subr.bf16.mxu0 0
        %1348 = vmatpush1.bf16.msra.mxu0 0
        %1349 = vmatprep.subr.bf16.mxu0 0
        %1350 = vmatpush1.bf16.msra.mxu0 0
        %1351 = vmatprep.subr.bf16.mxu0 0
        %1352 = vmatpush1.bf16.msra.mxu0 0
        %1353 = vmatprep.subr.bf16.mxu0 0
        %1354 = vmatpush1.bf16.msra.mxu0 0
        %1355 = vmatprep.subr.bf16.mxu0 0
        %1356 = vmatpush1.bf16.msra.mxu0 0
        %1357 = vmatprep.subr.bf16.mxu0 0
        %1358 = vmatpush1.bf16.msra.mxu0 0
        %1359 = vmatprep.subr.bf16.mxu0 0
        %1360 = vmatpush1.bf16.msra.mxu0 0
        %1361 = vmatprep.subr.bf16.mxu0 0
        %1362 = vmatpush1.bf16.msra.mxu0 0
        %1363 = vmatprep.subr.bf16.mxu0 0
        %1364 = vmatpush1.bf16.msra.mxu0 0
        %1365 = vmatprep.subr.bf16.mxu0 0
        %1366 = vmatpush1.bf16.msra.mxu0 0
        %1367 = vmatprep.subr.bf16.mxu0 0
        %1368 = vmatpush1.bf16.msra.mxu0 0
        %1369 = vmatprep.subr.bf16.mxu0 0
        %1370 = vmatpush1.bf16.msra.mxu0 0
        %1371 = vmatprep.mubr.bf16.mxu0 0
        %1372 = vmatmul.mubr.bf16.gmra.mrb[0].mxu0 %v1337
        %v1373 = vpop.f32.mrb[0].mxu0
        %v1374 = vadd.f32 %v1327, %v1373
        %v1375 = vpop.f32.mrb[0].mxu0
        %v1376 = vpop.f32.mrb[0].mxu0
        %v1377 = vadd.f32 %v1327, %v1376
        %v1378 = vpop.f32.mrb[0].mxu0
        %1379 = vdwg.mxu0
        %v1380 = vmul.f32 %v1374, %v1173
        %v1381 = vmul.f32 %v1377, %v1174
        %v1383 = vsel %vm1244, %v1374, 0
        %v1386 = vsel %vm1244, %v1377, 0
        %1388 = vmatprep.subr.mxu0 0.0
        %1389 = vmatpush1.msra.mxu0 %v1170
        %1390 = vmatprep.subr.mxu0 0.0
        %1391 = vmatpush1.msra.mxu0 0.0
        %1392 = vmatprep.subr.mxu0 0.0
        %1393 = vmatpush1.msra.mxu0 0.0
        %1394 = vmatprep.subr.mxu0 0.0
        %1395 = vmatpush1.msra.mxu0 0.0
        %1396 = vmatprep.subr.mxu0 0.0
        %1397 = vmatpush1.msra.mxu0 0.0
        %1398 = vmatprep.subr.mxu0 0.0
        %1399 = vmatpush1.msra.mxu0 0.0
        %1400 = vmatprep.subr.mxu0 0.0
        %1401 = vmatpush1.msra.mxu0 0.0
        %1402 = vmatprep.subr.mxu0 0.0
        %1403 = vmatpush1.msra.mxu0 0.0
        %1404 = vmatprep.subr.mxu0 0.0
        %1405 = vmatpush1.msra.mxu0 0.0
        %1406 = vmatprep.subr.mxu0 0.0
        %1407 = vmatpush1.msra.mxu0 0.0
        %1408 = vmatprep.subr.mxu0 0.0
        %1409 = vmatpush1.msra.mxu0 0.0
        %1410 = vmatprep.subr.mxu0 0.0
        %1411 = vmatpush1.msra.mxu0 0.0
        %1412 = vmatprep.subr.mxu0 0.0
        %1413 = vmatpush1.msra.mxu0 0.0
        %1414 = vmatprep.subr.mxu0 0.0
        %1415 = vmatpush1.msra.mxu0 0.0
        %1416 = vmatprep.subr.mxu0 0.0
        %1417 = vmatpush1.msra.mxu0 0.0
        %1418 = vmatprep.subr.mxu0 0.0
        %1419 = vmatpush1.msra.mxu0 0.0
        %1420 = vmatprep.subr.mxu0 0.0
        %1421 = vmatpush1.msra.mxu0 0.0
        %1422 = vmatprep.subr.mxu0 0.0
        %1423 = vmatpush1.msra.mxu0 0.0
        %1424 = vmatprep.subr.mxu0 0.0
        %1425 = vmatpush1.msra.mxu0 0.0
        %1426 = vmatprep.subr.mxu0 0.0
        %1427 = vmatpush1.msra.mxu0 0.0
        %1428 = vmatprep.subr.mxu0 0.0
        %1429 = vmatpush1.msra.mxu0 0.0
        %1430 = vmatprep.subr.mxu0 0.0
        %1431 = vmatpush1.msra.mxu0 0.0
        %1432 = vmatprep.subr.mxu0 0.0
        %1433 = vmatpush1.msra.mxu0 0.0
        %1434 = vmatprep.subr.mxu0 0.0
        %1435 = vmatpush1.msra.mxu0 0.0
        %1436 = vmatprep.subr.mxu0 0.0
        %1437 = vmatpush1.msra.mxu0 0.0
        %1438 = vmatprep.subr.mxu0 0.0
        %1439 = vmatpush1.msra.mxu0 0.0
        %1440 = vmatprep.subr.mxu0 0.0
        %1441 = vmatpush1.msra.mxu0 0.0
        %1442 = vmatprep.subr.mxu0 0.0
        %1443 = vmatpush1.msra.mxu0 0.0
        %1444 = vmatprep.subr.mxu0 0.0
        %1445 = vmatpush1.msra.mxu0 0.0
        %1446 = vmatprep.subr.mxu0 0.0
        %1447 = vmatpush1.msra.mxu0 0.0
        %1448 = vmatprep.subr.mxu0 0.0
        %1449 = vmatpush1.msra.mxu0 0.0
        %1450 = vmatprep.subr.mxu0 0.0
        %1451 = vmatpush1.msra.mxu0 0.0
        %1452 = vmatprep.mubr.f32.mxu0 0.0
        %1453 = vmatmul.mubr.f32.gmra.mrb[0].mxu0 %v1383
        %v1454 = vpop.f32.mrb[0].mxu0
        %v1455 = vadd.f32 0.0, %v1454
        %v1456 = vpop.f32.mrb[0].mxu0
        %1457 = vmatprep.mubr.f32.mxu0 0.0
        %1458 = vmatmul.mubr.f32.gmra.mrb[0].mxu0 %v1386
        %v1459 = vpop.f32.mrb[0].mxu0
        %v1460 = vadd.f32 0.0, %v1459
        %v1461 = vpop.f32.mrb[0].mxu0
        %1462 = vdwg.mxu0
        %v1463 = vmul.f32 %v1455, %v1175
        %v1464 = vmul.f32 %v1460, %v1176
        %v1465 = vadd.f32 %v1380, %v1463
        %v1466 = vadd.f32 %v1381, %v1464
        %v1467 = vld [vmem:[#allocation16] sm:$0xf]
        %v1468 = vld [vmem:[#allocation16 + $0x4] sm:$0xf]
        %v1469 = vld [vmem:[#allocation17] sm:$0x1]
        %v1471 = vlaneseq
        %v1472 = vshrl.u32 %v1471, 7
        %v1473 = vsub.s32 0, %v1472
        %v1474 = vrot.slane %v1469, %v1473
        %v1478 = vunpack.c.l.b16 %v1467
        %v1479 = vunpack.c.l.b16 %v1468
        %v1480 = vpack.c.b16 %v1479, %v1478
        %1482 = vmatprep.subr.bf16.mxu0 0
        %1483 = vmatpush1.bf16.msra.mxu0 %v1480
        %1484 = vmatprep.subr.bf16.mxu0 0
        %1485 = vmatpush1.bf16.msra.mxu0 0
        %1486 = vmatprep.subr.bf16.mxu0 0
        %1487 = vmatpush1.bf16.msra.mxu0 0
        %1488 = vmatprep.subr.bf16.mxu0 0
        %1489 = vmatpush1.bf16.msra.mxu0 0
        %1490 = vmatprep.subr.bf16.mxu0 0
        %1491 = vmatpush1.bf16.msra.mxu0 0
        %1492 = vmatprep.subr.bf16.mxu0 0
        %1493 = vmatpush1.bf16.msra.mxu0 0
        %1494 = vmatprep.subr.bf16.mxu0 0
        %1495 = vmatpush1.bf16.msra.mxu0 0
        %1496 = vmatprep.subr.bf16.mxu0 0
        %1497 = vmatpush1.bf16.msra.mxu0 0
        %1498 = vmatprep.subr.bf16.mxu0 0
        %1499 = vmatpush1.bf16.msra.mxu0 0
        %1500 = vmatprep.subr.bf16.mxu0 0
        %1501 = vmatpush1.bf16.msra.mxu0 0
        %1502 = vmatprep.subr.bf16.mxu0 0
        %1503 = vmatpush1.bf16.msra.mxu0 0
        %1504 = vmatprep.subr.bf16.mxu0 0
        %1505 = vmatpush1.bf16.msra.mxu0 0
        %1506 = vmatprep.subr.bf16.mxu0 0
        %1507 = vmatpush1.bf16.msra.mxu0 0
        %1508 = vmatprep.subr.bf16.mxu0 0
        %1509 = vmatpush1.bf16.msra.mxu0 0
        %1510 = vmatprep.subr.bf16.mxu0 0
        %1511 = vmatpush1.bf16.msra.mxu0 0
        %1512 = vmatprep.subr.bf16.mxu0 0
        %1513 = vmatpush1.bf16.msra.mxu0 0
        %1514 = vmatprep.mubr.bf16.mxu0 0
        %1515 = vmatmul.mubr.bf16.gmra.mrb[0].mxu0 %v1337
        %v1516 = vpop.f32.mrb[0].mxu0
        %v1517 = vadd.f32 %v1474, %v1516
        %v1518 = vpop.f32.mrb[0].mxu0
        %v1519 = vpop.f32.mrb[0].mxu0
        %v1520 = vadd.f32 %v1474, %v1519
        %v1521 = vpop.f32.mrb[0].mxu0
        %1522 = vdwg.mxu0
        %v1523 = vpack.c.bf16 %v1319, %v1319
        %v1524 = vpack.c.bf16 %v1466, %v1465
        %v1526 = vsel %vm1244, %v1523, 0
        %v1529 = vsel %vm1244, %v1524, 0
        %1531 = vmatprep.subr.bf16.mxu0 0
        %1532 = vmatpush1.bf16.xpose.msra.mxu0 %v1529
        %1533 = vmatprep.subr.bf16.mxu0 0
        %1534 = vmatpush1.bf16.xpose.msra.mxu0 0
        %1535 = vmatprep.subr.bf16.mxu0 0
        %1536 = vmatpush1.bf16.xpose.msra.mxu0 0
        %1537 = vmatprep.subr.bf16.mxu0 0
        %1538 = vmatpush1.bf16.xpose.msra.mxu0 0
        %1539 = vmatprep.subr.bf16.mxu0 0
        %1540 = vmatpush1.bf16.xpose.msra.mxu0 0
        %1541 = vmatprep.subr.bf16.mxu0 0
        %1542 = vmatpush1.bf16.xpose.msra.mxu0 0
        %1543 = vmatprep.subr.bf16.mxu0 0
        %1544 = vmatpush1.bf16.xpose.msra.mxu0 0
        %1545 = vmatprep.subr.bf16.mxu0 0
        %1546 = vmatpush1.bf16.xpose.msra.mxu0 0
        %1547 = vmatprep.subr.bf16.mxu0 0
        %1548 = vmatpush1.bf16.xpose.msra.mxu0 0
        %1549 = vmatprep.subr.bf16.mxu0 0
        %1550 = vmatpush1.bf16.xpose.msra.mxu0 0
        %1551 = vmatprep.subr.bf16.mxu0 0
        %1552 = vmatpush1.bf16.xpose.msra.mxu0 0
        %1553 = vmatprep.subr.bf16.mxu0 0
        %1554 = vmatpush1.bf16.xpose.msra.mxu0 0
        %1555 = vmatprep.subr.bf16.mxu0 0
        %1556 = vmatpush1.bf16.xpose.msra.mxu0 0
        %1557 = vmatprep.subr.bf16.mxu0 0
        %1558 = vmatpush1.bf16.xpose.msra.mxu0 0
        %1559 = vmatprep.subr.bf16.mxu0 0
        %1560 = vmatpush1.bf16.xpose.msra.mxu0 0
        %1561 = vmatprep.subr.bf16.mxu0 0
        %1562 = vmatpush1.bf16.xpose.msra.mxu0 0
        %1563 = vmatprep.mubr.bf16.mxu0 0
        %1564 = vmatmul.mubr.bf16.gmra.mrb[0].mxu0 %v1526
        %v1565 = vpop.f32.mrb[0].mxu0
        %v1566 = vadd.f32 0.0, %v1565
        %v1567 = vpop.f32.mrb[0].mxu0
        %v1568 = vpop.f32.mrb[0].mxu0
        %v1569 = vpop.f32.mrb[0].mxu0
        %1570 = vdwg.mxu0
        %v1571 = vld [vmem:[#allocation19] sm:$0x1]
        %v1573 = vlaneseq
        %v1574 = vshrl.u32 %v1573, 7
        %v1575 = vsub.s32 0, %v1574
        %v1576 = vrot.slane %v1571, %v1575
        %v1578 = vmul.f32 %v1319, %v1576
        %v1579 = vsel %vm1244, %v1578, 0.0
        %1580 = vadd.xlane.f32.xlu0 %v1579
        %v1581 = vpop.xlane.xlu0 %1580
        %vm1582 = vcmask 80896
        %v1583 = vsel %vm1582, %v1566, -inf
        %1584 = vmax.xlane.f32.xlu0 %v1583
        %v1585 = vpop.xlane.xlu0 %1584
        %v1586 = vmax.f32 %v1585, %v1581
        %v1587 = vsub.f32 %v1566, %v1586
        %v1588 = vmul.f32 %v1587, 1.442695
        %v1589 = vpow.pop %v1588
        %v1590 = vsub.f32 %v1581, %v1586
        %v1591 = vmul.f32 %v1590, 1.442695
        %v1592 = vpow.pop %v1591
        %v1593 = vsel %vm1582, %v1589, 0.0
        %1594 = vadd.xlane.f32.xlu0 %v1593
        %v1595 = vpop.xlane.xlu0 %1594
        %v1596 = vadd.f32 %v1595, %v1592
        %v1597 = vrcp.pop %v1596
        %v1598 = vmul.f32 %v1589, %v1597
        %v1599 = vpack.c.bf16 %v1598, %v1598
        %v1600 = vpack.c.bf16 %v1520, %v1517
        %v1601 = vmul.f32 %v1592, %v1597
        %v1602 = vld [vmem:[#allocation20] sm:$0x1]
        %v1604 = vlaneseq
        %v1605 = vshrl.u32 %v1604, 7
        %v1606 = vsub.s32 0, %v1605
        %v1607 = vrot.slane %v1602, %v1606
        %v1609 = vmul.f32 %v1601, %v1607
        %v1611 = vsel %vm1582, %v1599, 0
        %vm1613 = vcmask 1044480
        %v1615 = vsel %vm1613, %v1600, 0
        %1617 = vmatprep.subr.bf16.mxu0 0
        %1618 = vmatpush1.bf16.msra.mxu0 %v1615
        %1619 = vmatprep.subr.bf16.mxu0 0
        %1620 = vmatpush1.bf16.msra.mxu0 0
        %1621 = vmatprep.subr.bf16.mxu0 0
        %1622 = vmatpush1.bf16.msra.mxu0 0
        %1623 = vmatprep.subr.bf16.mxu0 0
        %1624 = vmatpush1.bf16.msra.mxu0 0
        %1625 = vmatprep.subr.bf16.mxu0 0
        %1626 = vmatpush1.bf16.msra.mxu0 0
        %1627 = vmatprep.subr.bf16.mxu0 0
        %1628 = vmatpush1.bf16.msra.mxu0 0
        %1629 = vmatprep.subr.bf16.mxu0 0
        %1630 = vmatpush1.bf16.msra.mxu0 0
        %1631 = vmatprep.subr.bf16.mxu0 0
        %1632 = vmatpush1.bf16.msra.mxu0 0
        %1633 = vmatprep.subr.bf16.mxu0 0
        %1634 = vmatpush1.bf16.msra.mxu0 0
        %1635 = vmatprep.subr.bf16.mxu0 0
        %1636 = vmatpush1.bf16.msra.mxu0 0
        %1637 = vmatprep.subr.bf16.mxu0 0
        %1638 = vmatpush1.bf16.msra.mxu0 0
        %1639 = vmatprep.subr.bf16.mxu0 0
        %1640 = vmatpush1.bf16.msra.mxu0 0
        %1641 = vmatprep.subr.bf16.mxu0 0
        %1642 = vmatpush1.bf16.msra.mxu0 0
        %1643 = vmatprep.subr.bf16.mxu0 0
        %1644 = vmatpush1.bf16.msra.mxu0 0
        %1645 = vmatprep.subr.bf16.mxu0 0
        %1646 = vmatpush1.bf16.msra.mxu0 0
        %1647 = vmatprep.subr.bf16.mxu0 0
        %1648 = vmatpush1.bf16.msra.mxu0 0
        %1649 = vmatprep.mubr.bf16.mxu0 0
        %1650 = vmatmul.mubr.bf16.gmra.mrb[0].mxu0 %v1611
        %v1651 = vpop.f32.mrb[0].mxu0
        %v1652 = vadd.f32 %v1609, %v1651
        %v1653 = vpop.f32.mrb[0].mxu0
        %v1654 = vpop.f32.mrb[0].mxu0
        %v1655 = vpop.f32.mrb[0].mxu0
        %1656 = vdwg.mxu0
        %v1657 = vpack.c.bf16 %v1652, %v1652
        %v1658 = vld [vmem:[#allocation22] sm:$0xf]
        %s1659 = scalar_lea.vmem [#allocation10], 16
        %v1660 = vld [vmem:[%s1659] sm:$0xf]
        %v1661 = vld [vmem:[%s1659 + $0x4] sm:$0xf]
        %v1662 = vld [vmem:[%s1659 + $0x8] sm:$0xf]
        %v1663 = vld [vmem:[%s1659 + $0xc] sm:$0xf]
        %s1664 = scalar_lea.vmem [#allocation11], 1
        %v1665 = vld [vmem:[%s1664] sm:$0x1]
        %v1667 = vlaneseq
        %v1668 = vshrl.u32 %v1667, 7
        %v1669 = vsub.s32 0, %v1668
        %v1670 = vrot.slane %v1665, %v1669
        %v1676 = vunpack.c.l.b16 %v1660
        %v1677 = vunpack.c.l.b16 %v1661
        %v1678 = vunpack.c.l.b16 %v1662
        %v1679 = vunpack.c.l.b16 %v1663
        %v1680 = vpack.c.b16 %v1677, %v1676
        %v1681 = vpack.c.b16 %v1679, %v1678
        %1684 = vmatprep.subr.bf16.mxu0 0
        %1685 = vmatpush1.bf16.msra.mxu0 %v1680
        %1686 = vmatprep.subr.bf16.mxu0 0
        %1687 = vmatpush1.bf16.msra.mxu0 %v1681
        %1688 = vmatprep.subr.bf16.mxu0 0
        %1689 = vmatpush1.bf16.msra.mxu0 0
        %1690 = vmatprep.subr.bf16.mxu0 0
        %1691 = vmatpush1.bf16.msra.mxu0 0
        %1692 = vmatprep.subr.bf16.mxu0 0
        %1693 = vmatpush1.bf16.msra.mxu0 0
        %1694 = vmatprep.subr.bf16.mxu0 0
        %1695 = vmatpush1.bf16.msra.mxu0 0
        %1696 = vmatprep.subr.bf16.mxu0 0
        %1697 = vmatpush1.bf16.msra.mxu0 0
        %1698 = vmatprep.subr.bf16.mxu0 0
        %1699 = vmatpush1.bf16.msra.mxu0 0
        %1700 = vmatprep.subr.bf16.mxu0 0
        %1701 = vmatpush1.bf16.msra.mxu0 0
        %1702 = vmatprep.subr.bf16.mxu0 0
        %1703 = vmatpush1.bf16.msra.mxu0 0
        %1704 = vmatprep.subr.bf16.mxu0 0
        %1705 = vmatpush1.bf16.msra.mxu0 0
        %1706 = vmatprep.subr.bf16.mxu0 0
        %1707 = vmatpush1.bf16.msra.mxu0 0
        %1708 = vmatprep.subr.bf16.mxu0 0
        %1709 = vmatpush1.bf16.msra.mxu0 0
        %1710 = vmatprep.subr.bf16.mxu0 0
        %1711 = vmatpush1.bf16.msra.mxu0 0
        %1712 = vmatprep.subr.bf16.mxu0 0
        %1713 = vmatpush1.bf16.msra.mxu0 0
        %1714 = vmatprep.subr.bf16.mxu0 0
        %1715 = vmatpush1.bf16.msra.mxu0 0
        %1716 = vmatprep.mubr.bf16.mxu0 0
        %1717 = vmatmul.mubr.bf16.gmra.mrb[0].mxu0 %v1201
        %v1718 = vpop.f32.mrb[0].mxu0
        %v1719 = vadd.f32 %v1670, %v1718
        %v1720 = vpop.f32.mrb[0].mxu0
        %v1721 = vpop.f32.mrb[0].mxu0
        %v1722 = vpop.f32.mrb[0].mxu0
        %1723 = vdwg.mxu0
        %v1724 = vmul.f32 %v1719, %v1171
        %v1726 = vsel %vm1244, %v1719, 0
        %1728 = vmatprep.subr.mxu0 0.0
        %1729 = vmatpush1.msra.mxu0 %v1170
        %1730 = vmatprep.subr.mxu0 0.0
        %1731 = vmatpush1.msra.mxu0 0.0
        %1732 = vmatprep.subr.mxu0 0.0
        %1733 = vmatpush1.msra.mxu0 0.0
        %1734 = vmatprep.subr.mxu0 0.0
        %1735 = vmatpush1.msra.mxu0 0.0
        %1736 = vmatprep.subr.mxu0 0.0
        %1737 = vmatpush1.msra.mxu0 0.0
        %1738 = vmatprep.subr.mxu0 0.0
        %1739 = vmatpush1.msra.mxu0 0.0
        %1740 = vmatprep.subr.mxu0 0.0
        %1741 = vmatpush1.msra.mxu0 0.0
        %1742 = vmatprep.subr.mxu0 0.0
        %1743 = vmatpush1.msra.mxu0 0.0
        %1744 = vmatprep.subr.mxu0 0.0
        %1745 = vmatpush1.msra.mxu0 0.0
        %1746 = vmatprep.subr.mxu0 0.0
        %1747 = vmatpush1.msra.mxu0 0.0
        %1748 = vmatprep.subr.mxu0 0.0
        %1749 = vmatpush1.msra.mxu0 0.0
        %1750 = vmatprep.subr.mxu0 0.0
        %1751 = vmatpush1.msra.mxu0 0.0
        %1752 = vmatprep.subr.mxu0 0.0
        %1753 = vmatpush1.msra.mxu0 0.0
        %1754 = vmatprep.subr.mxu0 0.0
        %1755 = vmatpush1.msra.mxu0 0.0
        %1756 = vmatprep.subr.mxu0 0.0
        %1757 = vmatpush1.msra.mxu0 0.0
        %1758 = vmatprep.subr.mxu0 0.0
        %1759 = vmatpush1.msra.mxu0 0.0
        %1760 = vmatprep.subr.mxu0 0.0
        %1761 = vmatpush1.msra.mxu0 0.0
        %1762 = vmatprep.subr.mxu0 0.0
        %1763 = vmatpush1.msra.mxu0 0.0
        %1764 = vmatprep.subr.mxu0 0.0
        %1765 = vmatpush1.msra.mxu0 0.0
        %1766 = vmatprep.subr.mxu0 0.0
        %1767 = vmatpush1.msra.mxu0 0.0
        %1768 = vmatprep.subr.mxu0 0.0
        %1769 = vmatpush1.msra.mxu0 0.0
        %1770 = vmatprep.subr.mxu0 0.0
        %1771 = vmatpush1.msra.mxu0 0.0
        %1772 = vmatprep.subr.mxu0 0.0
        %1773 = vmatpush1.msra.mxu0 0.0
        %1774 = vmatprep.subr.mxu0 0.0
        %1775 = vmatpush1.msra.mxu0 0.0
        %1776 = vmatprep.subr.mxu0 0.0
        %1777 = vmatpush1.msra.mxu0 0.0
        %1778 = vmatprep.subr.mxu0 0.0
        %1779 = vmatpush1.msra.mxu0 0.0
        %1780 = vmatprep.subr.mxu0 0.0
        %1781 = vmatpush1.msra.mxu0 0.0
        %1782 = vmatprep.subr.mxu0 0.0
        %1783 = vmatpush1.msra.mxu0 0.0
        %1784 = vmatprep.subr.mxu0 0.0
        %1785 = vmatpush1.msra.mxu0 0.0
        %1786 = vmatprep.subr.mxu0 0.0
        %1787 = vmatpush1.msra.mxu0 0.0
        %1788 = vmatprep.subr.mxu0 0.0
        %1789 = vmatpush1.msra.mxu0 0.0
        %1790 = vmatprep.subr.mxu0 0.0
        %1791 = vmatpush1.msra.mxu0 0.0
        %1792 = vmatprep.mubr.f32.mxu0 0.0
        %1793 = vmatmul.mubr.f32.gmra.mrb[0].mxu0 %v1726
        %v1794 = vpop.f32.mrb[0].mxu0
        %v1795 = vadd.f32 0.0, %v1794
        %v1796 = vpop.f32.mrb[0].mxu0
        %1797 = vdwg.mxu0
        %v1798 = vmul.f32 %v1795, %v1172
        %v1799 = vadd.f32 %v1724, %v1798
        %s1800 = scalar_lea.vmem [#allocation13], 8
        %v1801 = vld [vmem:[%s1800] sm:$0xf]
        %v1802 = vld [vmem:[%s1800 + $0x4] sm:$0xf]
        %s1803 = scalar_lea.vmem [#allocation14], 1
        %v1804 = vld [vmem:[%s1803] sm:$0x1]
        %v1806 = vlaneseq
        %v1807 = vshrl.u32 %v1806, 7
        %v1808 = vsub.s32 0, %v1807
        %v1809 = vrot.slane %v1804, %v1808
        %v1813 = vunpack.c.l.b16 %v1801
        %v1814 = vunpack.c.l.b16 %v1802
        %v1815 = vpack.c.b16 %v1814, %v1813
        %1817 = vmatprep.subr.bf16.mxu0 0
        %1818 = vmatpush1.bf16.msra.mxu0 %v1815
        %1819 = vmatprep.subr.bf16.mxu0 0
        %1820 = vmatpush1.bf16.msra.mxu0 0
        %1821 = vmatprep.subr.bf16.mxu0 0
        %1822 = vmatpush1.bf16.msra.mxu0 0
        %1823 = vmatprep.subr.bf16.mxu0 0
        %1824 = vmatpush1.bf16.msra.mxu0 0
        %1825 = vmatprep.subr.bf16.mxu0 0
        %1826 = vmatpush1.bf16.msra.mxu0 0
        %1827 = vmatprep.subr.bf16.mxu0 0
        %1828 = vmatpush1.bf16.msra.mxu0 0
        %1829 = vmatprep.subr.bf16.mxu0 0
        %1830 = vmatpush1.bf16.msra.mxu0 0
        %1831 = vmatprep.subr.bf16.mxu0 0
        %1832 = vmatpush1.bf16.msra.mxu0 0
        %1833 = vmatprep.subr.bf16.mxu0 0
        %1834 = vmatpush1.bf16.msra.mxu0 0
        %1835 = vmatprep.subr.bf16.mxu0 0
        %1836 = vmatpush1.bf16.msra.mxu0 0
        %1837 = vmatprep.subr.bf16.mxu0 0
        %1838 = vmatpush1.bf16.msra.mxu0 0
        %1839 = vmatprep.subr.bf16.mxu0 0
        %1840 = vmatpush1.bf16.msra.mxu0 0
        %1841 = vmatprep.subr.bf16.mxu0 0
        %1842 = vmatpush1.bf16.msra.mxu0 0
        %1843 = vmatprep.subr.bf16.mxu0 0
        %1844 = vmatpush1.bf16.msra.mxu0 0
        %1845 = vmatprep.subr.bf16.mxu0 0
        %1846 = vmatpush1.bf16.msra.mxu0 0
        %1847 = vmatprep.subr.bf16.mxu0 0
        %1848 = vmatpush1.bf16.msra.mxu0 0
        %1849 = vmatprep.mubr.bf16.mxu0 0
        %1850 = vmatmul.mubr.bf16.gmra.mrb[0].mxu0 %v1337
        %v1851 = vpop.f32.mrb[0].mxu0
        %v1852 = vadd.f32 %v1809, %v1851
        %v1853 = vpop.f32.mrb[0].mxu0
        %v1854 = vpop.f32.mrb[0].mxu0
        %v1855 = vadd.f32 %v1809, %v1854
        %v1856 = vpop.f32.mrb[0].mxu0
        %1857 = vdwg.mxu0
        %v1858 = vmul.f32 %v1852, %v1173
        %v1859 = vmul.f32 %v1855, %v1174
        %v1861 = vsel %vm1244, %v1852, 0
        %v1864 = vsel %vm1244, %v1855, 0
        %1866 = vmatprep.subr.mxu0 0.0
        %1867 = vmatpush1.msra.mxu0 %v1170
        %1868 = vmatprep.subr.mxu0 0.0
        %1869 = vmatpush1.msra.mxu0 0.0
        %1870 = vmatprep.subr.mxu0 0.0
        %1871 = vmatpush1.msra.mxu0 0.0
        %1872 = vmatprep.subr.mxu0 0.0
        %1873 = vmatpush1.msra.mxu0 0.0
        %1874 = vmatprep.subr.mxu0 0.0
        %1875 = vmatpush1.msra.mxu0 0.0
        %1876 = vmatprep.subr.mxu0 0.0
        %1877 = vmatpush1.msra.mxu0 0.0
        %1878 = vmatprep.subr.mxu0 0.0
        %1879 = vmatpush1.msra.mxu0 0.0
        %1880 = vmatprep.subr.mxu0 0.0
        %1881 = vmatpush1.msra.mxu0 0.0
        %1882 = vmatprep.subr.mxu0 0.0
        %1883 = vmatpush1.msra.mxu0 0.0
        %1884 = vmatprep.subr.mxu0 0.0
        %1885 = vmatpush1.msra.mxu0 0.0
        %1886 = vmatprep.subr.mxu0 0.0
        %1887 = vmatpush1.msra.mxu0 0.0
        %1888 = vmatprep.subr.mxu0 0.0
        %1889 = vmatpush1.msra.mxu0 0.0
        %1890 = vmatprep.subr.mxu0 0.0
        %1891 = vmatpush1.msra.mxu0 0.0
        %1892 = vmatprep.subr.mxu0 0.0
        %1893 = vmatpush1.msra.mxu0 0.0
        %1894 = vmatprep.subr.mxu0 0.0
        %1895 = vmatpush1.msra.mxu0 0.0
        %1896 = vmatprep.subr.mxu0 0.0
        %1897 = vmatpush1.msra.mxu0 0.0
        %1898 = vmatprep.subr.mxu0 0.0
        %1899 = vmatpush1.msra.mxu0 0.0
        %1900 = vmatprep.subr.mxu0 0.0
        %1901 = vmatpush1.msra.mxu0 0.0
        %1902 = vmatprep.subr.mxu0 0.0
        %1903 = vmatpush1.msra.mxu0 0.0
        %1904 = vmatprep.subr.mxu0 0.0
        %1905 = vmatpush1.msra.mxu0 0.0
        %1906 = vmatprep.subr.mxu0 0.0
        %1907 = vmatpush1.msra.mxu0 0.0
        %1908 = vmatprep.subr.mxu0 0.0
        %1909 = vmatpush1.msra.mxu0 0.0
        %1910 = vmatprep.subr.mxu0 0.0
        %1911 = vmatpush1.msra.mxu0 0.0
        %1912 = vmatprep.subr.mxu0 0.0
        %1913 = vmatpush1.msra.mxu0 0.0
        %1914 = vmatprep.subr.mxu0 0.0
        %1915 = vmatpush1.msra.mxu0 0.0
        %1916 = vmatprep.subr.mxu0 0.0
        %1917 = vmatpush1.msra.mxu0 0.0
        %1918 = vmatprep.subr.mxu0 0.0
        %1919 = vmatpush1.msra.mxu0 0.0
        %1920 = vmatprep.subr.mxu0 0.0
        %1921 = vmatpush1.msra.mxu0 0.0
        %1922 = vmatprep.subr.mxu0 0.0
        %1923 = vmatpush1.msra.mxu0 0.0
        %1924 = vmatprep.subr.mxu0 0.0
        %1925 = vmatpush1.msra.mxu0 0.0
        %1926 = vmatprep.subr.mxu0 0.0
        %1927 = vmatpush1.msra.mxu0 0.0
        %1928 = vmatprep.subr.mxu0 0.0
        %1929 = vmatpush1.msra.mxu0 0.0
        %1930 = vmatprep.mubr.f32.mxu0 0.0
        %1931 = vmatmul.mubr.f32.gmra.mrb[0].mxu0 %v1861
        %v1932 = vpop.f32.mrb[0].mxu0
        %v1933 = vadd.f32 0.0, %v1932
        %v1934 = vpop.f32.mrb[0].mxu0
        %1935 = vmatprep.mubr.f32.mxu0 0.0
        %1936 = vmatmul.mubr.f32.gmra.mrb[0].mxu0 %v1864
        %v1937 = vpop.f32.mrb[0].mxu0
        %v1938 = vadd.f32 0.0, %v1937
        %v1939 = vpop.f32.mrb[0].mxu0
        %1940 = vdwg.mxu0
        %v1941 = vmul.f32 %v1933, %v1175
        %v1942 = vmul.f32 %v1938, %v1176
        %v1943 = vadd.f32 %v1858, %v1941
        %v1944 = vadd.f32 %v1859, %v1942
        %s1945 = scalar_lea.vmem [#allocation16], 8
        %v1946 = vld [vmem:[%s1945] sm:$0xf]
        %v1947 = vld [vmem:[%s1945 + $0x4] sm:$0xf]
        %s1948 = scalar_lea.vmem [#allocation17], 1
        %v1949 = vld [vmem:[%s1948] sm:$0x1]
        %v1951 = vlaneseq
        %v1952 = vshrl.u32 %v1951, 7
        %v1953 = vsub.s32 0, %v1952
        %v1954 = vrot.slane %v1949, %v1953
        %v1958 = vunpack.c.l.b16 %v1946
        %v1959 = vunpack.c.l.b16 %v1947
        %v1960 = vpack.c.b16 %v1959, %v1958
        %1962 = vmatprep.subr.bf16.mxu0 0
        %1963 = vmatpush1.bf16.msra.mxu0 %v1960
        %1964 = vmatprep.subr.bf16.mxu0 0
        %1965 = vmatpush1.bf16.msra.mxu0 0
        %1966 = vmatprep.subr.bf16.mxu0 0
        %1967 = vmatpush1.bf16.msra.mxu0 0
        %1968 = vmatprep.subr.bf16.mxu0 0
        %1969 = vmatpush1.bf16.msra.mxu0 0
        %1970 = vmatprep.subr.bf16.mxu0 0
        %1971 = vmatpush1.bf16.msra.mxu0 0
        %1972 = vmatprep.subr.bf16.mxu0 0
        %1973 = vmatpush1.bf16.msra.mxu0 0
        %1974 = vmatprep.subr.bf16.mxu0 0
        %1975 = vmatpush1.bf16.msra.mxu0 0
        %1976 = vmatprep.subr.bf16.mxu0 0
        %1977 = vmatpush1.bf16.msra.mxu0 0
        %1978 = vmatprep.subr.bf16.mxu0 0
        %1979 = vmatpush1.bf16.msra.mxu0 0
        %1980 = vmatprep.subr.bf16.mxu0 0
        %1981 = vmatpush1.bf16.msra.mxu0 0
        %1982 = vmatprep.subr.bf16.mxu0 0
        %1983 = vmatpush1.bf16.msra.mxu0 0
        %1984 = vmatprep.subr.bf16.mxu0 0
        %1985 = vmatpush1.bf16.msra.mxu0 0
        %1986 = vmatprep.subr.bf16.mxu0 0
        %1987 = vmatpush1.bf16.msra.mxu0 0
        %1988 = vmatprep.subr.bf16.mxu0 0
        %1989 = vmatpush1.bf16.msra.mxu0 0
        %1990 = vmatprep.subr.bf16.mxu0 0
        %1991 = vmatpush1.bf16.msra.mxu0 0
        %1992 = vmatprep.subr.bf16.mxu0 0
        %1993 = vmatpush1.bf16.msra.mxu0 0
        %1994 = vmatprep.mubr.bf16.mxu0 0
        %1995 = vmatmul.mubr.bf16.gmra.mrb[0].mxu0 %v1337
        %v1996 = vpop.f32.mrb[0].mxu0
        %v1997 = vadd.f32 %v1954, %v1996
        %v1998 = vpop.f32.mrb[0].mxu0
        %v1999 = vpop.f32.mrb[0].mxu0
        %v2000 = vadd.f32 %v1954, %v1999
        %v2001 = vpop.f32.mrb[0].mxu0
        %2002 = vdwg.mxu0
        %v2003 = vpack.c.bf16 %v1799, %v1799
        %v2004 = vpack.c.bf16 %v1944, %v1943
        %v2006 = vsel %vm1244, %v2003, 0
        %v2009 = vsel %vm1244, %v2004, 0
        %2011 = vmatprep.subr.bf16.mxu0 0
        %2012 = vmatpush1.bf16.xpose.msra.mxu0 %v2009
        %2013 = vmatprep.subr.bf16.mxu0 0
        %2014 = vmatpush1.bf16.xpose.msra.mxu0 0
        %2015 = vmatprep.subr.bf16.mxu0 0
        %2016 = vmatpush1.bf16.xpose.msra.mxu0 0
        %2017 = vmatprep.subr.bf16.mxu0 0
        %2018 = vmatpush1.bf16.xpose.msra.mxu0 0
        %2019 = vmatprep.subr.bf16.mxu0 0
        %2020 = vmatpush1.bf16.xpose.msra.mxu0 0
        %2021 = vmatprep.subr.bf16.mxu0 0
        %2022 = vmatpush1.bf16.xpose.msra.mxu0 0
        %2023 = vmatprep.subr.bf16.mxu0 0
        %2024 = vmatpush1.bf16.xpose.msra.mxu0 0
        %2025 = vmatprep.subr.bf16.mxu0 0
        %2026 = vmatpush1.bf16.xpose.msra.mxu0 0
        %2027 = vmatprep.subr.bf16.mxu0 0
        %2028 = vmatpush1.bf16.xpose.msra.mxu0 0
        %2029 = vmatprep.subr.bf16.mxu0 0
        %2030 = vmatpush1.bf16.xpose.msra.mxu0 0
        %2031 = vmatprep.subr.bf16.mxu0 0
        %2032 = vmatpush1.bf16.xpose.msra.mxu0 0
        %2033 = vmatprep.subr.bf16.mxu0 0
        %2034 = vmatpush1.bf16.xpose.msra.mxu0 0
        %2035 = vmatprep.subr.bf16.mxu0 0
        %2036 = vmatpush1.bf16.xpose.msra.mxu0 0
        %2037 = vmatprep.subr.bf16.mxu0 0
        %2038 = vmatpush1.bf16.xpose.msra.mxu0 0
        %2039 = vmatprep.subr.bf16.mxu0 0
        %2040 = vmatpush1.bf16.xpose.msra.mxu0 0
        %2041 = vmatprep.subr.bf16.mxu0 0
        %2042 = vmatpush1.bf16.xpose.msra.mxu0 0
        %2043 = vmatprep.mubr.bf16.mxu0 0
        %2044 = vmatmul.mubr.bf16.gmra.mrb[0].mxu0 %v2006
        %v2045 = vpop.f32.mrb[0].mxu0
        %v2046 = vadd.f32 0.0, %v2045
        %v2047 = vpop.f32.mrb[0].mxu0
        %v2048 = vpop.f32.mrb[0].mxu0
        %v2049 = vpop.f32.mrb[0].mxu0
        %2050 = vdwg.mxu0
        %s2051 = scalar_lea.vmem [#allocation19], 1
        %v2052 = vld [vmem:[%s2051] sm:$0x1]
        %v2054 = vlaneseq
        %v2055 = vshrl.u32 %v2054, 7
        %v2056 = vsub.s32 0, %v2055
        %v2057 = vrot.slane %v2052, %v2056
        %v2059 = vmul.f32 %v1799, %v2057
        %v2060 = vsel %vm1244, %v2059, 0.0
        %2061 = vadd.xlane.f32.xlu0 %v2060
        %v2062 = vpop.xlane.xlu0 %2061
        %v2063 = vsel %vm1582, %v2046, -inf
        %2064 = vmax.xlane.f32.xlu0 %v2063
        %v2065 = vpop.xlane.xlu0 %2064
        %v2066 = vmax.f32 %v2065, %v2062
        %v2067 = vsub.f32 %v2046, %v2066
        %v2068 = vmul.f32 %v2067, 1.442695
        %v2069 = vpow.pop %v2068
        %v2070 = vsub.f32 %v2062, %v2066
        %v2071 = vmul.f32 %v2070, 1.442695
        %v2072 = vpow.pop %v2071
        %v2073 = vsel %vm1582, %v2069, 0.0
        %2074 = vadd.xlane.f32.xlu0 %v2073
        %v2075 = vpop.xlane.xlu0 %2074
        %v2076 = vadd.f32 %v2075, %v2072
        %v2077 = vrcp.pop %v2076
        %v2078 = vmul.f32 %v2069, %v2077
        %v2079 = vpack.c.bf16 %v2078, %v2078
        %v2080 = vpack.c.bf16 %v2000, %v1997
        %v2081 = vmul.f32 %v2072, %v2077
        %s2082 = scalar_lea.vmem [#allocation20], 1
        %v2083 = vld [vmem:[%s2082] sm:$0x1]
        %v2085 = vlaneseq
        %v2086 = vshrl.u32 %v2085, 7
        %v2087 = vsub.s32 0, %v2086
        %v2088 = vrot.slane %v2083, %v2087
        %v2090 = vmul.f32 %v2081, %v2088
        %v2092 = vsel %vm1582, %v2079, 0
        %v2095 = vsel %vm1613, %v2080, 0
        %2097 = vmatprep.subr.bf16.mxu0 0
        %2098 = vmatpush1.bf16.msra.mxu0 %v2095
        %2099 = vmatprep.subr.bf16.mxu0 0
        %2100 = vmatpush1.bf16.msra.mxu0 0
        %2101 = vmatprep.subr.bf16.mxu0 0
        %2102 = vmatpush1.bf16.msra.mxu0 0
        %2103 = vmatprep.subr.bf16.mxu0 0
        %2104 = vmatpush1.bf16.msra.mxu0 0
        %2105 = vmatprep.subr.bf16.mxu0 0
        %2106 = vmatpush1.bf16.msra.mxu0 0
        %2107 = vmatprep.subr.bf16.mxu0 0
        %2108 = vmatpush1.bf16.msra.mxu0 0
        %2109 = vmatprep.subr.bf16.mxu0 0
        %2110 = vmatpush1.bf16.msra.mxu0 0
        %2111 = vmatprep.subr.bf16.mxu0 0
        %2112 = vmatpush1.bf16.msra.mxu0 0
        %2113 = vmatprep.subr.bf16.mxu0 0
        %2114 = vmatpush1.bf16.msra.mxu0 0
        %2115 = vmatprep.subr.bf16.mxu0 0
        %2116 = vmatpush1.bf16.msra.mxu0 0
        %2117 = vmatprep.subr.bf16.mxu0 0
        %2118 = vmatpush1.bf16.msra.mxu0 0
        %2119 = vmatprep.subr.bf16.mxu0 0
        %2120 = vmatpush1.bf16.msra.mxu0 0
        %2121 = vmatprep.subr.bf16.mxu0 0
        %2122 = vmatpush1.bf16.msra.mxu0 0
        %2123 = vmatprep.subr.bf16.mxu0 0
        %2124 = vmatpush1.bf16.msra.mxu0 0
        %2125 = vmatprep.subr.bf16.mxu0 0
        %2126 = vmatpush1.bf16.msra.mxu0 0
        %2127 = vmatprep.subr.bf16.mxu0 0
        %2128 = vmatpush1.bf16.msra.mxu0 0
        %2129 = vmatprep.mubr.bf16.mxu0 0
        %2130 = vmatmul.mubr.bf16.gmra.mrb[0].mxu0 %v2092
        %v2131 = vpop.f32.mrb[0].mxu0
        %v2132 = vadd.f32 %v2090, %v2131
        %v2133 = vpop.f32.mrb[0].mxu0
        %v2134 = vpop.f32.mrb[0].mxu0
        %v2135 = vpop.f32.mrb[0].mxu0
        %2136 = vdwg.mxu0
        %v2137 = vpack.c.bf16 %v2132, %v2132
        %s2138 = scalar_lea.vmem [#allocation22], 4
        %v2139 = vld [vmem:[%s2138] sm:$0xf]
        %v2141 = vsel %vm1244, %v2137, 0
        %vm2143 = vcmask 1043456
        %v2145 = vsel %vm2143, %v2139, 0
        %2147 = vmatprep.subr.bf16.mxu0 0
        %2148 = vmatpush1.bf16.msra.mxu0 %v2145
        %2149 = vmatprep.subr.bf16.mxu0 0
        %2150 = vmatpush1.bf16.msra.mxu0 0
        %2151 = vmatprep.subr.bf16.mxu0 0
        %2152 = vmatpush1.bf16.msra.mxu0 0
        %2153 = vmatprep.subr.bf16.mxu0 0
        %2154 = vmatpush1.bf16.msra.mxu0 0
        %2155 = vmatprep.subr.bf16.mxu0 0
        %2156 = vmatpush1.bf16.msra.mxu0 0
        %2157 = vmatprep.subr.bf16.mxu0 0
        %2158 = vmatpush1.bf16.msra.mxu0 0
        %2159 = vmatprep.subr.bf16.mxu0 0
        %2160 = vmatpush1.bf16.msra.mxu0 0
        %2161 = vmatprep.subr.bf16.mxu0 0
        %2162 = vmatpush1.bf16.msra.mxu0 0
        %2163 = vmatprep.subr.bf16.mxu0 0
        %2164 = vmatpush1.bf16.msra.mxu0 0
        %2165 = vmatprep.subr.bf16.mxu0 0
        %2166 = vmatpush1.bf16.msra.mxu0 0
        %2167 = vmatprep.subr.bf16.mxu0 0
        %2168 = vmatpush1.bf16.msra.mxu0 0
        %2169 = vmatprep.subr.bf16.mxu0 0
        %2170 = vmatpush1.bf16.msra.mxu0 0
        %2171 = vmatprep.subr.bf16.mxu0 0
        %2172 = vmatpush1.bf16.msra.mxu0 0
        %2173 = vmatprep.subr.bf16.mxu0 0
        %2174 = vmatpush1.bf16.msra.mxu0 0
        %2175 = vmatprep.subr.bf16.mxu0 0
        %2176 = vmatpush1.bf16.msra.mxu0 0
        %2177 = vmatprep.subr.bf16.mxu0 0
        %2178 = vmatpush1.bf16.msra.mxu0 0
        %2179 = vmatprep.mubr.bf16.mxu0 0
        %2180 = vmatmul.mubr.bf16.gmra.mrb[0].mxu0 %v2141
        %v2181 = vpop.f32.mrb[0].mxu0
        %v2182 = vadd.f32 0.0, %v2181
        %v2183 = vpop.f32.mrb[0].mxu0
        %v2184 = vpop.f32.mrb[0].mxu0
        %v2185 = vpop.f32.mrb[0].mxu0
        %2186 = vdwg.mxu0
        %v2188 = vsel %vm1244, %v1657, 0
        %v2191 = vsel %vm2143, %v1658, 0
        %2193 = vmatprep.subr.bf16.mxu0 0
        %2194 = vmatpush1.bf16.msra.mxu0 %v2191
        %2195 = vmatprep.subr.bf16.mxu0 0
        %2196 = vmatpush1.bf16.msra.mxu0 0
        %2197 = vmatprep.subr.bf16.mxu0 0
        %2198 = vmatpush1.bf16.msra.mxu0 0
        %2199 = vmatprep.subr.bf16.mxu0 0
        %2200 = vmatpush1.bf16.msra.mxu0 0
        %2201 = vmatprep.subr.bf16.mxu0 0
        %2202 = vmatpush1.bf16.msra.mxu0 0
        %2203 = vmatprep.subr.bf16.mxu0 0
        %2204 = vmatpush1.bf16.msra.mxu0 0
        %2205 = vmatprep.subr.bf16.mxu0 0
        %2206 = vmatpush1.bf16.msra.mxu0 0
        %2207 = vmatprep.subr.bf16.mxu0 0
        %2208 = vmatpush1.bf16.msra.mxu0 0
        %2209 = vmatprep.subr.bf16.mxu0 0
        %2210 = vmatpush1.bf16.msra.mxu0 0
        %2211 = vmatprep.subr.bf16.mxu0 0
        %2212 = vmatpush1.bf16.msra.mxu0 0
        %2213 = vmatprep.subr.bf16.mxu0 0
        %2214 = vmatpush1.bf16.msra.mxu0 0
        %2215 = vmatprep.subr.bf16.mxu0 0
        %2216 = vmatpush1.bf16.msra.mxu0 0
        %2217 = vmatprep.subr.bf16.mxu0 0
        %2218 = vmatpush1.bf16.msra.mxu0 0
        %2219 = vmatprep.subr.bf16.mxu0 0
        %2220 = vmatpush1.bf16.msra.mxu0 0
        %2221 = vmatprep.subr.bf16.mxu0 0
        %2222 = vmatpush1.bf16.msra.mxu0 0
        %2223 = vmatprep.subr.bf16.mxu0 0
        %2224 = vmatpush1.bf16.msra.mxu0 0
        %2225 = vmatprep.mubr.bf16.mxu0 0
        %2226 = vmatmul.mubr.bf16.gmra.mrb[0].mxu0 %v2188
        %v2227 = vpop.f32.mrb[0].mxu0
        %v2228 = vadd.f32 %v2182, %v2227
        %v2229 = vpop.f32.mrb[0].mxu0
        %v2230 = vpop.f32.mrb[0].mxu0
        %v2231 = vpop.f32.mrb[0].mxu0
        %2232 = vdwg.mxu0
        %s2233 = scalar_lea.vmem [#allocation10], 32
        %v2234 = vld [vmem:[%s2233] sm:$0xf]
        %v2235 = vld [vmem:[%s2233 + $0x4] sm:$0xf]
        %v2236 = vld [vmem:[%s2233 + $0x8] sm:$0xf]
        %v2237 = vld [vmem:[%s2233 + $0xc] sm:$0xf]
        %s2238 = scalar_lea.vmem [#allocation11], 2
        %v2239 = vld [vmem:[%s2238] sm:$0x1]
        %v2241 = vlaneseq
        %v2242 = vshrl.u32 %v2241, 7
        %v2243 = vsub.s32 0, %v2242
        %v2244 = vrot.slane %v2239, %v2243
        %v2250 = vunpack.c.l.b16 %v2234
        %v2251 = vunpack.c.l.b16 %v2235
        %v2252 = vunpack.c.l.b16 %v2236
        %v2253 = vunpack.c.l.b16 %v2237
        %v2254 = vpack.c.b16 %v2251, %v2250
        %v2255 = vpack.c.b16 %v2253, %v2252
        %2258 = vmatprep.subr.bf16.mxu0 0
        %2259 = vmatpush1.bf16.msra.mxu0 %v2254
        %2260 = vmatprep.subr.bf16.mxu0 0
        %2261 = vmatpush1.bf16.msra.mxu0 %v2255
        %2262 = vmatprep.subr.bf16.mxu0 0
        %2263 = vmatpush1.bf16.msra.mxu0 0
        %2264 = vmatprep.subr.bf16.mxu0 0
        %2265 = vmatpush1.bf16.msra.mxu0 0
        %2266 = vmatprep.subr.bf16.mxu0 0
        %2267 = vmatpush1.bf16.msra.mxu0 0
        %2268 = vmatprep.subr.bf16.mxu0 0
        %2269 = vmatpush1.bf16.msra.mxu0 0
        %2270 = vmatprep.subr.bf16.mxu0 0
        %2271 = vmatpush1.bf16.msra.mxu0 0
        %2272 = vmatprep.subr.bf16.mxu0 0
        %2273 = vmatpush1.bf16.msra.mxu0 0
        %2274 = vmatprep.subr.bf16.mxu0 0
        %2275 = vmatpush1.bf16.msra.mxu0 0
        %2276 = vmatprep.subr.bf16.mxu0 0
        %2277 = vmatpush1.bf16.msra.mxu0 0
        %2278 = vmatprep.subr.bf16.mxu0 0
        %2279 = vmatpush1.bf16.msra.mxu0 0
        %2280 = vmatprep.subr.bf16.mxu0 0
        %2281 = vmatpush1.bf16.msra.mxu0 0
        %2282 = vmatprep.subr.bf16.mxu0 0
        %2283 = vmatpush1.bf16.msra.mxu0 0
        %2284 = vmatprep.subr.bf16.mxu0 0
        %2285 = vmatpush1.bf16.msra.mxu0 0
        %2286 = vmatprep.subr.bf16.mxu0 0
        %2287 = vmatpush1.bf16.msra.mxu0 0
        %2288 = vmatprep.subr.bf16.mxu0 0
        %2289 = vmatpush1.bf16.msra.mxu0 0
        %2290 = vmatprep.mubr.bf16.mxu0 0
        %2291 = vmatmul.mubr.bf16.gmra.mrb[0].mxu0 %v1201
        %v2292 = vpop.f32.mrb[0].mxu0
        %v2293 = vadd.f32 %v2244, %v2292
        %v2294 = vpop.f32.mrb[0].mxu0
        %v2295 = vpop.f32.mrb[0].mxu0
        %v2296 = vpop.f32.mrb[0].mxu0
        %2297 = vdwg.mxu0
        %v2298 = vmul.f32 %v2293, %v1171
        %v2300 = vsel %vm1244, %v2293, 0
        %2302 = vmatprep.subr.mxu0 0.0
        %2303 = vmatpush1.msra.mxu0 %v1170
        %2304 = vmatprep.subr.mxu0 0.0
        %2305 = vmatpush1.msra.mxu0 0.0
        %2306 = vmatprep.subr.mxu0 0.0
        %2307 = vmatpush1.msra.mxu0 0.0
        %2308 = vmatprep.subr.mxu0 0.0
        %2309 = vmatpush1.msra.mxu0 0.0
        %2310 = vmatprep.subr.mxu0 0.0
        %2311 = vmatpush1.msra.mxu0 0.0
        %2312 = vmatprep.subr.mxu0 0.0
        %2313 = vmatpush1.msra.mxu0 0.0
        %2314 = vmatprep.subr.mxu0 0.0
        %2315 = vmatpush1.msra.mxu0 0.0
        %2316 = vmatprep.subr.mxu0 0.0
        %2317 = vmatpush1.msra.mxu0 0.0
        %2318 = vmatprep.subr.mxu0 0.0
        %2319 = vmatpush1.msra.mxu0 0.0
        %2320 = vmatprep.subr.mxu0 0.0
        %2321 = vmatpush1.msra.mxu0 0.0
        %2322 = vmatprep.subr.mxu0 0.0
        %2323 = vmatpush1.msra.mxu0 0.0
        %2324 = vmatprep.subr.mxu0 0.0
        %2325 = vmatpush1.msra.mxu0 0.0
        %2326 = vmatprep.subr.mxu0 0.0
        %2327 = vmatpush1.msra.mxu0 0.0
        %2328 = vmatprep.subr.mxu0 0.0
        %2329 = vmatpush1.msra.mxu0 0.0
        %2330 = vmatprep.subr.mxu0 0.0
        %2331 = vmatpush1.msra.mxu0 0.0
        %2332 = vmatprep.subr.mxu0 0.0
        %2333 = vmatpush1.msra.mxu0 0.0
        %2334 = vmatprep.subr.mxu0 0.0
        %2335 = vmatpush1.msra.mxu0 0.0
        %2336 = vmatprep.subr.mxu0 0.0
        %2337 = vmatpush1.msra.mxu0 0.0
        %2338 = vmatprep.subr.mxu0 0.0
        %2339 = vmatpush1.msra.mxu0 0.0
        %2340 = vmatprep.subr.mxu0 0.0
        %2341 = vmatpush1.msra.mxu0 0.0
        %2342 = vmatprep.subr.mxu0 0.0
        %2343 = vmatpush1.msra.mxu0 0.0
        %2344 = vmatprep.subr.mxu0 0.0
        %2345 = vmatpush1.msra.mxu0 0.0
        %2346 = vmatprep.subr.mxu0 0.0
        %2347 = vmatpush1.msra.mxu0 0.0
        %2348 = vmatprep.subr.mxu0 0.0
        %2349 = vmatpush1.msra.mxu0 0.0
        %2350 = vmatprep.subr.mxu0 0.0
        %2351 = vmatpush1.msra.mxu0 0.0
        %2352 = vmatprep.subr.mxu0 0.0
        %2353 = vmatpush1.msra.mxu0 0.0
        %2354 = vmatprep.subr.mxu0 0.0
        %2355 = vmatpush1.msra.mxu0 0.0
        %2356 = vmatprep.subr.mxu0 0.0
        %2357 = vmatpush1.msra.mxu0 0.0
        %2358 = vmatprep.subr.mxu0 0.0
        %2359 = vmatpush1.msra.mxu0 0.0
        %2360 = vmatprep.subr.mxu0 0.0
        %2361 = vmatpush1.msra.mxu0 0.0
        %2362 = vmatprep.subr.mxu0 0.0
        %2363 = vmatpush1.msra.mxu0 0.0
        %2364 = vmatprep.subr.mxu0 0.0
        %2365 = vmatpush1.msra.mxu0 0.0
        %2366 = vmatprep.mubr.f32.mxu0 0.0
        %2367 = vmatmul.mubr.f32.gmra.mrb[0].mxu0 %v2300
        %v2368 = vpop.f32.mrb[0].mxu0
        %v2369 = vadd.f32 0.0, %v2368
        %v2370 = vpop.f32.mrb[0].mxu0
        %2371 = vdwg.mxu0
        %v2372 = vmul.f32 %v2369, %v1172
        %v2373 = vadd.f32 %v2298, %v2372
        %s2374 = scalar_lea.vmem [#allocation13], 16
        %v2375 = vld [vmem:[%s2374] sm:$0xf]
        %v2376 = vld [vmem:[%s2374 + $0x4] sm:$0xf]
        %s2377 = scalar_lea.vmem [#allocation14], 2
        %v2378 = vld [vmem:[%s2377] sm:$0x1]
        %v2380 = vlaneseq
        %v2381 = vshrl.u32 %v2380, 7
        %v2382 = vsub.s32 0, %v2381
        %v2383 = vrot.slane %v2378, %v2382
        %v2387 = vunpack.c.l.b16 %v2375
        %v2388 = vunpack.c.l.b16 %v2376
        %v2389 = vpack.c.b16 %v2388, %v2387
        %2391 = vmatprep.subr.bf16.mxu0 0
        %2392 = vmatpush1.bf16.msra.mxu0 %v2389
        %2393 = vmatprep.subr.bf16.mxu0 0
        %2394 = vmatpush1.bf16.msra.mxu0 0
        %2395 = vmatprep.subr.bf16.mxu0 0
        %2396 = vmatpush1.bf16.msra.mxu0 0
        %2397 = vmatprep.subr.bf16.mxu0 0
        %2398 = vmatpush1.bf16.msra.mxu0 0
        %2399 = vmatprep.subr.bf16.mxu0 0
        %2400 = vmatpush1.bf16.msra.mxu0 0
        %2401 = vmatprep.subr.bf16.mxu0 0
        %2402 = vmatpush1.bf16.msra.mxu0 0
        %2403 = vmatprep.subr.bf16.mxu0 0
        %2404 = vmatpush1.bf16.msra.mxu0 0
        %2405 = vmatprep.subr.bf16.mxu0 0
        %2406 = vmatpush1.bf16.msra.mxu0 0
        %2407 = vmatprep.subr.bf16.mxu0 0
        %2408 = vmatpush1.bf16.msra.mxu0 0
        %2409 = vmatprep.subr.bf16.mxu0 0
        %2410 = vmatpush1.bf16.msra.mxu0 0
        %2411 = vmatprep.subr.bf16.mxu0 0
        %2412 = vmatpush1.bf16.msra.mxu0 0
        %2413 = vmatprep.subr.bf16.mxu0 0
        %2414 = vmatpush1.bf16.msra.mxu0 0
        %2415 = vmatprep.subr.bf16.mxu0 0
        %2416 = vmatpush1.bf16.msra.mxu0 0
        %2417 = vmatprep.subr.bf16.mxu0 0
        %2418 = vmatpush1.bf16.msra.mxu0 0
        %2419 = vmatprep.subr.bf16.mxu0 0
        %2420 = vmatpush1.bf16.msra.mxu0 0
        %2421 = vmatprep.subr.bf16.mxu0 0
        %2422 = vmatpush1.bf16.msra.mxu0 0
        %2423 = vmatprep.mubr.bf16.mxu0 0
        %2424 = vmatmul.mubr.bf16.gmra.mrb[0].mxu0 %v1337
        %v2425 = vpop.f32.mrb[0].mxu0
        %v2426 = vadd.f32 %v2383, %v2425
        %v2427 = vpop.f32.mrb[0].mxu0
        %v2428 = vpop.f32.mrb[0].mxu0
        %v2429 = vadd.f32 %v2383, %v2428
        %v2430 = vpop.f32.mrb[0].mxu0
        %2431 = vdwg.mxu0
        %v2432 = vmul.f32 %v2426, %v1173
        %v2433 = vmul.f32 %v2429, %v1174
        %v2435 = vsel %vm1244, %v2426, 0
        %v2438 = vsel %vm1244, %v2429, 0
        %2440 = vmatprep.subr.mxu0 0.0
        %2441 = vmatpush1.msra.mxu0 %v1170
        %2442 = vmatprep.subr.mxu0 0.0
        %2443 = vmatpush1.msra.mxu0 0.0
        %2444 = vmatprep.subr.mxu0 0.0
        %2445 = vmatpush1.msra.mxu0 0.0
        %2446 = vmatprep.subr.mxu0 0.0
        %2447 = vmatpush1.msra.mxu0 0.0
        %2448 = vmatprep.subr.mxu0 0.0
        %2449 = vmatpush1.msra.mxu0 0.0
        %2450 = vmatprep.subr.mxu0 0.0
        %2451 = vmatpush1.msra.mxu0 0.0
        %2452 = vmatprep.subr.mxu0 0.0
        %2453 = vmatpush1.msra.mxu0 0.0
        %2454 = vmatprep.subr.mxu0 0.0
        %2455 = vmatpush1.msra.mxu0 0.0
        %2456 = vmatprep.subr.mxu0 0.0
        %2457 = vmatpush1.msra.mxu0 0.0
        %2458 = vmatprep.subr.mxu0 0.0
        %2459 = vmatpush1.msra.mxu0 0.0
        %2460 = vmatprep.subr.mxu0 0.0
        %2461 = vmatpush1.msra.mxu0 0.0
        %2462 = vmatprep.subr.mxu0 0.0
        %2463 = vmatpush1.msra.mxu0 0.0
        %2464 = vmatprep.subr.mxu0 0.0
        %2465 = vmatpush1.msra.mxu0 0.0
        %2466 = vmatprep.subr.mxu0 0.0
        %2467 = vmatpush1.msra.mxu0 0.0
        %2468 = vmatprep.subr.mxu0 0.0
        %2469 = vmatpush1.msra.mxu0 0.0
        %2470 = vmatprep.subr.mxu0 0.0
        %2471 = vmatpush1.msra.mxu0 0.0
        %2472 = vmatprep.subr.mxu0 0.0
        %2473 = vmatpush1.msra.mxu0 0.0
        %2474 = vmatprep.subr.mxu0 0.0
        %2475 = vmatpush1.msra.mxu0 0.0
        %2476 = vmatprep.subr.mxu0 0.0
        %2477 = vmatpush1.msra.mxu0 0.0
        %2478 = vmatprep.subr.mxu0 0.0
        %2479 = vmatpush1.msra.mxu0 0.0
        %2480 = vmatprep.subr.mxu0 0.0
        %2481 = vmatpush1.msra.mxu0 0.0
        %2482 = vmatprep.subr.mxu0 0.0
        %2483 = vmatpush1.msra.mxu0 0.0
        %2484 = vmatprep.subr.mxu0 0.0
        %2485 = vmatpush1.msra.mxu0 0.0
        %2486 = vmatprep.subr.mxu0 0.0
        %2487 = vmatpush1.msra.mxu0 0.0
        %2488 = vmatprep.subr.mxu0 0.0
        %2489 = vmatpush1.msra.mxu0 0.0
        %2490 = vmatprep.subr.mxu0 0.0
        %2491 = vmatpush1.msra.mxu0 0.0
        %2492 = vmatprep.subr.mxu0 0.0
        %2493 = vmatpush1.msra.mxu0 0.0
        %2494 = vmatprep.subr.mxu0 0.0
        %2495 = vmatpush1.msra.mxu0 0.0
        %2496 = vmatprep.subr.mxu0 0.0
        %2497 = vmatpush1.msra.mxu0 0.0
        %2498 = vmatprep.subr.mxu0 0.0
        %2499 = vmatpush1.msra.mxu0 0.0
        %2500 = vmatprep.subr.mxu0 0.0
        %2501 = vmatpush1.msra.mxu0 0.0
        %2502 = vmatprep.subr.mxu0 0.0
        %2503 = vmatpush1.msra.mxu0 0.0
        %2504 = vmatprep.mubr.f32.mxu0 0.0
        %2505 = vmatmul.mubr.f32.gmra.mrb[0].mxu0 %v2435
        %v2506 = vpop.f32.mrb[0].mxu0
        %v2507 = vadd.f32 0.0, %v2506
        %v2508 = vpop.f32.mrb[0].mxu0
        %2509 = vmatprep.mubr.f32.mxu0 0.0
        %2510 = vmatmul.mubr.f32.gmra.mrb[0].mxu0 %v2438
        %v2511 = vpop.f32.mrb[0].mxu0
        %v2512 = vadd.f32 0.0, %v2511
        %v2513 = vpop.f32.mrb[0].mxu0
        %2514 = vdwg.mxu0
        %v2515 = vmul.f32 %v2507, %v1175
        %v2516 = vmul.f32 %v2512, %v1176
        %v2517 = vadd.f32 %v2432, %v2515
        %v2518 = vadd.f32 %v2433, %v2516
        %s2519 = scalar_lea.vmem [#allocation16], 16
        %v2520 = vld [vmem:[%s2519] sm:$0xf]
        %v2521 = vld [vmem:[%s2519 + $0x4] sm:$0xf]
        %s2522 = scalar_lea.vmem [#allocation17], 2
        %v2523 = vld [vmem:[%s2522] sm:$0x1]
        %v2525 = vlaneseq
        %v2526 = vshrl.u32 %v2525, 7
        %v2527 = vsub.s32 0, %v2526
        %v2528 = vrot.slane %v2523, %v2527
        %v2532 = vunpack.c.l.b16 %v2520
        %v2533 = vunpack.c.l.b16 %v2521
        %v2534 = vpack.c.b16 %v2533, %v2532
        %2536 = vmatprep.subr.bf16.mxu0 0
        %2537 = vmatpush1.bf16.msra.mxu0 %v2534
        %2538 = vmatprep.subr.bf16.mxu0 0
        %2539 = vmatpush1.bf16.msra.mxu0 0
        %2540 = vmatprep.subr.bf16.mxu0 0
        %2541 = vmatpush1.bf16.msra.mxu0 0
        %2542 = vmatprep.subr.bf16.mxu0 0
        %2543 = vmatpush1.bf16.msra.mxu0 0
        %2544 = vmatprep.subr.bf16.mxu0 0
        %2545 = vmatpush1.bf16.msra.mxu0 0
        %2546 = vmatprep.subr.bf16.mxu0 0
        %2547 = vmatpush1.bf16.msra.mxu0 0
        %2548 = vmatprep.subr.bf16.mxu0 0
        %2549 = vmatpush1.bf16.msra.mxu0 0
        %2550 = vmatprep.subr.bf16.mxu0 0
        %2551 = vmatpush1.bf16.msra.mxu0 0
        %2552 = vmatprep.subr.bf16.mxu0 0
        %2553 = vmatpush1.bf16.msra.mxu0 0
        %2554 = vmatprep.subr.bf16.mxu0 0
        %2555 = vmatpush1.bf16.msra.mxu0 0
        %2556 = vmatprep.subr.bf16.mxu0 0
        %2557 = vmatpush1.bf16.msra.mxu0 0
        %2558 = vmatprep.subr.bf16.mxu0 0
        %2559 = vmatpush1.bf16.msra.mxu0 0
        %2560 = vmatprep.subr.bf16.mxu0 0
        %2561 = vmatpush1.bf16.msra.mxu0 0
        %2562 = vmatprep.subr.bf16.mxu0 0
        %2563 = vmatpush1.bf16.msra.mxu0 0
        %2564 = vmatprep.subr.bf16.mxu0 0
        %2565 = vmatpush1.bf16.msra.mxu0 0
        %2566 = vmatprep.subr.bf16.mxu0 0
        %2567 = vmatpush1.bf16.msra.mxu0 0
        %2568 = vmatprep.mubr.bf16.mxu0 0
        %2569 = vmatmul.mubr.bf16.gmra.mrb[0].mxu0 %v1337
        %v2570 = vpop.f32.mrb[0].mxu0
        %v2571 = vadd.f32 %v2528, %v2570
        %v2572 = vpop.f32.mrb[0].mxu0
        %v2573 = vpop.f32.mrb[0].mxu0
        %v2574 = vadd.f32 %v2528, %v2573
        %v2575 = vpop.f32.mrb[0].mxu0
        %2576 = vdwg.mxu0
        %v2577 = vpack.c.bf16 %v2373, %v2373
        %v2578 = vpack.c.bf16 %v2518, %v2517
        %v2580 = vsel %vm1244, %v2577, 0
        %v2583 = vsel %vm1244, %v2578, 0
        %2585 = vmatprep.subr.bf16.mxu0 0
        %2586 = vmatpush1.bf16.xpose.msra.mxu0 %v2583
        %2587 = vmatprep.subr.bf16.mxu0 0
        %2588 = vmatpush1.bf16.xpose.msra.mxu0 0
        %2589 = vmatprep.subr.bf16.mxu0 0
        %2590 = vmatpush1.bf16.xpose.msra.mxu0 0
        %2591 = vmatprep.subr.bf16.mxu0 0
        %2592 = vmatpush1.bf16.xpose.msra.mxu0 0
        %2593 = vmatprep.subr.bf16.mxu0 0
        %2594 = vmatpush1.bf16.xpose.msra.mxu0 0
        %2595 = vmatprep.subr.bf16.mxu0 0
        %2596 = vmatpush1.bf16.xpose.msra.mxu0 0
        %2597 = vmatprep.subr.bf16.mxu0 0
        %2598 = vmatpush1.bf16.xpose.msra.mxu0 0
        %2599 = vmatprep.subr.bf16.mxu0 0
        %2600 = vmatpush1.bf16.xpose.msra.mxu0 0
        %2601 = vmatprep.subr.bf16.mxu0 0
        %2602 = vmatpush1.bf16.xpose.msra.mxu0 0
        %2603 = vmatprep.subr.bf16.mxu0 0
        %2604 = vmatpush1.bf16.xpose.msra.mxu0 0
        %2605 = vmatprep.subr.bf16.mxu0 0
        %2606 = vmatpush1.bf16.xpose.msra.mxu0 0
        %2607 = vmatprep.subr.bf16.mxu0 0
        %2608 = vmatpush1.bf16.xpose.msra.mxu0 0
        %2609 = vmatprep.subr.bf16.mxu0 0
        %2610 = vmatpush1.bf16.xpose.msra.mxu0 0
        %2611 = vmatprep.subr.bf16.mxu0 0
        %2612 = vmatpush1.bf16.xpose.msra.mxu0 0
        %2613 = vmatprep.subr.bf16.mxu0 0
        %2614 = vmatpush1.bf16.xpose.msra.mxu0 0
        %2615 = vmatprep.subr.bf16.mxu0 0
        %2616 = vmatpush1.bf16.xpose.msra.mxu0 0
        %2617 = vmatprep.mubr.bf16.mxu0 0
        %2618 = vmatmul.mubr.bf16.gmra.mrb[0].mxu0 %v2580
        %v2619 = vpop.f32.mrb[0].mxu0
        %v2620 = vadd.f32 0.0, %v2619
        %v2621 = vpop.f32.mrb[0].mxu0
        %v2622 = vpop.f32.mrb[0].mxu0
        %v2623 = vpop.f32.mrb[0].mxu0
        %2624 = vdwg.mxu0
        %s2625 = scalar_lea.vmem [#allocation19], 2
        %v2626 = vld [vmem:[%s2625] sm:$0x1]
        %v2628 = vlaneseq
        %v2629 = vshrl.u32 %v2628, 7
        %v2630 = vsub.s32 0, %v2629
        %v2631 = vrot.slane %v2626, %v2630
        %v2633 = vmul.f32 %v2373, %v2631
        %v2634 = vsel %vm1244, %v2633, 0.0
        %2635 = vadd.xlane.f32.xlu0 %v2634
        %v2636 = vpop.xlane.xlu0 %2635
        %v2637 = vsel %vm1582, %v2620, -inf
        %2638 = vmax.xlane.f32.xlu0 %v2637
        %v2639 = vpop.xlane.xlu0 %2638
        %v2640 = vmax.f32 %v2639, %v2636
        %v2641 = vsub.f32 %v2620, %v2640
        %v2642 = vmul.f32 %v2641, 1.442695
        %v2643 = vpow.pop %v2642
        %v2644 = vsub.f32 %v2636, %v2640
        %v2645 = vmul.f32 %v2644, 1.442695
        %v2646 = vpow.pop %v2645
        %v2647 = vsel %vm1582, %v2643, 0.0
        %2648 = vadd.xlane.f32.xlu0 %v2647
        %v2649 = vpop.xlane.xlu0 %2648
        %v2650 = vadd.f32 %v2649, %v2646
        %v2651 = vrcp.pop %v2650
        %v2652 = vmul.f32 %v2643, %v2651
        %v2653 = vpack.c.bf16 %v2652, %v2652
        %v2654 = vpack.c.bf16 %v2574, %v2571
        %v2655 = vmul.f32 %v2646, %v2651
        %s2656 = scalar_lea.vmem [#allocation20], 2
        %v2657 = vld [vmem:[%s2656] sm:$0x1]
        %v2659 = vlaneseq
        %v2660 = vshrl.u32 %v2659, 7
        %v2661 = vsub.s32 0, %v2660
        %v2662 = vrot.slane %v2657, %v2661
        %v2664 = vmul.f32 %v2655, %v2662
        %v2666 = vsel %vm1582, %v2653, 0
        %v2669 = vsel %vm1613, %v2654, 0
        %2671 = vmatprep.subr.bf16.mxu0 0
        %2672 = vmatpush1.bf16.msra.mxu0 %v2669
        %2673 = vmatprep.subr.bf16.mxu0 0
        %2674 = vmatpush1.bf16.msra.mxu0 0
        %2675 = vmatprep.subr.bf16.mxu0 0
        %2676 = vmatpush1.bf16.msra.mxu0 0
        %2677 = vmatprep.subr.bf16.mxu0 0
        %2678 = vmatpush1.bf16.msra.mxu0 0
        %2679 = vmatprep.subr.bf16.mxu0 0
        %2680 = vmatpush1.bf16.msra.mxu0 0
        %2681 = vmatprep.subr.bf16.mxu0 0
        %2682 = vmatpush1.bf16.msra.mxu0 0
        %2683 = vmatprep.subr.bf16.mxu0 0
        %2684 = vmatpush1.bf16.msra.mxu0 0
        %2685 = vmatprep.subr.bf16.mxu0 0
        %2686 = vmatpush1.bf16.msra.mxu0 0
        %2687 = vmatprep.subr.bf16.mxu0 0
        %2688 = vmatpush1.bf16.msra.mxu0 0
        %2689 = vmatprep.subr.bf16.mxu0 0
        %2690 = vmatpush1.bf16.msra.mxu0 0
        %2691 = vmatprep.subr.bf16.mxu0 0
        %2692 = vmatpush1.bf16.msra.mxu0 0
        %2693 = vmatprep.subr.bf16.mxu0 0
        %2694 = vmatpush1.bf16.msra.mxu0 0
        %2695 = vmatprep.subr.bf16.mxu0 0
        %2696 = vmatpush1.bf16.msra.mxu0 0
        %2697 = vmatprep.subr.bf16.mxu0 0
        %2698 = vmatpush1.bf16.msra.mxu0 0
        %2699 = vmatprep.subr.bf16.mxu0 0
        %2700 = vmatpush1.bf16.msra.mxu0 0
        %2701 = vmatprep.subr.bf16.mxu0 0
        %2702 = vmatpush1.bf16.msra.mxu0 0
        %2703 = vmatprep.mubr.bf16.mxu0 0
        %2704 = vmatmul.mubr.bf16.gmra.mrb[0].mxu0 %v2666
        %v2705 = vpop.f32.mrb[0].mxu0
        %v2706 = vadd.f32 %v2664, %v2705
        %v2707 = vpop.f32.mrb[0].mxu0
        %v2708 = vpop.f32.mrb[0].mxu0
        %v2709 = vpop.f32.mrb[0].mxu0
        %2710 = vdwg.mxu0
        %v2711 = vpack.c.bf16 %v2706, %v2706
        %s2712 = scalar_lea.vmem [#allocation22], 8
        %v2713 = vld [vmem:[%s2712] sm:$0xf]
        %v2715 = vsel %vm1244, %v2711, 0
        %v2718 = vsel %vm2143, %v2713, 0
        %2720 = vmatprep.subr.bf16.mxu0 0
        %2721 = vmatpush1.bf16.msra.mxu0 %v2718
        %2722 = vmatprep.subr.bf16.mxu0 0
        %2723 = vmatpush1.bf16.msra.mxu0 0
        %2724 = vmatprep.subr.bf16.mxu0 0
        %2725 = vmatpush1.bf16.msra.mxu0 0
        %2726 = vmatprep.subr.bf16.mxu0 0
        %2727 = vmatpush1.bf16.msra.mxu0 0
        %2728 = vmatprep.subr.bf16.mxu0 0
        %2729 = vmatpush1.bf16.msra.mxu0 0
        %2730 = vmatprep.subr.bf16.mxu0 0
        %2731 = vmatpush1.bf16.msra.mxu0 0
        %2732 = vmatprep.subr.bf16.mxu0 0
        %2733 = vmatpush1.bf16.msra.mxu0 0
        %2734 = vmatprep.subr.bf16.mxu0 0
        %2735 = vmatpush1.bf16.msra.mxu0 0
        %2736 = vmatprep.subr.bf16.mxu0 0
        %2737 = vmatpush1.bf16.msra.mxu0 0
        %2738 = vmatprep.subr.bf16.mxu0 0
        %2739 = vmatpush1.bf16.msra.mxu0 0
        %2740 = vmatprep.subr.bf16.mxu0 0
        %2741 = vmatpush1.bf16.msra.mxu0 0
        %2742 = vmatprep.subr.bf16.mxu0 0
        %2743 = vmatpush1.bf16.msra.mxu0 0
        %2744 = vmatprep.subr.bf16.mxu0 0
        %2745 = vmatpush1.bf16.msra.mxu0 0
        %2746 = vmatprep.subr.bf16.mxu0 0
        %2747 = vmatpush1.bf16.msra.mxu0 0
        %2748 = vmatprep.subr.bf16.mxu0 0
        %2749 = vmatpush1.bf16.msra.mxu0 0
        %2750 = vmatprep.subr.bf16.mxu0 0
        %2751 = vmatpush1.bf16.msra.mxu0 0
        %2752 = vmatprep.mubr.bf16.mxu0 0
        %2753 = vmatmul.mubr.bf16.gmra.mrb[0].mxu0 %v2715
        %v2754 = vpop.f32.mrb[0].mxu0
        %v2755 = vadd.f32 0.0, %v2754
        %v2756 = vpop.f32.mrb[0].mxu0
        %v2757 = vpop.f32.mrb[0].mxu0
        %v2758 = vpop.f32.mrb[0].mxu0
        %2759 = vdwg.mxu0
        %v2760 = vadd.f32 %v2228, %v2755
        %s2761 = scalar_lea.vmem [#allocation10], 48
        %v2762 = vld [vmem:[%s2761] sm:$0xf]
        %v2763 = vld [vmem:[%s2761 + $0x4] sm:$0xf]
        %v2764 = vld [vmem:[%s2761 + $0x8] sm:$0xf]
        %v2765 = vld [vmem:[%s2761 + $0xc] sm:$0xf]
        %s2766 = scalar_lea.vmem [#allocation11], 3
        %v2767 = vld [vmem:[%s2766] sm:$0x1]
        %v2769 = vlaneseq
        %v2770 = vshrl.u32 %v2769, 7
        %v2771 = vsub.s32 0, %v2770
        %v2772 = vrot.slane %v2767, %v2771
        %v2778 = vunpack.c.l.b16 %v2762
        %v2779 = vunpack.c.l.b16 %v2763
        %v2780 = vunpack.c.l.b16 %v2764
        %v2781 = vunpack.c.l.b16 %v2765
        %v2782 = vpack.c.b16 %v2779, %v2778
        %v2783 = vpack.c.b16 %v2781, %v2780
        %2786 = vmatprep.subr.bf16.mxu0 0
        %2787 = vmatpush1.bf16.msra.mxu0 %v2782
        %2788 = vmatprep.subr.bf16.mxu0 0
        %2789 = vmatpush1.bf16.msra.mxu0 %v2783
        %2790 = vmatprep.subr.bf16.mxu0 0
        %2791 = vmatpush1.bf16.msra.mxu0 0
        %2792 = vmatprep.subr.bf16.mxu0 0
        %2793 = vmatpush1.bf16.msra.mxu0 0
        %2794 = vmatprep.subr.bf16.mxu0 0
        %2795 = vmatpush1.bf16.msra.mxu0 0
        %2796 = vmatprep.subr.bf16.mxu0 0
        %2797 = vmatpush1.bf16.msra.mxu0 0
        %2798 = vmatprep.subr.bf16.mxu0 0
        %2799 = vmatpush1.bf16.msra.mxu0 0
        %2800 = vmatprep.subr.bf16.mxu0 0
        %2801 = vmatpush1.bf16.msra.mxu0 0
        %2802 = vmatprep.subr.bf16.mxu0 0
        %2803 = vmatpush1.bf16.msra.mxu0 0
        %2804 = vmatprep.subr.bf16.mxu0 0
        %2805 = vmatpush1.bf16.msra.mxu0 0
        %2806 = vmatprep.subr.bf16.mxu0 0
        %2807 = vmatpush1.bf16.msra.mxu0 0
        %2808 = vmatprep.subr.bf16.mxu0 0
        %2809 = vmatpush1.bf16.msra.mxu0 0
        %2810 = vmatprep.subr.bf16.mxu0 0
        %2811 = vmatpush1.bf16.msra.mxu0 0
        %2812 = vmatprep.subr.bf16.mxu0 0
        %2813 = vmatpush1.bf16.msra.mxu0 0
        %2814 = vmatprep.subr.bf16.mxu0 0
        %2815 = vmatpush1.bf16.msra.mxu0 0
        %2816 = vmatprep.subr.bf16.mxu0 0
        %2817 = vmatpush1.bf16.msra.mxu0 0
        %2818 = vmatprep.mubr.bf16.mxu0 0
        %2819 = vmatmul.mubr.bf16.gmra.mrb[0].mxu0 %v1201
        %v2820 = vpop.f32.mrb[0].mxu0
        %v2821 = vadd.f32 %v2772, %v2820
        %v2822 = vpop.f32.mrb[0].mxu0
        %v2823 = vpop.f32.mrb[0].mxu0
        %v2824 = vpop.f32.mrb[0].mxu0
        %2825 = vdwg.mxu0
        %v2826 = vmul.f32 %v2821, %v1171
        %v2828 = vsel %vm1244, %v2821, 0
        %2830 = vmatprep.subr.mxu0 0.0
        %2831 = vmatpush1.msra.mxu0 %v1170
        %2832 = vmatprep.subr.mxu0 0.0
        %2833 = vmatpush1.msra.mxu0 0.0
        %2834 = vmatprep.subr.mxu0 0.0
        %2835 = vmatpush1.msra.mxu0 0.0
        %2836 = vmatprep.subr.mxu0 0.0
        %2837 = vmatpush1.msra.mxu0 0.0
        %2838 = vmatprep.subr.mxu0 0.0
        %2839 = vmatpush1.msra.mxu0 0.0
        %2840 = vmatprep.subr.mxu0 0.0
        %2841 = vmatpush1.msra.mxu0 0.0
        %2842 = vmatprep.subr.mxu0 0.0
        %2843 = vmatpush1.msra.mxu0 0.0
        %2844 = vmatprep.subr.mxu0 0.0
        %2845 = vmatpush1.msra.mxu0 0.0
        %2846 = vmatprep.subr.mxu0 0.0
        %2847 = vmatpush1.msra.mxu0 0.0
        %2848 = vmatprep.subr.mxu0 0.0
        %2849 = vmatpush1.msra.mxu0 0.0
        %2850 = vmatprep.subr.mxu0 0.0
        %2851 = vmatpush1.msra.mxu0 0.0
        %2852 = vmatprep.subr.mxu0 0.0
        %2853 = vmatpush1.msra.mxu0 0.0
        %2854 = vmatprep.subr.mxu0 0.0
        %2855 = vmatpush1.msra.mxu0 0.0
        %2856 = vmatprep.subr.mxu0 0.0
        %2857 = vmatpush1.msra.mxu0 0.0
        %2858 = vmatprep.subr.mxu0 0.0
        %2859 = vmatpush1.msra.mxu0 0.0
        %2860 = vmatprep.subr.mxu0 0.0
        %2861 = vmatpush1.msra.mxu0 0.0
        %2862 = vmatprep.subr.mxu0 0.0
        %2863 = vmatpush1.msra.mxu0 0.0
        %2864 = vmatprep.subr.mxu0 0.0
        %2865 = vmatpush1.msra.mxu0 0.0
        %2866 = vmatprep.subr.mxu0 0.0
        %2867 = vmatpush1.msra.mxu0 0.0
        %2868 = vmatprep.subr.mxu0 0.0
        %2869 = vmatpush1.msra.mxu0 0.0
        %2870 = vmatprep.subr.mxu0 0.0
        %2871 = vmatpush1.msra.mxu0 0.0
        %2872 = vmatprep.subr.mxu0 0.0
        %2873 = vmatpush1.msra.mxu0 0.0
        %2874 = vmatprep.subr.mxu0 0.0
        %2875 = vmatpush1.msra.mxu0 0.0
        %2876 = vmatprep.subr.mxu0 0.0
        %2877 = vmatpush1.msra.mxu0 0.0
        %2878 = vmatprep.subr.mxu0 0.0
        %2879 = vmatpush1.msra.mxu0 0.0
        %2880 = vmatprep.subr.mxu0 0.0
        %2881 = vmatpush1.msra.mxu0 0.0
        %2882 = vmatprep.subr.mxu0 0.0
        %2883 = vmatpush1.msra.mxu0 0.0
        %2884 = vmatprep.subr.mxu0 0.0
        %2885 = vmatpush1.msra.mxu0 0.0
        %2886 = vmatprep.subr.mxu0 0.0
        %2887 = vmatpush1.msra.mxu0 0.0
        %2888 = vmatprep.subr.mxu0 0.0
        %2889 = vmatpush1.msra.mxu0 0.0
        %2890 = vmatprep.subr.mxu0 0.0
        %2891 = vmatpush1.msra.mxu0 0.0
        %2892 = vmatprep.subr.mxu0 0.0
        %2893 = vmatpush1.msra.mxu0 0.0
        %2894 = vmatprep.mubr.f32.mxu0 0.0
        %2895 = vmatmul.mubr.f32.gmra.mrb[0].mxu0 %v2828
        %v2896 = vpop.f32.mrb[0].mxu0
        %v2897 = vadd.f32 0.0, %v2896
        %v2898 = vpop.f32.mrb[0].mxu0
        %2899 = vdwg.mxu0
        %v2900 = vmul.f32 %v2897, %v1172
        %v2901 = vadd.f32 %v2826, %v2900
        %s2902 = scalar_lea.vmem [#allocation13], 24
        %v2903 = vld [vmem:[%s2902] sm:$0xf]
        %v2904 = vld [vmem:[%s2902 + $0x4] sm:$0xf]
        %s2905 = scalar_lea.vmem [#allocation14], 3
        %v2906 = vld [vmem:[%s2905] sm:$0x1]
        %v2908 = vlaneseq
        %v2909 = vshrl.u32 %v2908, 7
        %v2910 = vsub.s32 0, %v2909
        %v2911 = vrot.slane %v2906, %v2910
        %v2915 = vunpack.c.l.b16 %v2903
        %v2916 = vunpack.c.l.b16 %v2904
        %v2917 = vpack.c.b16 %v2916, %v2915
        %2919 = vmatprep.subr.bf16.mxu0 0
        %2920 = vmatpush1.bf16.msra.mxu0 %v2917
        %2921 = vmatprep.subr.bf16.mxu0 0
        %2922 = vmatpush1.bf16.msra.mxu0 0
        %2923 = vmatprep.subr.bf16.mxu0 0
        %2924 = vmatpush1.bf16.msra.mxu0 0
        %2925 = vmatprep.subr.bf16.mxu0 0
        %2926 = vmatpush1.bf16.msra.mxu0 0
        %2927 = vmatprep.subr.bf16.mxu0 0
        %2928 = vmatpush1.bf16.msra.mxu0 0
        %2929 = vmatprep.subr.bf16.mxu0 0
        %2930 = vmatpush1.bf16.msra.mxu0 0
        %2931 = vmatprep.subr.bf16.mxu0 0
        %2932 = vmatpush1.bf16.msra.mxu0 0
        %2933 = vmatprep.subr.bf16.mxu0 0
        %2934 = vmatpush1.bf16.msra.mxu0 0
        %2935 = vmatprep.subr.bf16.mxu0 0
        %2936 = vmatpush1.bf16.msra.mxu0 0
        %2937 = vmatprep.subr.bf16.mxu0 0
        %2938 = vmatpush1.bf16.msra.mxu0 0
        %2939 = vmatprep.subr.bf16.mxu0 0
        %2940 = vmatpush1.bf16.msra.mxu0 0
        %2941 = vmatprep.subr.bf16.mxu0 0
        %2942 = vmatpush1.bf16.msra.mxu0 0
        %2943 = vmatprep.subr.bf16.mxu0 0
        %2944 = vmatpush1.bf16.msra.mxu0 0
        %2945 = vmatprep.subr.bf16.mxu0 0
        %2946 = vmatpush1.bf16.msra.mxu0 0
        %2947 = vmatprep.subr.bf16.mxu0 0
        %2948 = vmatpush1.bf16.msra.mxu0 0
        %2949 = vmatprep.subr.bf16.mxu0 0
        %2950 = vmatpush1.bf16.msra.mxu0 0
        %2951 = vmatprep.mubr.bf16.mxu0 0
        %2952 = vmatmul.mubr.bf16.gmra.mrb[0].mxu0 %v1337
        %v2953 = vpop.f32.mrb[0].mxu0
        %v2954 = vadd.f32 %v2911, %v2953
        %v2955 = vpop.f32.mrb[0].mxu0
        %v2956 = vpop.f32.mrb[0].mxu0
        %v2957 = vadd.f32 %v2911, %v2956
        %v2958 = vpop.f32.mrb[0].mxu0
        %2959 = vdwg.mxu0
        %v2960 = vmul.f32 %v2954, %v1173
        %v2961 = vmul.f32 %v2957, %v1174
        %v2963 = vsel %vm1244, %v2954, 0
        %v2966 = vsel %vm1244, %v2957, 0
        %2968 = vmatprep.subr.mxu0 0.0
        %2969 = vmatpush1.msra.mxu0 %v1170
        %2970 = vmatprep.subr.mxu0 0.0
        %2971 = vmatpush1.msra.mxu0 0.0
        %2972 = vmatprep.subr.mxu0 0.0
        %2973 = vmatpush1.msra.mxu0 0.0
        %2974 = vmatprep.subr.mxu0 0.0
        %2975 = vmatpush1.msra.mxu0 0.0
        %2976 = vmatprep.subr.mxu0 0.0
        %2977 = vmatpush1.msra.mxu0 0.0
        %2978 = vmatprep.subr.mxu0 0.0
        %2979 = vmatpush1.msra.mxu0 0.0
        %2980 = vmatprep.subr.mxu0 0.0
        %2981 = vmatpush1.msra.mxu0 0.0
        %2982 = vmatprep.subr.mxu0 0.0
        %2983 = vmatpush1.msra.mxu0 0.0
        %2984 = vmatprep.subr.mxu0 0.0
        %2985 = vmatpush1.msra.mxu0 0.0
        %2986 = vmatprep.subr.mxu0 0.0
        %2987 = vmatpush1.msra.mxu0 0.0
        %2988 = vmatprep.subr.mxu0 0.0
        %2989 = vmatpush1.msra.mxu0 0.0
        %2990 = vmatprep.subr.mxu0 0.0
        %2991 = vmatpush1.msra.mxu0 0.0
        %2992 = vmatprep.subr.mxu0 0.0
        %2993 = vmatpush1.msra.mxu0 0.0
        %2994 = vmatprep.subr.mxu0 0.0
        %2995 = vmatpush1.msra.mxu0 0.0
        %2996 = vmatprep.subr.mxu0 0.0
        %2997 = vmatpush1.msra.mxu0 0.0
        %2998 = vmatprep.subr.mxu0 0.0
        %2999 = vmatpush1.msra.mxu0 0.0
        %3000 = vmatprep.subr.mxu0 0.0
        %3001 = vmatpush1.msra.mxu0 0.0
        %3002 = vmatprep.subr.mxu0 0.0
        %3003 = vmatpush1.msra.mxu0 0.0
        %3004 = vmatprep.subr.mxu0 0.0
        %3005 = vmatpush1.msra.mxu0 0.0
        %3006 = vmatprep.subr.mxu0 0.0
        %3007 = vmatpush1.msra.mxu0 0.0
        %3008 = vmatprep.subr.mxu0 0.0
        %3009 = vmatpush1.msra.mxu0 0.0
        %3010 = vmatprep.subr.mxu0 0.0
        %3011 = vmatpush1.msra.mxu0 0.0
        %3012 = vmatprep.subr.mxu0 0.0
        %3013 = vmatpush1.msra.mxu0 0.0
        %3014 = vmatprep.subr.mxu0 0.0
        %3015 = vmatpush1.msra.mxu0 0.0
        %3016 = vmatprep.subr.mxu0 0.0
        %3017 = vmatpush1.msra.mxu0 0.0
        %3018 = vmatprep.subr.mxu0 0.0
        %3019 = vmatpush1.msra.mxu0 0.0
        %3020 = vmatprep.subr.mxu0 0.0
        %3021 = vmatpush1.msra.mxu0 0.0
        %3022 = vmatprep.subr.mxu0 0.0
        %3023 = vmatpush1.msra.mxu0 0.0
        %3024 = vmatprep.subr.mxu0 0.0
        %3025 = vmatpush1.msra.mxu0 0.0
        %3026 = vmatprep.subr.mxu0 0.0
        %3027 = vmatpush1.msra.mxu0 0.0
        %3028 = vmatprep.subr.mxu0 0.0
        %3029 = vmatpush1.msra.mxu0 0.0
        %3030 = vmatprep.subr.mxu0 0.0
        %3031 = vmatpush1.msra.mxu0 0.0
        %3032 = vmatprep.mubr.f32.mxu0 0.0
        %3033 = vmatmul.mubr.f32.gmra.mrb[0].mxu0 %v2963
        %v3034 = vpop.f32.mrb[0].mxu0
        %v3035 = vadd.f32 0.0, %v3034
        %v3036 = vpop.f32.mrb[0].mxu0
        %3037 = vmatprep.mubr.f32.mxu0 0.0
        %3038 = vmatmul.mubr.f32.gmra.mrb[0].mxu0 %v2966
        %v3039 = vpop.f32.mrb[0].mxu0
        %v3040 = vadd.f32 0.0, %v3039
        %v3041 = vpop.f32.mrb[0].mxu0
        %3042 = vdwg.mxu0
        %v3043 = vmul.f32 %v3035, %v1175
        %v3044 = vmul.f32 %v3040, %v1176
        %v3045 = vadd.f32 %v2960, %v3043
        %v3046 = vadd.f32 %v2961, %v3044
        %s3047 = scalar_lea.vmem [#allocation16], 24
        %v3048 = vld [vmem:[%s3047] sm:$0xf]
        %v3049 = vld [vmem:[%s3047 + $0x4] sm:$0xf]
        %s3050 = scalar_lea.vmem [#allocation17], 3
        %v3051 = vld [vmem:[%s3050] sm:$0x1]
        %v3053 = vlaneseq
        %v3054 = vshrl.u32 %v3053, 7
        %v3055 = vsub.s32 0, %v3054
        %v3056 = vrot.slane %v3051, %v3055
        %v3060 = vunpack.c.l.b16 %v3048
        %v3061 = vunpack.c.l.b16 %v3049
        %v3062 = vpack.c.b16 %v3061, %v3060
        %3064 = vmatprep.subr.bf16.mxu0 0
        %3065 = vmatpush1.bf16.msra.mxu0 %v3062
        %3066 = vmatprep.subr.bf16.mxu0 0
        %3067 = vmatpush1.bf16.msra.mxu0 0
        %3068 = vmatprep.subr.bf16.mxu0 0
        %3069 = vmatpush1.bf16.msra.mxu0 0
        %3070 = vmatprep.subr.bf16.mxu0 0
        %3071 = vmatpush1.bf16.msra.mxu0 0
        %3072 = vmatprep.subr.bf16.mxu0 0
        %3073 = vmatpush1.bf16.msra.mxu0 0
        %3074 = vmatprep.subr.bf16.mxu0 0
        %3075 = vmatpush1.bf16.msra.mxu0 0
        %3076 = vmatprep.subr.bf16.mxu0 0
        %3077 = vmatpush1.bf16.msra.mxu0 0
        %3078 = vmatprep.subr.bf16.mxu0 0
        %3079 = vmatpush1.bf16.msra.mxu0 0
        %3080 = vmatprep.subr.bf16.mxu0 0
        %3081 = vmatpush1.bf16.msra.mxu0 0
        %3082 = vmatprep.subr.bf16.mxu0 0
        %3083 = vmatpush1.bf16.msra.mxu0 0
        %3084 = vmatprep.subr.bf16.mxu0 0
        %3085 = vmatpush1.bf16.msra.mxu0 0
        %3086 = vmatprep.subr.bf16.mxu0 0
        %3087 = vmatpush1.bf16.msra.mxu0 0
        %3088 = vmatprep.subr.bf16.mxu0 0
        %3089 = vmatpush1.bf16.msra.mxu0 0
        %3090 = vmatprep.subr.bf16.mxu0 0
        %3091 = vmatpush1.bf16.msra.mxu0 0
        %3092 = vmatprep.subr.bf16.mxu0 0
        %3093 = vmatpush1.bf16.msra.mxu0 0
        %3094 = vmatprep.subr.bf16.mxu0 0
        %3095 = vmatpush1.bf16.msra.mxu0 0
        %3096 = vmatprep.mubr.bf16.mxu0 0
        %3097 = vmatmul.mubr.bf16.gmra.mrb[0].mxu0 %v1337
        %v3098 = vpop.f32.mrb[0].mxu0
        %v3099 = vadd.f32 %v3056, %v3098
        %v3100 = vpop.f32.mrb[0].mxu0
        %v3101 = vpop.f32.mrb[0].mxu0
        %v3102 = vadd.f32 %v3056, %v3101
        %v3103 = vpop.f32.mrb[0].mxu0
        %3104 = vdwg.mxu0
        %v3105 = vpack.c.bf16 %v2901, %v2901
        %v3106 = vpack.c.bf16 %v3046, %v3045
        %v3108 = vsel %vm1244, %v3105, 0
        %v3111 = vsel %vm1244, %v3106, 0
        %3113 = vmatprep.subr.bf16.mxu0 0
        %3114 = vmatpush1.bf16.xpose.msra.mxu0 %v3111
        %3115 = vmatprep.subr.bf16.mxu0 0
        %3116 = vmatpush1.bf16.xpose.msra.mxu0 0
        %3117 = vmatprep.subr.bf16.mxu0 0
        %3118 = vmatpush1.bf16.xpose.msra.mxu0 0
        %3119 = vmatprep.subr.bf16.mxu0 0
        %3120 = vmatpush1.bf16.xpose.msra.mxu0 0
        %3121 = vmatprep.subr.bf16.mxu0 0
        %3122 = vmatpush1.bf16.xpose.msra.mxu0 0
        %3123 = vmatprep.subr.bf16.mxu0 0
        %3124 = vmatpush1.bf16.xpose.msra.mxu0 0
        %3125 = vmatprep.subr.bf16.mxu0 0
        %3126 = vmatpush1.bf16.xpose.msra.mxu0 0
        %3127 = vmatprep.subr.bf16.mxu0 0
        %3128 = vmatpush1.bf16.xpose.msra.mxu0 0
        %3129 = vmatprep.subr.bf16.mxu0 0
        %3130 = vmatpush1.bf16.xpose.msra.mxu0 0
        %3131 = vmatprep.subr.bf16.mxu0 0
        %3132 = vmatpush1.bf16.xpose.msra.mxu0 0
        %3133 = vmatprep.subr.bf16.mxu0 0
        %3134 = vmatpush1.bf16.xpose.msra.mxu0 0
        %3135 = vmatprep.subr.bf16.mxu0 0
        %3136 = vmatpush1.bf16.xpose.msra.mxu0 0
        %3137 = vmatprep.subr.bf16.mxu0 0
        %3138 = vmatpush1.bf16.xpose.msra.mxu0 0
        %3139 = vmatprep.subr.bf16.mxu0 0
        %3140 = vmatpush1.bf16.xpose.msra.mxu0 0
        %3141 = vmatprep.subr.bf16.mxu0 0
        %3142 = vmatpush1.bf16.xpose.msra.mxu0 0
        %3143 = vmatprep.subr.bf16.mxu0 0
        %3144 = vmatpush1.bf16.xpose.msra.mxu0 0
        %3145 = vmatprep.mubr.bf16.mxu0 0
        %3146 = vmatmul.mubr.bf16.gmra.mrb[0].mxu0 %v3108
        %v3147 = vpop.f32.mrb[0].mxu0
        %v3148 = vadd.f32 0.0, %v3147
        %v3149 = vpop.f32.mrb[0].mxu0
        %v3150 = vpop.f32.mrb[0].mxu0
        %v3151 = vpop.f32.mrb[0].mxu0
        %3152 = vdwg.mxu0
        %s3153 = scalar_lea.vmem [#allocation19], 3
        %v3154 = vld [vmem:[%s3153] sm:$0x1]
        %v3156 = vlaneseq
        %v3157 = vshrl.u32 %v3156, 7
        %v3158 = vsub.s32 0, %v3157
        %v3159 = vrot.slane %v3154, %v3158
        %v3161 = vmul.f32 %v2901, %v3159
        %v3162 = vsel %vm1244, %v3161, 0.0
        %3163 = vadd.xlane.f32.xlu0 %v3162
        %v3164 = vpop.xlane.xlu0 %3163
        %v3165 = vsel %vm1582, %v3148, -inf
        %3166 = vmax.xlane.f32.xlu0 %v3165
        %v3167 = vpop.xlane.xlu0 %3166
        %v3168 = vmax.f32 %v3167, %v3164
        %v3169 = vsub.f32 %v3148, %v3168
        %v3170 = vmul.f32 %v3169, 1.442695
        %v3171 = vpow.pop %v3170
        %v3172 = vsub.f32 %v3164, %v3168
        %v3173 = vmul.f32 %v3172, 1.442695
        %v3174 = vpow.pop %v3173
        %v3175 = vsel %vm1582, %v3171, 0.0
        %3176 = vadd.xlane.f32.xlu0 %v3175
        %v3177 = vpop.xlane.xlu0 %3176
        %v3178 = vadd.f32 %v3177, %v3174
        %v3179 = vrcp.pop %v3178
        %v3180 = vmul.f32 %v3171, %v3179
        %v3181 = vpack.c.bf16 %v3180, %v3180
        %v3182 = vpack.c.bf16 %v3102, %v3099
        %v3183 = vmul.f32 %v3174, %v3179
        %s3184 = scalar_lea.vmem [#allocation20], 3
        %v3185 = vld [vmem:[%s3184] sm:$0x1]
        %v3187 = vlaneseq
        %v3188 = vshrl.u32 %v3187, 7
        %v3189 = vsub.s32 0, %v3188
        %v3190 = vrot.slane %v3185, %v3189
        %v3192 = vmul.f32 %v3183, %v3190
        %v3194 = vsel %vm1582, %v3181, 0
        %v3197 = vsel %vm1613, %v3182, 0
        %3199 = vmatprep.subr.bf16.mxu0 0
        %3200 = vmatpush1.bf16.msra.mxu0 %v3197
        %3201 = vmatprep.subr.bf16.mxu0 0
        %3202 = vmatpush1.bf16.msra.mxu0 0
        %3203 = vmatprep.subr.bf16.mxu0 0
        %3204 = vmatpush1.bf16.msra.mxu0 0
        %3205 = vmatprep.subr.bf16.mxu0 0
        %3206 = vmatpush1.bf16.msra.mxu0 0
        %3207 = vmatprep.subr.bf16.mxu0 0
        %3208 = vmatpush1.bf16.msra.mxu0 0
        %3209 = vmatprep.subr.bf16.mxu0 0
        %3210 = vmatpush1.bf16.msra.mxu0 0
        %3211 = vmatprep.subr.bf16.mxu0 0
        %3212 = vmatpush1.bf16.msra.mxu0 0
        %3213 = vmatprep.subr.bf16.mxu0 0
        %3214 = vmatpush1.bf16.msra.mxu0 0
        %3215 = vmatprep.subr.bf16.mxu0 0
        %3216 = vmatpush1.bf16.msra.mxu0 0
        %3217 = vmatprep.subr.bf16.mxu0 0
        %3218 = vmatpush1.bf16.msra.mxu0 0
        %3219 = vmatprep.subr.bf16.mxu0 0
        %3220 = vmatpush1.bf16.msra.mxu0 0
        %3221 = vmatprep.subr.bf16.mxu0 0
        %3222 = vmatpush1.bf16.msra.mxu0 0
        %3223 = vmatprep.subr.bf16.mxu0 0
        %3224 = vmatpush1.bf16.msra.mxu0 0
        %3225 = vmatprep.subr.bf16.mxu0 0
        %3226 = vmatpush1.bf16.msra.mxu0 0
        %3227 = vmatprep.subr.bf16.mxu0 0
        %3228 = vmatpush1.bf16.msra.mxu0 0
        %3229 = vmatprep.subr.bf16.mxu0 0
        %3230 = vmatpush1.bf16.msra.mxu0 0
        %3231 = vmatprep.mubr.bf16.mxu0 0
        %3232 = vmatmul.mubr.bf16.gmra.mrb[0].mxu0 %v3194
        %v3233 = vpop.f32.mrb[0].mxu0
        %v3234 = vadd.f32 %v3192, %v3233
        %v3235 = vpop.f32.mrb[0].mxu0
        %v3236 = vpop.f32.mrb[0].mxu0
        %v3237 = vpop.f32.mrb[0].mxu0
        %3238 = vdwg.mxu0
        %v3239 = vpack.c.bf16 %v3234, %v3234
        %s3240 = scalar_lea.vmem [#allocation22], 12
        %v3241 = vld [vmem:[%s3240] sm:$0xf]
        %v3243 = vsel %vm1244, %v3239, 0
        %v3246 = vsel %vm2143, %v3241, 0
        %3248 = vmatprep.subr.bf16.mxu0 0
        %3249 = vmatpush1.bf16.msra.mxu0 %v3246
        %3250 = vmatprep.subr.bf16.mxu0 0
        %3251 = vmatpush1.bf16.msra.mxu0 0
        %3252 = vmatprep.subr.bf16.mxu0 0
        %3253 = vmatpush1.bf16.msra.mxu0 0
        %3254 = vmatprep.subr.bf16.mxu0 0
        %3255 = vmatpush1.bf16.msra.mxu0 0
        %3256 = vmatprep.subr.bf16.mxu0 0
        %3257 = vmatpush1.bf16.msra.mxu0 0
        %3258 = vmatprep.subr.bf16.mxu0 0
        %3259 = vmatpush1.bf16.msra.mxu0 0
        %3260 = vmatprep.subr.bf16.mxu0 0
        %3261 = vmatpush1.bf16.msra.mxu0 0
        %3262 = vmatprep.subr.bf16.mxu0 0
        %3263 = vmatpush1.bf16.msra.mxu0 0
        %3264 = vmatprep.subr.bf16.mxu0 0
        %3265 = vmatpush1.bf16.msra.mxu0 0
        %3266 = vmatprep.subr.bf16.mxu0 0
        %3267 = vmatpush1.bf16.msra.mxu0 0
        %3268 = vmatprep.subr.bf16.mxu0 0
        %3269 = vmatpush1.bf16.msra.mxu0 0
        %3270 = vmatprep.subr.bf16.mxu0 0
        %3271 = vmatpush1.bf16.msra.mxu0 0
        %3272 = vmatprep.subr.bf16.mxu0 0
        %3273 = vmatpush1.bf16.msra.mxu0 0
        %3274 = vmatprep.subr.bf16.mxu0 0
        %3275 = vmatpush1.bf16.msra.mxu0 0
        %3276 = vmatprep.subr.bf16.mxu0 0
        %3277 = vmatpush1.bf16.msra.mxu0 0
        %3278 = vmatprep.subr.bf16.mxu0 0
        %3279 = vmatpush1.bf16.msra.mxu0 0
        %3280 = vmatprep.mubr.bf16.mxu0 0
        %3281 = vmatmul.mubr.bf16.gmra.mrb[0].mxu0 %v3243
        %v3282 = vpop.f32.mrb[0].mxu0
        %v3283 = vadd.f32 0.0, %v3282
        %v3284 = vpop.f32.mrb[0].mxu0
        %v3285 = vpop.f32.mrb[0].mxu0
        %v3286 = vpop.f32.mrb[0].mxu0
        %3287 = vdwg.mxu0
        %v3288 = vadd.f32 %v2760, %v3283
        %v3289 = vadd.f32 %v1134, %v3288
        %v3290 = vld [vmem:[#allocation23] sm:$0x1]
        %v3292 = vlaneseq
        %v3293 = vshrl.u32 %v3292, 7
        %v3294 = vsub.s32 0, %v3293
        %v3295 = vrot.slane %v3290, %v3294
        %v3297 = vadd.f32 %v3289, %v3295
        %v3298 = vsel %vm1137, %v3297, 0.0
        %3299 = vadd.xlane.f32.xlu0 %v3298
        %v3300 = vpop.xlane.xlu0 %3299
        %v3301 = vmul.f32 %v3300, %v1141
        %v3302 = vsub.f32 %v3297, %v3301
        %v3303 = vmul.f32 %v3302, %v3302
        %v3304 = vsel %vm1137, %v3303, 0.0
        %3305 = vadd.xlane.f32.xlu0 %v3304
        %v3306 = vpop.xlane.xlu0 %3305
        %v3307 = vmul.f32 %v3306, %v1141
        %v3308 = vadd.f32 %v3307, 1e-12
        %v3309 = vrsqrt.pop %v3308
        %v3310 = vmul.f32 %v3302, %v3309
        %v3311 = vld [vmem:[#allocation32] sm:$0x1]
        %v3313 = vlaneseq
        %v3314 = vshrl.u32 %v3313, 7
        %v3315 = vsub.s32 0, %v3314
        %v3316 = vrot.slane %v3311, %v3315
        %v3318 = vmul.f32 %v3310, %v3316
        %v3319 = vld [vmem:[#allocation34] sm:$0x1]
        %v3321 = vlaneseq
        %v3322 = vshrl.u32 %v3321, 7
        %v3323 = vsub.s32 0, %v3322
        %v3324 = vrot.slane %v3319, %v3323
        %v3326 = vadd.f32 %v3318, %v3324
        %v3327 = vpack.c.bf16 %v3326, %v3326
        %v3328 = vld [vmem:[#allocation35] sm:$0xf]
        %v3329 = vld [vmem:[#allocation35 + $0x4] sm:$0xf]
        %v3330 = vld [vmem:[#allocation35 + $0x8] sm:$0xf]
        %v3331 = vld [vmem:[#allocation35 + $0xc] sm:$0xf]
        %v3332 = vld [vmem:[#allocation37] sm:$0x1]
        %v3334 = vlaneseq
        %v3335 = vshrl.u32 %v3334, 7
        %v3336 = vsub.s32 0, %v3335
        %v3337 = vrot.slane %v3332, %v3336
        %v3343 = vunpack.c.l.b16 %v3328
        %v3344 = vunpack.c.l.b16 %v3329
        %v3345 = vunpack.c.l.b16 %v3330
        %v3346 = vunpack.c.l.b16 %v3331
        %v3347 = vpack.c.b16 %v3344, %v3343
        %v3348 = vpack.c.b16 %v3346, %v3345
        %v3352 = vsel %vm1137, %v3327, 0
        %3354 = vmatprep.subr.bf16.mxu0 0
        %3355 = vmatpush1.bf16.msra.mxu0 %v3347
        %3356 = vmatprep.subr.bf16.mxu0 0
        %3357 = vmatpush1.bf16.msra.mxu0 %v3348
        %3358 = vmatprep.subr.bf16.mxu0 0
        %3359 = vmatpush1.bf16.msra.mxu0 0
        %3360 = vmatprep.subr.bf16.mxu0 0
        %3361 = vmatpush1.bf16.msra.mxu0 0
        %3362 = vmatprep.subr.bf16.mxu0 0
        %3363 = vmatpush1.bf16.msra.mxu0 0
        %3364 = vmatprep.subr.bf16.mxu0 0
        %3365 = vmatpush1.bf16.msra.mxu0 0
        %3366 = vmatprep.subr.bf16.mxu0 0
        %3367 = vmatpush1.bf16.msra.mxu0 0
        %3368 = vmatprep.subr.bf16.mxu0 0
        %3369 = vmatpush1.bf16.msra.mxu0 0
        %3370 = vmatprep.subr.bf16.mxu0 0
        %3371 = vmatpush1.bf16.msra.mxu0 0
        %3372 = vmatprep.subr.bf16.mxu0 0
        %3373 = vmatpush1.bf16.msra.mxu0 0
        %3374 = vmatprep.subr.bf16.mxu0 0
        %3375 = vmatpush1.bf16.msra.mxu0 0
        %3376 = vmatprep.subr.bf16.mxu0 0
        %3377 = vmatpush1.bf16.msra.mxu0 0
        %3378 = vmatprep.subr.bf16.mxu0 0
        %3379 = vmatpush1.bf16.msra.mxu0 0
        %3380 = vmatprep.subr.bf16.mxu0 0
        %3381 = vmatpush1.bf16.msra.mxu0 0
        %3382 = vmatprep.subr.bf16.mxu0 0
        %3383 = vmatpush1.bf16.msra.mxu0 0
        %3384 = vmatprep.subr.bf16.mxu0 0
        %3385 = vmatpush1.bf16.msra.mxu0 0
        %3386 = vmatprep.mubr.bf16.mxu0 0
        %3387 = vmatmul.mubr.bf16.gmra.mrb[0].mxu0 %v3352
        %v3388 = vpop.f32.mrb[0].mxu0
        %v3389 = vadd.f32 %v3337, %v3388
        %v3390 = vpop.f32.mrb[0].mxu0
        %v3391 = vpop.f32.mrb[0].mxu0
        %v3392 = vpop.f32.mrb[0].mxu0
        %3393 = vdwg.mxu0
        %v3394 = vmul.f32 %v3389, 0.5
        %v3395 = vmul.f32 %v3389, 0.70710677
        %v3396 = verf.f32.pop %v3395
        %v3397 = vadd.f32 %v3396, 1.0
        %v3398 = vmul.f32 %v3394, %v3397
        %v3399 = vpack.c.bf16 %v3398, %v3398
        %v3400 = vld [vmem:[#allocation38] sm:$0xf]
        %v3401 = vld [vmem:[#allocation38 + $0x4] sm:$0xf]
        %v3404 = vunpack.c.l.b16 %v3400
        %v3405 = vunpack.c.l.b16 %v3401
        %v3406 = vpack.c.b16 %v3405, %v3404
        %v3409 = vsel %vm1335, %v3399, 0
        %3411 = vmatprep.subr.bf16.mxu0 0
        %3412 = vmatpush1.bf16.msra.mxu0 %v3406
        %3413 = vmatprep.subr.bf16.mxu0 0
        %3414 = vmatpush1.bf16.msra.mxu0 0
        %3415 = vmatprep.subr.bf16.mxu0 0
        %3416 = vmatpush1.bf16.msra.mxu0 0
        %3417 = vmatprep.subr.bf16.mxu0 0
        %3418 = vmatpush1.bf16.msra.mxu0 0
        %3419 = vmatprep.subr.bf16.mxu0 0
        %3420 = vmatpush1.bf16.msra.mxu0 0
        %3421 = vmatprep.subr.bf16.mxu0 0
        %3422 = vmatpush1.bf16.msra.mxu0 0
        %3423 = vmatprep.subr.bf16.mxu0 0
        %3424 = vmatpush1.bf16.msra.mxu0 0
        %3425 = vmatprep.subr.bf16.mxu0 0
        %3426 = vmatpush1.bf16.msra.mxu0 0
        %3427 = vmatprep.subr.bf16.mxu0 0
        %3428 = vmatpush1.bf16.msra.mxu0 0
        %3429 = vmatprep.subr.bf16.mxu0 0
        %3430 = vmatpush1.bf16.msra.mxu0 0
        %3431 = vmatprep.subr.bf16.mxu0 0
        %3432 = vmatpush1.bf16.msra.mxu0 0
        %3433 = vmatprep.subr.bf16.mxu0 0
        %3434 = vmatpush1.bf16.msra.mxu0 0
        %3435 = vmatprep.subr.bf16.mxu0 0
        %3436 = vmatpush1.bf16.msra.mxu0 0
        %3437 = vmatprep.subr.bf16.mxu0 0
        %3438 = vmatpush1.bf16.msra.mxu0 0
        %3439 = vmatprep.subr.bf16.mxu0 0
        %3440 = vmatpush1.bf16.msra.mxu0 0
        %3441 = vmatprep.subr.bf16.mxu0 0
        %3442 = vmatpush1.bf16.msra.mxu0 0
        %3443 = vmatprep.mubr.bf16.mxu0 0
        %3444 = vmatmul.mubr.bf16.gmra.mrb[0].mxu0 %v3409
        %v3445 = vpop.f32.mrb[0].mxu0
        %v3446 = vadd.f32 0.0, %v3445
        %v3447 = vpop.f32.mrb[0].mxu0
        %v3448 = vpop.f32.mrb[0].mxu0
        %v3449 = vpop.f32.mrb[0].mxu0
        %3450 = vdwg.mxu0
        %v3451 = vadd.f32 %v3297, %v3446
        %v3452 = vld [vmem:[#allocation40] sm:$0x1]
        %v3454 = vlaneseq
        %v3455 = vshrl.u32 %v3454, 7
        %v3456 = vsub.s32 0, %v3455
        %v3457 = vrot.slane %v3452, %v3456
        %v3459 = vadd.f32 %v3451, %v3457
        %v3460 = vadd.f32 %v1134, %v3459
        %3461 = vst.msk [vmem:[%s1132] sm:$0xff] %vm1137, %v3460
        %s3462 = sand.u32 %s599, 1
        %s3463 = scalar_lea.sflag [#allocation4], %s3462
        %s3464 = sand.u32 %s599, 1
        %s3465 = smul.addr %s3464, 8
        %s3466 = scalar_lea.vmem [#allocation41], %s3465
        // Predicated region
        $region221: #{transformer_layer_forward.3} parent=119 // pred_check
          %p3467 = pneg %p609
        $region222: #{transformer_layer_forward.3} parent=119 // pred_check_branch
          %3469 = sbr.rel (%p3467) target = $region224
        $region223: #{transformer_layer_forward.3} parent=119 // pred_region
          %s3471 = ssub.s32 128, 128
          %3472 = vsyncadd %s3463, %s3471
          %s3473 = smul.addr %s56, 128
          %s3474 = scalar_lea.hbm %s25, %s3473
          %s3476 = sshll.u32 %s3466, 4
          %s3477 = int_to_ptr.vmem [resolvable:$true] %s3476
          %3479 = dma.vmem_to_hbm [thread:$0]  %s3477, 128, %s3474, %s3463
        $region224: #{transformer_layer_forward.3} parent=119 // pred_fallthru
          _
      $region120: #{transformer_layer_forward.3} parent=5 // pred_fallthru
        _
      %p3480 = scmp.le.s32.totalorder 2, %s51
      // Predicated region
      $region225: #{transformer_layer_forward.3} parent=5 // pred_check
        %p3481 = pneg %p3480
      $region226: #{transformer_layer_forward.3} parent=5 // pred_check_branch
        %3483 = sbr.rel (%p3481) target = $region228
      $region227: #{transformer_layer_forward.3} parent=5 // pred_region
        %s3484 = ssub.s32 %s51, 2
        // Predicated region
        $region229: #{transformer_layer_forward.3} parent=227 // pred_check
          %p3485 = pneg %p615
        $region230: #{transformer_layer_forward.3} parent=227 // pred_check_branch
          %3487 = sbr.rel (%p3485) target = $region232
        $region231: #{transformer_layer_forward.3} parent=227 // pred_region
          %s3488 = sand.u32 %s600, 1
          %s3489 = scalar_lea.sflag [#allocation4], %s3488
          %s3490 = sand.u32 %s600, 1
          %s3491 = smul.addr %s3490, 8
          %s3492 = scalar_lea.vmem [#allocation41], %s3491
          %3493 = dma.done %s3489, 128
        $region232: #{transformer_layer_forward.3} parent=227 // pred_fallthru
          _
      $region228: #{transformer_layer_forward.3} parent=5 // pred_fallthru
        _
    $region6: #{transformer_layer_forward.3} parent=1 // loop_footer
      %s55 = sadd.s32 1, %s51
    $region7: #{transformer_layer_forward.3} parent=1 // loop_footer_branch
      %50 = sbr.rel target = $region3
    $region8: #{transformer_layer_forward.3} parent=1 // loop_exit
      _
    %3494 = vsyncpa [#allocation3], 1
    %s3495 = scalar_lea.sflag [#allocation3], 1
    %3496 = vsyncpa %s3495, 1
    %3497 = vsyncpa [#allocation6], 1
    %s3498 = scalar_lea.sflag [#allocation6], 1
    %3499 = vsyncpa %s3498, 1
    %3500 = vsyncpa [#allocation9], 1
    %3501 = vsyncpa [#allocation12], 1
    %3502 = vsyncpa [#allocation15], 1
    %3503 = vsyncpa [#allocation18], 1
    %3504 = vsyncpa [#allocation21], 1
    %3505 = vsyncpa [#allocation24], 1
    %3506 = vsyncpa [#allocation27], 1
    %3507 = vsyncpa [#allocation30], 1
    %3508 = vsyncpa [#allocation33], 1
    %3509 = vsyncpa [#allocation36], 1
    %3510 = vsyncpa [#allocation39], 1
    %3511 = vsyncpa [#allocation4], 1
    %s3512 = scalar_lea.sflag [#allocation4], 1
    %3513 = vsyncpa %s3512, 1

</llo_original>
